<compile_context>
chip_gen: v6e
topology: v6e:2x2x1
jax: 0.10.0
libtpu: 0.0.40
codegen_flags: <defaults>
</compile_context>

<pallas_src>
import functools

import jax
import jax.numpy as jnp
from jax.experimental import pallas as pl
from jax.experimental.pallas import tpu as pltpu


# ------------------------------ configuration ------------------------------ #

CFG = dict(
    vocab_size=100,
    embedding_size=32,          # == hidden_size (see NOTE above)
    hidden_size=32,
    intra_bottleneck_size=16,   # MobileBERT "true_hidden_size"
    num_attention_heads=4,
    intermediate_size=64,
    num_hidden_layers=2,
    num_feedforward_networks=4,  # 3 extra FFN blocks + main intermediate/output
    max_position_embeddings=64,
    type_vocab_size=2,
    num_classes=5,
    classifier_num_layers=2,
)


# --------------------------- fused Pallas kernel ---------------------------- #

def _mobilebert_kernel(tri_ref, postype_ref,
                       emb_w_ref, emb_b_ref, emb_ln_w_ref, emb_ln_b_ref,
                       hproj_w_ref, hproj_b_ref, hproj_ln_w_ref, hproj_ln_b_ref,
                       qk_w_ref, qk_b_ref,
                       attn_out_w_ref, attn_out_b_ref, attn_ln_w_ref, attn_ln_b_ref,
                       ffn_inter_w_ref, ffn_inter_b_ref,
                       ffn_out_w_ref, ffn_out_b_ref, ffn_ln_w_ref, ffn_ln_b_ref,
                       out_bot_w_ref, out_bot_b_ref, out_bot_ln_w_ref, out_bot_ln_b_ref,
                       pool_w_ref, pool_b_ref,
                       *rest,
                       num_layers, num_ffn, num_heads, head_dim, ib, scale,
                       num_cls_layers):
    """One grid step = one batch element. All activations stay in VMEM."""
    cls_refs = rest[:-1]
    o_ref = rest[-1]

    # --- embeddings: trigram linear + pos/type add + NoNorm ---
    x = jnp.dot(tri_ref[...], emb_w_ref[...], preferred_element_type=jnp.float32)
    x = x + emb_b_ref[...] + postype_ref[...]
    h = x * emb_ln_w_ref[...] + emb_ln_b_ref[...]                    # (S, H)

    # --- encoder layers (static unroll) ---
    for l in range(num_layers):
        # fused bottleneck_in | bottleneck_attn | V projection  (H -> 3*IB)
        hp = jnp.dot(h, hproj_w_ref[l],
                     preferred_element_type=jnp.float32) + hproj_b_ref[l]
        hp = hp * hproj_ln_w_ref[l] + hproj_ln_b_ref[l]              # (S, 3*IB)
        layer_input = hp[:, 0:ib]
        shared = hp[:, ib:2 * ib]
        v = hp[:, 2 * ib:3 * ib]

        # fused Q | K projection of the shared bottleneck  (IB -> 2*IB)
        qk = jnp.dot(shared, qk_w_ref[l],
                     preferred_element_type=jnp.float32) + qk_b_ref[l]
        q = qk[:, 0:ib]
        k = qk[:, ib:2 * ib]

        # multi-head attention; head-concat folded into the output projection
        w_ao = attn_out_w_ref[l]                                     # (IB, IB)
        ctx_proj = jnp.zeros_like(layer_input)                       # (S, IB)
        for hd in range(num_heads):
            lo = hd * head_dim
            hi = lo + head_dim
            qh = q[:, lo:hi]
            kh = k[:, lo:hi]
            vh = v[:, lo:hi]
            s = jnp.dot(qh, kh.T, preferred_element_type=jnp.float32) * scale
            s = s - jnp.max(s, axis=-1, keepdims=True)
            p = jnp.exp(s)
            p = p * pl.reciprocal(jnp.sum(p, axis=-1, keepdims=True), approx=True)
            ctx_h = jnp.dot(p, vh, preferred_element_type=jnp.float32)
            ctx_proj = ctx_proj + jnp.dot(ctx_h, w_ao[lo:hi, :],
                                          preferred_element_type=jnp.float32)

        attn_out = ((ctx_proj + attn_out_b_ref[l] + layer_input)
                    * attn_ln_w_ref[l] + attn_ln_b_ref[l])           # (S, IB)

        # stacked FFN blocks (3 extras + the main intermediate/output block)
        for f in range(num_ffn):
            inter = jnp.dot(attn_out, ffn_inter_w_ref[l, f],
                            preferred_element_type=jnp.float32) + ffn_inter_b_ref[l, f]
            inter = jnp.maximum(inter, 0.0)
            out = jnp.dot(inter, ffn_out_w_ref[l, f],
                          preferred_element_type=jnp.float32) + ffn_out_b_ref[l, f]
            attn_out = (out + attn_out) * ffn_ln_w_ref[l, f] + ffn_ln_b_ref[l, f]

        # output bottleneck back to hidden_size + residual with layer input h
        ob = jnp.dot(attn_out, out_bot_w_ref[l],
                     preferred_element_type=jnp.float32) + out_bot_b_ref[l]
        h = (ob + h) * out_bot_ln_w_ref[l] + out_bot_ln_b_ref[l]     # (S, H)

    # --- pooler: tanh(dense(first token)) ---
    first = h[0:1, :]                                                # (1, H)
    x = jnp.tanh(jnp.dot(first, pool_w_ref[...],
                         preferred_element_type=jnp.float32) + pool_b_ref[...])

    # --- classifier MLP (Linear+ReLU chain, final Linear) ---
    for i in range(num_cls_layers):
        w_ref = cls_refs[2 * i]
        b_ref = cls_refs[2 * i + 1]
        x = jnp.dot(x, w_ref[...], preferred_element_type=jnp.float32) + b_ref[...]
        if i < num_cls_layers - 1:
            x = jnp.maximum(x, 0.0)

    o_ref[...] = x.astype(o_ref.dtype)                               # (1, C)


# ------------------------------ parameters -------------------------------- #

def _dense(key, din, dout):
    kw, kb = jax.random.split(key)
    return dict(w=0.02 * jax.random.normal(kw, (din, dout), jnp.float32),
                b=0.01 * jax.random.normal(kb, (dout,), jnp.float32))


def _nonorm(key, d):
    kw, kb = jax.random.split(key)
    return dict(w=1.0 + 0.01 * jax.random.normal(kw, (d,), jnp.float32),
                b=0.01 * jax.random.normal(kb, (d,), jnp.float32))


def init_params(key, cfg):
    H, E, IB, I = (cfg["hidden_size"], cfg["embedding_size"],
                   cfg["intra_bottleneck_size"], cfg["intermediate_size"])
    keys = iter(jax.random.split(key, 256))
    p = {}
    word = 0.02 * jax.random.normal(next(keys), (cfg["vocab_size"], E), jnp.float32)
    p["word_emb"] = word.at[0].set(0.0)  # padding_idx=0
    p["pos_emb"] = 0.02 * jax.random.normal(
        next(keys), (cfg["max_position_embeddings"], H), jnp.float32)
    p["type_emb"] = 0.02 * jax.random.normal(
        next(keys), (cfg["type_vocab_size"], H), jnp.float32)
    p["emb_tr"] = _dense(next(keys), 3 * E, H)
    p["emb_ln"] = _nonorm(next(keys), H)

    layers = []
    for _ in range(cfg["num_hidden_layers"]):
        lp = dict(
            bot_in=_dense(next(keys), H, IB), bot_in_ln=_nonorm(next(keys), IB),
            bot_attn=_dense(next(keys), H, IB), bot_attn_ln=_nonorm(next(keys), IB),
            q=_dense(next(keys), IB, IB), k=_dense(next(keys), IB, IB),
            v=_dense(next(keys), H, IB),
            attn_out=_dense(next(keys), IB, IB), attn_out_ln=_nonorm(next(keys), IB),
            ffn=[dict(inter=_dense(next(keys), IB, I),
                      out=_dense(next(keys), I, IB),
                      ln=_nonorm(next(keys), IB))
                 for _ in range(cfg["num_feedforward_networks"] - 1)],
            inter=_dense(next(keys), IB, I),
            out=_dense(next(keys), I, IB), out_ln=_nonorm(next(keys), IB),
            out_bot=_dense(next(keys), IB, H), out_bot_ln=_nonorm(next(keys), H),
        )
        layers.append(lp)
    p["layers"] = layers

    p["pooler"] = _dense(next(keys), H, H)

    cls = [_dense(next(keys), E, H)]
    for _ in range(cfg["classifier_num_layers"] - 1):
        cls.append(_dense(next(keys), H, H))
    cls.append(_dense(next(keys), H, cfg["num_classes"]))
    p["classifier"] = cls
    return p


def pack_params(params, cfg):
    """Concatenate / stack per-layer weights for the single fused kernel."""
    IB = cfg["intra_bottleneck_size"]
    ones = jnp.ones((IB,), jnp.float32)
    zeros = jnp.zeros((IB,), jnp.float32)

    def stack(fn):
        return jnp.stack([fn(lp) for lp in params["layers"]])

    def ffn_blocks(lp):
        # 3 extra FFN blocks + the main intermediate/output (same structure)
        return list(lp["ffn"]) + [dict(inter=lp["inter"], out=lp["out"], ln=lp["out_ln"])]

    return dict(
        emb_w=params["emb_tr"]["w"],
        emb_b=params["emb_tr"]["b"][None, :],
        emb_ln_w=params["emb_ln"]["w"][None, :],
        emb_ln_b=params["emb_ln"]["b"][None, :],
        # bottleneck_in | bottleneck_attn | V share input h -> one matmul
        hproj_w=stack(lambda lp: jnp.concatenate(
            [lp["bot_in"]["w"], lp["bot_attn"]["w"], lp["v"]["w"]], axis=1)),
        hproj_b=stack(lambda lp: jnp.concatenate(
            [lp["bot_in"]["b"], lp["bot_attn"]["b"], lp["v"]["b"]])[None, :]),
        hproj_ln_w=stack(lambda lp: jnp.concatenate(
            [lp["bot_in_ln"]["w"], lp["bot_attn_ln"]["w"], ones])[None, :]),
        hproj_ln_b=stack(lambda lp: jnp.concatenate(
            [lp["bot_in_ln"]["b"], lp["bot_attn_ln"]["b"], zeros])[None, :]),
        # Q | K share the shared-bottleneck input -> one matmul
        qk_w=stack(lambda lp: jnp.concatenate([lp["q"]["w"], lp["k"]["w"]], axis=1)),
        qk_b=stack(lambda lp: jnp.concatenate([lp["q"]["b"], lp["k"]["b"]])[None, :]),
        attn_out_w=stack(lambda lp: lp["attn_out"]["w"]),
        attn_out_b=stack(lambda lp: lp["attn_out"]["b"][None, :]),
        attn_ln_w=stack(lambda lp: lp["attn_out_ln"]["w"][None, :]),
        attn_ln_b=stack(lambda lp: lp["attn_out_ln"]["b"][None, :]),
        ffn_inter_w=stack(lambda lp: jnp.stack([b["inter"]["w"] for b in ffn_blocks(lp)])),
        ffn_inter_b=stack(lambda lp: jnp.stack([b["inter"]["b"][None, :] for b in ffn_blocks(lp)])),
        ffn_out_w=stack(lambda lp: jnp.stack([b["out"]["w"] for b in ffn_blocks(lp)])),
        ffn_out_b=stack(lambda lp: jnp.stack([b["out"]["b"][None, :] for b in ffn_blocks(lp)])),
        ffn_ln_w=stack(lambda lp: jnp.stack([b["ln"]["w"][None, :] for b in ffn_blocks(lp)])),
        ffn_ln_b=stack(lambda lp: jnp.stack([b["ln"]["b"][None, :] for b in ffn_blocks(lp)])),
        out_bot_w=stack(lambda lp: lp["out_bot"]["w"]),
        out_bot_b=stack(lambda lp: lp["out_bot"]["b"][None, :]),
        out_bot_ln_w=stack(lambda lp: lp["out_bot_ln"]["w"][None, :]),
        out_bot_ln_b=stack(lambda lp: lp["out_bot_ln"]["b"][None, :]),
        pool_w=params["pooler"]["w"],
        pool_b=params["pooler"]["b"][None, :],
        cls=[dict(w=dp["w"], b=dp["b"][None, :]) for dp in params["classifier"]],
    )


# ------------------------------ forward pass ------------------------------- #

def mobilebert_forward(params, cfg, input_ids):
    B, S = input_ids.shape
    H, E = cfg["hidden_size"], cfg["embedding_size"]
    IB = cfg["intra_bottleneck_size"]
    nh = cfg["num_attention_heads"]
    dh = IB // nh
    L = cfg["num_hidden_layers"]
    F = cfg["num_feedforward_networks"]
    C = cfg["num_classes"]

    pk = pack_params(params, cfg)

    # Embedding gathers + trigram concat stay in XLA (no Pallas gather needed).
    we = params["word_emb"][input_ids]                               # (B, S, E)
    left = jnp.pad(we[:, 1:], ((0, 0), (0, 1), (0, 0)))
    right = jnp.pad(we[:, :-1], ((0, 0), (1, 0), (0, 0)))
    tri = jnp.concatenate([left, we, right], axis=-1)                # (B, S, 3E)
    postype = params["pos_emb"][:S] + params["type_emb"][0][None, :]  # (S, H)

    def const_spec(a):
        nd = a.ndim

        def imap(b):
            return (0,) * nd
        return pl.BlockSpec(a.shape, imap)

    cls_inputs = []
    for dp in pk["cls"]:
        cls_inputs.extend([dp["w"], dp["b"]])

    inputs = [tri, postype,
              pk["emb_w"], pk["emb_b"], pk["emb_ln_w"], pk["emb_ln_b"],
              pk["hproj_w"], pk["hproj_b"], pk["hproj_ln_w"], pk["hproj_ln_b"],
              pk["qk_w"], pk["qk_b"],
              pk["attn_out_w"], pk["attn_out_b"], pk["attn_ln_w"], pk["attn_ln_b"],
              pk["ffn_inter_w"], pk["ffn_inter_b"],
              pk["ffn_out_w"], pk["ffn_out_b"], pk["ffn_ln_w"], pk["ffn_ln_b"],
              pk["out_bot_w"], pk["out_bot_b"], pk["out_bot_ln_w"], pk["out_bot_ln_b"],
              pk["pool_w"], pk["pool_b"]] + cls_inputs

    in_specs = ([pl.BlockSpec((None, S, 3 * E), lambda b: (b, 0, 0))]
                + [const_spec(a) for a in inputs[1:]])

    kernel = functools.partial(
        _mobilebert_kernel,
        num_layers=L, num_ffn=F, num_heads=nh, head_dim=dh, ib=IB,
        scale=1.0 / float(dh) ** 0.5, num_cls_layers=len(pk["cls"]))

    logits = pl.pallas_call(
        kernel,
        out_shape=jax.ShapeDtypeStruct((B, 1, C), jnp.float32),
        grid=(B,),
        in_specs=in_specs,
        out_specs=pl.BlockSpec((None, 1, C), lambda b: (b, 0, 0)),
        compiler_params=pltpu.CompilerParams(
            dimension_semantics=("parallel",)),   # v7x: one batch per TensorCore
    )(*inputs)
    return logits.reshape(B, C)


# TODO(synk): pretrained-checkpoint path (use_pt_model=True) is out of scope;
# weights are synthetic/deterministic. Dropout layers are inference identities.


if __name__ == "__main__":
    key = jax.random.PRNGKey(0)
    kp, kx = jax.random.split(key)
    params = init_params(kp, CFG)
    input_ids = jax.random.randint(kx, (2, 8), 0, CFG["vocab_size"], dtype=jnp.int32)

    fwd = jax.jit(lambda p, ids: mobilebert_forward(p, CFG, ids))
    logits = fwd(params, input_ids)
    jax.block_until_ready(logits)
    assert logits.shape == (2, CFG["num_classes"])
    assert bool(jnp.all(jnp.isfinite(logits)))
    print("KERNEL_OK")
</pallas_src>

<mosaic_0001>
module attributes {stable_mosaic.version = 11 : i64} {
  func.func @_mobilebert_kernel(%arg0: i32, %arg1: memref<1x8x96xf32, #tpu.memory_space<vmem>>, %arg2: memref<8x32xf32, #tpu.memory_space<vmem>>, %arg3: memref<96x32xf32, #tpu.memory_space<vmem>>, %arg4: memref<1x32xf32, #tpu.memory_space<vmem>>, %arg5: memref<1x32xf32, #tpu.memory_space<vmem>>, %arg6: memref<1x32xf32, #tpu.memory_space<vmem>>, %arg7: memref<2x32x48xf32, #tpu.memory_space<vmem>>, %arg8: memref<2x1x48xf32, #tpu.memory_space<vmem>>, %arg9: memref<2x1x48xf32, #tpu.memory_space<vmem>>, %arg10: memref<2x1x48xf32, #tpu.memory_space<vmem>>, %arg11: memref<2x16x32xf32, #tpu.memory_space<vmem>>, %arg12: memref<2x1x32xf32, #tpu.memory_space<vmem>>, %arg13: memref<2x16x16xf32, #tpu.memory_space<vmem>>, %arg14: memref<2x1x16xf32, #tpu.memory_space<vmem>>, %arg15: memref<2x1x16xf32, #tpu.memory_space<vmem>>, %arg16: memref<2x1x16xf32, #tpu.memory_space<vmem>>, %arg17: memref<2x4x16x64xf32, #tpu.memory_space<vmem>>, %arg18: memref<2x4x1x64xf32, #tpu.memory_space<vmem>>, %arg19: memref<2x4x64x16xf32, #tpu.memory_space<vmem>>, %arg20: memref<2x4x1x16xf32, #tpu.memory_space<vmem>>, %arg21: memref<2x4x1x16xf32, #tpu.memory_space<vmem>>, %arg22: memref<2x4x1x16xf32, #tpu.memory_space<vmem>>, %arg23: memref<2x16x32xf32, #tpu.memory_space<vmem>>, %arg24: memref<2x1x32xf32, #tpu.memory_space<vmem>>, %arg25: memref<2x1x32xf32, #tpu.memory_space<vmem>>, %arg26: memref<2x1x32xf32, #tpu.memory_space<vmem>>, %arg27: memref<32x32xf32, #tpu.memory_space<vmem>>, %arg28: memref<1x32xf32, #tpu.memory_space<vmem>>, %arg29: memref<32x32xf32, #tpu.memory_space<vmem>>, %arg30: memref<1x32xf32, #tpu.memory_space<vmem>>, %arg31: memref<32x32xf32, #tpu.memory_space<vmem>>, %arg32: memref<1x32xf32, #tpu.memory_space<vmem>>, %arg33: memref<32x5xf32, #tpu.memory_space<vmem>>, %arg34: memref<1x5xf32, #tpu.memory_space<vmem>>, %arg35: memref<1x1x5xf32, #tpu.memory_space<vmem>>) attributes {dimension_semantics = [#tpu.dimension_semantics<parallel>], iteration_bounds = array<i64: 2>, scalar_prefetch = 0 : i64, scratch_operands = 0 : i64, tpu.core_type = #tpu.core_type<tc>, window_params = [{transform_indices = @transform_0, window_bounds = array<i64: 1, 8, 96>}, {pipeline_mode = #tpu.pipeline_mode<synchronous>, transform_indices = @transform_1, window_bounds = array<i64: 8, 32>}, {pipeline_mode = #tpu.pipeline_mode<synchronous>, transform_indices = @transform_2, window_bounds = array<i64: 96, 32>}, {pipeline_mode = #tpu.pipeline_mode<synchronous>, transform_indices = @transform_3, window_bounds = array<i64: 1, 32>}, {pipeline_mode = #tpu.pipeline_mode<synchronous>, transform_indices = @transform_4, window_bounds = array<i64: 1, 32>}, {pipeline_mode = #tpu.pipeline_mode<synchronous>, transform_indices = @transform_5, window_bounds = array<i64: 1, 32>}, {pipeline_mode = #tpu.pipeline_mode<synchronous>, transform_indices = @transform_6, window_bounds = array<i64: 2, 32, 48>}, {pipeline_mode = #tpu.pipeline_mode<synchronous>, transform_indices = @transform_7, window_bounds = array<i64: 2, 1, 48>}, {pipeline_mode = #tpu.pipeline_mode<synchronous>, transform_indices = @transform_8, window_bounds = array<i64: 2, 1, 48>}, {pipeline_mode = #tpu.pipeline_mode<synchronous>, transform_indices = @transform_9, window_bounds = array<i64: 2, 1, 48>}, {pipeline_mode = #tpu.pipeline_mode<synchronous>, transform_indices = @transform_10, window_bounds = array<i64: 2, 16, 32>}, {pipeline_mode = #tpu.pipeline_mode<synchronous>, transform_indices = @transform_11, window_bounds = array<i64: 2, 1, 32>}, {pipeline_mode = #tpu.pipeline_mode<synchronous>, transform_indices = @transform_12, window_bounds = array<i64: 2, 16, 16>}, {pipeline_mode = #tpu.pipeline_mode<synchronous>, transform_indices = @transform_13, window_bounds = array<i64: 2, 1, 16>}, {pipeline_mode = #tpu.pipeline_mode<synchronous>, transform_indices = @transform_14, window_bounds = array<i64: 2, 1, 16>}, {pipeline_mode = #tpu.pipeline_mode<synchronous>, transform_indices = @transform_15, window_bounds = array<i64: 2, 1, 16>}, {pipeline_mode = #tpu.pipeline_mode<synchronous>, transform_indices = @transform_16, window_bounds = array<i64: 2, 4, 16, 64>}, {pipeline_mode = #tpu.pipeline_mode<synchronous>, transform_indices = @transform_17, window_bounds = array<i64: 2, 4, 1, 64>}, {pipeline_mode = #tpu.pipeline_mode<synchronous>, transform_indices = @transform_18, window_bounds = array<i64: 2, 4, 64, 16>}, {pipeline_mode = #tpu.pipeline_mode<synchronous>, transform_indices = @transform_19, window_bounds = array<i64: 2, 4, 1, 16>}, {pipeline_mode = #tpu.pipeline_mode<synchronous>, transform_indices = @transform_20, window_bounds = array<i64: 2, 4, 1, 16>}, {pipeline_mode = #tpu.pipeline_mode<synchronous>, transform_indices = @transform_21, window_bounds = array<i64: 2, 4, 1, 16>}, {pipeline_mode = #tpu.pipeline_mode<synchronous>, transform_indices = @transform_22, window_bounds = array<i64: 2, 16, 32>}, {pipeline_mode = #tpu.pipeline_mode<synchronous>, transform_indices = @transform_23, window_bounds = array<i64: 2, 1, 32>}, {pipeline_mode = #tpu.pipeline_mode<synchronous>, transform_indices = @transform_24, window_bounds = array<i64: 2, 1, 32>}, {pipeline_mode = #tpu.pipeline_mode<synchronous>, transform_indices = @transform_25, window_bounds = array<i64: 2, 1, 32>}, {pipeline_mode = #tpu.pipeline_mode<synchronous>, transform_indices = @transform_26, window_bounds = array<i64: 32, 32>}, {pipeline_mode = #tpu.pipeline_mode<synchronous>, transform_indices = @transform_27, window_bounds = array<i64: 1, 32>}, {pipeline_mode = #tpu.pipeline_mode<synchronous>, transform_indices = @transform_28, window_bounds = array<i64: 32, 32>}, {pipeline_mode = #tpu.pipeline_mode<synchronous>, transform_indices = @transform_29, window_bounds = array<i64: 1, 32>}, {pipeline_mode = #tpu.pipeline_mode<synchronous>, transform_indices = @transform_30, window_bounds = array<i64: 32, 32>}, {pipeline_mode = #tpu.pipeline_mode<synchronous>, transform_indices = @transform_31, window_bounds = array<i64: 1, 32>}, {pipeline_mode = #tpu.pipeline_mode<synchronous>, transform_indices = @transform_32, window_bounds = array<i64: 32, 5>}, {pipeline_mode = #tpu.pipeline_mode<synchronous>, transform_indices = @transform_33, window_bounds = array<i64: 1, 5>}, {transform_indices = @transform_34, window_bounds = array<i64: 1, 1, 5>}]} {
    %c0 = arith.constant 0 : index
    %c0_0 = arith.constant 0 : index
    %c0_1 = arith.constant 0 : index
    %0 = vector.load %arg1[%c0, %c0_0, %c0_1] : memref<1x8x96xf32, #tpu.memory_space<vmem>>, vector<1x8x96xf32>
    %1 = vector.shape_cast %0 : vector<1x8x96xf32> to vector<8x96xf32>
    %c0_2 = arith.constant 0 : index
    %c0_3 = arith.constant 0 : index
    %2 = vector.load %arg3[%c0_2, %c0_3] : memref<96x32xf32, #tpu.memory_space<vmem>>, vector<96x32xf32>
    %cst = arith.constant dense<0.000000e+00> : vector<8x32xf32>
    %3 = tpu.matmul %1, %2, %cst {dimension_numbers = #tpu.dot_dimension_numbers<[1], [0], [0], [1], [0, 0, 1, 1], [], []>} : vector<8x96xf32>, vector<96x32xf32>, vector<8x32xf32> -> vector<8x32xf32>
    %c0_4 = arith.constant 0 : index
    %c0_5 = arith.constant 0 : index
    %4 = vector.load %arg4[%c0_4, %c0_5] : memref<1x32xf32, #tpu.memory_space<vmem>>, vector<1x32xf32>
    %5 = vector.broadcast %4 : vector<1x32xf32> to vector<8x32xf32>
    %6 = arith.addf %3, %5 : vector<8x32xf32>
    %c0_6 = arith.constant 0 : index
    %c0_7 = arith.constant 0 : index
    %7 = vector.load %arg2[%c0_6, %c0_7] : memref<8x32xf32, #tpu.memory_space<vmem>>, vector<8x32xf32>
    %8 = arith.addf %6, %7 : vector<8x32xf32>
    %c0_8 = arith.constant 0 : index
    %c0_9 = arith.constant 0 : index
    %9 = vector.load %arg5[%c0_8, %c0_9] : memref<1x32xf32, #tpu.memory_space<vmem>>, vector<1x32xf32>
    %10 = vector.broadcast %9 : vector<1x32xf32> to vector<8x32xf32>
    %11 = arith.mulf %8, %10 : vector<8x32xf32>
    %c0_10 = arith.constant 0 : index
    %c0_11 = arith.constant 0 : index
    %12 = vector.load %arg6[%c0_10, %c0_11] : memref<1x32xf32, #tpu.memory_space<vmem>>, vector<1x32xf32>
    %13 = vector.broadcast %12 : vector<1x32xf32> to vector<8x32xf32>
    %14 = arith.addf %11, %13 : vector<8x32xf32>
    %c0_12 = arith.constant 0 : index
    %c0_13 = arith.constant 0 : index
    %c0_14 = arith.constant 0 : index
    %15 = vector.load %arg7[%c0_12, %c0_13, %c0_14] : memref<2x32x48xf32, #tpu.memory_space<vmem>>, vector<1x32x48xf32>
    %16 = vector.shape_cast %15 : vector<1x32x48xf32> to vector<32x48xf32>
    %cst_15 = arith.constant dense<0.000000e+00> : vector<8x48xf32>
    %17 = tpu.matmul %14, %16, %cst_15 {dimension_numbers = #tpu.dot_dimension_numbers<[1], [0], [0], [1], [0, 0, 1, 1], [], []>} : vector<8x32xf32>, vector<32x48xf32>, vector<8x48xf32> -> vector<8x48xf32>
    %c0_16 = arith.constant 0 : index
    %c0_17 = arith.constant 0 : index
    %c0_18 = arith.constant 0 : index
    %18 = vector.load %arg8[%c0_16, %c0_17, %c0_18] : memref<2x1x48xf32, #tpu.memory_space<vmem>>, vector<1x1x48xf32>
    %19 = vector.shape_cast %18 : vector<1x1x48xf32> to vector<1x48xf32>
    %20 = vector.broadcast %19 : vector<1x48xf32> to vector<8x48xf32>
    %21 = arith.addf %17, %20 : vector<8x48xf32>
    %c0_19 = arith.constant 0 : index
    %c0_20 = arith.constant 0 : index
    %c0_21 = arith.constant 0 : index
    %22 = vector.load %arg9[%c0_19, %c0_20, %c0_21] : memref<2x1x48xf32, #tpu.memory_space<vmem>>, vector<1x1x48xf32>
    %23 = vector.shape_cast %22 : vector<1x1x48xf32> to vector<1x48xf32>
    %24 = vector.broadcast %23 : vector<1x48xf32> to vector<8x48xf32>
    %25 = arith.mulf %21, %24 : vector<8x48xf32>
    %c0_22 = arith.constant 0 : index
    %c0_23 = arith.constant 0 : index
    %c0_24 = arith.constant 0 : index
    %26 = vector.load %arg10[%c0_22, %c0_23, %c0_24] : memref<2x1x48xf32, #tpu.memory_space<vmem>>, vector<1x1x48xf32>
    %27 = vector.shape_cast %26 : vector<1x1x48xf32> to vector<1x48xf32>
    %28 = vector.broadcast %27 : vector<1x48xf32> to vector<8x48xf32>
    %29 = arith.addf %25, %28 : vector<8x48xf32>
    %30 = vector.extract_strided_slice %29 {offsets = [0, 0], sizes = [8, 16], strides = [1, 1]} : vector<8x48xf32> to vector<8x16xf32>
    %31 = vector.extract_strided_slice %29 {offsets = [0, 16], sizes = [8, 16], strides = [1, 1]} : vector<8x48xf32> to vector<8x16xf32>
    %32 = vector.extract_strided_slice %29 {offsets = [0, 32], sizes = [8, 16], strides = [1, 1]} : vector<8x48xf32> to vector<8x16xf32>
    %c0_25 = arith.constant 0 : index
    %c0_26 = arith.constant 0 : index
    %c0_27 = arith.constant 0 : index
    %33 = vector.load %arg11[%c0_25, %c0_26, %c0_27] : memref<2x16x32xf32, #tpu.memory_space<vmem>>, vector<1x16x32xf32>
    %34 = vector.shape_cast %33 : vector<1x16x32xf32> to vector<16x32xf32>
    %cst_28 = arith.constant dense<0.000000e+00> : vector<8x32xf32>
    %35 = tpu.matmul %31, %34, %cst_28 {dimension_numbers = #tpu.dot_dimension_numbers<[1], [0], [0], [1], [0, 0, 1, 1], [], []>} : vector<8x16xf32>, vector<16x32xf32>, vector<8x32xf32> -> vector<8x32xf32>
    %c0_29 = arith.constant 0 : index
    %c0_30 = arith.constant 0 : index
    %c0_31 = arith.constant 0 : index
    %36 = vector.load %arg12[%c0_29, %c0_30, %c0_31] : memref<2x1x32xf32, #tpu.memory_space<vmem>>, vector<1x1x32xf32>
    %37 = vector.shape_cast %36 : vector<1x1x32xf32> to vector<1x32xf32>
    %38 = vector.broadcast %37 : vector<1x32xf32> to vector<8x32xf32>
    %39 = arith.addf %35, %38 : vector<8x32xf32>
    %40 = vector.extract_strided_slice %39 {offsets = [0, 0], sizes = [8, 16], strides = [1, 1]} : vector<8x32xf32> to vector<8x16xf32>
    %41 = vector.extract_strided_slice %39 {offsets = [0, 16], sizes = [8, 16], strides = [1, 1]} : vector<8x32xf32> to vector<8x16xf32>
    %c0_32 = arith.constant 0 : index
    %c0_33 = arith.constant 0 : index
    %c0_34 = arith.constant 0 : index
    %42 = vector.load %arg13[%c0_32, %c0_33, %c0_34] : memref<2x16x16xf32, #tpu.memory_space<vmem>>, vector<1x16x16xf32>
    %43 = vector.shape_cast %42 : vector<1x16x16xf32> to vector<16x16xf32>
    %cst_35 = arith.constant 0.000000e+00 : f32
    %44 = vector.broadcast %cst_35 : f32 to vector<8x16xf32>
    %45 = vector.extract_strided_slice %40 {offsets = [0, 0], sizes = [8, 4], strides = [1, 1]} : vector<8x16xf32> to vector<8x4xf32>
    %46 = vector.extract_strided_slice %41 {offsets = [0, 0], sizes = [8, 4], strides = [1, 1]} : vector<8x16xf32> to vector<8x4xf32>
    %47 = vector.extract_strided_slice %32 {offsets = [0, 0], sizes = [8, 4], strides = [1, 1]} : vector<8x16xf32> to vector<8x4xf32>
    %48 = tpu.transpose %46, [1, 0] : vector<8x4xf32> -> vector<4x8xf32>
    %cst_36 = arith.constant dense<0.000000e+00> : vector<8x8xf32>
    %49 = tpu.matmul %45, %48, %cst_36 {dimension_numbers = #tpu.dot_dimension_numbers<[1], [0], [0], [1], [0, 0, 1, 1], [], []>} : vector<8x4xf32>, vector<4x8xf32>, vector<8x8xf32> -> vector<8x8xf32>
    %cst_37 = arith.constant 5.000000e-01 : f32
    %50 = vector.broadcast %cst_37 : f32 to vector<8x8xf32>
    %51 = arith.mulf %49, %50 : vector<8x8xf32>
    %cst_38 = arith.constant dense<0xFF800000> : vector<8xf32>
    %52 = vector.multi_reduction <maximumf>, %51, %cst_38 [1] : vector<8x8xf32> to vector<8xf32>
    %53 = vector.shape_cast %52 : vector<8xf32> to vector<8x1xf32>
    %54 = vector.broadcast %53 : vector<8x1xf32> to vector<8x8xf32>
    %55 = arith.subf %51, %54 : vector<8x8xf32>
    %56 = math.exp %55 : vector<8x8xf32>
    %cst_39 = arith.constant dense<0.000000e+00> : vector<8xf32>
    %57 = vector.multi_reduction <add>, %56, %cst_39 [1] : vector<8x8xf32> to vector<8xf32>
    %58 = vector.shape_cast %57 : vector<8xf32> to vector<8x1xf32>
    %59 = tpu.reciprocal %58 {approx = true} : vector<8x1xf32> -> vector<8x1xf32>
    %60 = vector.broadcast %59 : vector<8x1xf32> to vector<8x8xf32>
    %61 = arith.mulf %56, %60 : vector<8x8xf32>
    %cst_40 = arith.constant dense<0.000000e+00> : vector<8x4xf32>
    %62 = tpu.matmul %61, %47, %cst_40 {dimension_numbers = #tpu.dot_dimension_numbers<[1], [0], [0], [1], [0, 0, 1, 1], [], []>} : vector<8x8xf32>, vector<8x4xf32>, vector<8x4xf32> -> vector<8x4xf32>
    %63 = vector.extract_strided_slice %43 {offsets = [0, 0], sizes = [4, 16], strides = [1, 1]} : vector<16x16xf32> to vector<4x16xf32>
    %cst_41 = arith.constant dense<0.000000e+00> : vector<8x16xf32>
    %64 = tpu.matmul %62, %63, %cst_41 {dimension_numbers = #tpu.dot_dimension_numbers<[1], [0], [0], [1], [0, 0, 1, 1], [], []>} : vector<8x4xf32>, vector<4x16xf32>, vector<8x16xf32> -> vector<8x16xf32>
    %65 = arith.addf %44, %64 : vector<8x16xf32>
    %66 = vector.extract_strided_slice %40 {offsets = [0, 4], sizes = [8, 4], strides = [1, 1]} : vector<8x16xf32> to vector<8x4xf32>
    %67 = vector.extract_strided_slice %41 {offsets = [0, 4], sizes = [8, 4], strides = [1, 1]} : vector<8x16xf32> to vector<8x4xf32>
    %68 = vector.extract_strided_slice %32 {offsets = [0, 4], sizes = [8, 4], strides = [1, 1]} : vector<8x16xf32> to vector<8x4xf32>
    %69 = tpu.transpose %67, [1, 0] : vector<8x4xf32> -> vector<4x8xf32>
    %cst_42 = arith.constant dense<0.000000e+00> : vector<8x8xf32>
    %70 = tpu.matmul %66, %69, %cst_42 {dimension_numbers = #tpu.dot_dimension_numbers<[1], [0], [0], [1], [0, 0, 1, 1], [], []>} : vector<8x4xf32>, vector<4x8xf32>, vector<8x8xf32> -> vector<8x8xf32>
    %cst_43 = arith.constant 5.000000e-01 : f32
    %71 = vector.broadcast %cst_43 : f32 to vector<8x8xf32>
    %72 = arith.mulf %70, %71 : vector<8x8xf32>
    %cst_44 = arith.constant dense<0xFF800000> : vector<8xf32>
    %73 = vector.multi_reduction <maximumf>, %72, %cst_44 [1] : vector<8x8xf32> to vector<8xf32>
    %74 = vector.shape_cast %73 : vector<8xf32> to vector<8x1xf32>
    %75 = vector.broadcast %74 : vector<8x1xf32> to vector<8x8xf32>
    %76 = arith.subf %72, %75 : vector<8x8xf32>
    %77 = math.exp %76 : vector<8x8xf32>
    %cst_45 = arith.constant dense<0.000000e+00> : vector<8xf32>
    %78 = vector.multi_reduction <add>, %77, %cst_45 [1] : vector<8x8xf32> to vector<8xf32>
    %79 = vector.shape_cast %78 : vector<8xf32> to vector<8x1xf32>
    %80 = tpu.reciprocal %79 {approx = true} : vector<8x1xf32> -> vector<8x1xf32>
    %81 = vector.broadcast %80 : vector<8x1xf32> to vector<8x8xf32>
    %82 = arith.mulf %77, %81 : vector<8x8xf32>
    %cst_46 = arith.constant dense<0.000000e+00> : vector<8x4xf32>
    %83 = tpu.matmul %82, %68, %cst_46 {dimension_numbers = #tpu.dot_dimension_numbers<[1], [0], [0], [1], [0, 0, 1, 1], [], []>} : vector<8x8xf32>, vector<8x4xf32>, vector<8x4xf32> -> vector<8x4xf32>
    %84 = vector.extract_strided_slice %43 {offsets = [4, 0], sizes = [4, 16], strides = [1, 1]} : vector<16x16xf32> to vector<4x16xf32>
    %cst_47 = arith.constant dense<0.000000e+00> : vector<8x16xf32>
    %85 = tpu.matmul %83, %84, %cst_47 {dimension_numbers = #tpu.dot_dimension_numbers<[1], [0], [0], [1], [0, 0, 1, 1], [], []>} : vector<8x4xf32>, vector<4x16xf32>, vector<8x16xf32> -> vector<8x16xf32>
    %86 = arith.addf %65, %85 : vector<8x16xf32>
    %87 = vector.extract_strided_slice %40 {offsets = [0, 8], sizes = [8, 4], strides = [1, 1]} : vector<8x16xf32> to vector<8x4xf32>
    %88 = vector.extract_strided_slice %41 {offsets = [0, 8], sizes = [8, 4], strides = [1, 1]} : vector<8x16xf32> to vector<8x4xf32>
    %89 = vector.extract_strided_slice %32 {offsets = [0, 8], sizes = [8, 4], strides = [1, 1]} : vector<8x16xf32> to vector<8x4xf32>
    %90 = tpu.transpose %88, [1, 0] : vector<8x4xf32> -> vector<4x8xf32>
    %cst_48 = arith.constant dense<0.000000e+00> : vector<8x8xf32>
    %91 = tpu.matmul %87, %90, %cst_48 {dimension_numbers = #tpu.dot_dimension_numbers<[1], [0], [0], [1], [0, 0, 1, 1], [], []>} : vector<8x4xf32>, vector<4x8xf32>, vector<8x8xf32> -> vector<8x8xf32>
    %cst_49 = arith.constant 5.000000e-01 : f32
    %92 = vector.broadcast %cst_49 : f32 to vector<8x8xf32>
    %93 = arith.mulf %91, %92 : vector<8x8xf32>
    %cst_50 = arith.constant dense<0xFF800000> : vector<8xf32>
    %94 = vector.multi_reduction <maximumf>, %93, %cst_50 [1] : vector<8x8xf32> to vector<8xf32>
    %95 = vector.shape_cast %94 : vector<8xf32> to vector<8x1xf32>
    %96 = vector.broadcast %95 : vector<8x1xf32> to vector<8x8xf32>
    %97 = arith.subf %93, %96 : vector<8x8xf32>
    %98 = math.exp %97 : vector<8x8xf32>
    %cst_51 = arith.constant dense<0.000000e+00> : vector<8xf32>
    %99 = vector.multi_reduction <add>, %98, %cst_51 [1] : vector<8x8xf32> to vector<8xf32>
    %100 = vector.shape_cast %99 : vector<8xf32> to vector<8x1xf32>
    %101 = tpu.reciprocal %100 {approx = true} : vector<8x1xf32> -> vector<8x1xf32>
    %102 = vector.broadcast %101 : vector<8x1xf32> to vector<8x8xf32>
    %103 = arith.mulf %98, %102 : vector<8x8xf32>
    %cst_52 = arith.constant dense<0.000000e+00> : vector<8x4xf32>
    %104 = tpu.matmul %103, %89, %cst_52 {dimension_numbers = #tpu.dot_dimension_numbers<[1], [0], [0], [1], [0, 0, 1, 1], [], []>} : vector<8x8xf32>, vector<8x4xf32>, vector<8x4xf32> -> vector<8x4xf32>
    %105 = vector.extract_strided_slice %43 {offsets = [8, 0], sizes = [4, 16], strides = [1, 1]} : vector<16x16xf32> to vector<4x16xf32>
    %cst_53 = arith.constant dense<0.000000e+00> : vector<8x16xf32>
    %106 = tpu.matmul %104, %105, %cst_53 {dimension_numbers = #tpu.dot_dimension_numbers<[1], [0], [0], [1], [0, 0, 1, 1], [], []>} : vector<8x4xf32>, vector<4x16xf32>, vector<8x16xf32> -> vector<8x16xf32>
    %107 = arith.addf %86, %106 : vector<8x16xf32>
    %108 = vector.extract_strided_slice %40 {offsets = [0, 12], sizes = [8, 4], strides = [1, 1]} : vector<8x16xf32> to vector<8x4xf32>
    %109 = vector.extract_strided_slice %41 {offsets = [0, 12], sizes = [8, 4], strides = [1, 1]} : vector<8x16xf32> to vector<8x4xf32>
    %110 = vector.extract_strided_slice %32 {offsets = [0, 12], sizes = [8, 4], strides = [1, 1]} : vector<8x16xf32> to vector<8x4xf32>
    %111 = tpu.transpose %109, [1, 0] : vector<8x4xf32> -> vector<4x8xf32>
    %cst_54 = arith.constant dense<0.000000e+00> : vector<8x8xf32>
    %112 = tpu.matmul %108, %111, %cst_54 {dimension_numbers = #tpu.dot_dimension_numbers<[1], [0], [0], [1], [0, 0, 1, 1], [], []>} : vector<8x4xf32>, vector<4x8xf32>, vector<8x8xf32> -> vector<8x8xf32>
    %cst_55 = arith.constant 5.000000e-01 : f32
    %113 = vector.broadcast %cst_55 : f32 to vector<8x8xf32>
    %114 = arith.mulf %112, %113 : vector<8x8xf32>
    %cst_56 = arith.constant dense<0xFF800000> : vector<8xf32>
    %115 = vector.multi_reduction <maximumf>, %114, %cst_56 [1] : vector<8x8xf32> to vector<8xf32>
    %116 = vector.shape_cast %115 : vector<8xf32> to vector<8x1xf32>
    %117 = vector.broadcast %116 : vector<8x1xf32> to vector<8x8xf32>
    %118 = arith.subf %114, %117 : vector<8x8xf32>
    %119 = math.exp %118 : vector<8x8xf32>
    %cst_57 = arith.constant dense<0.000000e+00> : vector<8xf32>
    %120 = vector.multi_reduction <add>, %119, %cst_57 [1] : vector<8x8xf32> to vector<8xf32>
    %121 = vector.shape_cast %120 : vector<8xf32> to vector<8x1xf32>
    %122 = tpu.reciprocal %121 {approx = true} : vector<8x1xf32> -> vector<8x1xf32>
    %123 = vector.broadcast %122 : vector<8x1xf32> to vector<8x8xf32>
    %124 = arith.mulf %119, %123 : vector<8x8xf32>
    %cst_58 = arith.constant dense<0.000000e+00> : vector<8x4xf32>
    %125 = tpu.matmul %124, %110, %cst_58 {dimension_numbers = #tpu.dot_dimension_numbers<[1], [0], [0], [1], [0, 0, 1, 1], [], []>} : vector<8x8xf32>, vector<8x4xf32>, vector<8x4xf32> -> vector<8x4xf32>
    %126 = vector.extract_strided_slice %43 {offsets = [12, 0], sizes = [4, 16], strides = [1, 1]} : vector<16x16xf32> to vector<4x16xf32>
    %cst_59 = arith.constant dense<0.000000e+00> : vector<8x16xf32>
    %127 = tpu.matmul %125, %126, %cst_59 {dimension_numbers = #tpu.dot_dimension_numbers<[1], [0], [0], [1], [0, 0, 1, 1], [], []>} : vector<8x4xf32>, vector<4x16xf32>, vector<8x16xf32> -> vector<8x16xf32>
    %128 = arith.addf %107, %127 : vector<8x16xf32>
    %c0_60 = arith.constant 0 : index
    %c0_61 = arith.constant 0 : index
    %c0_62 = arith.constant 0 : index
    %129 = vector.load %arg14[%c0_60, %c0_61, %c0_62] : memref<2x1x16xf32, #tpu.memory_space<vmem>>, vector<1x1x16xf32>
    %130 = vector.shape_cast %129 : vector<1x1x16xf32> to vector<1x16xf32>
    %131 = vector.broadcast %130 : vector<1x16xf32> to vector<8x16xf32>
    %132 = arith.addf %128, %131 : vector<8x16xf32>
    %133 = arith.addf %132, %30 : vector<8x16xf32>
    %c0_63 = arith.constant 0 : index
    %c0_64 = arith.constant 0 : index
    %c0_65 = arith.constant 0 : index
    %134 = vector.load %arg15[%c0_63, %c0_64, %c0_65] : memref<2x1x16xf32, #tpu.memory_space<vmem>>, vector<1x1x16xf32>
    %135 = vector.shape_cast %134 : vector<1x1x16xf32> to vector<1x16xf32>
    %136 = vector.broadcast %135 : vector<1x16xf32> to vector<8x16xf32>
    %137 = arith.mulf %133, %136 : vector<8x16xf32>
    %c0_66 = arith.constant 0 : index
    %c0_67 = arith.constant 0 : index
    %c0_68 = arith.constant 0 : index
    %138 = vector.load %arg16[%c0_66, %c0_67, %c0_68] : memref<2x1x16xf32, #tpu.memory_space<vmem>>, vector<1x1x16xf32>
    %139 = vector.shape_cast %138 : vector<1x1x16xf32> to vector<1x16xf32>
    %140 = vector.broadcast %139 : vector<1x16xf32> to vector<8x16xf32>
    %141 = arith.addf %137, %140 : vector<8x16xf32>
    %c0_69 = arith.constant 0 : index
    %c0_70 = arith.constant 0 : index
    %c0_71 = arith.constant 0 : index
    %c0_72 = arith.constant 0 : index
    %142 = vector.load %arg17[%c0_69, %c0_70, %c0_71, %c0_72] : memref<2x4x16x64xf32, #tpu.memory_space<vmem>>, vector<1x1x16x64xf32>
    %143 = vector.shape_cast %142 : vector<1x1x16x64xf32> to vector<16x64xf32>
    %cst_73 = arith.constant dense<0.000000e+00> : vector<8x64xf32>
    %144 = tpu.matmul %141, %143, %cst_73 {dimension_numbers = #tpu.dot_dimension_numbers<[1], [0], [0], [1], [0, 0, 1, 1], [], []>} : vector<8x16xf32>, vector<16x64xf32>, vector<8x64xf32> -> vector<8x64xf32>
    %c0_74 = arith.constant 0 : index
    %c0_75 = arith.constant 0 : index
    %c0_76 = arith.constant 0 : index
    %c0_77 = arith.constant 0 : index
    %145 = vector.load %arg18[%c0_74, %c0_75, %c0_76, %c0_77] : memref<2x4x1x64xf32, #tpu.memory_space<vmem>>, vector<1x1x1x64xf32>
    %146 = vector.shape_cast %145 : vector<1x1x1x64xf32> to vector<1x64xf32>
    %147 = vector.broadcast %146 : vector<1x64xf32> to vector<8x64xf32>
    %148 = arith.addf %144, %147 : vector<8x64xf32>
    %cst_78 = arith.constant 0.000000e+00 : f32
    %149 = vector.broadcast %cst_78 : f32 to vector<8x64xf32>
    %150 = arith.maximumf %148, %149 : vector<8x64xf32>
    %c0_79 = arith.constant 0 : index
    %c0_80 = arith.constant 0 : index
    %c0_81 = arith.constant 0 : index
    %c0_82 = arith.constant 0 : index
    %151 = vector.load %arg19[%c0_79, %c0_80, %c0_81, %c0_82] : memref<2x4x64x16xf32, #tpu.memory_space<vmem>>, vector<1x1x64x16xf32>
    %152 = vector.shape_cast %151 : vector<1x1x64x16xf32> to vector<64x16xf32>
    %cst_83 = arith.constant dense<0.000000e+00> : vector<8x16xf32>
    %153 = tpu.matmul %150, %152, %cst_83 {dimension_numbers = #tpu.dot_dimension_numbers<[1], [0], [0], [1], [0, 0, 1, 1], [], []>} : vector<8x64xf32>, vector<64x16xf32>, vector<8x16xf32> -> vector<8x16xf32>
    %c0_84 = arith.constant 0 : index
    %c0_85 = arith.constant 0 : index
    %c0_86 = arith.constant 0 : index
    %c0_87 = arith.constant 0 : index
    %154 = vector.load %arg20[%c0_84, %c0_85, %c0_86, %c0_87] : memref<2x4x1x16xf32, #tpu.memory_space<vmem>>, vector<1x1x1x16xf32>
    %155 = vector.shape_cast %154 : vector<1x1x1x16xf32> to vector<1x16xf32>
    %156 = vector.broadcast %155 : vector<1x16xf32> to vector<8x16xf32>
    %157 = arith.addf %153, %156 : vector<8x16xf32>
    %158 = arith.addf %157, %141 : vector<8x16xf32>
    %c0_88 = arith.constant 0 : index
    %c0_89 = arith.constant 0 : index
    %c0_90 = arith.constant 0 : index
    %c0_91 = arith.constant 0 : index
    %159 = vector.load %arg21[%c0_88, %c0_89, %c0_90, %c0_91] : memref<2x4x1x16xf32, #tpu.memory_space<vmem>>, vector<1x1x1x16xf32>
    %160 = vector.shape_cast %159 : vector<1x1x1x16xf32> to vector<1x16xf32>
    %161 = vector.broadcast %160 : vector<1x16xf32> to vector<8x16xf32>
    %162 = arith.mulf %158, %161 : vector<8x16xf32>
    %c0_92 = arith.constant 0 : index
    %c0_93 = arith.constant 0 : index
    %c0_94 = arith.constant 0 : index
    %c0_95 = arith.constant 0 : index
    %163 = vector.load %arg22[%c0_92, %c0_93, %c0_94, %c0_95] : memref<2x4x1x16xf32, #tpu.memory_space<vmem>>, vector<1x1x1x16xf32>
    %164 = vector.shape_cast %163 : vector<1x1x1x16xf32> to vector<1x16xf32>
    %165 = vector.broadcast %164 : vector<1x16xf32> to vector<8x16xf32>
    %166 = arith.addf %162, %165 : vector<8x16xf32>
    %c0_96 = arith.constant 0 : index
    %c1 = arith.constant 1 : index
    %c0_97 = arith.constant 0 : index
    %c0_98 = arith.constant 0 : index
    %167 = vector.load %arg17[%c0_96, %c1, %c0_97, %c0_98] : memref<2x4x16x64xf32, #tpu.memory_space<vmem>>, vector<1x1x16x64xf32>
    %168 = vector.shape_cast %167 : vector<1x1x16x64xf32> to vector<16x64xf32>
    %cst_99 = arith.constant dense<0.000000e+00> : vector<8x64xf32>
    %169 = tpu.matmul %166, %168, %cst_99 {dimension_numbers = #tpu.dot_dimension_numbers<[1], [0], [0], [1], [0, 0, 1, 1], [], []>} : vector<8x16xf32>, vector<16x64xf32>, vector<8x64xf32> -> vector<8x64xf32>
    %c0_100 = arith.constant 0 : index
    %c1_101 = arith.constant 1 : index
    %c0_102 = arith.constant 0 : index
    %c0_103 = arith.constant 0 : index
    %170 = vector.load %arg18[%c0_100, %c1_101, %c0_102, %c0_103] : memref<2x4x1x64xf32, #tpu.memory_space<vmem>>, vector<1x1x1x64xf32>
    %171 = vector.shape_cast %170 : vector<1x1x1x64xf32> to vector<1x64xf32>
    %172 = vector.broadcast %171 : vector<1x64xf32> to vector<8x64xf32>
    %173 = arith.addf %169, %172 : vector<8x64xf32>
    %cst_104 = arith.constant 0.000000e+00 : f32
    %174 = vector.broadcast %cst_104 : f32 to vector<8x64xf32>
    %175 = arith.maximumf %173, %174 : vector<8x64xf32>
    %c0_105 = arith.constant 0 : index
    %c1_106 = arith.constant 1 : index
    %c0_107 = arith.constant 0 : index
    %c0_108 = arith.constant 0 : index
    %176 = vector.load %arg19[%c0_105, %c1_106, %c0_107, %c0_108] : memref<2x4x64x16xf32, #tpu.memory_space<vmem>>, vector<1x1x64x16xf32>
    %177 = vector.shape_cast %176 : vector<1x1x64x16xf32> to vector<64x16xf32>
    %cst_109 = arith.constant dense<0.000000e+00> : vector<8x16xf32>
    %178 = tpu.matmul %175, %177, %cst_109 {dimension_numbers = #tpu.dot_dimension_numbers<[1], [0], [0], [1], [0, 0, 1, 1], [], []>} : vector<8x64xf32>, vector<64x16xf32>, vector<8x16xf32> -> vector<8x16xf32>
    %c0_110 = arith.constant 0 : index
    %c1_111 = arith.constant 1 : index
    %c0_112 = arith.constant 0 : index
    %c0_113 = arith.constant 0 : index
    %179 = vector.load %arg20[%c0_110, %c1_111, %c0_112, %c0_113] : memref<2x4x1x16xf32, #tpu.memory_space<vmem>>, vector<1x1x1x16xf32>
    %180 = vector.shape_cast %179 : vector<1x1x1x16xf32> to vector<1x16xf32>
    %181 = vector.broadcast %180 : vector<1x16xf32> to vector<8x16xf32>
    %182 = arith.addf %178, %181 : vector<8x16xf32>
    %183 = arith.addf %182, %166 : vector<8x16xf32>
    %c0_114 = arith.constant 0 : index
    %c1_115 = arith.constant 1 : index
    %c0_116 = arith.constant 0 : index
    %c0_117 = arith.constant 0 : index
    %184 = vector.load %arg21[%c0_114, %c1_115, %c0_116, %c0_117] : memref<2x4x1x16xf32, #tpu.memory_space<vmem>>, vector<1x1x1x16xf32>
    %185 = vector.shape_cast %184 : vector<1x1x1x16xf32> to vector<1x16xf32>
    %186 = vector.broadcast %185 : vector<1x16xf32> to vector<8x16xf32>
    %187 = arith.mulf %183, %186 : vector<8x16xf32>
    %c0_118 = arith.constant 0 : index
    %c1_119 = arith.constant 1 : index
    %c0_120 = arith.constant 0 : index
    %c0_121 = arith.constant 0 : index
    %188 = vector.load %arg22[%c0_118, %c1_119, %c0_120, %c0_121] : memref<2x4x1x16xf32, #tpu.memory_space<vmem>>, vector<1x1x1x16xf32>
    %189 = vector.shape_cast %188 : vector<1x1x1x16xf32> to vector<1x16xf32>
    %190 = vector.broadcast %189 : vector<1x16xf32> to vector<8x16xf32>
    %191 = arith.addf %187, %190 : vector<8x16xf32>
    %c0_122 = arith.constant 0 : index
    %c2 = arith.constant 2 : index
    %c0_123 = arith.constant 0 : index
    %c0_124 = arith.constant 0 : index
    %192 = vector.load %arg17[%c0_122, %c2, %c0_123, %c0_124] : memref<2x4x16x64xf32, #tpu.memory_space<vmem>>, vector<1x1x16x64xf32>
    %193 = vector.shape_cast %192 : vector<1x1x16x64xf32> to vector<16x64xf32>
    %cst_125 = arith.constant dense<0.000000e+00> : vector<8x64xf32>
    %194 = tpu.matmul %191, %193, %cst_125 {dimension_numbers = #tpu.dot_dimension_numbers<[1], [0], [0], [1], [0, 0, 1, 1], [], []>} : vector<8x16xf32>, vector<16x64xf32>, vector<8x64xf32> -> vector<8x64xf32>
    %c0_126 = arith.constant 0 : index
    %c2_127 = arith.constant 2 : index
    %c0_128 = arith.constant 0 : index
    %c0_129 = arith.constant 0 : index
    %195 = vector.load %arg18[%c0_126, %c2_127, %c0_128, %c0_129] : memref<2x4x1x64xf32, #tpu.memory_space<vmem>>, vector<1x1x1x64xf32>
    %196 = vector.shape_cast %195 : vector<1x1x1x64xf32> to vector<1x64xf32>
    %197 = vector.broadcast %196 : vector<1x64xf32> to vector<8x64xf32>
    %198 = arith.addf %194, %197 : vector<8x64xf32>
    %cst_130 = arith.constant 0.000000e+00 : f32
    %199 = vector.broadcast %cst_130 : f32 to vector<8x64xf32>
    %200 = arith.maximumf %198, %199 : vector<8x64xf32>
    %c0_131 = arith.constant 0 : index
    %c2_132 = arith.constant 2 : index
    %c0_133 = arith.constant 0 : index
    %c0_134 = arith.constant 0 : index
    %201 = vector.load %arg19[%c0_131, %c2_132, %c0_133, %c0_134] : memref<2x4x64x16xf32, #tpu.memory_space<vmem>>, vector<1x1x64x16xf32>
    %202 = vector.shape_cast %201 : vector<1x1x64x16xf32> to vector<64x16xf32>
    %cst_135 = arith.constant dense<0.000000e+00> : vector<8x16xf32>
    %203 = tpu.matmul %200, %202, %cst_135 {dimension_numbers = #tpu.dot_dimension_numbers<[1], [0], [0], [1], [0, 0, 1, 1], [], []>} : vector<8x64xf32>, vector<64x16xf32>, vector<8x16xf32> -> vector<8x16xf32>
    %c0_136 = arith.constant 0 : index
    %c2_137 = arith.constant 2 : index
    %c0_138 = arith.constant 0 : index
    %c0_139 = arith.constant 0 : index
    %204 = vector.load %arg20[%c0_136, %c2_137, %c0_138, %c0_139] : memref<2x4x1x16xf32, #tpu.memory_space<vmem>>, vector<1x1x1x16xf32>
    %205 = vector.shape_cast %204 : vector<1x1x1x16xf32> to vector<1x16xf32>
    %206 = vector.broadcast %205 : vector<1x16xf32> to vector<8x16xf32>
    %207 = arith.addf %203, %206 : vector<8x16xf32>
    %208 = arith.addf %207, %191 : vector<8x16xf32>
    %c0_140 = arith.constant 0 : index
    %c2_141 = arith.constant 2 : index
    %c0_142 = arith.constant 0 : index
    %c0_143 = arith.constant 0 : index
    %209 = vector.load %arg21[%c0_140, %c2_141, %c0_142, %c0_143] : memref<2x4x1x16xf32, #tpu.memory_space<vmem>>, vector<1x1x1x16xf32>
    %210 = vector.shape_cast %209 : vector<1x1x1x16xf32> to vector<1x16xf32>
    %211 = vector.broadcast %210 : vector<1x16xf32> to vector<8x16xf32>
    %212 = arith.mulf %208, %211 : vector<8x16xf32>
    %c0_144 = arith.constant 0 : index
    %c2_145 = arith.constant 2 : index
    %c0_146 = arith.constant 0 : index
    %c0_147 = arith.constant 0 : index
    %213 = vector.load %arg22[%c0_144, %c2_145, %c0_146, %c0_147] : memref<2x4x1x16xf32, #tpu.memory_space<vmem>>, vector<1x1x1x16xf32>
    %214 = vector.shape_cast %213 : vector<1x1x1x16xf32> to vector<1x16xf32>
    %215 = vector.broadcast %214 : vector<1x16xf32> to vector<8x16xf32>
    %216 = arith.addf %212, %215 : vector<8x16xf32>
    %c0_148 = arith.constant 0 : index
    %c3 = arith.constant 3 : index
    %c0_149 = arith.constant 0 : index
    %c0_150 = arith.constant 0 : index
    %217 = vector.load %arg17[%c0_148, %c3, %c0_149, %c0_150] : memref<2x4x16x64xf32, #tpu.memory_space<vmem>>, vector<1x1x16x64xf32>
    %218 = vector.shape_cast %217 : vector<1x1x16x64xf32> to vector<16x64xf32>
    %cst_151 = arith.constant dense<0.000000e+00> : vector<8x64xf32>
    %219 = tpu.matmul %216, %218, %cst_151 {dimension_numbers = #tpu.dot_dimension_numbers<[1], [0], [0], [1], [0, 0, 1, 1], [], []>} : vector<8x16xf32>, vector<16x64xf32>, vector<8x64xf32> -> vector<8x64xf32>
    %c0_152 = arith.constant 0 : index
    %c3_153 = arith.constant 3 : index
    %c0_154 = arith.constant 0 : index
    %c0_155 = arith.constant 0 : index
    %220 = vector.load %arg18[%c0_152, %c3_153, %c0_154, %c0_155] : memref<2x4x1x64xf32, #tpu.memory_space<vmem>>, vector<1x1x1x64xf32>
    %221 = vector.shape_cast %220 : vector<1x1x1x64xf32> to vector<1x64xf32>
    %222 = vector.broadcast %221 : vector<1x64xf32> to vector<8x64xf32>
    %223 = arith.addf %219, %222 : vector<8x64xf32>
    %cst_156 = arith.constant 0.000000e+00 : f32
    %224 = vector.broadcast %cst_156 : f32 to vector<8x64xf32>
    %225 = arith.maximumf %223, %224 : vector<8x64xf32>
    %c0_157 = arith.constant 0 : index
    %c3_158 = arith.constant 3 : index
    %c0_159 = arith.constant 0 : index
    %c0_160 = arith.constant 0 : index
    %226 = vector.load %arg19[%c0_157, %c3_158, %c0_159, %c0_160] : memref<2x4x64x16xf32, #tpu.memory_space<vmem>>, vector<1x1x64x16xf32>
    %227 = vector.shape_cast %226 : vector<1x1x64x16xf32> to vector<64x16xf32>
    %cst_161 = arith.constant dense<0.000000e+00> : vector<8x16xf32>
    %228 = tpu.matmul %225, %227, %cst_161 {dimension_numbers = #tpu.dot_dimension_numbers<[1], [0], [0], [1], [0, 0, 1, 1], [], []>} : vector<8x64xf32>, vector<64x16xf32>, vector<8x16xf32> -> vector<8x16xf32>
    %c0_162 = arith.constant 0 : index
    %c3_163 = arith.constant 3 : index
    %c0_164 = arith.constant 0 : index
    %c0_165 = arith.constant 0 : index
    %229 = vector.load %arg20[%c0_162, %c3_163, %c0_164, %c0_165] : memref<2x4x1x16xf32, #tpu.memory_space<vmem>>, vector<1x1x1x16xf32>
    %230 = vector.shape_cast %229 : vector<1x1x1x16xf32> to vector<1x16xf32>
    %231 = vector.broadcast %230 : vector<1x16xf32> to vector<8x16xf32>
    %232 = arith.addf %228, %231 : vector<8x16xf32>
    %233 = arith.addf %232, %216 : vector<8x16xf32>
    %c0_166 = arith.constant 0 : index
    %c3_167 = arith.constant 3 : index
    %c0_168 = arith.constant 0 : index
    %c0_169 = arith.constant 0 : index
    %234 = vector.load %arg21[%c0_166, %c3_167, %c0_168, %c0_169] : memref<2x4x1x16xf32, #tpu.memory_space<vmem>>, vector<1x1x1x16xf32>
    %235 = vector.shape_cast %234 : vector<1x1x1x16xf32> to vector<1x16xf32>
    %236 = vector.broadcast %235 : vector<1x16xf32> to vector<8x16xf32>
    %237 = arith.mulf %233, %236 : vector<8x16xf32>
    %c0_170 = arith.constant 0 : index
    %c3_171 = arith.constant 3 : index
    %c0_172 = arith.constant 0 : index
    %c0_173 = arith.constant 0 : index
    %238 = vector.load %arg22[%c0_170, %c3_171, %c0_172, %c0_173] : memref<2x4x1x16xf32, #tpu.memory_space<vmem>>, vector<1x1x1x16xf32>
    %239 = vector.shape_cast %238 : vector<1x1x1x16xf32> to vector<1x16xf32>
    %240 = vector.broadcast %239 : vector<1x16xf32> to vector<8x16xf32>
    %241 = arith.addf %237, %240 : vector<8x16xf32>
    %c0_174 = arith.constant 0 : index
    %c0_175 = arith.constant 0 : index
    %c0_176 = arith.constant 0 : index
    %242 = vector.load %arg23[%c0_174, %c0_175, %c0_176] : memref<2x16x32xf32, #tpu.memory_space<vmem>>, vector<1x16x32xf32>
    %243 = vector.shape_cast %242 : vector<1x16x32xf32> to vector<16x32xf32>
    %cst_177 = arith.constant dense<0.000000e+00> : vector<8x32xf32>
    %244 = tpu.matmul %241, %243, %cst_177 {dimension_numbers = #tpu.dot_dimension_numbers<[1], [0], [0], [1], [0, 0, 1, 1], [], []>} : vector<8x16xf32>, vector<16x32xf32>, vector<8x32xf32> -> vector<8x32xf32>
    %c0_178 = arith.constant 0 : index
    %c0_179 = arith.constant 0 : index
    %c0_180 = arith.constant 0 : index
    %245 = vector.load %arg24[%c0_178, %c0_179, %c0_180] : memref<2x1x32xf32, #tpu.memory_space<vmem>>, vector<1x1x32xf32>
    %246 = vector.shape_cast %245 : vector<1x1x32xf32> to vector<1x32xf32>
    %247 = vector.broadcast %246 : vector<1x32xf32> to vector<8x32xf32>
    %248 = arith.addf %244, %247 : vector<8x32xf32>
    %249 = arith.addf %248, %14 : vector<8x32xf32>
    %c0_181 = arith.constant 0 : index
    %c0_182 = arith.constant 0 : index
    %c0_183 = arith.constant 0 : index
    %250 = vector.load %arg25[%c0_181, %c0_182, %c0_183] : memref<2x1x32xf32, #tpu.memory_space<vmem>>, vector<1x1x32xf32>
    %251 = vector.shape_cast %250 : vector<1x1x32xf32> to vector<1x32xf32>
    %252 = vector.broadcast %251 : vector<1x32xf32> to vector<8x32xf32>
    %253 = arith.mulf %249, %252 : vector<8x32xf32>
    %c0_184 = arith.constant 0 : index
    %c0_185 = arith.constant 0 : index
    %c0_186 = arith.constant 0 : index
    %254 = vector.load %arg26[%c0_184, %c0_185, %c0_186] : memref<2x1x32xf32, #tpu.memory_space<vmem>>, vector<1x1x32xf32>
    %255 = vector.shape_cast %254 : vector<1x1x32xf32> to vector<1x32xf32>
    %256 = vector.broadcast %255 : vector<1x32xf32> to vector<8x32xf32>
    %257 = arith.addf %253, %256 : vector<8x32xf32>
    %c1_187 = arith.constant 1 : index
    %c0_188 = arith.constant 0 : index
    %c0_189 = arith.constant 0 : index
    %258 = vector.load %arg7[%c1_187, %c0_188, %c0_189] : memref<2x32x48xf32, #tpu.memory_space<vmem>>, vector<1x32x48xf32>
    %259 = vector.shape_cast %258 : vector<1x32x48xf32> to vector<32x48xf32>
    %cst_190 = arith.constant dense<0.000000e+00> : vector<8x48xf32>
    %260 = tpu.matmul %257, %259, %cst_190 {dimension_numbers = #tpu.dot_dimension_numbers<[1], [0], [0], [1], [0, 0, 1, 1], [], []>} : vector<8x32xf32>, vector<32x48xf32>, vector<8x48xf32> -> vector<8x48xf32>
    %c1_191 = arith.constant 1 : index
    %c0_192 = arith.constant 0 : index
    %c0_193 = arith.constant 0 : index
    %261 = vector.load %arg8[%c1_191, %c0_192, %c0_193] : memref<2x1x48xf32, #tpu.memory_space<vmem>>, vector<1x1x48xf32>
    %262 = vector.shape_cast %261 : vector<1x1x48xf32> to vector<1x48xf32>
    %263 = vector.broadcast %262 : vector<1x48xf32> to vector<8x48xf32>
    %264 = arith.addf %260, %263 : vector<8x48xf32>
    %c1_194 = arith.constant 1 : index
    %c0_195 = arith.constant 0 : index
    %c0_196 = arith.constant 0 : index
    %265 = vector.load %arg9[%c1_194, %c0_195, %c0_196] : memref<2x1x48xf32, #tpu.memory_space<vmem>>, vector<1x1x48xf32>
    %266 = vector.shape_cast %265 : vector<1x1x48xf32> to vector<1x48xf32>
    %267 = vector.broadcast %266 : vector<1x48xf32> to vector<8x48xf32>
    %268 = arith.mulf %264, %267 : vector<8x48xf32>
    %c1_197 = arith.constant 1 : index
    %c0_198 = arith.constant 0 : index
    %c0_199 = arith.constant 0 : index
    %269 = vector.load %arg10[%c1_197, %c0_198, %c0_199] : memref<2x1x48xf32, #tpu.memory_space<vmem>>, vector<1x1x48xf32>
    %270 = vector.shape_cast %269 : vector<1x1x48xf32> to vector<1x48xf32>
    %271 = vector.broadcast %270 : vector<1x48xf32> to vector<8x48xf32>
    %272 = arith.addf %268, %271 : vector<8x48xf32>
    %273 = vector.extract_strided_slice %272 {offsets = [0, 0], sizes = [8, 16], strides = [1, 1]} : vector<8x48xf32> to vector<8x16xf32>
    %274 = vector.extract_strided_slice %272 {offsets = [0, 16], sizes = [8, 16], strides = [1, 1]} : vector<8x48xf32> to vector<8x16xf32>
    %275 = vector.extract_strided_slice %272 {offsets = [0, 32], sizes = [8, 16], strides = [1, 1]} : vector<8x48xf32> to vector<8x16xf32>
    %c1_200 = arith.constant 1 : index
    %c0_201 = arith.constant 0 : index
    %c0_202 = arith.constant 0 : index
    %276 = vector.load %arg11[%c1_200, %c0_201, %c0_202] : memref<2x16x32xf32, #tpu.memory_space<vmem>>, vector<1x16x32xf32>
    %277 = vector.shape_cast %276 : vector<1x16x32xf32> to vector<16x32xf32>
    %cst_203 = arith.constant dense<0.000000e+00> : vector<8x32xf32>
    %278 = tpu.matmul %274, %277, %cst_203 {dimension_numbers = #tpu.dot_dimension_numbers<[1], [0], [0], [1], [0, 0, 1, 1], [], []>} : vector<8x16xf32>, vector<16x32xf32>, vector<8x32xf32> -> vector<8x32xf32>
    %c1_204 = arith.constant 1 : index
    %c0_205 = arith.constant 0 : index
    %c0_206 = arith.constant 0 : index
    %279 = vector.load %arg12[%c1_204, %c0_205, %c0_206] : memref<2x1x32xf32, #tpu.memory_space<vmem>>, vector<1x1x32xf32>
    %280 = vector.shape_cast %279 : vector<1x1x32xf32> to vector<1x32xf32>
    %281 = vector.broadcast %280 : vector<1x32xf32> to vector<8x32xf32>
    %282 = arith.addf %278, %281 : vector<8x32xf32>
    %283 = vector.extract_strided_slice %282 {offsets = [0, 0], sizes = [8, 16], strides = [1, 1]} : vector<8x32xf32> to vector<8x16xf32>
    %284 = vector.extract_strided_slice %282 {offsets = [0, 16], sizes = [8, 16], strides = [1, 1]} : vector<8x32xf32> to vector<8x16xf32>
    %c1_207 = arith.constant 1 : index
    %c0_208 = arith.constant 0 : index
    %c0_209 = arith.constant 0 : index
    %285 = vector.load %arg13[%c1_207, %c0_208, %c0_209] : memref<2x16x16xf32, #tpu.memory_space<vmem>>, vector<1x16x16xf32>
    %286 = vector.shape_cast %285 : vector<1x16x16xf32> to vector<16x16xf32>
    %cst_210 = arith.constant 0.000000e+00 : f32
    %287 = vector.broadcast %cst_210 : f32 to vector<8x16xf32>
    %288 = vector.extract_strided_slice %283 {offsets = [0, 0], sizes = [8, 4], strides = [1, 1]} : vector<8x16xf32> to vector<8x4xf32>
    %289 = vector.extract_strided_slice %284 {offsets = [0, 0], sizes = [8, 4], strides = [1, 1]} : vector<8x16xf32> to vector<8x4xf32>
    %290 = vector.extract_strided_slice %275 {offsets = [0, 0], sizes = [8, 4], strides = [1, 1]} : vector<8x16xf32> to vector<8x4xf32>
    %291 = tpu.transpose %289, [1, 0] : vector<8x4xf32> -> vector<4x8xf32>
    %cst_211 = arith.constant dense<0.000000e+00> : vector<8x8xf32>
    %292 = tpu.matmul %288, %291, %cst_211 {dimension_numbers = #tpu.dot_dimension_numbers<[1], [0], [0], [1], [0, 0, 1, 1], [], []>} : vector<8x4xf32>, vector<4x8xf32>, vector<8x8xf32> -> vector<8x8xf32>
    %cst_212 = arith.constant 5.000000e-01 : f32
    %293 = vector.broadcast %cst_212 : f32 to vector<8x8xf32>
    %294 = arith.mulf %292, %293 : vector<8x8xf32>
    %cst_213 = arith.constant dense<0xFF800000> : vector<8xf32>
    %295 = vector.multi_reduction <maximumf>, %294, %cst_213 [1] : vector<8x8xf32> to vector<8xf32>
    %296 = vector.shape_cast %295 : vector<8xf32> to vector<8x1xf32>
    %297 = vector.broadcast %296 : vector<8x1xf32> to vector<8x8xf32>
    %298 = arith.subf %294, %297 : vector<8x8xf32>
    %299 = math.exp %298 : vector<8x8xf32>
    %cst_214 = arith.constant dense<0.000000e+00> : vector<8xf32>
    %300 = vector.multi_reduction <add>, %299, %cst_214 [1] : vector<8x8xf32> to vector<8xf32>
    %301 = vector.shape_cast %300 : vector<8xf32> to vector<8x1xf32>
    %302 = tpu.reciprocal %301 {approx = true} : vector<8x1xf32> -> vector<8x1xf32>
    %303 = vector.broadcast %302 : vector<8x1xf32> to vector<8x8xf32>
    %304 = arith.mulf %299, %303 : vector<8x8xf32>
    %cst_215 = arith.constant dense<0.000000e+00> : vector<8x4xf32>
    %305 = tpu.matmul %304, %290, %cst_215 {dimension_numbers = #tpu.dot_dimension_numbers<[1], [0], [0], [1], [0, 0, 1, 1], [], []>} : vector<8x8xf32>, vector<8x4xf32>, vector<8x4xf32> -> vector<8x4xf32>
    %306 = vector.extract_strided_slice %286 {offsets = [0, 0], sizes = [4, 16], strides = [1, 1]} : vector<16x16xf32> to vector<4x16xf32>
    %cst_216 = arith.constant dense<0.000000e+00> : vector<8x16xf32>
    %307 = tpu.matmul %305, %306, %cst_216 {dimension_numbers = #tpu.dot_dimension_numbers<[1], [0], [0], [1], [0, 0, 1, 1], [], []>} : vector<8x4xf32>, vector<4x16xf32>, vector<8x16xf32> -> vector<8x16xf32>
    %308 = arith.addf %287, %307 : vector<8x16xf32>
    %309 = vector.extract_strided_slice %283 {offsets = [0, 4], sizes = [8, 4], strides = [1, 1]} : vector<8x16xf32> to vector<8x4xf32>
    %310 = vector.extract_strided_slice %284 {offsets = [0, 4], sizes = [8, 4], strides = [1, 1]} : vector<8x16xf32> to vector<8x4xf32>
    %311 = vector.extract_strided_slice %275 {offsets = [0, 4], sizes = [8, 4], strides = [1, 1]} : vector<8x16xf32> to vector<8x4xf32>
    %312 = tpu.transpose %310, [1, 0] : vector<8x4xf32> -> vector<4x8xf32>
    %cst_217 = arith.constant dense<0.000000e+00> : vector<8x8xf32>
    %313 = tpu.matmul %309, %312, %cst_217 {dimension_numbers = #tpu.dot_dimension_numbers<[1], [0], [0], [1], [0, 0, 1, 1], [], []>} : vector<8x4xf32>, vector<4x8xf32>, vector<8x8xf32> -> vector<8x8xf32>
    %cst_218 = arith.constant 5.000000e-01 : f32
    %314 = vector.broadcast %cst_218 : f32 to vector<8x8xf32>
    %315 = arith.mulf %313, %314 : vector<8x8xf32>
    %cst_219 = arith.constant dense<0xFF800000> : vector<8xf32>
    %316 = vector.multi_reduction <maximumf>, %315, %cst_219 [1] : vector<8x8xf32> to vector<8xf32>
    %317 = vector.shape_cast %316 : vector<8xf32> to vector<8x1xf32>
    %318 = vector.broadcast %317 : vector<8x1xf32> to vector<8x8xf32>
    %319 = arith.subf %315, %318 : vector<8x8xf32>
    %320 = math.exp %319 : vector<8x8xf32>
    %cst_220 = arith.constant dense<0.000000e+00> : vector<8xf32>
    %321 = vector.multi_reduction <add>, %320, %cst_220 [1] : vector<8x8xf32> to vector<8xf32>
    %322 = vector.shape_cast %321 : vector<8xf32> to vector<8x1xf32>
    %323 = tpu.reciprocal %322 {approx = true} : vector<8x1xf32> -> vector<8x1xf32>
    %324 = vector.broadcast %323 : vector<8x1xf32> to vector<8x8xf32>
    %325 = arith.mulf %320, %324 : vector<8x8xf32>
    %cst_221 = arith.constant dense<0.000000e+00> : vector<8x4xf32>
    %326 = tpu.matmul %325, %311, %cst_221 {dimension_numbers = #tpu.dot_dimension_numbers<[1], [0], [0], [1], [0, 0, 1, 1], [], []>} : vector<8x8xf32>, vector<8x4xf32>, vector<8x4xf32> -> vector<8x4xf32>
    %327 = vector.extract_strided_slice %286 {offsets = [4, 0], sizes = [4, 16], strides = [1, 1]} : vector<16x16xf32> to vector<4x16xf32>
    %cst_222 = arith.constant dense<0.000000e+00> : vector<8x16xf32>
    %328 = tpu.matmul %326, %327, %cst_222 {dimension_numbers = #tpu.dot_dimension_numbers<[1], [0], [0], [1], [0, 0, 1, 1], [], []>} : vector<8x4xf32>, vector<4x16xf32>, vector<8x16xf32> -> vector<8x16xf32>
    %329 = arith.addf %308, %328 : vector<8x16xf32>
    %330 = vector.extract_strided_slice %283 {offsets = [0, 8], sizes = [8, 4], strides = [1, 1]} : vector<8x16xf32> to vector<8x4xf32>
    %331 = vector.extract_strided_slice %284 {offsets = [0, 8], sizes = [8, 4], strides = [1, 1]} : vector<8x16xf32> to vector<8x4xf32>
    %332 = vector.extract_strided_slice %275 {offsets = [0, 8], sizes = [8, 4], strides = [1, 1]} : vector<8x16xf32> to vector<8x4xf32>
    %333 = tpu.transpose %331, [1, 0] : vector<8x4xf32> -> vector<4x8xf32>
    %cst_223 = arith.constant dense<0.000000e+00> : vector<8x8xf32>
    %334 = tpu.matmul %330, %333, %cst_223 {dimension_numbers = #tpu.dot_dimension_numbers<[1], [0], [0], [1], [0, 0, 1, 1], [], []>} : vector<8x4xf32>, vector<4x8xf32>, vector<8x8xf32> -> vector<8x8xf32>
    %cst_224 = arith.constant 5.000000e-01 : f32
    %335 = vector.broadcast %cst_224 : f32 to vector<8x8xf32>
    %336 = arith.mulf %334, %335 : vector<8x8xf32>
    %cst_225 = arith.constant dense<0xFF800000> : vector<8xf32>
    %337 = vector.multi_reduction <maximumf>, %336, %cst_225 [1] : vector<8x8xf32> to vector<8xf32>
    %338 = vector.shape_cast %337 : vector<8xf32> to vector<8x1xf32>
    %339 = vector.broadcast %338 : vector<8x1xf32> to vector<8x8xf32>
    %340 = arith.subf %336, %339 : vector<8x8xf32>
    %341 = math.exp %340 : vector<8x8xf32>
    %cst_226 = arith.constant dense<0.000000e+00> : vector<8xf32>
    %342 = vector.multi_reduction <add>, %341, %cst_226 [1] : vector<8x8xf32> to vector<8xf32>
    %343 = vector.shape_cast %342 : vector<8xf32> to vector<8x1xf32>
    %344 = tpu.reciprocal %343 {approx = true} : vector<8x1xf32> -> vector<8x1xf32>
    %345 = vector.broadcast %344 : vector<8x1xf32> to vector<8x8xf32>
    %346 = arith.mulf %341, %345 : vector<8x8xf32>
    %cst_227 = arith.constant dense<0.000000e+00> : vector<8x4xf32>
    %347 = tpu.matmul %346, %332, %cst_227 {dimension_numbers = #tpu.dot_dimension_numbers<[1], [0], [0], [1], [0, 0, 1, 1], [], []>} : vector<8x8xf32>, vector<8x4xf32>, vector<8x4xf32> -> vector<8x4xf32>
    %348 = vector.extract_strided_slice %286 {offsets = [8, 0], sizes = [4, 16], strides = [1, 1]} : vector<16x16xf32> to vector<4x16xf32>
    %cst_228 = arith.constant dense<0.000000e+00> : vector<8x16xf32>
    %349 = tpu.matmul %347, %348, %cst_228 {dimension_numbers = #tpu.dot_dimension_numbers<[1], [0], [0], [1], [0, 0, 1, 1], [], []>} : vector<8x4xf32>, vector<4x16xf32>, vector<8x16xf32> -> vector<8x16xf32>
    %350 = arith.addf %329, %349 : vector<8x16xf32>
    %351 = vector.extract_strided_slice %283 {offsets = [0, 12], sizes = [8, 4], strides = [1, 1]} : vector<8x16xf32> to vector<8x4xf32>
    %352 = vector.extract_strided_slice %284 {offsets = [0, 12], sizes = [8, 4], strides = [1, 1]} : vector<8x16xf32> to vector<8x4xf32>
    %353 = vector.extract_strided_slice %275 {offsets = [0, 12], sizes = [8, 4], strides = [1, 1]} : vector<8x16xf32> to vector<8x4xf32>
    %354 = tpu.transpose %352, [1, 0] : vector<8x4xf32> -> vector<4x8xf32>
    %cst_229 = arith.constant dense<0.000000e+00> : vector<8x8xf32>
    %355 = tpu.matmul %351, %354, %cst_229 {dimension_numbers = #tpu.dot_dimension_numbers<[1], [0], [0], [1], [0, 0, 1, 1], [], []>} : vector<8x4xf32>, vector<4x8xf32>, vector<8x8xf32> -> vector<8x8xf32>
    %cst_230 = arith.constant 5.000000e-01 : f32
    %356 = vector.broadcast %cst_230 : f32 to vector<8x8xf32>
    %357 = arith.mulf %355, %356 : vector<8x8xf32>
    %cst_231 = arith.constant dense<0xFF800000> : vector<8xf32>
    %358 = vector.multi_reduction <maximumf>, %357, %cst_231 [1] : vector<8x8xf32> to vector<8xf32>
    %359 = vector.shape_cast %358 : vector<8xf32> to vector<8x1xf32>
    %360 = vector.broadcast %359 : vector<8x1xf32> to vector<8x8xf32>
    %361 = arith.subf %357, %360 : vector<8x8xf32>
    %362 = math.exp %361 : vector<8x8xf32>
    %cst_232 = arith.constant dense<0.000000e+00> : vector<8xf32>
    %363 = vector.multi_reduction <add>, %362, %cst_232 [1] : vector<8x8xf32> to vector<8xf32>
    %364 = vector.shape_cast %363 : vector<8xf32> to vector<8x1xf32>
    %365 = tpu.reciprocal %364 {approx = true} : vector<8x1xf32> -> vector<8x1xf32>
    %366 = vector.broadcast %365 : vector<8x1xf32> to vector<8x8xf32>
    %367 = arith.mulf %362, %366 : vector<8x8xf32>
    %cst_233 = arith.constant dense<0.000000e+00> : vector<8x4xf32>
    %368 = tpu.matmul %367, %353, %cst_233 {dimension_numbers = #tpu.dot_dimension_numbers<[1], [0], [0], [1], [0, 0, 1, 1], [], []>} : vector<8x8xf32>, vector<8x4xf32>, vector<8x4xf32> -> vector<8x4xf32>
    %369 = vector.extract_strided_slice %286 {offsets = [12, 0], sizes = [4, 16], strides = [1, 1]} : vector<16x16xf32> to vector<4x16xf32>
    %cst_234 = arith.constant dense<0.000000e+00> : vector<8x16xf32>
    %370 = tpu.matmul %368, %369, %cst_234 {dimension_numbers = #tpu.dot_dimension_numbers<[1], [0], [0], [1], [0, 0, 1, 1], [], []>} : vector<8x4xf32>, vector<4x16xf32>, vector<8x16xf32> -> vector<8x16xf32>
    %371 = arith.addf %350, %370 : vector<8x16xf32>
    %c1_235 = arith.constant 1 : index
    %c0_236 = arith.constant 0 : index
    %c0_237 = arith.constant 0 : index
    %372 = vector.load %arg14[%c1_235, %c0_236, %c0_237] : memref<2x1x16xf32, #tpu.memory_space<vmem>>, vector<1x1x16xf32>
    %373 = vector.shape_cast %372 : vector<1x1x16xf32> to vector<1x16xf32>
    %374 = vector.broadcast %373 : vector<1x16xf32> to vector<8x16xf32>
    %375 = arith.addf %371, %374 : vector<8x16xf32>
    %376 = arith.addf %375, %273 : vector<8x16xf32>
    %c1_238 = arith.constant 1 : index
    %c0_239 = arith.constant 0 : index
    %c0_240 = arith.constant 0 : index
    %377 = vector.load %arg15[%c1_238, %c0_239, %c0_240] : memref<2x1x16xf32, #tpu.memory_space<vmem>>, vector<1x1x16xf32>
    %378 = vector.shape_cast %377 : vector<1x1x16xf32> to vector<1x16xf32>
    %379 = vector.broadcast %378 : vector<1x16xf32> to vector<8x16xf32>
    %380 = arith.mulf %376, %379 : vector<8x16xf32>
    %c1_241 = arith.constant 1 : index
    %c0_242 = arith.constant 0 : index
    %c0_243 = arith.constant 0 : index
    %381 = vector.load %arg16[%c1_241, %c0_242, %c0_243] : memref<2x1x16xf32, #tpu.memory_space<vmem>>, vector<1x1x16xf32>
    %382 = vector.shape_cast %381 : vector<1x1x16xf32> to vector<1x16xf32>
    %383 = vector.broadcast %382 : vector<1x16xf32> to vector<8x16xf32>
    %384 = arith.addf %380, %383 : vector<8x16xf32>
    %c1_244 = arith.constant 1 : index
    %c0_245 = arith.constant 0 : index
    %c0_246 = arith.constant 0 : index
    %c0_247 = arith.constant 0 : index
    %385 = vector.load %arg17[%c1_244, %c0_245, %c0_246, %c0_247] : memref<2x4x16x64xf32, #tpu.memory_space<vmem>>, vector<1x1x16x64xf32>
    %386 = vector.shape_cast %385 : vector<1x1x16x64xf32> to vector<16x64xf32>
    %cst_248 = arith.constant dense<0.000000e+00> : vector<8x64xf32>
    %387 = tpu.matmul %384, %386, %cst_248 {dimension_numbers = #tpu.dot_dimension_numbers<[1], [0], [0], [1], [0, 0, 1, 1], [], []>} : vector<8x16xf32>, vector<16x64xf32>, vector<8x64xf32> -> vector<8x64xf32>
    %c1_249 = arith.constant 1 : index
    %c0_250 = arith.constant 0 : index
    %c0_251 = arith.constant 0 : index
    %c0_252 = arith.constant 0 : index
    %388 = vector.load %arg18[%c1_249, %c0_250, %c0_251, %c0_252] : memref<2x4x1x64xf32, #tpu.memory_space<vmem>>, vector<1x1x1x64xf32>
    %389 = vector.shape_cast %388 : vector<1x1x1x64xf32> to vector<1x64xf32>
    %390 = vector.broadcast %389 : vector<1x64xf32> to vector<8x64xf32>
    %391 = arith.addf %387, %390 : vector<8x64xf32>
    %cst_253 = arith.constant 0.000000e+00 : f32
    %392 = vector.broadcast %cst_253 : f32 to vector<8x64xf32>
    %393 = arith.maximumf %391, %392 : vector<8x64xf32>
    %c1_254 = arith.constant 1 : index
    %c0_255 = arith.constant 0 : index
    %c0_256 = arith.constant 0 : index
    %c0_257 = arith.constant 0 : index
    %394 = vector.load %arg19[%c1_254, %c0_255, %c0_256, %c0_257] : memref<2x4x64x16xf32, #tpu.memory_space<vmem>>, vector<1x1x64x16xf32>
    %395 = vector.shape_cast %394 : vector<1x1x64x16xf32> to vector<64x16xf32>
    %cst_258 = arith.constant dense<0.000000e+00> : vector<8x16xf32>
    %396 = tpu.matmul %393, %395, %cst_258 {dimension_numbers = #tpu.dot_dimension_numbers<[1], [0], [0], [1], [0, 0, 1, 1], [], []>} : vector<8x64xf32>, vector<64x16xf32>, vector<8x16xf32> -> vector<8x16xf32>
    %c1_259 = arith.constant 1 : index
    %c0_260 = arith.constant 0 : index
    %c0_261 = arith.constant 0 : index
    %c0_262 = arith.constant 0 : index
    %397 = vector.load %arg20[%c1_259, %c0_260, %c0_261, %c0_262] : memref<2x4x1x16xf32, #tpu.memory_space<vmem>>, vector<1x1x1x16xf32>
    %398 = vector.shape_cast %397 : vector<1x1x1x16xf32> to vector<1x16xf32>
    %399 = vector.broadcast %398 : vector<1x16xf32> to vector<8x16xf32>
    %400 = arith.addf %396, %399 : vector<8x16xf32>
    %401 = arith.addf %400, %384 : vector<8x16xf32>
    %c1_263 = arith.constant 1 : index
    %c0_264 = arith.constant 0 : index
    %c0_265 = arith.constant 0 : index
    %c0_266 = arith.constant 0 : index
    %402 = vector.load %arg21[%c1_263, %c0_264, %c0_265, %c0_266] : memref<2x4x1x16xf32, #tpu.memory_space<vmem>>, vector<1x1x1x16xf32>
    %403 = vector.shape_cast %402 : vector<1x1x1x16xf32> to vector<1x16xf32>
    %404 = vector.broadcast %403 : vector<1x16xf32> to vector<8x16xf32>
    %405 = arith.mulf %401, %404 : vector<8x16xf32>
    %c1_267 = arith.constant 1 : index
    %c0_268 = arith.constant 0 : index
    %c0_269 = arith.constant 0 : index
    %c0_270 = arith.constant 0 : index
    %406 = vector.load %arg22[%c1_267, %c0_268, %c0_269, %c0_270] : memref<2x4x1x16xf32, #tpu.memory_space<vmem>>, vector<1x1x1x16xf32>
    %407 = vector.shape_cast %406 : vector<1x1x1x16xf32> to vector<1x16xf32>
    %408 = vector.broadcast %407 : vector<1x16xf32> to vector<8x16xf32>
    %409 = arith.addf %405, %408 : vector<8x16xf32>
    %c1_271 = arith.constant 1 : index
    %c1_272 = arith.constant 1 : index
    %c0_273 = arith.constant 0 : index
    %c0_274 = arith.constant 0 : index
    %410 = vector.load %arg17[%c1_271, %c1_272, %c0_273, %c0_274] : memref<2x4x16x64xf32, #tpu.memory_space<vmem>>, vector<1x1x16x64xf32>
    %411 = vector.shape_cast %410 : vector<1x1x16x64xf32> to vector<16x64xf32>
    %cst_275 = arith.constant dense<0.000000e+00> : vector<8x64xf32>
    %412 = tpu.matmul %409, %411, %cst_275 {dimension_numbers = #tpu.dot_dimension_numbers<[1], [0], [0], [1], [0, 0, 1, 1], [], []>} : vector<8x16xf32>, vector<16x64xf32>, vector<8x64xf32> -> vector<8x64xf32>
    %c1_276 = arith.constant 1 : index
    %c1_277 = arith.constant 1 : index
    %c0_278 = arith.constant 0 : index
    %c0_279 = arith.constant 0 : index
    %413 = vector.load %arg18[%c1_276, %c1_277, %c0_278, %c0_279] : memref<2x4x1x64xf32, #tpu.memory_space<vmem>>, vector<1x1x1x64xf32>
    %414 = vector.shape_cast %413 : vector<1x1x1x64xf32> to vector<1x64xf32>
    %415 = vector.broadcast %414 : vector<1x64xf32> to vector<8x64xf32>
    %416 = arith.addf %412, %415 : vector<8x64xf32>
    %cst_280 = arith.constant 0.000000e+00 : f32
    %417 = vector.broadcast %cst_280 : f32 to vector<8x64xf32>
    %418 = arith.maximumf %416, %417 : vector<8x64xf32>
    %c1_281 = arith.constant 1 : index
    %c1_282 = arith.constant 1 : index
    %c0_283 = arith.constant 0 : index
    %c0_284 = arith.constant 0 : index
    %419 = vector.load %arg19[%c1_281, %c1_282, %c0_283, %c0_284] : memref<2x4x64x16xf32, #tpu.memory_space<vmem>>, vector<1x1x64x16xf32>
    %420 = vector.shape_cast %419 : vector<1x1x64x16xf32> to vector<64x16xf32>
    %cst_285 = arith.constant dense<0.000000e+00> : vector<8x16xf32>
    %421 = tpu.matmul %418, %420, %cst_285 {dimension_numbers = #tpu.dot_dimension_numbers<[1], [0], [0], [1], [0, 0, 1, 1], [], []>} : vector<8x64xf32>, vector<64x16xf32>, vector<8x16xf32> -> vector<8x16xf32>
    %c1_286 = arith.constant 1 : index
    %c1_287 = arith.constant 1 : index
    %c0_288 = arith.constant 0 : index
    %c0_289 = arith.constant 0 : index
    %422 = vector.load %arg20[%c1_286, %c1_287, %c0_288, %c0_289] : memref<2x4x1x16xf32, #tpu.memory_space<vmem>>, vector<1x1x1x16xf32>
    %423 = vector.shape_cast %422 : vector<1x1x1x16xf32> to vector<1x16xf32>
    %424 = vector.broadcast %423 : vector<1x16xf32> to vector<8x16xf32>
    %425 = arith.addf %421, %424 : vector<8x16xf32>
    %426 = arith.addf %425, %409 : vector<8x16xf32>
    %c1_290 = arith.constant 1 : index
    %c1_291 = arith.constant 1 : index
    %c0_292 = arith.constant 0 : index
    %c0_293 = arith.constant 0 : index
    %427 = vector.load %arg21[%c1_290, %c1_291, %c0_292, %c0_293] : memref<2x4x1x16xf32, #tpu.memory_space<vmem>>, vector<1x1x1x16xf32>
    %428 = vector.shape_cast %427 : vector<1x1x1x16xf32> to vector<1x16xf32>
    %429 = vector.broadcast %428 : vector<1x16xf32> to vector<8x16xf32>
    %430 = arith.mulf %426, %429 : vector<8x16xf32>
    %c1_294 = arith.constant 1 : index
    %c1_295 = arith.constant 1 : index
    %c0_296 = arith.constant 0 : index
    %c0_297 = arith.constant 0 : index
    %431 = vector.load %arg22[%c1_294, %c1_295, %c0_296, %c0_297] : memref<2x4x1x16xf32, #tpu.memory_space<vmem>>, vector<1x1x1x16xf32>
    %432 = vector.shape_cast %431 : vector<1x1x1x16xf32> to vector<1x16xf32>
    %433 = vector.broadcast %432 : vector<1x16xf32> to vector<8x16xf32>
    %434 = arith.addf %430, %433 : vector<8x16xf32>
    %c1_298 = arith.constant 1 : index
    %c2_299 = arith.constant 2 : index
    %c0_300 = arith.constant 0 : index
    %c0_301 = arith.constant 0 : index
    %435 = vector.load %arg17[%c1_298, %c2_299, %c0_300, %c0_301] : memref<2x4x16x64xf32, #tpu.memory_space<vmem>>, vector<1x1x16x64xf32>
    %436 = vector.shape_cast %435 : vector<1x1x16x64xf32> to vector<16x64xf32>
    %cst_302 = arith.constant dense<0.000000e+00> : vector<8x64xf32>
    %437 = tpu.matmul %434, %436, %cst_302 {dimension_numbers = #tpu.dot_dimension_numbers<[1], [0], [0], [1], [0, 0, 1, 1], [], []>} : vector<8x16xf32>, vector<16x64xf32>, vector<8x64xf32> -> vector<8x64xf32>
    %c1_303 = arith.constant 1 : index
    %c2_304 = arith.constant 2 : index
    %c0_305 = arith.constant 0 : index
    %c0_306 = arith.constant 0 : index
    %438 = vector.load %arg18[%c1_303, %c2_304, %c0_305, %c0_306] : memref<2x4x1x64xf32, #tpu.memory_space<vmem>>, vector<1x1x1x64xf32>
    %439 = vector.shape_cast %438 : vector<1x1x1x64xf32> to vector<1x64xf32>
    %440 = vector.broadcast %439 : vector<1x64xf32> to vector<8x64xf32>
    %441 = arith.addf %437, %440 : vector<8x64xf32>
    %cst_307 = arith.constant 0.000000e+00 : f32
    %442 = vector.broadcast %cst_307 : f32 to vector<8x64xf32>
    %443 = arith.maximumf %441, %442 : vector<8x64xf32>
    %c1_308 = arith.constant 1 : index
    %c2_309 = arith.constant 2 : index
    %c0_310 = arith.constant 0 : index
    %c0_311 = arith.constant 0 : index
    %444 = vector.load %arg19[%c1_308, %c2_309, %c0_310, %c0_311] : memref<2x4x64x16xf32, #tpu.memory_space<vmem>>, vector<1x1x64x16xf32>
    %445 = vector.shape_cast %444 : vector<1x1x64x16xf32> to vector<64x16xf32>
    %cst_312 = arith.constant dense<0.000000e+00> : vector<8x16xf32>
    %446 = tpu.matmul %443, %445, %cst_312 {dimension_numbers = #tpu.dot_dimension_numbers<[1], [0], [0], [1], [0, 0, 1, 1], [], []>} : vector<8x64xf32>, vector<64x16xf32>, vector<8x16xf32> -> vector<8x16xf32>
    %c1_313 = arith.constant 1 : index
    %c2_314 = arith.constant 2 : index
    %c0_315 = arith.constant 0 : index
    %c0_316 = arith.constant 0 : index
    %447 = vector.load %arg20[%c1_313, %c2_314, %c0_315, %c0_316] : memref<2x4x1x16xf32, #tpu.memory_space<vmem>>, vector<1x1x1x16xf32>
    %448 = vector.shape_cast %447 : vector<1x1x1x16xf32> to vector<1x16xf32>
    %449 = vector.broadcast %448 : vector<1x16xf32> to vector<8x16xf32>
    %450 = arith.addf %446, %449 : vector<8x16xf32>
    %451 = arith.addf %450, %434 : vector<8x16xf32>
    %c1_317 = arith.constant 1 : index
    %c2_318 = arith.constant 2 : index
    %c0_319 = arith.constant 0 : index
    %c0_320 = arith.constant 0 : index
    %452 = vector.load %arg21[%c1_317, %c2_318, %c0_319, %c0_320] : memref<2x4x1x16xf32, #tpu.memory_space<vmem>>, vector<1x1x1x16xf32>
    %453 = vector.shape_cast %452 : vector<1x1x1x16xf32> to vector<1x16xf32>
    %454 = vector.broadcast %453 : vector<1x16xf32> to vector<8x16xf32>
    %455 = arith.mulf %451, %454 : vector<8x16xf32>
    %c1_321 = arith.constant 1 : index
    %c2_322 = arith.constant 2 : index
    %c0_323 = arith.constant 0 : index
    %c0_324 = arith.constant 0 : index
    %456 = vector.load %arg22[%c1_321, %c2_322, %c0_323, %c0_324] : memref<2x4x1x16xf32, #tpu.memory_space<vmem>>, vector<1x1x1x16xf32>
    %457 = vector.shape_cast %456 : vector<1x1x1x16xf32> to vector<1x16xf32>
    %458 = vector.broadcast %457 : vector<1x16xf32> to vector<8x16xf32>
    %459 = arith.addf %455, %458 : vector<8x16xf32>
    %c1_325 = arith.constant 1 : index
    %c3_326 = arith.constant 3 : index
    %c0_327 = arith.constant 0 : index
    %c0_328 = arith.constant 0 : index
    %460 = vector.load %arg17[%c1_325, %c3_326, %c0_327, %c0_328] : memref<2x4x16x64xf32, #tpu.memory_space<vmem>>, vector<1x1x16x64xf32>
    %461 = vector.shape_cast %460 : vector<1x1x16x64xf32> to vector<16x64xf32>
    %cst_329 = arith.constant dense<0.000000e+00> : vector<8x64xf32>
    %462 = tpu.matmul %459, %461, %cst_329 {dimension_numbers = #tpu.dot_dimension_numbers<[1], [0], [0], [1], [0, 0, 1, 1], [], []>} : vector<8x16xf32>, vector<16x64xf32>, vector<8x64xf32> -> vector<8x64xf32>
    %c1_330 = arith.constant 1 : index
    %c3_331 = arith.constant 3 : index
    %c0_332 = arith.constant 0 : index
    %c0_333 = arith.constant 0 : index
    %463 = vector.load %arg18[%c1_330, %c3_331, %c0_332, %c0_333] : memref<2x4x1x64xf32, #tpu.memory_space<vmem>>, vector<1x1x1x64xf32>
    %464 = vector.shape_cast %463 : vector<1x1x1x64xf32> to vector<1x64xf32>
    %465 = vector.broadcast %464 : vector<1x64xf32> to vector<8x64xf32>
    %466 = arith.addf %462, %465 : vector<8x64xf32>
    %cst_334 = arith.constant 0.000000e+00 : f32
    %467 = vector.broadcast %cst_334 : f32 to vector<8x64xf32>
    %468 = arith.maximumf %466, %467 : vector<8x64xf32>
    %c1_335 = arith.constant 1 : index
    %c3_336 = arith.constant 3 : index
    %c0_337 = arith.constant 0 : index
    %c0_338 = arith.constant 0 : index
    %469 = vector.load %arg19[%c1_335, %c3_336, %c0_337, %c0_338] : memref<2x4x64x16xf32, #tpu.memory_space<vmem>>, vector<1x1x64x16xf32>
    %470 = vector.shape_cast %469 : vector<1x1x64x16xf32> to vector<64x16xf32>
    %cst_339 = arith.constant dense<0.000000e+00> : vector<8x16xf32>
    %471 = tpu.matmul %468, %470, %cst_339 {dimension_numbers = #tpu.dot_dimension_numbers<[1], [0], [0], [1], [0, 0, 1, 1], [], []>} : vector<8x64xf32>, vector<64x16xf32>, vector<8x16xf32> -> vector<8x16xf32>
    %c1_340 = arith.constant 1 : index
    %c3_341 = arith.constant 3 : index
    %c0_342 = arith.constant 0 : index
    %c0_343 = arith.constant 0 : index
    %472 = vector.load %arg20[%c1_340, %c3_341, %c0_342, %c0_343] : memref<2x4x1x16xf32, #tpu.memory_space<vmem>>, vector<1x1x1x16xf32>
    %473 = vector.shape_cast %472 : vector<1x1x1x16xf32> to vector<1x16xf32>
    %474 = vector.broadcast %473 : vector<1x16xf32> to vector<8x16xf32>
    %475 = arith.addf %471, %474 : vector<8x16xf32>
    %476 = arith.addf %475, %459 : vector<8x16xf32>
    %c1_344 = arith.constant 1 : index
    %c3_345 = arith.constant 3 : index
    %c0_346 = arith.constant 0 : index
    %c0_347 = arith.constant 0 : index
    %477 = vector.load %arg21[%c1_344, %c3_345, %c0_346, %c0_347] : memref<2x4x1x16xf32, #tpu.memory_space<vmem>>, vector<1x1x1x16xf32>
    %478 = vector.shape_cast %477 : vector<1x1x1x16xf32> to vector<1x16xf32>
    %479 = vector.broadcast %478 : vector<1x16xf32> to vector<8x16xf32>
    %480 = arith.mulf %476, %479 : vector<8x16xf32>
    %c1_348 = arith.constant 1 : index
    %c3_349 = arith.constant 3 : index
    %c0_350 = arith.constant 0 : index
    %c0_351 = arith.constant 0 : index
    %481 = vector.load %arg22[%c1_348, %c3_349, %c0_350, %c0_351] : memref<2x4x1x16xf32, #tpu.memory_space<vmem>>, vector<1x1x1x16xf32>
    %482 = vector.shape_cast %481 : vector<1x1x1x16xf32> to vector<1x16xf32>
    %483 = vector.broadcast %482 : vector<1x16xf32> to vector<8x16xf32>
    %484 = arith.addf %480, %483 : vector<8x16xf32>
    %c1_352 = arith.constant 1 : index
    %c0_353 = arith.constant 0 : index
    %c0_354 = arith.constant 0 : index
    %485 = vector.load %arg23[%c1_352, %c0_353, %c0_354] : memref<2x16x32xf32, #tpu.memory_space<vmem>>, vector<1x16x32xf32>
    %486 = vector.shape_cast %485 : vector<1x16x32xf32> to vector<16x32xf32>
    %cst_355 = arith.constant dense<0.000000e+00> : vector<8x32xf32>
    %487 = tpu.matmul %484, %486, %cst_355 {dimension_numbers = #tpu.dot_dimension_numbers<[1], [0], [0], [1], [0, 0, 1, 1], [], []>} : vector<8x16xf32>, vector<16x32xf32>, vector<8x32xf32> -> vector<8x32xf32>
    %c1_356 = arith.constant 1 : index
    %c0_357 = arith.constant 0 : index
    %c0_358 = arith.constant 0 : index
    %488 = vector.load %arg24[%c1_356, %c0_357, %c0_358] : memref<2x1x32xf32, #tpu.memory_space<vmem>>, vector<1x1x32xf32>
    %489 = vector.shape_cast %488 : vector<1x1x32xf32> to vector<1x32xf32>
    %490 = vector.broadcast %489 : vector<1x32xf32> to vector<8x32xf32>
    %491 = arith.addf %487, %490 : vector<8x32xf32>
    %492 = arith.addf %491, %257 : vector<8x32xf32>
    %c1_359 = arith.constant 1 : index
    %c0_360 = arith.constant 0 : index
    %c0_361 = arith.constant 0 : index
    %493 = vector.load %arg25[%c1_359, %c0_360, %c0_361] : memref<2x1x32xf32, #tpu.memory_space<vmem>>, vector<1x1x32xf32>
    %494 = vector.shape_cast %493 : vector<1x1x32xf32> to vector<1x32xf32>
    %495 = vector.broadcast %494 : vector<1x32xf32> to vector<8x32xf32>
    %496 = arith.mulf %492, %495 : vector<8x32xf32>
    %c1_362 = arith.constant 1 : index
    %c0_363 = arith.constant 0 : index
    %c0_364 = arith.constant 0 : index
    %497 = vector.load %arg26[%c1_362, %c0_363, %c0_364] : memref<2x1x32xf32, #tpu.memory_space<vmem>>, vector<1x1x32xf32>
    %498 = vector.shape_cast %497 : vector<1x1x32xf32> to vector<1x32xf32>
    %499 = vector.broadcast %498 : vector<1x32xf32> to vector<8x32xf32>
    %500 = arith.addf %496, %499 : vector<8x32xf32>
    %501 = vector.extract_strided_slice %500 {offsets = [0, 0], sizes = [1, 32], strides = [1, 1]} : vector<8x32xf32> to vector<1x32xf32>
    %c0_365 = arith.constant 0 : index
    %c0_366 = arith.constant 0 : index
    %502 = vector.load %arg27[%c0_365, %c0_366] : memref<32x32xf32, #tpu.memory_space<vmem>>, vector<32x32xf32>
    %cst_367 = arith.constant dense<0.000000e+00> : vector<1x32xf32>
    %503 = tpu.matmul %501, %502, %cst_367 {dimension_numbers = #tpu.dot_dimension_numbers<[1], [0], [0], [1], [0, 0, 1, 1], [], []>} : vector<1x32xf32>, vector<32x32xf32>, vector<1x32xf32> -> vector<1x32xf32>
    %c0_368 = arith.constant 0 : index
    %c0_369 = arith.constant 0 : index
    %504 = vector.load %arg28[%c0_368, %c0_369] : memref<1x32xf32, #tpu.memory_space<vmem>>, vector<1x32xf32>
    %505 = arith.addf %503, %504 : vector<1x32xf32>
    %506 = math.tanh %505 : vector<1x32xf32>
    %c0_370 = arith.constant 0 : index
    %c0_371 = arith.constant 0 : index
    %507 = vector.load %arg29[%c0_370, %c0_371] : memref<32x32xf32, #tpu.memory_space<vmem>>, vector<32x32xf32>
    %cst_372 = arith.constant dense<0.000000e+00> : vector<1x32xf32>
    %508 = tpu.matmul %506, %507, %cst_372 {dimension_numbers = #tpu.dot_dimension_numbers<[1], [0], [0], [1], [0, 0, 1, 1], [], []>} : vector<1x32xf32>, vector<32x32xf32>, vector<1x32xf32> -> vector<1x32xf32>
    %c0_373 = arith.constant 0 : index
    %c0_374 = arith.constant 0 : index
    %509 = vector.load %arg30[%c0_373, %c0_374] : memref<1x32xf32, #tpu.memory_space<vmem>>, vector<1x32xf32>
    %510 = arith.addf %508, %509 : vector<1x32xf32>
    %cst_375 = arith.constant 0.000000e+00 : f32
    %511 = vector.broadcast %cst_375 : f32 to vector<1x32xf32>
    %512 = arith.maximumf %510, %511 : vector<1x32xf32>
    %c0_376 = arith.constant 0 : index
    %c0_377 = arith.constant 0 : index
    %513 = vector.load %arg31[%c0_376, %c0_377] : memref<32x32xf32, #tpu.memory_space<vmem>>, vector<32x32xf32>
    %cst_378 = arith.constant dense<0.000000e+00> : vector<1x32xf32>
    %514 = tpu.matmul %512, %513, %cst_378 {dimension_numbers = #tpu.dot_dimension_numbers<[1], [0], [0], [1], [0, 0, 1, 1], [], []>} : vector<1x32xf32>, vector<32x32xf32>, vector<1x32xf32> -> vector<1x32xf32>
    %c0_379 = arith.constant 0 : index
    %c0_380 = arith.constant 0 : index
    %515 = vector.load %arg32[%c0_379, %c0_380] : memref<1x32xf32, #tpu.memory_space<vmem>>, vector<1x32xf32>
    %516 = arith.addf %514, %515 : vector<1x32xf32>
    %cst_381 = arith.constant 0.000000e+00 : f32
    %517 = vector.broadcast %cst_381 : f32 to vector<1x32xf32>
    %518 = arith.maximumf %516, %517 : vector<1x32xf32>
    %c0_382 = arith.constant 0 : index
    %c0_383 = arith.constant 0 : index
    %519 = vector.load %arg33[%c0_382, %c0_383] : memref<32x5xf32, #tpu.memory_space<vmem>>, vector<32x5xf32>
    %cst_384 = arith.constant dense<0.000000e+00> : vector<1x5xf32>
    %520 = tpu.matmul %518, %519, %cst_384 {dimension_numbers = #tpu.dot_dimension_numbers<[1], [0], [0], [1], [0, 0, 1, 1], [], []>} : vector<1x32xf32>, vector<32x5xf32>, vector<1x5xf32> -> vector<1x5xf32>
    %c0_385 = arith.constant 0 : index
    %c0_386 = arith.constant 0 : index
    %521 = vector.load %arg34[%c0_385, %c0_386] : memref<1x5xf32, #tpu.memory_space<vmem>>, vector<1x5xf32>
    %522 = arith.addf %520, %521 : vector<1x5xf32>
    %c0_387 = arith.constant 0 : index
    %c0_388 = arith.constant 0 : index
    %c0_389 = arith.constant 0 : index
    %523 = vector.load %arg35[%c0_387, %c0_388, %c0_389] : memref<1x1x5xf32, #tpu.memory_space<vmem>>, vector<1x1x5xf32>
    %524 = vector.shape_cast %523 : vector<1x1x5xf32> to vector<1x5xf32>
    %525 = vector.shape_cast %522 : vector<1x5xf32> to vector<1x1x5xf32>
    tpu.vector_store %arg35[%c0_387, %c0_388, %c0_389], %525 {strides = array<i32>} : memref<1x1x5xf32, #tpu.memory_space<vmem>>, vector<1x1x5xf32>,
    return
  }
  func.func @transform_0(%arg0: i32) -> (i32, i32, i32) {
    %c0_i32 = arith.constant 0 : i32
    %c0_i32_0 = arith.constant 0 : i32
    %c0_i32_1 = arith.constant 0 : i32
    return %arg0, %c0_i32, %c0_i32_0 : i32, i32, i32
  }
  func.func @transform_1(%arg0: i32) -> (i32, i32) {
    %c0_i32 = arith.constant 0 : i32
    %c0_i32_0 = arith.constant 0 : i32
    %c0_i32_1 = arith.constant 0 : i32
    return %c0_i32, %c0_i32_0 : i32, i32
  }
  func.func @transform_2(%arg0: i32) -> (i32, i32) {
    %c0_i32 = arith.constant 0 : i32
    %c0_i32_0 = arith.constant 0 : i32
    %c0_i32_1 = arith.constant 0 : i32
    return %c0_i32, %c0_i32_0 : i32, i32
  }
  func.func @transform_3(%arg0: i32) -> (i32, i32) {
    %c0_i32 = arith.constant 0 : i32
    %c0_i32_0 = arith.constant 0 : i32
    %c0_i32_1 = arith.constant 0 : i32
    return %c0_i32, %c0_i32_0 : i32, i32
  }
  func.func @transform_4(%arg0: i32) -> (i32, i32) {
    %c0_i32 = arith.constant 0 : i32
    %c0_i32_0 = arith.constant 0 : i32
    %c0_i32_1 = arith.constant 0 : i32
    return %c0_i32, %c0_i32_0 : i32, i32
  }
  func.func @transform_5(%arg0: i32) -> (i32, i32) {
    %c0_i32 = arith.constant 0 : i32
    %c0_i32_0 = arith.constant 0 : i32
    %c0_i32_1 = arith.constant 0 : i32
    return %c0_i32, %c0_i32_0 : i32, i32
  }
  func.func @transform_6(%arg0: i32) -> (i32, i32, i32) {
    %c0_i32 = arith.constant 0 : i32
    %c0_i32_0 = arith.constant 0 : i32
    %c0_i32_1 = arith.constant 0 : i32
    %c0_i32_2 = arith.constant 0 : i32
    return %c0_i32, %c0_i32_0, %c0_i32_1 : i32, i32, i32
  }
  func.func @transform_7(%arg0: i32) -> (i32, i32, i32) {
    %c0_i32 = arith.constant 0 : i32
    %c0_i32_0 = arith.constant 0 : i32
    %c0_i32_1 = arith.constant 0 : i32
    %c0_i32_2 = arith.constant 0 : i32
    return %c0_i32, %c0_i32_0, %c0_i32_1 : i32, i32, i32
  }
  func.func @transform_8(%arg0: i32) -> (i32, i32, i32) {
    %c0_i32 = arith.constant 0 : i32
    %c0_i32_0 = arith.constant 0 : i32
    %c0_i32_1 = arith.constant 0 : i32
    %c0_i32_2 = arith.constant 0 : i32
    return %c0_i32, %c0_i32_0, %c0_i32_1 : i32, i32, i32
  }
  func.func @transform_9(%arg0: i32) -> (i32, i32, i32) {
    %c0_i32 = arith.constant 0 : i32
    %c0_i32_0 = arith.constant 0 : i32
    %c0_i32_1 = arith.constant 0 : i32
    %c0_i32_2 = arith.constant 0 : i32
    return %c0_i32, %c0_i32_0, %c0_i32_1 : i32, i32, i32
  }
  func.func @transform_10(%arg0: i32) -> (i32, i32, i32) {
    %c0_i32 = arith.constant 0 : i32
    %c0_i32_0 = arith.constant 0 : i32
    %c0_i32_1 = arith.constant 0 : i32
    %c0_i32_2 = arith.constant 0 : i32
    return %c0_i32, %c0_i32_0, %c0_i32_1 : i32, i32, i32
  }
  func.func @transform_11(%arg0: i32) -> (i32, i32, i32) {
    %c0_i32 = arith.constant 0 : i32
    %c0_i32_0 = arith.constant 0 : i32
    %c0_i32_1 = arith.constant 0 : i32
    %c0_i32_2 = arith.constant 0 : i32
    return %c0_i32, %c0_i32_0, %c0_i32_1 : i32, i32, i32
  }
  func.func @transform_12(%arg0: i32) -> (i32, i32, i32) {
    %c0_i32 = arith.constant 0 : i32
    %c0_i32_0 = arith.constant 0 : i32
    %c0_i32_1 = arith.constant 0 : i32
    %c0_i32_2 = arith.constant 0 : i32
    return %c0_i32, %c0_i32_0, %c0_i32_1 : i32, i32, i32
  }
  func.func @transform_13(%arg0: i32) -> (i32, i32, i32) {
    %c0_i32 = arith.constant 0 : i32
    %c0_i32_0 = arith.constant 0 : i32
    %c0_i32_1 = arith.constant 0 : i32
    %c0_i32_2 = arith.constant 0 : i32
    return %c0_i32, %c0_i32_0, %c0_i32_1 : i32, i32, i32
  }
  func.func @transform_14(%arg0: i32) -> (i32, i32, i32) {
    %c0_i32 = arith.constant 0 : i32
    %c0_i32_0 = arith.constant 0 : i32
    %c0_i32_1 = arith.constant 0 : i32
    %c0_i32_2 = arith.constant 0 : i32
    return %c0_i32, %c0_i32_0, %c0_i32_1 : i32, i32, i32
  }
  func.func @transform_15(%arg0: i32) -> (i32, i32, i32) {
    %c0_i32 = arith.constant 0 : i32
    %c0_i32_0 = arith.constant 0 : i32
    %c0_i32_1 = arith.constant 0 : i32
    %c0_i32_2 = arith.constant 0 : i32
    return %c0_i32, %c0_i32_0, %c0_i32_1 : i32, i32, i32
  }
  func.func @transform_16(%arg0: i32) -> (i32, i32, i32, i32) {
    %c0_i32 = arith.constant 0 : i32
    %c0_i32_0 = arith.constant 0 : i32
    %c0_i32_1 = arith.constant 0 : i32
    %c0_i32_2 = arith.constant 0 : i32
    %c0_i32_3 = arith.constant 0 : i32
    return %c0_i32, %c0_i32_0, %c0_i32_1, %c0_i32_2 : i32, i32, i32, i32
  }
  func.func @transform_17(%arg0: i32) -> (i32, i32, i32, i32) {
    %c0_i32 = arith.constant 0 : i32
    %c0_i32_0 = arith.constant 0 : i32
    %c0_i32_1 = arith.constant 0 : i32
    %c0_i32_2 = arith.constant 0 : i32
    %c0_i32_3 = arith.constant 0 : i32
    return %c0_i32, %c0_i32_0, %c0_i32_1, %c0_i32_2 : i32, i32, i32, i32
  }
  func.func @transform_18(%arg0: i32) -> (i32, i32, i32, i32) {
    %c0_i32 = arith.constant 0 : i32
    %c0_i32_0 = arith.constant 0 : i32
    %c0_i32_1 = arith.constant 0 : i32
    %c0_i32_2 = arith.constant 0 : i32
    %c0_i32_3 = arith.constant 0 : i32
    return %c0_i32, %c0_i32_0, %c0_i32_1, %c0_i32_2 : i32, i32, i32, i32
  }
  func.func @transform_19(%arg0: i32) -> (i32, i32, i32, i32) {
    %c0_i32 = arith.constant 0 : i32
    %c0_i32_0 = arith.constant 0 : i32
    %c0_i32_1 = arith.constant 0 : i32
    %c0_i32_2 = arith.constant 0 : i32
    %c0_i32_3 = arith.constant 0 : i32
    return %c0_i32, %c0_i32_0, %c0_i32_1, %c0_i32_2 : i32, i32, i32, i32
  }
  func.func @transform_20(%arg0: i32) -> (i32, i32, i32, i32) {
    %c0_i32 = arith.constant 0 : i32
    %c0_i32_0 = arith.constant 0 : i32
    %c0_i32_1 = arith.constant 0 : i32
    %c0_i32_2 = arith.constant 0 : i32
    %c0_i32_3 = arith.constant 0 : i32
    return %c0_i32, %c0_i32_0, %c0_i32_1, %c0_i32_2 : i32, i32, i32, i32
  }
  func.func @transform_21(%arg0: i32) -> (i32, i32, i32, i32) {
    %c0_i32 = arith.constant 0 : i32
    %c0_i32_0 = arith.constant 0 : i32
    %c0_i32_1 = arith.constant 0 : i32
    %c0_i32_2 = arith.constant 0 : i32
    %c0_i32_3 = arith.constant 0 : i32
    return %c0_i32, %c0_i32_0, %c0_i32_1, %c0_i32_2 : i32, i32, i32, i32
  }
  func.func @transform_22(%arg0: i32) -> (i32, i32, i32) {
    %c0_i32 = arith.constant 0 : i32
    %c0_i32_0 = arith.constant 0 : i32
    %c0_i32_1 = arith.constant 0 : i32
    %c0_i32_2 = arith.constant 0 : i32
    return %c0_i32, %c0_i32_0, %c0_i32_1 : i32, i32, i32
  }
  func.func @transform_23(%arg0: i32) -> (i32, i32, i32) {
    %c0_i32 = arith.constant 0 : i32
    %c0_i32_0 = arith.constant 0 : i32
    %c0_i32_1 = arith.constant 0 : i32
    %c0_i32_2 = arith.constant 0 : i32
    return %c0_i32, %c0_i32_0, %c0_i32_1 : i32, i32, i32
  }
  func.func @transform_24(%arg0: i32) -> (i32, i32, i32) {
    %c0_i32 = arith.constant 0 : i32
    %c0_i32_0 = arith.constant 0 : i32
    %c0_i32_1 = arith.constant 0 : i32
    %c0_i32_2 = arith.constant 0 : i32
    return %c0_i32, %c0_i32_0, %c0_i32_1 : i32, i32, i32
  }
  func.func @transform_25(%arg0: i32) -> (i32, i32, i32) {
    %c0_i32 = arith.constant 0 : i32
    %c0_i32_0 = arith.constant 0 : i32
    %c0_i32_1 = arith.constant 0 : i32
    %c0_i32_2 = arith.constant 0 : i32
    return %c0_i32, %c0_i32_0, %c0_i32_1 : i32, i32, i32
  }
  func.func @transform_26(%arg0: i32) -> (i32, i32) {
    %c0_i32 = arith.constant 0 : i32
    %c0_i32_0 = arith.constant 0 : i32
    %c0_i32_1 = arith.constant 0 : i32
    return %c0_i32, %c0_i32_0 : i32, i32
  }
  func.func @transform_27(%arg0: i32) -> (i32, i32) {
    %c0_i32 = arith.constant 0 : i32
    %c0_i32_0 = arith.constant 0 : i32
    %c0_i32_1 = arith.constant 0 : i32
    return %c0_i32, %c0_i32_0 : i32, i32
  }
  func.func @transform_28(%arg0: i32) -> (i32, i32) {
    %c0_i32 = arith.constant 0 : i32
    %c0_i32_0 = arith.constant 0 : i32
    %c0_i32_1 = arith.constant 0 : i32
    return %c0_i32, %c0_i32_0 : i32, i32
  }
  func.func @transform_29(%arg0: i32) -> (i32, i32) {
    %c0_i32 = arith.constant 0 : i32
    %c0_i32_0 = arith.constant 0 : i32
    %c0_i32_1 = arith.constant 0 : i32
    return %c0_i32, %c0_i32_0 : i32, i32
  }
  func.func @transform_30(%arg0: i32) -> (i32, i32) {
    %c0_i32 = arith.constant 0 : i32
    %c0_i32_0 = arith.constant 0 : i32
    %c0_i32_1 = arith.constant 0 : i32
    return %c0_i32, %c0_i32_0 : i32, i32
  }
  func.func @transform_31(%arg0: i32) -> (i32, i32) {
    %c0_i32 = arith.constant 0 : i32
    %c0_i32_0 = arith.constant 0 : i32
    %c0_i32_1 = arith.constant 0 : i32
    return %c0_i32, %c0_i32_0 : i32, i32
  }
  func.func @transform_32(%arg0: i32) -> (i32, i32) {
    %c0_i32 = arith.constant 0 : i32
    %c0_i32_0 = arith.constant 0 : i32
    %c0_i32_1 = arith.constant 0 : i32
    return %c0_i32, %c0_i32_0 : i32, i32
  }
  func.func @transform_33(%arg0: i32) -> (i32, i32) {
    %c0_i32 = arith.constant 0 : i32
    %c0_i32_0 = arith.constant 0 : i32
    %c0_i32_1 = arith.constant 0 : i32
    return %c0_i32, %c0_i32_0 : i32, i32
  }
  func.func @transform_34(%arg0: i32) -> (i32, i32, i32) {
    %c0_i32 = arith.constant 0 : i32
    %c0_i32_0 = arith.constant 0 : i32
    %c0_i32_1 = arith.constant 0 : i32
    return %arg0, %c0_i32, %c0_i32_0 : i32, i32, i32
  }
}

</mosaic_0001>

<llo_original>
// kernel: _lambda_.1
$region0: #{_lambda_.1}
  #allocation0 [shape = 'u32[]', space=smem, size = 0x4, offset = 0x4, fixed_abs, tag = 'smem constant byte address 0x4 - core index']
  #allocation1 [shape = 'u32[144,128]{1,0:T(1,128)}', space=vmem, size = 0x12000, scoped, tag = 'internal scratch']
  %s0 = inlined_call_operand.smem [shape: u32[35], index: -1, kind: input, shape index: {}]
  %s1 = sld [smem:[%s0]]
  %s2 = scalar_lea.smem %s0, 1
  %s3 = sld [smem:[%s2]]
  %s4 = scalar_lea.smem %s0, 2
  %s5 = sld [smem:[%s4]]
  %s6 = scalar_lea.smem %s0, 3
  %s7 = sld [smem:[%s6]]
  %s8 = scalar_lea.smem %s0, 4
  %s9 = sld [smem:[%s8]]
  %s10 = scalar_lea.smem %s0, 5
  %s11 = sld [smem:[%s10]]
  %s12 = scalar_lea.smem %s0, 6
  %s13 = sld [smem:[%s12]]
  %s14 = scalar_lea.smem %s0, 7
  %s15 = sld [smem:[%s14]]
  %s16 = scalar_lea.smem %s0, 8
  %s17 = sld [smem:[%s16]]
  %s18 = scalar_lea.smem %s0, 9
  %s19 = sld [smem:[%s18]]
  %s20 = scalar_lea.smem %s0, 10
  %s21 = sld [smem:[%s20]]
  %s22 = scalar_lea.smem %s0, 11
  %s23 = sld [smem:[%s22]]
  %s24 = scalar_lea.smem %s0, 12
  %s25 = sld [smem:[%s24]]
  %s26 = scalar_lea.smem %s0, 13
  %s27 = sld [smem:[%s26]]
  %s28 = scalar_lea.smem %s0, 14
  %s29 = sld [smem:[%s28]]
  %s30 = scalar_lea.smem %s0, 15
  %s31 = sld [smem:[%s30]]
  %s32 = scalar_lea.smem %s0, 16
  %s33 = sld [smem:[%s32]]
  %s34 = scalar_lea.smem %s0, 17
  %s35 = sld [smem:[%s34]]
  %s36 = scalar_lea.smem %s0, 18
  %s37 = sld [smem:[%s36]]
  %s38 = scalar_lea.smem %s0, 19
  %s39 = sld [smem:[%s38]]
  %s40 = scalar_lea.smem %s0, 20
  %s41 = sld [smem:[%s40]]
  %s42 = scalar_lea.smem %s0, 21
  %s43 = sld [smem:[%s42]]
  %s44 = scalar_lea.smem %s0, 22
  %s45 = sld [smem:[%s44]]
  %s46 = scalar_lea.smem %s0, 23
  %s47 = sld [smem:[%s46]]
  %s48 = scalar_lea.smem %s0, 24
  %s49 = sld [smem:[%s48]]
  %s50 = scalar_lea.smem %s0, 25
  %s51 = sld [smem:[%s50]]
  %s52 = scalar_lea.smem %s0, 26
  %s53 = sld [smem:[%s52]]
  %s54 = scalar_lea.smem %s0, 27
  %s55 = sld [smem:[%s54]]
  %s56 = scalar_lea.smem %s0, 28
  %s57 = sld [smem:[%s56]]
  %s58 = scalar_lea.smem %s0, 29
  %s59 = sld [smem:[%s58]]
  %s60 = scalar_lea.smem %s0, 30
  %s61 = sld [smem:[%s60]]
  %s62 = scalar_lea.smem %s0, 31
  %s63 = sld [smem:[%s62]]
  %s64 = scalar_lea.smem %s0, 32
  %s65 = sld [smem:[%s64]]
  %s66 = scalar_lea.smem %s0, 33
  %s67 = sld [smem:[%s66]]
  %s68 = scalar_lea.smem %s0, 34
  %s69 = sld [smem:[%s68]]
  %s70 = sld [smem:[#allocation0]]
  $region169: #{_lambda_.1} parent=0
    _
  %s72 = ssub.s32 1, %s70
  %s73 = scalar_select 0, %s72, %s70
  $region1: #{_lambda_.1} parent=0
    #allocation2 [shape = 'u8[1024]{0}', space=vmem, size = 0x400, scoped, tag = 'output window, operand 0']
    #allocation3 [shape = 's32[2]{0}', space=sflag, size = 0x8, scoped, tag = 'scoped memory for _lambda_.1']
    %74 = vsyncpa [#allocation3], 0
    %s75 = scalar_lea.sflag [#allocation3], 1
    %76 = vsyncpa %s75, 0
    loop: start=0, step=1, limit=4
    $region2: #{_lambda_.1} parent=1 // loop_pre_header
      _
    $region3: #{_lambda_.1} parent=1 // loop_header
      %s78 = sphi 0, %s82
      %p79 = scmp.ge.s32.totalorder %s78, 4
      %s88 = sphi 0, %s90
      %s91 = sphi 0, %s88
      %s92 = sphi 0, %s91
      %s108 = sphi 0, %s92
      %s112 = sphi 0, %s112
      %s114 = sphi 0, %s112
      %s115 = sphi 0, %s114
      %s129 = sphi 0, %s115
      %s133 = sphi 0, %s133
      %s135 = sphi 0, %s133
      %s136 = sphi 0, %s135
      %s150 = sphi 0, %s136
      %s154 = sphi 0, %s154
      %s156 = sphi 0, %s154
      %s157 = sphi 0, %s156
      %s171 = sphi 0, %s157
      %s175 = sphi 0, %s175
      %s177 = sphi 0, %s175
      %s178 = sphi 0, %s177
      %s192 = sphi 0, %s178
      %s196 = sphi 0, %s196
      %s198 = sphi 0, %s196
      %s199 = sphi 0, %s198
      %s213 = sphi 0, %s199
      %s217 = sphi 0, %s217
      %s219 = sphi 0, %s217
      %s220 = sphi 0, %s219
      %s234 = sphi 0, %s220
      %s238 = sphi 0, %s238
      %s240 = sphi 0, %s238
      %s241 = sphi 0, %s240
      %s255 = sphi 0, %s241
      %s259 = sphi 0, %s259
      %s261 = sphi 0, %s259
      %s262 = sphi 0, %s261
      %s276 = sphi 0, %s262
      %s280 = sphi 0, %s280
      %s282 = sphi 0, %s280
      %s283 = sphi 0, %s282
      %s297 = sphi 0, %s283
      %s301 = sphi 0, %s301
      %s303 = sphi 0, %s301
      %s304 = sphi 0, %s303
      %s318 = sphi 0, %s304
      %s322 = sphi 0, %s322
      %s324 = sphi 0, %s322
      %s325 = sphi 0, %s324
      %s339 = sphi 0, %s325
      %s343 = sphi 0, %s343
      %s345 = sphi 0, %s343
      %s346 = sphi 0, %s345
      %s360 = sphi 0, %s346
      %s364 = sphi 0, %s364
      %s366 = sphi 0, %s364
      %s367 = sphi 0, %s366
      %s381 = sphi 0, %s367
      %s385 = sphi 0, %s385
      %s387 = sphi 0, %s385
      %s388 = sphi 0, %s387
      %s402 = sphi 0, %s388
      %s406 = sphi 0, %s406
      %s408 = sphi 0, %s406
      %s409 = sphi 0, %s408
      %s423 = sphi 0, %s409
      %s427 = sphi 0, %s427
      %s429 = sphi 0, %s427
      %s430 = sphi 0, %s429
      %s444 = sphi 0, %s430
      %s448 = sphi 0, %s448
      %s450 = sphi 0, %s448
      %s451 = sphi 0, %s450
      %s465 = sphi 0, %s451
      %s469 = sphi 0, %s469
      %s471 = sphi 0, %s469
      %s472 = sphi 0, %s471
      %s486 = sphi 0, %s472
      %s490 = sphi 0, %s490
      %s492 = sphi 0, %s490
      %s493 = sphi 0, %s492
      %s507 = sphi 0, %s493
      %s511 = sphi 0, %s511
      %s513 = sphi 0, %s511
      %s514 = sphi 0, %s513
      %s528 = sphi 0, %s514
      %s532 = sphi 0, %s532
      %s534 = sphi 0, %s532
      %s535 = sphi 0, %s534
      %s549 = sphi 0, %s535
      %s553 = sphi 0, %s553
      %s555 = sphi 0, %s553
      %s556 = sphi 0, %s555
      %s570 = sphi 0, %s556
      %s574 = sphi 0, %s574
      %s576 = sphi 0, %s574
      %s577 = sphi 0, %s576
      %s591 = sphi 0, %s577
      %s595 = sphi 0, %s595
      %s597 = sphi 0, %s595
      %s598 = sphi 0, %s597
      %s612 = sphi 0, %s598
      %s616 = sphi 0, %s616
      %s618 = sphi 0, %s616
      %s619 = sphi 0, %s618
      %s633 = sphi 0, %s619
      %s637 = sphi 0, %s637
      %s639 = sphi 0, %s637
      %s640 = sphi 0, %s639
      %s654 = sphi 0, %s640
      %s658 = sphi 0, %s658
      %s660 = sphi 0, %s658
      %s661 = sphi 0, %s660
      %s675 = sphi 0, %s661
      %s679 = sphi 0, %s679
      %s681 = sphi 0, %s679
      %s682 = sphi 0, %s681
      %s696 = sphi 0, %s682
      %s700 = sphi 0, %s700
      %s702 = sphi 0, %s700
      %s703 = sphi 0, %s702
      %s717 = sphi 0, %s703
      %s721 = sphi 0, %s721
      %s723 = sphi 0, %s721
      %s724 = sphi 0, %s723
      %s738 = sphi 0, %s724
      %s742 = sphi 0, %s742
      %s744 = sphi 0, %s742
      %s745 = sphi 0, %s744
      %s759 = sphi 0, %s745
      %s763 = sphi 0, %s763
      %s765 = sphi 0, %s763
      %s766 = sphi 0, %s765
      %s780 = sphi 0, %s766
      %s784 = sphi 0, %s784
      %s786 = sphi 0, %s784
      %s787 = sphi 0, %s786
      %s801 = sphi 0, %s787
      %s807 = sphi 0, %s809
      %s810 = sphi 0, %s807
      %s811 = sphi 0, %s810
      %s827 = sphi 0, %s811
    $region4: #{_lambda_.1} parent=1 // loop_header_branch
      %81 = sbr.rel (%p79) target = $region8
    $region5: #{_lambda_.1} parent=1 // loop_body
      %s83 = ssub.s32 %s78, 1
      %s84 = ssub.s32 %s78, 2
      %s85 = sadd.s32 %s78, 1
      %s86 = ssub.s32 %s78, %s85
      %p87 = scmp.eq.s32.totalorder %s86, 0
      %s89 = sadd.s32 %s88, 1
      %s90 = scalar_select %p87, %s88, %s89
      %p93 = pneg %p87
      %p94 = scmp.eq.s32.totalorder %s78, 1
      %p95 = por %p93, %p94
      %p96 = scmp.ne.s32.totalorder %s88, %s91
      %p97 = scmp.eq.s32.totalorder %s78, 0
      %p98 = por %p96, %p97
      %p99 = scmp.ne.s32.totalorder %s88, %s91
      %p100 = scmp.eq.s32.totalorder %s83, 1
      %p101 = por %p99, %p100
      %p102 = scmp.ne.s32.totalorder %s91, %s92
      %p103 = scmp.eq.s32.totalorder %s83, 0
      %p104 = por %p102, %p103
      %p105 = scmp.ne.s32.totalorder %s91, %s92
      %p106 = scmp.eq.s32.totalorder %s84, 1
      %p107 = por %p105, %p106
      %p109 = scmp.ne.s32.totalorder %s92, %s108
      %p110 = scmp.eq.s32.totalorder %s84, 0
      %p111 = por %p109, %p110
      %s113 = sadd.s32 %s112, 1
      %p116 = scmp.eq.s32.totalorder %s78, 1
      %p117 = scmp.ne.s32.totalorder %s112, %s114
      %p118 = scmp.eq.s32.totalorder %s78, 0
      %p119 = por %p117, %p118
      %p120 = scmp.ne.s32.totalorder %s112, %s114
      %p121 = scmp.eq.s32.totalorder %s83, 1
      %p122 = por %p120, %p121
      %p123 = scmp.ne.s32.totalorder %s114, %s115
      %p124 = scmp.eq.s32.totalorder %s83, 0
      %p125 = por %p123, %p124
      %p126 = scmp.ne.s32.totalorder %s114, %s115
      %p127 = scmp.eq.s32.totalorder %s84, 1
      %p128 = por %p126, %p127
      %p130 = scmp.ne.s32.totalorder %s115, %s129
      %p131 = scmp.eq.s32.totalorder %s84, 0
      %p132 = por %p130, %p131
      %s134 = sadd.s32 %s133, 1
      %p137 = scmp.eq.s32.totalorder %s78, 1
      %p138 = scmp.ne.s32.totalorder %s133, %s135
      %p139 = scmp.eq.s32.totalorder %s78, 0
      %p140 = por %p138, %p139
      %p141 = scmp.ne.s32.totalorder %s133, %s135
      %p142 = scmp.eq.s32.totalorder %s83, 1
      %p143 = por %p141, %p142
      %p144 = scmp.ne.s32.totalorder %s135, %s136
      %p145 = scmp.eq.s32.totalorder %s83, 0
      %p146 = por %p144, %p145
      %p147 = scmp.ne.s32.totalorder %s135, %s136
      %p148 = scmp.eq.s32.totalorder %s84, 1
      %p149 = por %p147, %p148
      %p151 = scmp.ne.s32.totalorder %s136, %s150
      %p152 = scmp.eq.s32.totalorder %s84, 0
      %p153 = por %p151, %p152
      %s155 = sadd.s32 %s154, 1
      %p158 = scmp.eq.s32.totalorder %s78, 1
      %p159 = scmp.ne.s32.totalorder %s154, %s156
      %p160 = scmp.eq.s32.totalorder %s78, 0
      %p161 = por %p159, %p160
      %p162 = scmp.ne.s32.totalorder %s154, %s156
      %p163 = scmp.eq.s32.totalorder %s83, 1
      %p164 = por %p162, %p163
      %p165 = scmp.ne.s32.totalorder %s156, %s157
      %p166 = scmp.eq.s32.totalorder %s83, 0
      %p167 = por %p165, %p166
      %p168 = scmp.ne.s32.totalorder %s156, %s157
      %p169 = scmp.eq.s32.totalorder %s84, 1
      %p170 = por %p168, %p169
      %p172 = scmp.ne.s32.totalorder %s157, %s171
      %p173 = scmp.eq.s32.totalorder %s84, 0
      %p174 = por %p172, %p173
      %s176 = sadd.s32 %s175, 1
      %p179 = scmp.eq.s32.totalorder %s78, 1
      %p180 = scmp.ne.s32.totalorder %s175, %s177
      %p181 = scmp.eq.s32.totalorder %s78, 0
      %p182 = por %p180, %p181
      %p183 = scmp.ne.s32.totalorder %s175, %s177
      %p184 = scmp.eq.s32.totalorder %s83, 1
      %p185 = por %p183, %p184
      %p186 = scmp.ne.s32.totalorder %s177, %s178
      %p187 = scmp.eq.s32.totalorder %s83, 0
      %p188 = por %p186, %p187
      %p189 = scmp.ne.s32.totalorder %s177, %s178
      %p190 = scmp.eq.s32.totalorder %s84, 1
      %p191 = por %p189, %p190
      %p193 = scmp.ne.s32.totalorder %s178, %s192
      %p194 = scmp.eq.s32.totalorder %s84, 0
      %p195 = por %p193, %p194
      %s197 = sadd.s32 %s196, 1
      %p200 = scmp.eq.s32.totalorder %s78, 1
      %p201 = scmp.ne.s32.totalorder %s196, %s198
      %p202 = scmp.eq.s32.totalorder %s78, 0
      %p203 = por %p201, %p202
      %p204 = scmp.ne.s32.totalorder %s196, %s198
      %p205 = scmp.eq.s32.totalorder %s83, 1
      %p206 = por %p204, %p205
      %p207 = scmp.ne.s32.totalorder %s198, %s199
      %p208 = scmp.eq.s32.totalorder %s83, 0
      %p209 = por %p207, %p208
      %p210 = scmp.ne.s32.totalorder %s198, %s199
      %p211 = scmp.eq.s32.totalorder %s84, 1
      %p212 = por %p210, %p211
      %p214 = scmp.ne.s32.totalorder %s199, %s213
      %p215 = scmp.eq.s32.totalorder %s84, 0
      %p216 = por %p214, %p215
      %s218 = sadd.s32 %s217, 1
      %p221 = scmp.eq.s32.totalorder %s78, 1
      %p222 = scmp.ne.s32.totalorder %s217, %s219
      %p223 = scmp.eq.s32.totalorder %s78, 0
      %p224 = por %p222, %p223
      %p225 = scmp.ne.s32.totalorder %s217, %s219
      %p226 = scmp.eq.s32.totalorder %s83, 1
      %p227 = por %p225, %p226
      %p228 = scmp.ne.s32.totalorder %s219, %s220
      %p229 = scmp.eq.s32.totalorder %s83, 0
      %p230 = por %p228, %p229
      %p231 = scmp.ne.s32.totalorder %s219, %s220
      %p232 = scmp.eq.s32.totalorder %s84, 1
      %p233 = por %p231, %p232
      %p235 = scmp.ne.s32.totalorder %s220, %s234
      %p236 = scmp.eq.s32.totalorder %s84, 0
      %p237 = por %p235, %p236
      %s239 = sadd.s32 %s238, 1
      %p242 = scmp.eq.s32.totalorder %s78, 1
      %p243 = scmp.ne.s32.totalorder %s238, %s240
      %p244 = scmp.eq.s32.totalorder %s78, 0
      %p245 = por %p243, %p244
      %p246 = scmp.ne.s32.totalorder %s238, %s240
      %p247 = scmp.eq.s32.totalorder %s83, 1
      %p248 = por %p246, %p247
      %p249 = scmp.ne.s32.totalorder %s240, %s241
      %p250 = scmp.eq.s32.totalorder %s83, 0
      %p251 = por %p249, %p250
      %p252 = scmp.ne.s32.totalorder %s240, %s241
      %p253 = scmp.eq.s32.totalorder %s84, 1
      %p254 = por %p252, %p253
      %p256 = scmp.ne.s32.totalorder %s241, %s255
      %p257 = scmp.eq.s32.totalorder %s84, 0
      %p258 = por %p256, %p257
      %s260 = sadd.s32 %s259, 1
      %p263 = scmp.eq.s32.totalorder %s78, 1
      %p264 = scmp.ne.s32.totalorder %s259, %s261
      %p265 = scmp.eq.s32.totalorder %s78, 0
      %p266 = por %p264, %p265
      %p267 = scmp.ne.s32.totalorder %s259, %s261
      %p268 = scmp.eq.s32.totalorder %s83, 1
      %p269 = por %p267, %p268
      %p270 = scmp.ne.s32.totalorder %s261, %s262
      %p271 = scmp.eq.s32.totalorder %s83, 0
      %p272 = por %p270, %p271
      %p273 = scmp.ne.s32.totalorder %s261, %s262
      %p274 = scmp.eq.s32.totalorder %s84, 1
      %p275 = por %p273, %p274
      %p277 = scmp.ne.s32.totalorder %s262, %s276
      %p278 = scmp.eq.s32.totalorder %s84, 0
      %p279 = por %p277, %p278
      %s281 = sadd.s32 %s280, 1
      %p284 = scmp.eq.s32.totalorder %s78, 1
      %p285 = scmp.ne.s32.totalorder %s280, %s282
      %p286 = scmp.eq.s32.totalorder %s78, 0
      %p287 = por %p285, %p286
      %p288 = scmp.ne.s32.totalorder %s280, %s282
      %p289 = scmp.eq.s32.totalorder %s83, 1
      %p290 = por %p288, %p289
      %p291 = scmp.ne.s32.totalorder %s282, %s283
      %p292 = scmp.eq.s32.totalorder %s83, 0
      %p293 = por %p291, %p292
      %p294 = scmp.ne.s32.totalorder %s282, %s283
      %p295 = scmp.eq.s32.totalorder %s84, 1
      %p296 = por %p294, %p295
      %p298 = scmp.ne.s32.totalorder %s283, %s297
      %p299 = scmp.eq.s32.totalorder %s84, 0
      %p300 = por %p298, %p299
      %s302 = sadd.s32 %s301, 1
      %p305 = scmp.eq.s32.totalorder %s78, 1
      %p306 = scmp.ne.s32.totalorder %s301, %s303
      %p307 = scmp.eq.s32.totalorder %s78, 0
      %p308 = por %p306, %p307
      %p309 = scmp.ne.s32.totalorder %s301, %s303
      %p310 = scmp.eq.s32.totalorder %s83, 1
      %p311 = por %p309, %p310
      %p312 = scmp.ne.s32.totalorder %s303, %s304
      %p313 = scmp.eq.s32.totalorder %s83, 0
      %p314 = por %p312, %p313
      %p315 = scmp.ne.s32.totalorder %s303, %s304
      %p316 = scmp.eq.s32.totalorder %s84, 1
      %p317 = por %p315, %p316
      %p319 = scmp.ne.s32.totalorder %s304, %s318
      %p320 = scmp.eq.s32.totalorder %s84, 0
      %p321 = por %p319, %p320
      %s323 = sadd.s32 %s322, 1
      %p326 = scmp.eq.s32.totalorder %s78, 1
      %p327 = scmp.ne.s32.totalorder %s322, %s324
      %p328 = scmp.eq.s32.totalorder %s78, 0
      %p329 = por %p327, %p328
      %p330 = scmp.ne.s32.totalorder %s322, %s324
      %p331 = scmp.eq.s32.totalorder %s83, 1
      %p332 = por %p330, %p331
      %p333 = scmp.ne.s32.totalorder %s324, %s325
      %p334 = scmp.eq.s32.totalorder %s83, 0
      %p335 = por %p333, %p334
      %p336 = scmp.ne.s32.totalorder %s324, %s325
      %p337 = scmp.eq.s32.totalorder %s84, 1
      %p338 = por %p336, %p337
      %p340 = scmp.ne.s32.totalorder %s325, %s339
      %p341 = scmp.eq.s32.totalorder %s84, 0
      %p342 = por %p340, %p341
      %s344 = sadd.s32 %s343, 1
      %p347 = scmp.eq.s32.totalorder %s78, 1
      %p348 = scmp.ne.s32.totalorder %s343, %s345
      %p349 = scmp.eq.s32.totalorder %s78, 0
      %p350 = por %p348, %p349
      %p351 = scmp.ne.s32.totalorder %s343, %s345
      %p352 = scmp.eq.s32.totalorder %s83, 1
      %p353 = por %p351, %p352
      %p354 = scmp.ne.s32.totalorder %s345, %s346
      %p355 = scmp.eq.s32.totalorder %s83, 0
      %p356 = por %p354, %p355
      %p357 = scmp.ne.s32.totalorder %s345, %s346
      %p358 = scmp.eq.s32.totalorder %s84, 1
      %p359 = por %p357, %p358
      %p361 = scmp.ne.s32.totalorder %s346, %s360
      %p362 = scmp.eq.s32.totalorder %s84, 0
      %p363 = por %p361, %p362
      %s365 = sadd.s32 %s364, 1
      %p368 = scmp.eq.s32.totalorder %s78, 1
      %p369 = scmp.ne.s32.totalorder %s364, %s366
      %p370 = scmp.eq.s32.totalorder %s78, 0
      %p371 = por %p369, %p370
      %p372 = scmp.ne.s32.totalorder %s364, %s366
      %p373 = scmp.eq.s32.totalorder %s83, 1
      %p374 = por %p372, %p373
      %p375 = scmp.ne.s32.totalorder %s366, %s367
      %p376 = scmp.eq.s32.totalorder %s83, 0
      %p377 = por %p375, %p376
      %p378 = scmp.ne.s32.totalorder %s366, %s367
      %p379 = scmp.eq.s32.totalorder %s84, 1
      %p380 = por %p378, %p379
      %p382 = scmp.ne.s32.totalorder %s367, %s381
      %p383 = scmp.eq.s32.totalorder %s84, 0
      %p384 = por %p382, %p383
      %s386 = sadd.s32 %s385, 1
      %p389 = scmp.eq.s32.totalorder %s78, 1
      %p390 = scmp.ne.s32.totalorder %s385, %s387
      %p391 = scmp.eq.s32.totalorder %s78, 0
      %p392 = por %p390, %p391
      %p393 = scmp.ne.s32.totalorder %s385, %s387
      %p394 = scmp.eq.s32.totalorder %s83, 1
      %p395 = por %p393, %p394
      %p396 = scmp.ne.s32.totalorder %s387, %s388
      %p397 = scmp.eq.s32.totalorder %s83, 0
      %p398 = por %p396, %p397
      %p399 = scmp.ne.s32.totalorder %s387, %s388
      %p400 = scmp.eq.s32.totalorder %s84, 1
      %p401 = por %p399, %p400
      %p403 = scmp.ne.s32.totalorder %s388, %s402
      %p404 = scmp.eq.s32.totalorder %s84, 0
      %p405 = por %p403, %p404
      %s407 = sadd.s32 %s406, 1
      %p410 = scmp.eq.s32.totalorder %s78, 1
      %p411 = scmp.ne.s32.totalorder %s406, %s408
      %p412 = scmp.eq.s32.totalorder %s78, 0
      %p413 = por %p411, %p412
      %p414 = scmp.ne.s32.totalorder %s406, %s408
      %p415 = scmp.eq.s32.totalorder %s83, 1
      %p416 = por %p414, %p415
      %p417 = scmp.ne.s32.totalorder %s408, %s409
      %p418 = scmp.eq.s32.totalorder %s83, 0
      %p419 = por %p417, %p418
      %p420 = scmp.ne.s32.totalorder %s408, %s409
      %p421 = scmp.eq.s32.totalorder %s84, 1
      %p422 = por %p420, %p421
      %p424 = scmp.ne.s32.totalorder %s409, %s423
      %p425 = scmp.eq.s32.totalorder %s84, 0
      %p426 = por %p424, %p425
      %s428 = sadd.s32 %s427, 1
      %p431 = scmp.eq.s32.totalorder %s78, 1
      %p432 = scmp.ne.s32.totalorder %s427, %s429
      %p433 = scmp.eq.s32.totalorder %s78, 0
      %p434 = por %p432, %p433
      %p435 = scmp.ne.s32.totalorder %s427, %s429
      %p436 = scmp.eq.s32.totalorder %s83, 1
      %p437 = por %p435, %p436
      %p438 = scmp.ne.s32.totalorder %s429, %s430
      %p439 = scmp.eq.s32.totalorder %s83, 0
      %p440 = por %p438, %p439
      %p441 = scmp.ne.s32.totalorder %s429, %s430
      %p442 = scmp.eq.s32.totalorder %s84, 1
      %p443 = por %p441, %p442
      %p445 = scmp.ne.s32.totalorder %s430, %s444
      %p446 = scmp.eq.s32.totalorder %s84, 0
      %p447 = por %p445, %p446
      %s449 = sadd.s32 %s448, 1
      %p452 = scmp.eq.s32.totalorder %s78, 1
      %p453 = scmp.ne.s32.totalorder %s448, %s450
      %p454 = scmp.eq.s32.totalorder %s78, 0
      %p455 = por %p453, %p454
      %p456 = scmp.ne.s32.totalorder %s448, %s450
      %p457 = scmp.eq.s32.totalorder %s83, 1
      %p458 = por %p456, %p457
      %p459 = scmp.ne.s32.totalorder %s450, %s451
      %p460 = scmp.eq.s32.totalorder %s83, 0
      %p461 = por %p459, %p460
      %p462 = scmp.ne.s32.totalorder %s450, %s451
      %p463 = scmp.eq.s32.totalorder %s84, 1
      %p464 = por %p462, %p463
      %p466 = scmp.ne.s32.totalorder %s451, %s465
      %p467 = scmp.eq.s32.totalorder %s84, 0
      %p468 = por %p466, %p467
      %s470 = sadd.s32 %s469, 1
      %p473 = scmp.eq.s32.totalorder %s78, 1
      %p474 = scmp.ne.s32.totalorder %s469, %s471
      %p475 = scmp.eq.s32.totalorder %s78, 0
      %p476 = por %p474, %p475
      %p477 = scmp.ne.s32.totalorder %s469, %s471
      %p478 = scmp.eq.s32.totalorder %s83, 1
      %p479 = por %p477, %p478
      %p480 = scmp.ne.s32.totalorder %s471, %s472
      %p481 = scmp.eq.s32.totalorder %s83, 0
      %p482 = por %p480, %p481
      %p483 = scmp.ne.s32.totalorder %s471, %s472
      %p484 = scmp.eq.s32.totalorder %s84, 1
      %p485 = por %p483, %p484
      %p487 = scmp.ne.s32.totalorder %s472, %s486
      %p488 = scmp.eq.s32.totalorder %s84, 0
      %p489 = por %p487, %p488
      %s491 = sadd.s32 %s490, 1
      %p494 = scmp.eq.s32.totalorder %s78, 1
      %p495 = scmp.ne.s32.totalorder %s490, %s492
      %p496 = scmp.eq.s32.totalorder %s78, 0
      %p497 = por %p495, %p496
      %p498 = scmp.ne.s32.totalorder %s490, %s492
      %p499 = scmp.eq.s32.totalorder %s83, 1
      %p500 = por %p498, %p499
      %p501 = scmp.ne.s32.totalorder %s492, %s493
      %p502 = scmp.eq.s32.totalorder %s83, 0
      %p503 = por %p501, %p502
      %p504 = scmp.ne.s32.totalorder %s492, %s493
      %p505 = scmp.eq.s32.totalorder %s84, 1
      %p506 = por %p504, %p505
      %p508 = scmp.ne.s32.totalorder %s493, %s507
      %p509 = scmp.eq.s32.totalorder %s84, 0
      %p510 = por %p508, %p509
      %s512 = sadd.s32 %s511, 1
      %p515 = scmp.eq.s32.totalorder %s78, 1
      %p516 = scmp.ne.s32.totalorder %s511, %s513
      %p517 = scmp.eq.s32.totalorder %s78, 0
      %p518 = por %p516, %p517
      %p519 = scmp.ne.s32.totalorder %s511, %s513
      %p520 = scmp.eq.s32.totalorder %s83, 1
      %p521 = por %p519, %p520
      %p522 = scmp.ne.s32.totalorder %s513, %s514
      %p523 = scmp.eq.s32.totalorder %s83, 0
      %p524 = por %p522, %p523
      %p525 = scmp.ne.s32.totalorder %s513, %s514
      %p526 = scmp.eq.s32.totalorder %s84, 1
      %p527 = por %p525, %p526
      %p529 = scmp.ne.s32.totalorder %s514, %s528
      %p530 = scmp.eq.s32.totalorder %s84, 0
      %p531 = por %p529, %p530
      %s533 = sadd.s32 %s532, 1
      %p536 = scmp.eq.s32.totalorder %s78, 1
      %p537 = scmp.ne.s32.totalorder %s532, %s534
      %p538 = scmp.eq.s32.totalorder %s78, 0
      %p539 = por %p537, %p538
      %p540 = scmp.ne.s32.totalorder %s532, %s534
      %p541 = scmp.eq.s32.totalorder %s83, 1
      %p542 = por %p540, %p541
      %p543 = scmp.ne.s32.totalorder %s534, %s535
      %p544 = scmp.eq.s32.totalorder %s83, 0
      %p545 = por %p543, %p544
      %p546 = scmp.ne.s32.totalorder %s534, %s535
      %p547 = scmp.eq.s32.totalorder %s84, 1
      %p548 = por %p546, %p547
      %p550 = scmp.ne.s32.totalorder %s535, %s549
      %p551 = scmp.eq.s32.totalorder %s84, 0
      %p552 = por %p550, %p551
      %s554 = sadd.s32 %s553, 1
      %p557 = scmp.eq.s32.totalorder %s78, 1
      %p558 = scmp.ne.s32.totalorder %s553, %s555
      %p559 = scmp.eq.s32.totalorder %s78, 0
      %p560 = por %p558, %p559
      %p561 = scmp.ne.s32.totalorder %s553, %s555
      %p562 = scmp.eq.s32.totalorder %s83, 1
      %p563 = por %p561, %p562
      %p564 = scmp.ne.s32.totalorder %s555, %s556
      %p565 = scmp.eq.s32.totalorder %s83, 0
      %p566 = por %p564, %p565
      %p567 = scmp.ne.s32.totalorder %s555, %s556
      %p568 = scmp.eq.s32.totalorder %s84, 1
      %p569 = por %p567, %p568
      %p571 = scmp.ne.s32.totalorder %s556, %s570
      %p572 = scmp.eq.s32.totalorder %s84, 0
      %p573 = por %p571, %p572
      %s575 = sadd.s32 %s574, 1
      %p578 = scmp.eq.s32.totalorder %s78, 1
      %p579 = scmp.ne.s32.totalorder %s574, %s576
      %p580 = scmp.eq.s32.totalorder %s78, 0
      %p581 = por %p579, %p580
      %p582 = scmp.ne.s32.totalorder %s574, %s576
      %p583 = scmp.eq.s32.totalorder %s83, 1
      %p584 = por %p582, %p583
      %p585 = scmp.ne.s32.totalorder %s576, %s577
      %p586 = scmp.eq.s32.totalorder %s83, 0
      %p587 = por %p585, %p586
      %p588 = scmp.ne.s32.totalorder %s576, %s577
      %p589 = scmp.eq.s32.totalorder %s84, 1
      %p590 = por %p588, %p589
      %p592 = scmp.ne.s32.totalorder %s577, %s591
      %p593 = scmp.eq.s32.totalorder %s84, 0
      %p594 = por %p592, %p593
      %s596 = sadd.s32 %s595, 1
      %p599 = scmp.eq.s32.totalorder %s78, 1
      %p600 = scmp.ne.s32.totalorder %s595, %s597
      %p601 = scmp.eq.s32.totalorder %s78, 0
      %p602 = por %p600, %p601
      %p603 = scmp.ne.s32.totalorder %s595, %s597
      %p604 = scmp.eq.s32.totalorder %s83, 1
      %p605 = por %p603, %p604
      %p606 = scmp.ne.s32.totalorder %s597, %s598
      %p607 = scmp.eq.s32.totalorder %s83, 0
      %p608 = por %p606, %p607
      %p609 = scmp.ne.s32.totalorder %s597, %s598
      %p610 = scmp.eq.s32.totalorder %s84, 1
      %p611 = por %p609, %p610
      %p613 = scmp.ne.s32.totalorder %s598, %s612
      %p614 = scmp.eq.s32.totalorder %s84, 0
      %p615 = por %p613, %p614
      %s617 = sadd.s32 %s616, 1
      %p620 = scmp.eq.s32.totalorder %s78, 1
      %p621 = scmp.ne.s32.totalorder %s616, %s618
      %p622 = scmp.eq.s32.totalorder %s78, 0
      %p623 = por %p621, %p622
      %p624 = scmp.ne.s32.totalorder %s616, %s618
      %p625 = scmp.eq.s32.totalorder %s83, 1
      %p626 = por %p624, %p625
      %p627 = scmp.ne.s32.totalorder %s618, %s619
      %p628 = scmp.eq.s32.totalorder %s83, 0
      %p629 = por %p627, %p628
      %p630 = scmp.ne.s32.totalorder %s618, %s619
      %p631 = scmp.eq.s32.totalorder %s84, 1
      %p632 = por %p630, %p631
      %p634 = scmp.ne.s32.totalorder %s619, %s633
      %p635 = scmp.eq.s32.totalorder %s84, 0
      %p636 = por %p634, %p635
      %s638 = sadd.s32 %s637, 1
      %p641 = scmp.eq.s32.totalorder %s78, 1
      %p642 = scmp.ne.s32.totalorder %s637, %s639
      %p643 = scmp.eq.s32.totalorder %s78, 0
      %p644 = por %p642, %p643
      %p645 = scmp.ne.s32.totalorder %s637, %s639
      %p646 = scmp.eq.s32.totalorder %s83, 1
      %p647 = por %p645, %p646
      %p648 = scmp.ne.s32.totalorder %s639, %s640
      %p649 = scmp.eq.s32.totalorder %s83, 0
      %p650 = por %p648, %p649
      %p651 = scmp.ne.s32.totalorder %s639, %s640
      %p652 = scmp.eq.s32.totalorder %s84, 1
      %p653 = por %p651, %p652
      %p655 = scmp.ne.s32.totalorder %s640, %s654
      %p656 = scmp.eq.s32.totalorder %s84, 0
      %p657 = por %p655, %p656
      %s659 = sadd.s32 %s658, 1
      %p662 = scmp.eq.s32.totalorder %s78, 1
      %p663 = scmp.ne.s32.totalorder %s658, %s660
      %p664 = scmp.eq.s32.totalorder %s78, 0
      %p665 = por %p663, %p664
      %p666 = scmp.ne.s32.totalorder %s658, %s660
      %p667 = scmp.eq.s32.totalorder %s83, 1
      %p668 = por %p666, %p667
      %p669 = scmp.ne.s32.totalorder %s660, %s661
      %p670 = scmp.eq.s32.totalorder %s83, 0
      %p671 = por %p669, %p670
      %p672 = scmp.ne.s32.totalorder %s660, %s661
      %p673 = scmp.eq.s32.totalorder %s84, 1
      %p674 = por %p672, %p673
      %p676 = scmp.ne.s32.totalorder %s661, %s675
      %p677 = scmp.eq.s32.totalorder %s84, 0
      %p678 = por %p676, %p677
      %s680 = sadd.s32 %s679, 1
      %p683 = scmp.eq.s32.totalorder %s78, 1
      %p684 = scmp.ne.s32.totalorder %s679, %s681
      %p685 = scmp.eq.s32.totalorder %s78, 0
      %p686 = por %p684, %p685
      %p687 = scmp.ne.s32.totalorder %s679, %s681
      %p688 = scmp.eq.s32.totalorder %s83, 1
      %p689 = por %p687, %p688
      %p690 = scmp.ne.s32.totalorder %s681, %s682
      %p691 = scmp.eq.s32.totalorder %s83, 0
      %p692 = por %p690, %p691
      %p693 = scmp.ne.s32.totalorder %s681, %s682
      %p694 = scmp.eq.s32.totalorder %s84, 1
      %p695 = por %p693, %p694
      %p697 = scmp.ne.s32.totalorder %s682, %s696
      %p698 = scmp.eq.s32.totalorder %s84, 0
      %p699 = por %p697, %p698
      %s701 = sadd.s32 %s700, 1
      %p704 = scmp.eq.s32.totalorder %s78, 1
      %p705 = scmp.ne.s32.totalorder %s700, %s702
      %p706 = scmp.eq.s32.totalorder %s78, 0
      %p707 = por %p705, %p706
      %p708 = scmp.ne.s32.totalorder %s700, %s702
      %p709 = scmp.eq.s32.totalorder %s83, 1
      %p710 = por %p708, %p709
      %p711 = scmp.ne.s32.totalorder %s702, %s703
      %p712 = scmp.eq.s32.totalorder %s83, 0
      %p713 = por %p711, %p712
      %p714 = scmp.ne.s32.totalorder %s702, %s703
      %p715 = scmp.eq.s32.totalorder %s84, 1
      %p716 = por %p714, %p715
      %p718 = scmp.ne.s32.totalorder %s703, %s717
      %p719 = scmp.eq.s32.totalorder %s84, 0
      %p720 = por %p718, %p719
      %s722 = sadd.s32 %s721, 1
      %p725 = scmp.eq.s32.totalorder %s78, 1
      %p726 = scmp.ne.s32.totalorder %s721, %s723
      %p727 = scmp.eq.s32.totalorder %s78, 0
      %p728 = por %p726, %p727
      %p729 = scmp.ne.s32.totalorder %s721, %s723
      %p730 = scmp.eq.s32.totalorder %s83, 1
      %p731 = por %p729, %p730
      %p732 = scmp.ne.s32.totalorder %s723, %s724
      %p733 = scmp.eq.s32.totalorder %s83, 0
      %p734 = por %p732, %p733
      %p735 = scmp.ne.s32.totalorder %s723, %s724
      %p736 = scmp.eq.s32.totalorder %s84, 1
      %p737 = por %p735, %p736
      %p739 = scmp.ne.s32.totalorder %s724, %s738
      %p740 = scmp.eq.s32.totalorder %s84, 0
      %p741 = por %p739, %p740
      %s743 = sadd.s32 %s742, 1
      %p746 = scmp.eq.s32.totalorder %s78, 1
      %p747 = scmp.ne.s32.totalorder %s742, %s744
      %p748 = scmp.eq.s32.totalorder %s78, 0
      %p749 = por %p747, %p748
      %p750 = scmp.ne.s32.totalorder %s742, %s744
      %p751 = scmp.eq.s32.totalorder %s83, 1
      %p752 = por %p750, %p751
      %p753 = scmp.ne.s32.totalorder %s744, %s745
      %p754 = scmp.eq.s32.totalorder %s83, 0
      %p755 = por %p753, %p754
      %p756 = scmp.ne.s32.totalorder %s744, %s745
      %p757 = scmp.eq.s32.totalorder %s84, 1
      %p758 = por %p756, %p757
      %p760 = scmp.ne.s32.totalorder %s745, %s759
      %p761 = scmp.eq.s32.totalorder %s84, 0
      %p762 = por %p760, %p761
      %s764 = sadd.s32 %s763, 1
      %p767 = scmp.eq.s32.totalorder %s78, 1
      %p768 = scmp.ne.s32.totalorder %s763, %s765
      %p769 = scmp.eq.s32.totalorder %s78, 0
      %p770 = por %p768, %p769
      %p771 = scmp.ne.s32.totalorder %s763, %s765
      %p772 = scmp.eq.s32.totalorder %s83, 1
      %p773 = por %p771, %p772
      %p774 = scmp.ne.s32.totalorder %s765, %s766
      %p775 = scmp.eq.s32.totalorder %s83, 0
      %p776 = por %p774, %p775
      %p777 = scmp.ne.s32.totalorder %s765, %s766
      %p778 = scmp.eq.s32.totalorder %s84, 1
      %p779 = por %p777, %p778
      %p781 = scmp.ne.s32.totalorder %s766, %s780
      %p782 = scmp.eq.s32.totalorder %s84, 0
      %p783 = por %p781, %p782
      %s785 = sadd.s32 %s784, 1
      %p788 = scmp.eq.s32.totalorder %s78, 1
      %p789 = scmp.ne.s32.totalorder %s784, %s786
      %p790 = scmp.eq.s32.totalorder %s78, 0
      %p791 = por %p789, %p790
      %p792 = scmp.ne.s32.totalorder %s784, %s786
      %p793 = scmp.eq.s32.totalorder %s83, 1
      %p794 = por %p792, %p793
      %p795 = scmp.ne.s32.totalorder %s786, %s787
      %p796 = scmp.eq.s32.totalorder %s83, 0
      %p797 = por %p795, %p796
      %p798 = scmp.ne.s32.totalorder %s786, %s787
      %p799 = scmp.eq.s32.totalorder %s84, 1
      %p800 = por %p798, %p799
      %p802 = scmp.ne.s32.totalorder %s787, %s801
      %p803 = scmp.eq.s32.totalorder %s84, 0
      %p804 = por %p802, %p803
      %s805 = ssub.s32 %s78, %s85
      %p806 = scmp.eq.s32.totalorder %s805, 0
      %s808 = sadd.s32 %s807, 1
      %s809 = scalar_select %p806, %s807, %s808
      %p812 = pneg %p806
      %p813 = scmp.eq.s32.totalorder %s78, 1
      %p814 = por %p812, %p813
      %p815 = scmp.ne.s32.totalorder %s807, %s810
      %p816 = scmp.eq.s32.totalorder %s78, 0
      %p817 = por %p815, %p816
      %p818 = scmp.ne.s32.totalorder %s807, %s810
      %p819 = scmp.eq.s32.totalorder %s83, 1
      %p820 = por %p818, %p819
      %p821 = scmp.ne.s32.totalorder %s810, %s811
      %p822 = scmp.eq.s32.totalorder %s83, 0
      %p823 = por %p821, %p822
      %p824 = scmp.ne.s32.totalorder %s810, %s811
      %p825 = scmp.eq.s32.totalorder %s84, 1
      %p826 = por %p824, %p825
      %p828 = scmp.ne.s32.totalorder %s811, %s827
      %p829 = scmp.eq.s32.totalorder %s84, 0
      %p830 = por %p828, %p829
      %p831 = scmp.le.s32.totalorder 1, %s78
      %p832 = scmp.lt.s32.totalorder %s78, 3
      %p833 = pnand %p831, %p832
      %p834 = pneg %p833
      // Predicated region
      $region9: #{_lambda_.1} parent=5 // pred_check
        _
      $region10: #{_lambda_.1} parent=5 // pred_check_branch
        %836 = sbr.rel (%p833) target = $region12
      $region11: #{_lambda_.1} parent=5 // pred_region
        %s837 = ssub.s32 %s78, 1
        // Predicated region
        $region13: #{_lambda_.1} parent=11 // pred_check
          %p838 = pneg %p125
        $region14: #{_lambda_.1} parent=11 // pred_check_branch
          %840 = sbr.rel (%p838) target = $region16
        $region15: #{_lambda_.1} parent=11 // pred_region
          _
        $region16: #{_lambda_.1} parent=11 // pred_fallthru
          _
        // Predicated region
        $region17: #{_lambda_.1} parent=11 // pred_check
          %p841 = pneg %p146
        $region18: #{_lambda_.1} parent=11 // pred_check_branch
          %843 = sbr.rel (%p841) target = $region20
        $region19: #{_lambda_.1} parent=11 // pred_region
          _
        $region20: #{_lambda_.1} parent=11 // pred_fallthru
          _
        // Predicated region
        $region21: #{_lambda_.1} parent=11 // pred_check
          %p844 = pneg %p167
        $region22: #{_lambda_.1} parent=11 // pred_check_branch
          %846 = sbr.rel (%p844) target = $region24
        $region23: #{_lambda_.1} parent=11 // pred_region
          _
        $region24: #{_lambda_.1} parent=11 // pred_fallthru
          _
        // Predicated region
        $region25: #{_lambda_.1} parent=11 // pred_check
          %p847 = pneg %p188
        $region26: #{_lambda_.1} parent=11 // pred_check_branch
          %849 = sbr.rel (%p847) target = $region28
        $region27: #{_lambda_.1} parent=11 // pred_region
          _
        $region28: #{_lambda_.1} parent=11 // pred_fallthru
          _
        // Predicated region
        $region29: #{_lambda_.1} parent=11 // pred_check
          %p850 = pneg %p209
        $region30: #{_lambda_.1} parent=11 // pred_check_branch
          %852 = sbr.rel (%p850) target = $region32
        $region31: #{_lambda_.1} parent=11 // pred_region
          _
        $region32: #{_lambda_.1} parent=11 // pred_fallthru
          _
        // Predicated region
        $region33: #{_lambda_.1} parent=11 // pred_check
          %p853 = pneg %p230
        $region34: #{_lambda_.1} parent=11 // pred_check_branch
          %855 = sbr.rel (%p853) target = $region36
        $region35: #{_lambda_.1} parent=11 // pred_region
          _
        $region36: #{_lambda_.1} parent=11 // pred_fallthru
          _
        // Predicated region
        $region37: #{_lambda_.1} parent=11 // pred_check
          %p856 = pneg %p251
        $region38: #{_lambda_.1} parent=11 // pred_check_branch
          %858 = sbr.rel (%p856) target = $region40
        $region39: #{_lambda_.1} parent=11 // pred_region
          _
        $region40: #{_lambda_.1} parent=11 // pred_fallthru
          _
        // Predicated region
        $region41: #{_lambda_.1} parent=11 // pred_check
          %p859 = pneg %p272
        $region42: #{_lambda_.1} parent=11 // pred_check_branch
          %861 = sbr.rel (%p859) target = $region44
        $region43: #{_lambda_.1} parent=11 // pred_region
          _
        $region44: #{_lambda_.1} parent=11 // pred_fallthru
          _
        // Predicated region
        $region45: #{_lambda_.1} parent=11 // pred_check
          %p862 = pneg %p293
        $region46: #{_lambda_.1} parent=11 // pred_check_branch
          %864 = sbr.rel (%p862) target = $region48
        $region47: #{_lambda_.1} parent=11 // pred_region
          _
        $region48: #{_lambda_.1} parent=11 // pred_fallthru
          _
        // Predicated region
        $region49: #{_lambda_.1} parent=11 // pred_check
          %p865 = pneg %p314
        $region50: #{_lambda_.1} parent=11 // pred_check_branch
          %867 = sbr.rel (%p865) target = $region52
        $region51: #{_lambda_.1} parent=11 // pred_region
          _
        $region52: #{_lambda_.1} parent=11 // pred_fallthru
          _
        // Predicated region
        $region53: #{_lambda_.1} parent=11 // pred_check
          %p868 = pneg %p335
        $region54: #{_lambda_.1} parent=11 // pred_check_branch
          %870 = sbr.rel (%p868) target = $region56
        $region55: #{_lambda_.1} parent=11 // pred_region
          _
        $region56: #{_lambda_.1} parent=11 // pred_fallthru
          _
        // Predicated region
        $region57: #{_lambda_.1} parent=11 // pred_check
          %p871 = pneg %p356
        $region58: #{_lambda_.1} parent=11 // pred_check_branch
          %873 = sbr.rel (%p871) target = $region60
        $region59: #{_lambda_.1} parent=11 // pred_region
          _
        $region60: #{_lambda_.1} parent=11 // pred_fallthru
          _
        // Predicated region
        $region61: #{_lambda_.1} parent=11 // pred_check
          %p874 = pneg %p377
        $region62: #{_lambda_.1} parent=11 // pred_check_branch
          %876 = sbr.rel (%p874) target = $region64
        $region63: #{_lambda_.1} parent=11 // pred_region
          _
        $region64: #{_lambda_.1} parent=11 // pred_fallthru
          _
        // Predicated region
        $region65: #{_lambda_.1} parent=11 // pred_check
          %p877 = pneg %p398
        $region66: #{_lambda_.1} parent=11 // pred_check_branch
          %879 = sbr.rel (%p877) target = $region68
        $region67: #{_lambda_.1} parent=11 // pred_region
          _
        $region68: #{_lambda_.1} parent=11 // pred_fallthru
          _
        // Predicated region
        $region69: #{_lambda_.1} parent=11 // pred_check
          %p880 = pneg %p419
        $region70: #{_lambda_.1} parent=11 // pred_check_branch
          %882 = sbr.rel (%p880) target = $region72
        $region71: #{_lambda_.1} parent=11 // pred_region
          _
        $region72: #{_lambda_.1} parent=11 // pred_fallthru
          _
        // Predicated region
        $region73: #{_lambda_.1} parent=11 // pred_check
          %p883 = pneg %p440
        $region74: #{_lambda_.1} parent=11 // pred_check_branch
          %885 = sbr.rel (%p883) target = $region76
        $region75: #{_lambda_.1} parent=11 // pred_region
          _
        $region76: #{_lambda_.1} parent=11 // pred_fallthru
          _
        // Predicated region
        $region77: #{_lambda_.1} parent=11 // pred_check
          %p886 = pneg %p461
        $region78: #{_lambda_.1} parent=11 // pred_check_branch
          %888 = sbr.rel (%p886) target = $region80
        $region79: #{_lambda_.1} parent=11 // pred_region
          _
        $region80: #{_lambda_.1} parent=11 // pred_fallthru
          _
        // Predicated region
        $region81: #{_lambda_.1} parent=11 // pred_check
          %p889 = pneg %p482
        $region82: #{_lambda_.1} parent=11 // pred_check_branch
          %891 = sbr.rel (%p889) target = $region84
        $region83: #{_lambda_.1} parent=11 // pred_region
          _
        $region84: #{_lambda_.1} parent=11 // pred_fallthru
          _
        // Predicated region
        $region85: #{_lambda_.1} parent=11 // pred_check
          %p892 = pneg %p503
        $region86: #{_lambda_.1} parent=11 // pred_check_branch
          %894 = sbr.rel (%p892) target = $region88
        $region87: #{_lambda_.1} parent=11 // pred_region
          _
        $region88: #{_lambda_.1} parent=11 // pred_fallthru
          _
        // Predicated region
        $region89: #{_lambda_.1} parent=11 // pred_check
          %p895 = pneg %p524
        $region90: #{_lambda_.1} parent=11 // pred_check_branch
          %897 = sbr.rel (%p895) target = $region92
        $region91: #{_lambda_.1} parent=11 // pred_region
          _
        $region92: #{_lambda_.1} parent=11 // pred_fallthru
          _
        // Predicated region
        $region93: #{_lambda_.1} parent=11 // pred_check
          %p898 = pneg %p545
        $region94: #{_lambda_.1} parent=11 // pred_check_branch
          %900 = sbr.rel (%p898) target = $region96
        $region95: #{_lambda_.1} parent=11 // pred_region
          _
        $region96: #{_lambda_.1} parent=11 // pred_fallthru
          _
        // Predicated region
        $region97: #{_lambda_.1} parent=11 // pred_check
          %p901 = pneg %p566
        $region98: #{_lambda_.1} parent=11 // pred_check_branch
          %903 = sbr.rel (%p901) target = $region100
        $region99: #{_lambda_.1} parent=11 // pred_region
          _
        $region100: #{_lambda_.1} parent=11 // pred_fallthru
          _
        // Predicated region
        $region101: #{_lambda_.1} parent=11 // pred_check
          %p904 = pneg %p587
        $region102: #{_lambda_.1} parent=11 // pred_check_branch
          %906 = sbr.rel (%p904) target = $region104
        $region103: #{_lambda_.1} parent=11 // pred_region
          _
        $region104: #{_lambda_.1} parent=11 // pred_fallthru
          _
        // Predicated region
        $region105: #{_lambda_.1} parent=11 // pred_check
          %p907 = pneg %p608
        $region106: #{_lambda_.1} parent=11 // pred_check_branch
          %909 = sbr.rel (%p907) target = $region108
        $region107: #{_lambda_.1} parent=11 // pred_region
          _
        $region108: #{_lambda_.1} parent=11 // pred_fallthru
          _
        // Predicated region
        $region109: #{_lambda_.1} parent=11 // pred_check
          %p910 = pneg %p629
        $region110: #{_lambda_.1} parent=11 // pred_check_branch
          %912 = sbr.rel (%p910) target = $region112
        $region111: #{_lambda_.1} parent=11 // pred_region
          _
        $region112: #{_lambda_.1} parent=11 // pred_fallthru
          _
        // Predicated region
        $region113: #{_lambda_.1} parent=11 // pred_check
          %p913 = pneg %p650
        $region114: #{_lambda_.1} parent=11 // pred_check_branch
          %915 = sbr.rel (%p913) target = $region116
        $region115: #{_lambda_.1} parent=11 // pred_region
          _
        $region116: #{_lambda_.1} parent=11 // pred_fallthru
          _
        // Predicated region
        $region117: #{_lambda_.1} parent=11 // pred_check
          %p916 = pneg %p671
        $region118: #{_lambda_.1} parent=11 // pred_check_branch
          %918 = sbr.rel (%p916) target = $region120
        $region119: #{_lambda_.1} parent=11 // pred_region
          _
        $region120: #{_lambda_.1} parent=11 // pred_fallthru
          _
        // Predicated region
        $region121: #{_lambda_.1} parent=11 // pred_check
          %p919 = pneg %p692
        $region122: #{_lambda_.1} parent=11 // pred_check_branch
          %921 = sbr.rel (%p919) target = $region124
        $region123: #{_lambda_.1} parent=11 // pred_region
          _
        $region124: #{_lambda_.1} parent=11 // pred_fallthru
          _
        // Predicated region
        $region125: #{_lambda_.1} parent=11 // pred_check
          %p922 = pneg %p713
        $region126: #{_lambda_.1} parent=11 // pred_check_branch
          %924 = sbr.rel (%p922) target = $region128
        $region127: #{_lambda_.1} parent=11 // pred_region
          _
        $region128: #{_lambda_.1} parent=11 // pred_fallthru
          _
        // Predicated region
        $region129: #{_lambda_.1} parent=11 // pred_check
          %p925 = pneg %p734
        $region130: #{_lambda_.1} parent=11 // pred_check_branch
          %927 = sbr.rel (%p925) target = $region132
        $region131: #{_lambda_.1} parent=11 // pred_region
          _
        $region132: #{_lambda_.1} parent=11 // pred_fallthru
          _
        // Predicated region
        $region133: #{_lambda_.1} parent=11 // pred_check
          %p928 = pneg %p755
        $region134: #{_lambda_.1} parent=11 // pred_check_branch
          %930 = sbr.rel (%p928) target = $region136
        $region135: #{_lambda_.1} parent=11 // pred_region
          _
        $region136: #{_lambda_.1} parent=11 // pred_fallthru
          _
        // Predicated region
        $region137: #{_lambda_.1} parent=11 // pred_check
          %p931 = pneg %p776
        $region138: #{_lambda_.1} parent=11 // pred_check_branch
          %933 = sbr.rel (%p931) target = $region140
        $region139: #{_lambda_.1} parent=11 // pred_region
          _
        $region140: #{_lambda_.1} parent=11 // pred_fallthru
          _
        // Predicated region
        $region141: #{_lambda_.1} parent=11 // pred_check
          %p934 = pneg %p797
        $region142: #{_lambda_.1} parent=11 // pred_check_branch
          %936 = sbr.rel (%p934) target = $region144
        $region143: #{_lambda_.1} parent=11 // pred_region
          _
        $region144: #{_lambda_.1} parent=11 // pred_fallthru
          _
      $region12: #{_lambda_.1} parent=5 // pred_fallthru
        _
      %p937 = scmp.lt.s32.totalorder %s78, 2
      // Predicated region
      $region145: #{_lambda_.1} parent=5 // pred_check
        %p938 = pneg %p937
      $region146: #{_lambda_.1} parent=5 // pred_check_branch
        %940 = sbr.rel (%p938) target = $region148
      $region147: #{_lambda_.1} parent=5 // pred_region
        // Predicated region
        $region149: #{_lambda_.1} parent=147 // pred_check
          %p941 = pneg %p98
        $region150: #{_lambda_.1} parent=147 // pred_check_branch
          %943 = sbr.rel (%p941) target = $region152
        $region151: #{_lambda_.1} parent=147 // pred_region
          %p944 = scmp.lt.s32.totalorder %s78, 1
          %s945 = scalar_select %p944, %s78, 1
          %s946 = smul.addr %s945, 8
          %s947 = scalar_lea.vmem %s1, %s946
        $region152: #{_lambda_.1} parent=147 // pred_fallthru
          _
      $region148: #{_lambda_.1} parent=5 // pred_fallthru
        _
      %p948 = scmp.le.s32.totalorder 1, %s78
      %p949 = scmp.lt.s32.totalorder %s78, 3
      %p950 = pnand %p948, %p949
      %p951 = pneg %p950
      // Predicated region
      $region153: #{_lambda_.1} parent=5 // pred_check
        _
      $region154: #{_lambda_.1} parent=5 // pred_check_branch
        %953 = sbr.rel (%p950) target = $region156
      $region155: #{_lambda_.1} parent=5 // pred_region
        %s954 = ssub.s32 %s78, 1
        %p955 = scmp.lt.s32.totalorder %s83, 1
        %s956 = scalar_select %p955, %s83, 1
        %s957 = smul.addr %s956, 8
        %s958 = scalar_lea.vmem %s1, %s957
        %p959 = pneg %p104
        %p960 = pneg %p101
        %p961 = pneg %p125
        %p962 = pneg %p122
        %p963 = pneg %p146
        %p964 = pneg %p143
        %p965 = pneg %p167
        %p966 = pneg %p164
        %p967 = pneg %p188
        %p968 = pneg %p185
        %p969 = pneg %p209
        %p970 = pneg %p206
        %p971 = pneg %p230
        %p972 = pneg %p227
        %p973 = pneg %p251
        %p974 = pneg %p248
        %p975 = pneg %p272
        %p976 = pneg %p269
        %p977 = pneg %p293
        %p978 = pneg %p290
        %p979 = pneg %p314
        %p980 = pneg %p311
        %p981 = pneg %p335
        %p982 = pneg %p332
        %p983 = pneg %p356
        %p984 = pneg %p353
        %p985 = pneg %p377
        %p986 = pneg %p374
        %p987 = pneg %p398
        %p988 = pneg %p395
        %p989 = pneg %p419
        %p990 = pneg %p416
        %p991 = pneg %p440
        %p992 = pneg %p437
        %p993 = pneg %p461
        %p994 = pneg %p458
        %p995 = pneg %p482
        %p996 = pneg %p479
        %p997 = pneg %p503
        %p998 = pneg %p500
        %p999 = pneg %p524
        %p1000 = pneg %p521
        %p1001 = pneg %p545
        %p1002 = pneg %p542
        %p1003 = pneg %p566
        %p1004 = pneg %p563
        %p1005 = pneg %p587
        %p1006 = pneg %p584
        %p1007 = pneg %p608
        %p1008 = pneg %p605
        %p1009 = pneg %p629
        %p1010 = pneg %p626
        %p1011 = pneg %p650
        %p1012 = pneg %p647
        %p1013 = pneg %p671
        %p1014 = pneg %p668
        %p1015 = pneg %p692
        %p1016 = pneg %p689
        %p1017 = pneg %p713
        %p1018 = pneg %p710
        %p1019 = pneg %p734
        %p1020 = pneg %p731
        %p1021 = pneg %p755
        %p1022 = pneg %p752
        %p1023 = pneg %p776
        %p1024 = pneg %p773
        %p1025 = pneg %p797
        %p1026 = pneg %p794
        %p1027 = pneg %p823
        %p1028 = pneg %p820
        %s1029 = sand.u32 %s810, 1
        %s1030 = scalar_lea.sflag [#allocation3], %s1029
        %s1031 = sand.u32 %s810, 1
        %s1032 = scalar_lea.vmem [#allocation2], %s1031
        %p1033 = scmp.lt.s32.totalorder %s83, 1
        %s1034 = scalar_select %p1033, %s83, 1
        %s1035 = smul.addr %s1034, 8
        %s1036 = scalar_lea.vmem %s1, %s1035
        %v1037 = vld [vmem:[%s1036] sm:$0xff]
        %v1038 = vld [vmem:[%s5] sm:$0xff]
        %v1039 = vld [vmem:[%s5 + $0x8] sm:$0xff]
        %v1040 = vld [vmem:[%s5 + $0x10] sm:$0xff]
        %v1041 = vld [vmem:[%s5 + $0x18] sm:$0xff]
        %v1042 = vld [vmem:[%s5 + $0x20] sm:$0xff]
        %v1043 = vld [vmem:[%s5 + $0x28] sm:$0xff]
        %v1044 = vld [vmem:[%s5 + $0x30] sm:$0xff]
        %v1045 = vld [vmem:[%s5 + $0x38] sm:$0xff]
        %v1046 = vld [vmem:[%s5 + $0x40] sm:$0xff]
        %v1047 = vld [vmem:[%s5 + $0x48] sm:$0xff]
        %v1048 = vld [vmem:[%s5 + $0x50] sm:$0xff]
        %v1049 = vld [vmem:[%s5 + $0x58] sm:$0xff]
        %v1050 = vld [vmem:[%s7] sm:$0x1]
        %v1052 = vlaneseq
        %v1053 = vshrl.u32 %v1052, 7
        %v1054 = vsub.s32 0, %v1053
        %v1055 = vrot.slane %v1050, %v1054
        %vm1057 = vcmask 785408
        %v1059 = vsel %vm1057, %v1037, 0
        %1061 = vmatprep.subr.mxu0 0.0
        %1062 = vmatpush1.msra.mxu0 0.0
        %1063 = vmatprep.subr.mxu0 0.0
        %1064 = vmatpush1.msra.mxu0 0.0
        %1065 = vmatprep.subr.mxu0 0.0
        %1066 = vmatpush1.msra.mxu0 0.0
        %1067 = vmatprep.subr.mxu0 0.0
        %1068 = vmatpush1.msra.mxu0 0.0
        %1069 = vmatprep.subr.mxu0 0.0
        %1070 = vmatpush1.msra.mxu0 %v1049
        %1071 = vmatprep.subr.mxu0 0.0
        %1072 = vmatpush1.msra.mxu0 %v1048
        %1073 = vmatprep.subr.mxu0 0.0
        %1074 = vmatpush1.msra.mxu0 %v1047
        %1075 = vmatprep.subr.mxu0 0.0
        %1076 = vmatpush1.msra.mxu0 %v1046
        %1077 = vmatprep.subr.mxu0 0.0
        %1078 = vmatpush1.msra.mxu0 %v1045
        %1079 = vmatprep.subr.mxu0 0.0
        %1080 = vmatpush1.msra.mxu0 %v1044
        %1081 = vmatprep.subr.mxu0 0.0
        %1082 = vmatpush1.msra.mxu0 %v1043
        %1083 = vmatprep.subr.mxu0 0.0
        %1084 = vmatpush1.msra.mxu0 %v1042
        %1085 = vmatprep.subr.mxu0 0.0
        %1086 = vmatpush1.msra.mxu0 %v1041
        %1087 = vmatprep.subr.mxu0 0.0
        %1088 = vmatpush1.msra.mxu0 %v1040
        %1089 = vmatprep.subr.mxu0 0.0
        %1090 = vmatpush1.msra.mxu0 %v1039
        %1091 = vmatprep.subr.mxu0 0.0
        %1092 = vmatpush1.msra.mxu0 %v1038
        %1093 = vmatprep.subr.mxu0 0.0
        %1094 = vmatpush2.msra.mxu0 0.0
        %1095 = vmatprep.subr.mxu0 0.0
        %1096 = vmatpush2.msra.mxu0 0.0
        %1097 = vmatprep.subr.mxu0 0.0
        %1098 = vmatpush2.msra.mxu0 0.0
        %1099 = vmatprep.subr.mxu0 0.0
        %1100 = vmatpush2.msra.mxu0 0.0
        %1101 = vmatprep.subr.mxu0 0.0
        %1102 = vmatpush2.msra.mxu0 0.0
        %1103 = vmatprep.subr.mxu0 0.0
        %1104 = vmatpush2.msra.mxu0 0.0
        %1105 = vmatprep.subr.mxu0 0.0
        %1106 = vmatpush2.msra.mxu0 0.0
        %1107 = vmatprep.subr.mxu0 0.0
        %1108 = vmatpush2.msra.mxu0 0.0
        %1109 = vmatprep.subr.mxu0 0.0
        %1110 = vmatpush2.msra.mxu0 0.0
        %1111 = vmatprep.subr.mxu0 0.0
        %1112 = vmatpush2.msra.mxu0 0.0
        %1113 = vmatprep.subr.mxu0 0.0
        %1114 = vmatpush2.msra.mxu0 0.0
        %1115 = vmatprep.subr.mxu0 0.0
        %1116 = vmatpush2.msra.mxu0 0.0
        %1117 = vmatprep.subr.mxu0 0.0
        %1118 = vmatpush2.msra.mxu0 0.0
        %1119 = vmatprep.subr.mxu0 0.0
        %1120 = vmatpush2.msra.mxu0 0.0
        %1121 = vmatprep.subr.mxu0 0.0
        %1122 = vmatpush2.msra.mxu0 0.0
        %1123 = vmatprep.subr.mxu0 0.0
        %1124 = vmatpush2.msra.mxu0 0.0
        %1125 = vmatprep.mubr.f32.mxu0 0.0
        %1126 = vmatmul.mubr.f32.gmra.mxu0 %v1059
        %v1127 = vpop.f32.mrf.mxu0
        %v1128 = vadd.f32 %v1055, %v1127
        %v1129 = vpop.f32.mrf.mxu0
        %1130 = vdwg.mxu0
        %v1131 = vld [vmem:[%s3] sm:$0xff]
        %v1132 = vadd.f32 %v1128, %v1131
        %v1133 = vld [vmem:[%s9] sm:$0x1]
        %v1135 = vlaneseq
        %v1136 = vshrl.u32 %v1135, 7
        %v1137 = vsub.s32 0, %v1136
        %v1138 = vrot.slane %v1133, %v1137
        %v1140 = vmul.f32 %v1132, %v1138
        %v1141 = vld [vmem:[%s11] sm:$0x1]
        %v1143 = vlaneseq
        %v1144 = vshrl.u32 %v1143, 7
        %v1145 = vsub.s32 0, %v1144
        %v1146 = vrot.slane %v1141, %v1145
        %v1148 = vadd.f32 %v1140, %v1146
        %v1149 = vld [vmem:[%s13] sm:$0xff]
        %v1150 = vld [vmem:[%s13 + $0x8] sm:$0xff]
        %v1151 = vld [vmem:[%s13 + $0x10] sm:$0xff]
        %v1152 = vld [vmem:[%s13 + $0x18] sm:$0xff]
        %v1153 = vld [vmem:[%s15] sm:$0x1]
        %v1155 = vlaneseq
        %v1156 = vshrl.u32 %v1155, 7
        %v1157 = vsub.s32 0, %v1156
        %v1158 = vrot.slane %v1153, %v1157
        %vm1160 = vcmask 261120
        %v1162 = vsel %vm1160, %v1148, 0
        %1164 = vmatprep.subr.mxu0 0.0
        %1165 = vmatpush1.msra.mxu0 0.0
        %1166 = vmatprep.subr.mxu0 0.0
        %1167 = vmatpush1.msra.mxu0 0.0
        %1168 = vmatprep.subr.mxu0 0.0
        %1169 = vmatpush1.msra.mxu0 0.0
        %1170 = vmatprep.subr.mxu0 0.0
        %1171 = vmatpush1.msra.mxu0 0.0
        %1172 = vmatprep.subr.mxu0 0.0
        %1173 = vmatpush1.msra.mxu0 0.0
        %1174 = vmatprep.subr.mxu0 0.0
        %1175 = vmatpush1.msra.mxu0 0.0
        %1176 = vmatprep.subr.mxu0 0.0
        %1177 = vmatpush1.msra.mxu0 0.0
        %1178 = vmatprep.subr.mxu0 0.0
        %1179 = vmatpush1.msra.mxu0 0.0
        %1180 = vmatprep.subr.mxu0 0.0
        %1181 = vmatpush1.msra.mxu0 0.0
        %1182 = vmatprep.subr.mxu0 0.0
        %1183 = vmatpush1.msra.mxu0 0.0
        %1184 = vmatprep.subr.mxu0 0.0
        %1185 = vmatpush1.msra.mxu0 0.0
        %1186 = vmatprep.subr.mxu0 0.0
        %1187 = vmatpush1.msra.mxu0 0.0
        %1188 = vmatprep.subr.mxu0 0.0
        %1189 = vmatpush1.msra.mxu0 %v1152
        %1190 = vmatprep.subr.mxu0 0.0
        %1191 = vmatpush1.msra.mxu0 %v1151
        %1192 = vmatprep.subr.mxu0 0.0
        %1193 = vmatpush1.msra.mxu0 %v1150
        %1194 = vmatprep.subr.mxu0 0.0
        %1195 = vmatpush1.msra.mxu0 %v1149
        %1196 = vmatprep.subr.mxu0 0.0
        %1197 = vmatpush2.msra.mxu0 0.0
        %1198 = vmatprep.subr.mxu0 0.0
        %1199 = vmatpush2.msra.mxu0 0.0
        %1200 = vmatprep.subr.mxu0 0.0
        %1201 = vmatpush2.msra.mxu0 0.0
        %1202 = vmatprep.subr.mxu0 0.0
        %1203 = vmatpush2.msra.mxu0 0.0
        %1204 = vmatprep.subr.mxu0 0.0
        %1205 = vmatpush2.msra.mxu0 0.0
        %1206 = vmatprep.subr.mxu0 0.0
        %1207 = vmatpush2.msra.mxu0 0.0
        %1208 = vmatprep.subr.mxu0 0.0
        %1209 = vmatpush2.msra.mxu0 0.0
        %1210 = vmatprep.subr.mxu0 0.0
        %1211 = vmatpush2.msra.mxu0 0.0
        %1212 = vmatprep.subr.mxu0 0.0
        %1213 = vmatpush2.msra.mxu0 0.0
        %1214 = vmatprep.subr.mxu0 0.0
        %1215 = vmatpush2.msra.mxu0 0.0
        %1216 = vmatprep.subr.mxu0 0.0
        %1217 = vmatpush2.msra.mxu0 0.0
        %1218 = vmatprep.subr.mxu0 0.0
        %1219 = vmatpush2.msra.mxu0 0.0
        %1220 = vmatprep.subr.mxu0 0.0
        %1221 = vmatpush2.msra.mxu0 0.0
        %1222 = vmatprep.subr.mxu0 0.0
        %1223 = vmatpush2.msra.mxu0 0.0
        %1224 = vmatprep.subr.mxu0 0.0
        %1225 = vmatpush2.msra.mxu0 0.0
        %1226 = vmatprep.subr.mxu0 0.0
        %1227 = vmatpush2.msra.mxu0 0.0
        %1228 = vmatprep.mubr.f32.mxu0 0.0
        %1229 = vmatmul.mubr.f32.gmra.mxu0 %v1162
        %v1230 = vpop.f32.mrf.mxu0
        %v1231 = vadd.f32 %v1158, %v1230
        %v1232 = vpop.f32.mrf.mxu0
        %1233 = vdwg.mxu0
        %v1234 = vld [vmem:[%s17] sm:$0x1]
        %v1236 = vlaneseq
        %v1237 = vshrl.u32 %v1236, 7
        %v1238 = vsub.s32 0, %v1237
        %v1239 = vrot.slane %v1234, %v1238
        %v1241 = vmul.f32 %v1231, %v1239
        %v1242 = vld [vmem:[%s19] sm:$0x1]
        %v1244 = vlaneseq
        %v1245 = vshrl.u32 %v1244, 7
        %v1246 = vsub.s32 0, %v1245
        %v1247 = vrot.slane %v1242, %v1246
        %v1249 = vadd.f32 %v1241, %v1247
        %v1250 = vld [vmem:[%s21] sm:$0xff]
        %v1251 = vld [vmem:[%s21 + $0x8] sm:$0xff]
        %v1252 = vld [vmem:[%s23] sm:$0x1]
        %v1254 = vlaneseq
        %v1255 = vshrl.u32 %v1254, 7
        %v1256 = vsub.s32 0, %v1255
        %v1257 = vrot.slane %v1252, %v1256
        %1260 = vrot.lane.b32.xlu0 %v1249, 112
        %v1261 = vpop.permute.xlu0 %1260
        %vm1262 = vcmask 130048
        %v1263 = vsel %vm1262, %v1261, 0
        %1265 = vmatprep.subr.mxu0 0.0
        %1266 = vmatpush1.msra.mxu0 0.0
        %1267 = vmatprep.subr.mxu0 0.0
        %1268 = vmatpush1.msra.mxu0 0.0
        %1269 = vmatprep.subr.mxu0 0.0
        %1270 = vmatpush1.msra.mxu0 0.0
        %1271 = vmatprep.subr.mxu0 0.0
        %1272 = vmatpush1.msra.mxu0 0.0
        %1273 = vmatprep.subr.mxu0 0.0
        %1274 = vmatpush1.msra.mxu0 0.0
        %1275 = vmatprep.subr.mxu0 0.0
        %1276 = vmatpush1.msra.mxu0 0.0
        %1277 = vmatprep.subr.mxu0 0.0
        %1278 = vmatpush1.msra.mxu0 0.0
        %1279 = vmatprep.subr.mxu0 0.0
        %1280 = vmatpush1.msra.mxu0 0.0
        %1281 = vmatprep.subr.mxu0 0.0
        %1282 = vmatpush1.msra.mxu0 0.0
        %1283 = vmatprep.subr.mxu0 0.0
        %1284 = vmatpush1.msra.mxu0 0.0
        %1285 = vmatprep.subr.mxu0 0.0
        %1286 = vmatpush1.msra.mxu0 0.0
        %1287 = vmatprep.subr.mxu0 0.0
        %1288 = vmatpush1.msra.mxu0 0.0
        %1289 = vmatprep.subr.mxu0 0.0
        %1290 = vmatpush1.msra.mxu0 0.0
        %1291 = vmatprep.subr.mxu0 0.0
        %1292 = vmatpush1.msra.mxu0 0.0
        %1293 = vmatprep.subr.mxu0 0.0
        %1294 = vmatpush1.msra.mxu0 %v1251
        %1295 = vmatprep.subr.mxu0 0.0
        %1296 = vmatpush1.msra.mxu0 %v1250
        %1297 = vmatprep.subr.mxu0 0.0
        %1298 = vmatpush2.msra.mxu0 0.0
        %1299 = vmatprep.subr.mxu0 0.0
        %1300 = vmatpush2.msra.mxu0 0.0
        %1301 = vmatprep.subr.mxu0 0.0
        %1302 = vmatpush2.msra.mxu0 0.0
        %1303 = vmatprep.subr.mxu0 0.0
        %1304 = vmatpush2.msra.mxu0 0.0
        %1305 = vmatprep.subr.mxu0 0.0
        %1306 = vmatpush2.msra.mxu0 0.0
        %1307 = vmatprep.subr.mxu0 0.0
        %1308 = vmatpush2.msra.mxu0 0.0
        %1309 = vmatprep.subr.mxu0 0.0
        %1310 = vmatpush2.msra.mxu0 0.0
        %1311 = vmatprep.subr.mxu0 0.0
        %1312 = vmatpush2.msra.mxu0 0.0
        %1313 = vmatprep.subr.mxu0 0.0
        %1314 = vmatpush2.msra.mxu0 0.0
        %1315 = vmatprep.subr.mxu0 0.0
        %1316 = vmatpush2.msra.mxu0 0.0
        %1317 = vmatprep.subr.mxu0 0.0
        %1318 = vmatpush2.msra.mxu0 0.0
        %1319 = vmatprep.subr.mxu0 0.0
        %1320 = vmatpush2.msra.mxu0 0.0
        %1321 = vmatprep.subr.mxu0 0.0
        %1322 = vmatpush2.msra.mxu0 0.0
        %1323 = vmatprep.subr.mxu0 0.0
        %1324 = vmatpush2.msra.mxu0 0.0
        %1325 = vmatprep.subr.mxu0 0.0
        %1326 = vmatpush2.msra.mxu0 0.0
        %1327 = vmatprep.subr.mxu0 0.0
        %1328 = vmatpush2.msra.mxu0 0.0
        %1329 = vmatprep.mubr.f32.mxu0 0.0
        %1330 = vmatmul.mubr.f32.gmra.mxu0 %v1263
        %v1331 = vpop.f32.mrf.mxu0
        %v1332 = vadd.f32 %v1257, %v1331
        %v1333 = vpop.f32.mrf.mxu0
        %1334 = vdwg.mxu0
        %v1335 = vld [vmem:[%s25] sm:$0xff]
        %v1336 = vld [vmem:[%s25 + $0x8] sm:$0xff]
        %1338 = vrot.lane.b32.xlu0 %v1332, 112
        %v1339 = vpop.permute.xlu0 %1338
        %vm1340 = vcmask 31744
        %v1341 = vsel %vm1340, %v1332, 0
        %v1343 = vsel %vm1340, %v1339, 0
        %1345 = vmatprep.subr.mxu0 0.0
        %1346 = vmatpush1.xpose.msra.mxu0 0.0
        %1347 = vmatprep.subr.mxu0 0.0
        %1348 = vmatpush1.xpose.msra.mxu0 0.0
        %1349 = vmatprep.subr.mxu0 0.0
        %1350 = vmatpush1.xpose.msra.mxu0 0.0
        %1351 = vmatprep.subr.mxu0 0.0
        %1352 = vmatpush1.xpose.msra.mxu0 0.0
        %1353 = vmatprep.subr.mxu0 0.0
        %1354 = vmatpush1.xpose.msra.mxu0 0.0
        %1355 = vmatprep.subr.mxu0 0.0
        %1356 = vmatpush1.xpose.msra.mxu0 0.0
        %1357 = vmatprep.subr.mxu0 0.0
        %1358 = vmatpush1.xpose.msra.mxu0 0.0
        %1359 = vmatprep.subr.mxu0 0.0
        %1360 = vmatpush1.xpose.msra.mxu0 0.0
        %1361 = vmatprep.subr.mxu0 0.0
        %1362 = vmatpush1.xpose.msra.mxu0 0.0
        %1363 = vmatprep.subr.mxu0 0.0
        %1364 = vmatpush1.xpose.msra.mxu0 0.0
        %1365 = vmatprep.subr.mxu0 0.0
        %1366 = vmatpush1.xpose.msra.mxu0 0.0
        %1367 = vmatprep.subr.mxu0 0.0
        %1368 = vmatpush1.xpose.msra.mxu0 0.0
        %1369 = vmatprep.subr.mxu0 0.0
        %1370 = vmatpush1.xpose.msra.mxu0 0.0
        %1371 = vmatprep.subr.mxu0 0.0
        %1372 = vmatpush1.xpose.msra.mxu0 0.0
        %1373 = vmatprep.subr.mxu0 0.0
        %1374 = vmatpush1.xpose.msra.mxu0 0.0
        %1375 = vmatprep.subr.mxu0 0.0
        %1376 = vmatpush1.xpose.msra.mxu0 %v1343
        %1377 = vmatprep.subr.mxu0 0.0
        %1378 = vmatpush2.xpose.msra.mxu0 0.0
        %1379 = vmatprep.subr.mxu0 0.0
        %1380 = vmatpush2.xpose.msra.mxu0 0.0
        %1381 = vmatprep.subr.mxu0 0.0
        %1382 = vmatpush2.xpose.msra.mxu0 0.0
        %1383 = vmatprep.subr.mxu0 0.0
        %1384 = vmatpush2.xpose.msra.mxu0 0.0
        %1385 = vmatprep.subr.mxu0 0.0
        %1386 = vmatpush2.xpose.msra.mxu0 0.0
        %1387 = vmatprep.subr.mxu0 0.0
        %1388 = vmatpush2.xpose.msra.mxu0 0.0
        %1389 = vmatprep.subr.mxu0 0.0
        %1390 = vmatpush2.xpose.msra.mxu0 0.0
        %1391 = vmatprep.subr.mxu0 0.0
        %1392 = vmatpush2.xpose.msra.mxu0 0.0
        %1393 = vmatprep.subr.mxu0 0.0
        %1394 = vmatpush2.xpose.msra.mxu0 0.0
        %1395 = vmatprep.subr.mxu0 0.0
        %1396 = vmatpush2.xpose.msra.mxu0 0.0
        %1397 = vmatprep.subr.mxu0 0.0
        %1398 = vmatpush2.xpose.msra.mxu0 0.0
        %1399 = vmatprep.subr.mxu0 0.0
        %1400 = vmatpush2.xpose.msra.mxu0 0.0
        %1401 = vmatprep.subr.mxu0 0.0
        %1402 = vmatpush2.xpose.msra.mxu0 0.0
        %1403 = vmatprep.subr.mxu0 0.0
        %1404 = vmatpush2.xpose.msra.mxu0 0.0
        %1405 = vmatprep.subr.mxu0 0.0
        %1406 = vmatpush2.xpose.msra.mxu0 0.0
        %1407 = vmatprep.subr.mxu0 0.0
        %1408 = vmatpush2.xpose.msra.mxu0 0.0
        %1409 = vmatprep.mubr.f32.mxu0 0.0
        %1410 = vmatmul.mubr.f32.gmra.mxu0 %v1341
        %v1411 = vpop.f32.mrf.mxu0
        %v1412 = vadd.f32 0.0, %v1411
        %v1413 = vpop.f32.mrf.mxu0
        %1414 = vdwg.mxu0
        %v1415 = vmul.f32 %v1412, 0.5
        %vm1416 = vcmask 64512
        %v1417 = vsel %vm1416, %v1415, -inf
        %1418 = vmax.xlane.f32.xlu0 %v1417
        %v1419 = vpop.xlane.xlu0 %1418
        %v1420 = vsub.f32 %v1415, %v1419
        %v1421 = vmul.f32 %v1420, 1.442695
        %v1422 = vpow.pop %v1421
        %v1423 = vsel %vm1416, %v1422, 0.0
        %1424 = vadd.xlane.f32.xlu0 %v1423
        %v1425 = vpop.xlane.xlu0 %1424
        %v1426 = vrcp.pop %v1425
        %v1427 = vmul.f32 %v1422, %v1426
        %1428 = vrot.lane.b32.xlu0 %v1249, 96
        %v1429 = vpop.permute.xlu0 %1428
        %v1432 = vsel %vm1416, %v1427, 0
        %1434 = vmatprep.subr.mxu0 0.0
        %1435 = vmatpush1.msra.mxu0 0.0
        %1436 = vmatprep.subr.mxu0 0.0
        %1437 = vmatpush1.msra.mxu0 0.0
        %1438 = vmatprep.subr.mxu0 0.0
        %1439 = vmatpush1.msra.mxu0 0.0
        %1440 = vmatprep.subr.mxu0 0.0
        %1441 = vmatpush1.msra.mxu0 0.0
        %1442 = vmatprep.subr.mxu0 0.0
        %1443 = vmatpush1.msra.mxu0 0.0
        %1444 = vmatprep.subr.mxu0 0.0
        %1445 = vmatpush1.msra.mxu0 0.0
        %1446 = vmatprep.subr.mxu0 0.0
        %1447 = vmatpush1.msra.mxu0 0.0
        %1448 = vmatprep.subr.mxu0 0.0
        %1449 = vmatpush1.msra.mxu0 0.0
        %1450 = vmatprep.subr.mxu0 0.0
        %1451 = vmatpush1.msra.mxu0 0.0
        %1452 = vmatprep.subr.mxu0 0.0
        %1453 = vmatpush1.msra.mxu0 0.0
        %1454 = vmatprep.subr.mxu0 0.0
        %1455 = vmatpush1.msra.mxu0 0.0
        %1456 = vmatprep.subr.mxu0 0.0
        %1457 = vmatpush1.msra.mxu0 0.0
        %1458 = vmatprep.subr.mxu0 0.0
        %1459 = vmatpush1.msra.mxu0 0.0
        %1460 = vmatprep.subr.mxu0 0.0
        %1461 = vmatpush1.msra.mxu0 0.0
        %1462 = vmatprep.subr.mxu0 0.0
        %1463 = vmatpush1.msra.mxu0 0.0
        %1464 = vmatprep.subr.mxu0 0.0
        %1465 = vmatpush1.msra.mxu0 %v1429
        %1466 = vmatprep.subr.mxu0 0.0
        %1467 = vmatpush2.msra.mxu0 0.0
        %1468 = vmatprep.subr.mxu0 0.0
        %1469 = vmatpush2.msra.mxu0 0.0
        %1470 = vmatprep.subr.mxu0 0.0
        %1471 = vmatpush2.msra.mxu0 0.0
        %1472 = vmatprep.subr.mxu0 0.0
        %1473 = vmatpush2.msra.mxu0 0.0
        %1474 = vmatprep.subr.mxu0 0.0
        %1475 = vmatpush2.msra.mxu0 0.0
        %1476 = vmatprep.subr.mxu0 0.0
        %1477 = vmatpush2.msra.mxu0 0.0
        %1478 = vmatprep.subr.mxu0 0.0
        %1479 = vmatpush2.msra.mxu0 0.0
        %1480 = vmatprep.subr.mxu0 0.0
        %1481 = vmatpush2.msra.mxu0 0.0
        %1482 = vmatprep.subr.mxu0 0.0
        %1483 = vmatpush2.msra.mxu0 0.0
        %1484 = vmatprep.subr.mxu0 0.0
        %1485 = vmatpush2.msra.mxu0 0.0
        %1486 = vmatprep.subr.mxu0 0.0
        %1487 = vmatpush2.msra.mxu0 0.0
        %1488 = vmatprep.subr.mxu0 0.0
        %1489 = vmatpush2.msra.mxu0 0.0
        %1490 = vmatprep.subr.mxu0 0.0
        %1491 = vmatpush2.msra.mxu0 0.0
        %1492 = vmatprep.subr.mxu0 0.0
        %1493 = vmatpush2.msra.mxu0 0.0
        %1494 = vmatprep.subr.mxu0 0.0
        %1495 = vmatpush2.msra.mxu0 0.0
        %1496 = vmatprep.subr.mxu0 0.0
        %1497 = vmatpush2.msra.mxu0 0.0
        %1498 = vmatprep.mubr.f32.mxu0 0.0
        %1499 = vmatmul.mubr.f32.gmra.mxu0 %v1432
        %v1500 = vpop.f32.mrf.mxu0
        %v1501 = vadd.f32 0.0, %v1500
        %v1502 = vpop.f32.mrf.mxu0
        %1503 = vdwg.mxu0
        %1504 = vrot.lane.b32.xlu0 %v1332, 124
        %v1505 = vpop.permute.xlu0 %1504
        %1506 = vrot.lane.b32.xlu0 %v1332, 108
        %v1507 = vpop.permute.xlu0 %1506
        %v1508 = vsel %vm1340, %v1505, 0
        %v1510 = vsel %vm1340, %v1507, 0
        %1512 = vmatprep.subr.mxu0 0.0
        %1513 = vmatpush1.xpose.msra.mxu0 0.0
        %1514 = vmatprep.subr.mxu0 0.0
        %1515 = vmatpush1.xpose.msra.mxu0 0.0
        %1516 = vmatprep.subr.mxu0 0.0
        %1517 = vmatpush1.xpose.msra.mxu0 0.0
        %1518 = vmatprep.subr.mxu0 0.0
        %1519 = vmatpush1.xpose.msra.mxu0 0.0
        %1520 = vmatprep.subr.mxu0 0.0
        %1521 = vmatpush1.xpose.msra.mxu0 0.0
        %1522 = vmatprep.subr.mxu0 0.0
        %1523 = vmatpush1.xpose.msra.mxu0 0.0
        %1524 = vmatprep.subr.mxu0 0.0
        %1525 = vmatpush1.xpose.msra.mxu0 0.0
        %1526 = vmatprep.subr.mxu0 0.0
        %1527 = vmatpush1.xpose.msra.mxu0 0.0
        %1528 = vmatprep.subr.mxu0 0.0
        %1529 = vmatpush1.xpose.msra.mxu0 0.0
        %1530 = vmatprep.subr.mxu0 0.0
        %1531 = vmatpush1.xpose.msra.mxu0 0.0
        %1532 = vmatprep.subr.mxu0 0.0
        %1533 = vmatpush1.xpose.msra.mxu0 0.0
        %1534 = vmatprep.subr.mxu0 0.0
        %1535 = vmatpush1.xpose.msra.mxu0 0.0
        %1536 = vmatprep.subr.mxu0 0.0
        %1537 = vmatpush1.xpose.msra.mxu0 0.0
        %1538 = vmatprep.subr.mxu0 0.0
        %1539 = vmatpush1.xpose.msra.mxu0 0.0
        %1540 = vmatprep.subr.mxu0 0.0
        %1541 = vmatpush1.xpose.msra.mxu0 0.0
        %1542 = vmatprep.subr.mxu0 0.0
        %1543 = vmatpush1.xpose.msra.mxu0 %v1510
        %1544 = vmatprep.subr.mxu0 0.0
        %1545 = vmatpush2.xpose.msra.mxu0 0.0
        %1546 = vmatprep.subr.mxu0 0.0
        %1547 = vmatpush2.xpose.msra.mxu0 0.0
        %1548 = vmatprep.subr.mxu0 0.0
        %1549 = vmatpush2.xpose.msra.mxu0 0.0
        %1550 = vmatprep.subr.mxu0 0.0
        %1551 = vmatpush2.xpose.msra.mxu0 0.0
        %1552 = vmatprep.subr.mxu0 0.0
        %1553 = vmatpush2.xpose.msra.mxu0 0.0
        %1554 = vmatprep.subr.mxu0 0.0
        %1555 = vmatpush2.xpose.msra.mxu0 0.0
        %1556 = vmatprep.subr.mxu0 0.0
        %1557 = vmatpush2.xpose.msra.mxu0 0.0
        %1558 = vmatprep.subr.mxu0 0.0
        %1559 = vmatpush2.xpose.msra.mxu0 0.0
        %1560 = vmatprep.subr.mxu0 0.0
        %1561 = vmatpush2.xpose.msra.mxu0 0.0
        %1562 = vmatprep.subr.mxu0 0.0
        %1563 = vmatpush2.xpose.msra.mxu0 0.0
        %1564 = vmatprep.subr.mxu0 0.0
        %1565 = vmatpush2.xpose.msra.mxu0 0.0
        %1566 = vmatprep.subr.mxu0 0.0
        %1567 = vmatpush2.xpose.msra.mxu0 0.0
        %1568 = vmatprep.subr.mxu0 0.0
        %1569 = vmatpush2.xpose.msra.mxu0 0.0
        %1570 = vmatprep.subr.mxu0 0.0
        %1571 = vmatpush2.xpose.msra.mxu0 0.0
        %1572 = vmatprep.subr.mxu0 0.0
        %1573 = vmatpush2.xpose.msra.mxu0 0.0
        %1574 = vmatprep.subr.mxu0 0.0
        %1575 = vmatpush2.xpose.msra.mxu0 0.0
        %1576 = vmatprep.mubr.f32.mxu0 0.0
        %1577 = vmatmul.mubr.f32.gmra.mxu0 %v1508
        %v1578 = vpop.f32.mrf.mxu0
        %v1579 = vadd.f32 0.0, %v1578
        %v1580 = vpop.f32.mrf.mxu0
        %1581 = vdwg.mxu0
        %v1582 = vmul.f32 %v1579, 0.5
        %v1583 = vsel %vm1416, %v1582, -inf
        %1584 = vmax.xlane.f32.xlu0 %v1583
        %v1585 = vpop.xlane.xlu0 %1584
        %v1586 = vsub.f32 %v1582, %v1585
        %v1587 = vmul.f32 %v1586, 1.442695
        %v1588 = vpow.pop %v1587
        %v1589 = vsel %vm1416, %v1588, 0.0
        %1590 = vadd.xlane.f32.xlu0 %v1589
        %v1591 = vpop.xlane.xlu0 %1590
        %v1592 = vrcp.pop %v1591
        %v1593 = vmul.f32 %v1588, %v1592
        %1594 = vrot.lane.b32.xlu0 %v1249, 92
        %v1595 = vpop.permute.xlu0 %1594
        %v1598 = vsel %vm1416, %v1593, 0
        %1600 = vmatprep.subr.mxu0 0.0
        %1601 = vmatpush1.msra.mxu0 0.0
        %1602 = vmatprep.subr.mxu0 0.0
        %1603 = vmatpush1.msra.mxu0 0.0
        %1604 = vmatprep.subr.mxu0 0.0
        %1605 = vmatpush1.msra.mxu0 0.0
        %1606 = vmatprep.subr.mxu0 0.0
        %1607 = vmatpush1.msra.mxu0 0.0
        %1608 = vmatprep.subr.mxu0 0.0
        %1609 = vmatpush1.msra.mxu0 0.0
        %1610 = vmatprep.subr.mxu0 0.0
        %1611 = vmatpush1.msra.mxu0 0.0
        %1612 = vmatprep.subr.mxu0 0.0
        %1613 = vmatpush1.msra.mxu0 0.0
        %1614 = vmatprep.subr.mxu0 0.0
        %1615 = vmatpush1.msra.mxu0 0.0
        %1616 = vmatprep.subr.mxu0 0.0
        %1617 = vmatpush1.msra.mxu0 0.0
        %1618 = vmatprep.subr.mxu0 0.0
        %1619 = vmatpush1.msra.mxu0 0.0
        %1620 = vmatprep.subr.mxu0 0.0
        %1621 = vmatpush1.msra.mxu0 0.0
        %1622 = vmatprep.subr.mxu0 0.0
        %1623 = vmatpush1.msra.mxu0 0.0
        %1624 = vmatprep.subr.mxu0 0.0
        %1625 = vmatpush1.msra.mxu0 0.0
        %1626 = vmatprep.subr.mxu0 0.0
        %1627 = vmatpush1.msra.mxu0 0.0
        %1628 = vmatprep.subr.mxu0 0.0
        %1629 = vmatpush1.msra.mxu0 0.0
        %1630 = vmatprep.subr.mxu0 0.0
        %1631 = vmatpush1.msra.mxu0 %v1595
        %1632 = vmatprep.subr.mxu0 0.0
        %1633 = vmatpush2.msra.mxu0 0.0
        %1634 = vmatprep.subr.mxu0 0.0
        %1635 = vmatpush2.msra.mxu0 0.0
        %1636 = vmatprep.subr.mxu0 0.0
        %1637 = vmatpush2.msra.mxu0 0.0
        %1638 = vmatprep.subr.mxu0 0.0
        %1639 = vmatpush2.msra.mxu0 0.0
        %1640 = vmatprep.subr.mxu0 0.0
        %1641 = vmatpush2.msra.mxu0 0.0
        %1642 = vmatprep.subr.mxu0 0.0
        %1643 = vmatpush2.msra.mxu0 0.0
        %1644 = vmatprep.subr.mxu0 0.0
        %1645 = vmatpush2.msra.mxu0 0.0
        %1646 = vmatprep.subr.mxu0 0.0
        %1647 = vmatpush2.msra.mxu0 0.0
        %1648 = vmatprep.subr.mxu0 0.0
        %1649 = vmatpush2.msra.mxu0 0.0
        %1650 = vmatprep.subr.mxu0 0.0
        %1651 = vmatpush2.msra.mxu0 0.0
        %1652 = vmatprep.subr.mxu0 0.0
        %1653 = vmatpush2.msra.mxu0 0.0
        %1654 = vmatprep.subr.mxu0 0.0
        %1655 = vmatpush2.msra.mxu0 0.0
        %1656 = vmatprep.subr.mxu0 0.0
        %1657 = vmatpush2.msra.mxu0 0.0
        %1658 = vmatprep.subr.mxu0 0.0
        %1659 = vmatpush2.msra.mxu0 0.0
        %1660 = vmatprep.subr.mxu0 0.0
        %1661 = vmatpush2.msra.mxu0 0.0
        %1662 = vmatprep.subr.mxu0 0.0
        %1663 = vmatpush2.msra.mxu0 0.0
        %1664 = vmatprep.mubr.f32.mxu0 0.0
        %1665 = vmatmul.mubr.f32.gmra.mxu0 %v1598
        %v1666 = vpop.f32.mrf.mxu0
        %v1667 = vadd.f32 0.0, %v1666
        %v1668 = vpop.f32.mrf.mxu0
        %1669 = vdwg.mxu0
        %v1671 = vrot.slane %v1335, 4
        %v1673 = vsel %vm1340, %v1667, 0
        %vm1675 = vcmask 1043456
        %v1676 = vsel %vm1675, %v1671, 0
        %1678 = vmatprep.subr.mxu0 0.0
        %1679 = vmatpush1.msra.mxu0 0.0
        %1680 = vmatprep.subr.mxu0 0.0
        %1681 = vmatpush1.msra.mxu0 0.0
        %1682 = vmatprep.subr.mxu0 0.0
        %1683 = vmatpush1.msra.mxu0 0.0
        %1684 = vmatprep.subr.mxu0 0.0
        %1685 = vmatpush1.msra.mxu0 0.0
        %1686 = vmatprep.subr.mxu0 0.0
        %1687 = vmatpush1.msra.mxu0 0.0
        %1688 = vmatprep.subr.mxu0 0.0
        %1689 = vmatpush1.msra.mxu0 0.0
        %1690 = vmatprep.subr.mxu0 0.0
        %1691 = vmatpush1.msra.mxu0 0.0
        %1692 = vmatprep.subr.mxu0 0.0
        %1693 = vmatpush1.msra.mxu0 0.0
        %1694 = vmatprep.subr.mxu0 0.0
        %1695 = vmatpush1.msra.mxu0 0.0
        %1696 = vmatprep.subr.mxu0 0.0
        %1697 = vmatpush1.msra.mxu0 0.0
        %1698 = vmatprep.subr.mxu0 0.0
        %1699 = vmatpush1.msra.mxu0 0.0
        %1700 = vmatprep.subr.mxu0 0.0
        %1701 = vmatpush1.msra.mxu0 0.0
        %1702 = vmatprep.subr.mxu0 0.0
        %1703 = vmatpush1.msra.mxu0 0.0
        %1704 = vmatprep.subr.mxu0 0.0
        %1705 = vmatpush1.msra.mxu0 0.0
        %1706 = vmatprep.subr.mxu0 0.0
        %1707 = vmatpush1.msra.mxu0 0.0
        %1708 = vmatprep.subr.mxu0 0.0
        %1709 = vmatpush1.msra.mxu0 %v1676
        %1710 = vmatprep.subr.mxu0 0.0
        %1711 = vmatpush2.msra.mxu0 0.0
        %1712 = vmatprep.subr.mxu0 0.0
        %1713 = vmatpush2.msra.mxu0 0.0
        %1714 = vmatprep.subr.mxu0 0.0
        %1715 = vmatpush2.msra.mxu0 0.0
        %1716 = vmatprep.subr.mxu0 0.0
        %1717 = vmatpush2.msra.mxu0 0.0
        %1718 = vmatprep.subr.mxu0 0.0
        %1719 = vmatpush2.msra.mxu0 0.0
        %1720 = vmatprep.subr.mxu0 0.0
        %1721 = vmatpush2.msra.mxu0 0.0
        %1722 = vmatprep.subr.mxu0 0.0
        %1723 = vmatpush2.msra.mxu0 0.0
        %1724 = vmatprep.subr.mxu0 0.0
        %1725 = vmatpush2.msra.mxu0 0.0
        %1726 = vmatprep.subr.mxu0 0.0
        %1727 = vmatpush2.msra.mxu0 0.0
        %1728 = vmatprep.subr.mxu0 0.0
        %1729 = vmatpush2.msra.mxu0 0.0
        %1730 = vmatprep.subr.mxu0 0.0
        %1731 = vmatpush2.msra.mxu0 0.0
        %1732 = vmatprep.subr.mxu0 0.0
        %1733 = vmatpush2.msra.mxu0 0.0
        %1734 = vmatprep.subr.mxu0 0.0
        %1735 = vmatpush2.msra.mxu0 0.0
        %1736 = vmatprep.subr.mxu0 0.0
        %1737 = vmatpush2.msra.mxu0 0.0
        %1738 = vmatprep.subr.mxu0 0.0
        %1739 = vmatpush2.msra.mxu0 0.0
        %1740 = vmatprep.subr.mxu0 0.0
        %1741 = vmatpush2.msra.mxu0 0.0
        %1742 = vmatprep.mubr.f32.mxu0 0.0
        %1743 = vmatmul.mubr.f32.gmra.mxu0 %v1673
        %v1744 = vpop.f32.mrf.mxu0
        %v1745 = vadd.f32 0.0, %v1744
        %v1746 = vpop.f32.mrf.mxu0
        %1747 = vdwg.mxu0
        %v1749 = vsel %vm1340, %v1501, 0
        %v1751 = vsel %vm1675, %v1335, 0
        %1753 = vmatprep.subr.mxu0 0.0
        %1754 = vmatpush1.msra.mxu0 0.0
        %1755 = vmatprep.subr.mxu0 0.0
        %1756 = vmatpush1.msra.mxu0 0.0
        %1757 = vmatprep.subr.mxu0 0.0
        %1758 = vmatpush1.msra.mxu0 0.0
        %1759 = vmatprep.subr.mxu0 0.0
        %1760 = vmatpush1.msra.mxu0 0.0
        %1761 = vmatprep.subr.mxu0 0.0
        %1762 = vmatpush1.msra.mxu0 0.0
        %1763 = vmatprep.subr.mxu0 0.0
        %1764 = vmatpush1.msra.mxu0 0.0
        %1765 = vmatprep.subr.mxu0 0.0
        %1766 = vmatpush1.msra.mxu0 0.0
        %1767 = vmatprep.subr.mxu0 0.0
        %1768 = vmatpush1.msra.mxu0 0.0
        %1769 = vmatprep.subr.mxu0 0.0
        %1770 = vmatpush1.msra.mxu0 0.0
        %1771 = vmatprep.subr.mxu0 0.0
        %1772 = vmatpush1.msra.mxu0 0.0
        %1773 = vmatprep.subr.mxu0 0.0
        %1774 = vmatpush1.msra.mxu0 0.0
        %1775 = vmatprep.subr.mxu0 0.0
        %1776 = vmatpush1.msra.mxu0 0.0
        %1777 = vmatprep.subr.mxu0 0.0
        %1778 = vmatpush1.msra.mxu0 0.0
        %1779 = vmatprep.subr.mxu0 0.0
        %1780 = vmatpush1.msra.mxu0 0.0
        %1781 = vmatprep.subr.mxu0 0.0
        %1782 = vmatpush1.msra.mxu0 0.0
        %1783 = vmatprep.subr.mxu0 0.0
        %1784 = vmatpush1.msra.mxu0 %v1751
        %1785 = vmatprep.subr.mxu0 0.0
        %1786 = vmatpush2.msra.mxu0 0.0
        %1787 = vmatprep.subr.mxu0 0.0
        %1788 = vmatpush2.msra.mxu0 0.0
        %1789 = vmatprep.subr.mxu0 0.0
        %1790 = vmatpush2.msra.mxu0 0.0
        %1791 = vmatprep.subr.mxu0 0.0
        %1792 = vmatpush2.msra.mxu0 0.0
        %1793 = vmatprep.subr.mxu0 0.0
        %1794 = vmatpush2.msra.mxu0 0.0
        %1795 = vmatprep.subr.mxu0 0.0
        %1796 = vmatpush2.msra.mxu0 0.0
        %1797 = vmatprep.subr.mxu0 0.0
        %1798 = vmatpush2.msra.mxu0 0.0
        %1799 = vmatprep.subr.mxu0 0.0
        %1800 = vmatpush2.msra.mxu0 0.0
        %1801 = vmatprep.subr.mxu0 0.0
        %1802 = vmatpush2.msra.mxu0 0.0
        %1803 = vmatprep.subr.mxu0 0.0
        %1804 = vmatpush2.msra.mxu0 0.0
        %1805 = vmatprep.subr.mxu0 0.0
        %1806 = vmatpush2.msra.mxu0 0.0
        %1807 = vmatprep.subr.mxu0 0.0
        %1808 = vmatpush2.msra.mxu0 0.0
        %1809 = vmatprep.subr.mxu0 0.0
        %1810 = vmatpush2.msra.mxu0 0.0
        %1811 = vmatprep.subr.mxu0 0.0
        %1812 = vmatpush2.msra.mxu0 0.0
        %1813 = vmatprep.subr.mxu0 0.0
        %1814 = vmatpush2.msra.mxu0 0.0
        %1815 = vmatprep.subr.mxu0 0.0
        %1816 = vmatpush2.msra.mxu0 0.0
        %1817 = vmatprep.mubr.f32.mxu0 0.0
        %1818 = vmatmul.mubr.f32.gmra.mxu0 %v1749
        %v1819 = vpop.f32.mrf.mxu0
        %v1820 = vadd.f32 %v1745, %v1819
        %v1821 = vpop.f32.mrf.mxu0
        %1822 = vdwg.mxu0
        %1823 = vrot.lane.b32.xlu0 %v1332, 120
        %v1824 = vpop.permute.xlu0 %1823
        %1825 = vrot.lane.b32.xlu0 %v1332, 104
        %v1826 = vpop.permute.xlu0 %1825
        %v1827 = vsel %vm1340, %v1824, 0
        %v1829 = vsel %vm1340, %v1826, 0
        %1831 = vmatprep.subr.mxu0 0.0
        %1832 = vmatpush1.xpose.msra.mxu0 0.0
        %1833 = vmatprep.subr.mxu0 0.0
        %1834 = vmatpush1.xpose.msra.mxu0 0.0
        %1835 = vmatprep.subr.mxu0 0.0
        %1836 = vmatpush1.xpose.msra.mxu0 0.0
        %1837 = vmatprep.subr.mxu0 0.0
        %1838 = vmatpush1.xpose.msra.mxu0 0.0
        %1839 = vmatprep.subr.mxu0 0.0
        %1840 = vmatpush1.xpose.msra.mxu0 0.0
        %1841 = vmatprep.subr.mxu0 0.0
        %1842 = vmatpush1.xpose.msra.mxu0 0.0
        %1843 = vmatprep.subr.mxu0 0.0
        %1844 = vmatpush1.xpose.msra.mxu0 0.0
        %1845 = vmatprep.subr.mxu0 0.0
        %1846 = vmatpush1.xpose.msra.mxu0 0.0
        %1847 = vmatprep.subr.mxu0 0.0
        %1848 = vmatpush1.xpose.msra.mxu0 0.0
        %1849 = vmatprep.subr.mxu0 0.0
        %1850 = vmatpush1.xpose.msra.mxu0 0.0
        %1851 = vmatprep.subr.mxu0 0.0
        %1852 = vmatpush1.xpose.msra.mxu0 0.0
        %1853 = vmatprep.subr.mxu0 0.0
        %1854 = vmatpush1.xpose.msra.mxu0 0.0
        %1855 = vmatprep.subr.mxu0 0.0
        %1856 = vmatpush1.xpose.msra.mxu0 0.0
        %1857 = vmatprep.subr.mxu0 0.0
        %1858 = vmatpush1.xpose.msra.mxu0 0.0
        %1859 = vmatprep.subr.mxu0 0.0
        %1860 = vmatpush1.xpose.msra.mxu0 0.0
        %1861 = vmatprep.subr.mxu0 0.0
        %1862 = vmatpush1.xpose.msra.mxu0 %v1829
        %1863 = vmatprep.subr.mxu0 0.0
        %1864 = vmatpush2.xpose.msra.mxu0 0.0
        %1865 = vmatprep.subr.mxu0 0.0
        %1866 = vmatpush2.xpose.msra.mxu0 0.0
        %1867 = vmatprep.subr.mxu0 0.0
        %1868 = vmatpush2.xpose.msra.mxu0 0.0
        %1869 = vmatprep.subr.mxu0 0.0
        %1870 = vmatpush2.xpose.msra.mxu0 0.0
        %1871 = vmatprep.subr.mxu0 0.0
        %1872 = vmatpush2.xpose.msra.mxu0 0.0
        %1873 = vmatprep.subr.mxu0 0.0
        %1874 = vmatpush2.xpose.msra.mxu0 0.0
        %1875 = vmatprep.subr.mxu0 0.0
        %1876 = vmatpush2.xpose.msra.mxu0 0.0
        %1877 = vmatprep.subr.mxu0 0.0
        %1878 = vmatpush2.xpose.msra.mxu0 0.0
        %1879 = vmatprep.subr.mxu0 0.0
        %1880 = vmatpush2.xpose.msra.mxu0 0.0
        %1881 = vmatprep.subr.mxu0 0.0
        %1882 = vmatpush2.xpose.msra.mxu0 0.0
        %1883 = vmatprep.subr.mxu0 0.0
        %1884 = vmatpush2.xpose.msra.mxu0 0.0
        %1885 = vmatprep.subr.mxu0 0.0
        %1886 = vmatpush2.xpose.msra.mxu0 0.0
        %1887 = vmatprep.subr.mxu0 0.0
        %1888 = vmatpush2.xpose.msra.mxu0 0.0
        %1889 = vmatprep.subr.mxu0 0.0
        %1890 = vmatpush2.xpose.msra.mxu0 0.0
        %1891 = vmatprep.subr.mxu0 0.0
        %1892 = vmatpush2.xpose.msra.mxu0 0.0
        %1893 = vmatprep.subr.mxu0 0.0
        %1894 = vmatpush2.xpose.msra.mxu0 0.0
        %1895 = vmatprep.mubr.f32.mxu0 0.0
        %1896 = vmatmul.mubr.f32.gmra.mxu0 %v1827
        %v1897 = vpop.f32.mrf.mxu0
        %v1898 = vadd.f32 0.0, %v1897
        %v1899 = vpop.f32.mrf.mxu0
        %1900 = vdwg.mxu0
        %v1901 = vmul.f32 %v1898, 0.5
        %v1902 = vsel %vm1416, %v1901, -inf
        %1903 = vmax.xlane.f32.xlu0 %v1902
        %v1904 = vpop.xlane.xlu0 %1903
        %v1905 = vsub.f32 %v1901, %v1904
        %v1906 = vmul.f32 %v1905, 1.442695
        %v1907 = vpow.pop %v1906
        %v1908 = vsel %vm1416, %v1907, 0.0
        %1909 = vadd.xlane.f32.xlu0 %v1908
        %v1910 = vpop.xlane.xlu0 %1909
        %v1911 = vrcp.pop %v1910
        %v1912 = vmul.f32 %v1907, %v1911
        %1913 = vrot.lane.b32.xlu0 %v1249, 88
        %v1914 = vpop.permute.xlu0 %1913
        %v1917 = vsel %vm1416, %v1912, 0
        %1919 = vmatprep.subr.mxu0 0.0
        %1920 = vmatpush1.msra.mxu0 0.0
        %1921 = vmatprep.subr.mxu0 0.0
        %1922 = vmatpush1.msra.mxu0 0.0
        %1923 = vmatprep.subr.mxu0 0.0
        %1924 = vmatpush1.msra.mxu0 0.0
        %1925 = vmatprep.subr.mxu0 0.0
        %1926 = vmatpush1.msra.mxu0 0.0
        %1927 = vmatprep.subr.mxu0 0.0
        %1928 = vmatpush1.msra.mxu0 0.0
        %1929 = vmatprep.subr.mxu0 0.0
        %1930 = vmatpush1.msra.mxu0 0.0
        %1931 = vmatprep.subr.mxu0 0.0
        %1932 = vmatpush1.msra.mxu0 0.0
        %1933 = vmatprep.subr.mxu0 0.0
        %1934 = vmatpush1.msra.mxu0 0.0
        %1935 = vmatprep.subr.mxu0 0.0
        %1936 = vmatpush1.msra.mxu0 0.0
        %1937 = vmatprep.subr.mxu0 0.0
        %1938 = vmatpush1.msra.mxu0 0.0
        %1939 = vmatprep.subr.mxu0 0.0
        %1940 = vmatpush1.msra.mxu0 0.0
        %1941 = vmatprep.subr.mxu0 0.0
        %1942 = vmatpush1.msra.mxu0 0.0
        %1943 = vmatprep.subr.mxu0 0.0
        %1944 = vmatpush1.msra.mxu0 0.0
        %1945 = vmatprep.subr.mxu0 0.0
        %1946 = vmatpush1.msra.mxu0 0.0
        %1947 = vmatprep.subr.mxu0 0.0
        %1948 = vmatpush1.msra.mxu0 0.0
        %1949 = vmatprep.subr.mxu0 0.0
        %1950 = vmatpush1.msra.mxu0 %v1914
        %1951 = vmatprep.subr.mxu0 0.0
        %1952 = vmatpush2.msra.mxu0 0.0
        %1953 = vmatprep.subr.mxu0 0.0
        %1954 = vmatpush2.msra.mxu0 0.0
        %1955 = vmatprep.subr.mxu0 0.0
        %1956 = vmatpush2.msra.mxu0 0.0
        %1957 = vmatprep.subr.mxu0 0.0
        %1958 = vmatpush2.msra.mxu0 0.0
        %1959 = vmatprep.subr.mxu0 0.0
        %1960 = vmatpush2.msra.mxu0 0.0
        %1961 = vmatprep.subr.mxu0 0.0
        %1962 = vmatpush2.msra.mxu0 0.0
        %1963 = vmatprep.subr.mxu0 0.0
        %1964 = vmatpush2.msra.mxu0 0.0
        %1965 = vmatprep.subr.mxu0 0.0
        %1966 = vmatpush2.msra.mxu0 0.0
        %1967 = vmatprep.subr.mxu0 0.0
        %1968 = vmatpush2.msra.mxu0 0.0
        %1969 = vmatprep.subr.mxu0 0.0
        %1970 = vmatpush2.msra.mxu0 0.0
        %1971 = vmatprep.subr.mxu0 0.0
        %1972 = vmatpush2.msra.mxu0 0.0
        %1973 = vmatprep.subr.mxu0 0.0
        %1974 = vmatpush2.msra.mxu0 0.0
        %1975 = vmatprep.subr.mxu0 0.0
        %1976 = vmatpush2.msra.mxu0 0.0
        %1977 = vmatprep.subr.mxu0 0.0
        %1978 = vmatpush2.msra.mxu0 0.0
        %1979 = vmatprep.subr.mxu0 0.0
        %1980 = vmatpush2.msra.mxu0 0.0
        %1981 = vmatprep.subr.mxu0 0.0
        %1982 = vmatpush2.msra.mxu0 0.0
        %1983 = vmatprep.mubr.f32.mxu0 0.0
        %1984 = vmatmul.mubr.f32.gmra.mxu0 %v1917
        %v1985 = vpop.f32.mrf.mxu0
        %v1986 = vadd.f32 0.0, %v1985
        %v1987 = vpop.f32.mrf.mxu0
        %1988 = vdwg.mxu0
        %v1990 = vsel %vm1340, %v1986, 0
        %v1993 = vsel %vm1675, %v1336, 0
        %1995 = vmatprep.subr.mxu0 0.0
        %1996 = vmatpush1.msra.mxu0 0.0
        %1997 = vmatprep.subr.mxu0 0.0
        %1998 = vmatpush1.msra.mxu0 0.0
        %1999 = vmatprep.subr.mxu0 0.0
        %2000 = vmatpush1.msra.mxu0 0.0
        %2001 = vmatprep.subr.mxu0 0.0
        %2002 = vmatpush1.msra.mxu0 0.0
        %2003 = vmatprep.subr.mxu0 0.0
        %2004 = vmatpush1.msra.mxu0 0.0
        %2005 = vmatprep.subr.mxu0 0.0
        %2006 = vmatpush1.msra.mxu0 0.0
        %2007 = vmatprep.subr.mxu0 0.0
        %2008 = vmatpush1.msra.mxu0 0.0
        %2009 = vmatprep.subr.mxu0 0.0
        %2010 = vmatpush1.msra.mxu0 0.0
        %2011 = vmatprep.subr.mxu0 0.0
        %2012 = vmatpush1.msra.mxu0 0.0
        %2013 = vmatprep.subr.mxu0 0.0
        %2014 = vmatpush1.msra.mxu0 0.0
        %2015 = vmatprep.subr.mxu0 0.0
        %2016 = vmatpush1.msra.mxu0 0.0
        %2017 = vmatprep.subr.mxu0 0.0
        %2018 = vmatpush1.msra.mxu0 0.0
        %2019 = vmatprep.subr.mxu0 0.0
        %2020 = vmatpush1.msra.mxu0 0.0
        %2021 = vmatprep.subr.mxu0 0.0
        %2022 = vmatpush1.msra.mxu0 0.0
        %2023 = vmatprep.subr.mxu0 0.0
        %2024 = vmatpush1.msra.mxu0 0.0
        %2025 = vmatprep.subr.mxu0 0.0
        %2026 = vmatpush1.msra.mxu0 %v1993
        %2027 = vmatprep.subr.mxu0 0.0
        %2028 = vmatpush2.msra.mxu0 0.0
        %2029 = vmatprep.subr.mxu0 0.0
        %2030 = vmatpush2.msra.mxu0 0.0
        %2031 = vmatprep.subr.mxu0 0.0
        %2032 = vmatpush2.msra.mxu0 0.0
        %2033 = vmatprep.subr.mxu0 0.0
        %2034 = vmatpush2.msra.mxu0 0.0
        %2035 = vmatprep.subr.mxu0 0.0
        %2036 = vmatpush2.msra.mxu0 0.0
        %2037 = vmatprep.subr.mxu0 0.0
        %2038 = vmatpush2.msra.mxu0 0.0
        %2039 = vmatprep.subr.mxu0 0.0
        %2040 = vmatpush2.msra.mxu0 0.0
        %2041 = vmatprep.subr.mxu0 0.0
        %2042 = vmatpush2.msra.mxu0 0.0
        %2043 = vmatprep.subr.mxu0 0.0
        %2044 = vmatpush2.msra.mxu0 0.0
        %2045 = vmatprep.subr.mxu0 0.0
        %2046 = vmatpush2.msra.mxu0 0.0
        %2047 = vmatprep.subr.mxu0 0.0
        %2048 = vmatpush2.msra.mxu0 0.0
        %2049 = vmatprep.subr.mxu0 0.0
        %2050 = vmatpush2.msra.mxu0 0.0
        %2051 = vmatprep.subr.mxu0 0.0
        %2052 = vmatpush2.msra.mxu0 0.0
        %2053 = vmatprep.subr.mxu0 0.0
        %2054 = vmatpush2.msra.mxu0 0.0
        %2055 = vmatprep.subr.mxu0 0.0
        %2056 = vmatpush2.msra.mxu0 0.0
        %2057 = vmatprep.subr.mxu0 0.0
        %2058 = vmatpush2.msra.mxu0 0.0
        %2059 = vmatprep.mubr.f32.mxu0 0.0
        %2060 = vmatmul.mubr.f32.gmra.mxu0 %v1990
        %v2061 = vpop.f32.mrf.mxu0
        %v2062 = vadd.f32 0.0, %v2061
        %v2063 = vpop.f32.mrf.mxu0
        %2064 = vdwg.mxu0
        %v2065 = vadd.f32 %v1820, %v2062
        %2066 = vrot.lane.b32.xlu0 %v1332, 116
        %v2067 = vpop.permute.xlu0 %2066
        %2068 = vrot.lane.b32.xlu0 %v1332, 100
        %v2069 = vpop.permute.xlu0 %2068
        %v2070 = vsel %vm1340, %v2067, 0
        %v2072 = vsel %vm1340, %v2069, 0
        %2074 = vmatprep.subr.mxu0 0.0
        %2075 = vmatpush1.xpose.msra.mxu0 0.0
        %2076 = vmatprep.subr.mxu0 0.0
        %2077 = vmatpush1.xpose.msra.mxu0 0.0
        %2078 = vmatprep.subr.mxu0 0.0
        %2079 = vmatpush1.xpose.msra.mxu0 0.0
        %2080 = vmatprep.subr.mxu0 0.0
        %2081 = vmatpush1.xpose.msra.mxu0 0.0
        %2082 = vmatprep.subr.mxu0 0.0
        %2083 = vmatpush1.xpose.msra.mxu0 0.0
        %2084 = vmatprep.subr.mxu0 0.0
        %2085 = vmatpush1.xpose.msra.mxu0 0.0
        %2086 = vmatprep.subr.mxu0 0.0
        %2087 = vmatpush1.xpose.msra.mxu0 0.0
        %2088 = vmatprep.subr.mxu0 0.0
        %2089 = vmatpush1.xpose.msra.mxu0 0.0
        %2090 = vmatprep.subr.mxu0 0.0
        %2091 = vmatpush1.xpose.msra.mxu0 0.0
        %2092 = vmatprep.subr.mxu0 0.0
        %2093 = vmatpush1.xpose.msra.mxu0 0.0
        %2094 = vmatprep.subr.mxu0 0.0
        %2095 = vmatpush1.xpose.msra.mxu0 0.0
        %2096 = vmatprep.subr.mxu0 0.0
        %2097 = vmatpush1.xpose.msra.mxu0 0.0
        %2098 = vmatprep.subr.mxu0 0.0
        %2099 = vmatpush1.xpose.msra.mxu0 0.0
        %2100 = vmatprep.subr.mxu0 0.0
        %2101 = vmatpush1.xpose.msra.mxu0 0.0
        %2102 = vmatprep.subr.mxu0 0.0
        %2103 = vmatpush1.xpose.msra.mxu0 0.0
        %2104 = vmatprep.subr.mxu0 0.0
        %2105 = vmatpush1.xpose.msra.mxu0 %v2072
        %2106 = vmatprep.subr.mxu0 0.0
        %2107 = vmatpush2.xpose.msra.mxu0 0.0
        %2108 = vmatprep.subr.mxu0 0.0
        %2109 = vmatpush2.xpose.msra.mxu0 0.0
        %2110 = vmatprep.subr.mxu0 0.0
        %2111 = vmatpush2.xpose.msra.mxu0 0.0
        %2112 = vmatprep.subr.mxu0 0.0
        %2113 = vmatpush2.xpose.msra.mxu0 0.0
        %2114 = vmatprep.subr.mxu0 0.0
        %2115 = vmatpush2.xpose.msra.mxu0 0.0
        %2116 = vmatprep.subr.mxu0 0.0
        %2117 = vmatpush2.xpose.msra.mxu0 0.0
        %2118 = vmatprep.subr.mxu0 0.0
        %2119 = vmatpush2.xpose.msra.mxu0 0.0
        %2120 = vmatprep.subr.mxu0 0.0
        %2121 = vmatpush2.xpose.msra.mxu0 0.0
        %2122 = vmatprep.subr.mxu0 0.0
        %2123 = vmatpush2.xpose.msra.mxu0 0.0
        %2124 = vmatprep.subr.mxu0 0.0
        %2125 = vmatpush2.xpose.msra.mxu0 0.0
        %2126 = vmatprep.subr.mxu0 0.0
        %2127 = vmatpush2.xpose.msra.mxu0 0.0
        %2128 = vmatprep.subr.mxu0 0.0
        %2129 = vmatpush2.xpose.msra.mxu0 0.0
        %2130 = vmatprep.subr.mxu0 0.0
        %2131 = vmatpush2.xpose.msra.mxu0 0.0
        %2132 = vmatprep.subr.mxu0 0.0
        %2133 = vmatpush2.xpose.msra.mxu0 0.0
        %2134 = vmatprep.subr.mxu0 0.0
        %2135 = vmatpush2.xpose.msra.mxu0 0.0
        %2136 = vmatprep.subr.mxu0 0.0
        %2137 = vmatpush2.xpose.msra.mxu0 0.0
        %2138 = vmatprep.mubr.f32.mxu0 0.0
        %2139 = vmatmul.mubr.f32.gmra.mxu0 %v2070
        %v2140 = vpop.f32.mrf.mxu0
        %v2141 = vadd.f32 0.0, %v2140
        %v2142 = vpop.f32.mrf.mxu0
        %2143 = vdwg.mxu0
        %v2144 = vmul.f32 %v2141, 0.5
        %v2145 = vsel %vm1416, %v2144, -inf
        %2146 = vmax.xlane.f32.xlu0 %v2145
        %v2147 = vpop.xlane.xlu0 %2146
        %v2148 = vsub.f32 %v2144, %v2147
        %v2149 = vmul.f32 %v2148, 1.442695
        %v2150 = vpow.pop %v2149
        %v2151 = vsel %vm1416, %v2150, 0.0
        %2152 = vadd.xlane.f32.xlu0 %v2151
        %v2153 = vpop.xlane.xlu0 %2152
        %v2154 = vrcp.pop %v2153
        %v2155 = vmul.f32 %v2150, %v2154
        %2156 = vrot.lane.b32.xlu0 %v1249, 84
        %v2157 = vpop.permute.xlu0 %2156
        %v2160 = vsel %vm1416, %v2155, 0
        %2162 = vmatprep.subr.mxu0 0.0
        %2163 = vmatpush1.msra.mxu0 0.0
        %2164 = vmatprep.subr.mxu0 0.0
        %2165 = vmatpush1.msra.mxu0 0.0
        %2166 = vmatprep.subr.mxu0 0.0
        %2167 = vmatpush1.msra.mxu0 0.0
        %2168 = vmatprep.subr.mxu0 0.0
        %2169 = vmatpush1.msra.mxu0 0.0
        %2170 = vmatprep.subr.mxu0 0.0
        %2171 = vmatpush1.msra.mxu0 0.0
        %2172 = vmatprep.subr.mxu0 0.0
        %2173 = vmatpush1.msra.mxu0 0.0
        %2174 = vmatprep.subr.mxu0 0.0
        %2175 = vmatpush1.msra.mxu0 0.0
        %2176 = vmatprep.subr.mxu0 0.0
        %2177 = vmatpush1.msra.mxu0 0.0
        %2178 = vmatprep.subr.mxu0 0.0
        %2179 = vmatpush1.msra.mxu0 0.0
        %2180 = vmatprep.subr.mxu0 0.0
        %2181 = vmatpush1.msra.mxu0 0.0
        %2182 = vmatprep.subr.mxu0 0.0
        %2183 = vmatpush1.msra.mxu0 0.0
        %2184 = vmatprep.subr.mxu0 0.0
        %2185 = vmatpush1.msra.mxu0 0.0
        %2186 = vmatprep.subr.mxu0 0.0
        %2187 = vmatpush1.msra.mxu0 0.0
        %2188 = vmatprep.subr.mxu0 0.0
        %2189 = vmatpush1.msra.mxu0 0.0
        %2190 = vmatprep.subr.mxu0 0.0
        %2191 = vmatpush1.msra.mxu0 0.0
        %2192 = vmatprep.subr.mxu0 0.0
        %2193 = vmatpush1.msra.mxu0 %v2157
        %2194 = vmatprep.subr.mxu0 0.0
        %2195 = vmatpush2.msra.mxu0 0.0
        %2196 = vmatprep.subr.mxu0 0.0
        %2197 = vmatpush2.msra.mxu0 0.0
        %2198 = vmatprep.subr.mxu0 0.0
        %2199 = vmatpush2.msra.mxu0 0.0
        %2200 = vmatprep.subr.mxu0 0.0
        %2201 = vmatpush2.msra.mxu0 0.0
        %2202 = vmatprep.subr.mxu0 0.0
        %2203 = vmatpush2.msra.mxu0 0.0
        %2204 = vmatprep.subr.mxu0 0.0
        %2205 = vmatpush2.msra.mxu0 0.0
        %2206 = vmatprep.subr.mxu0 0.0
        %2207 = vmatpush2.msra.mxu0 0.0
        %2208 = vmatprep.subr.mxu0 0.0
        %2209 = vmatpush2.msra.mxu0 0.0
        %2210 = vmatprep.subr.mxu0 0.0
        %2211 = vmatpush2.msra.mxu0 0.0
        %2212 = vmatprep.subr.mxu0 0.0
        %2213 = vmatpush2.msra.mxu0 0.0
        %2214 = vmatprep.subr.mxu0 0.0
        %2215 = vmatpush2.msra.mxu0 0.0
        %2216 = vmatprep.subr.mxu0 0.0
        %2217 = vmatpush2.msra.mxu0 0.0
        %2218 = vmatprep.subr.mxu0 0.0
        %2219 = vmatpush2.msra.mxu0 0.0
        %2220 = vmatprep.subr.mxu0 0.0
        %2221 = vmatpush2.msra.mxu0 0.0
        %2222 = vmatprep.subr.mxu0 0.0
        %2223 = vmatpush2.msra.mxu0 0.0
        %2224 = vmatprep.subr.mxu0 0.0
        %2225 = vmatpush2.msra.mxu0 0.0
        %2226 = vmatprep.mubr.f32.mxu0 0.0
        %2227 = vmatmul.mubr.f32.gmra.mxu0 %v2160
        %v2228 = vpop.f32.mrf.mxu0
        %v2229 = vadd.f32 0.0, %v2228
        %v2230 = vpop.f32.mrf.mxu0
        %2231 = vdwg.mxu0
        %v2232 = vrot.slane %v1336, 4
        %v2234 = vsel %vm1340, %v2229, 0
        %v2236 = vsel %vm1675, %v2232, 0
        %2238 = vmatprep.subr.mxu0 0.0
        %2239 = vmatpush1.msra.mxu0 0.0
        %2240 = vmatprep.subr.mxu0 0.0
        %2241 = vmatpush1.msra.mxu0 0.0
        %2242 = vmatprep.subr.mxu0 0.0
        %2243 = vmatpush1.msra.mxu0 0.0
        %2244 = vmatprep.subr.mxu0 0.0
        %2245 = vmatpush1.msra.mxu0 0.0
        %2246 = vmatprep.subr.mxu0 0.0
        %2247 = vmatpush1.msra.mxu0 0.0
        %2248 = vmatprep.subr.mxu0 0.0
        %2249 = vmatpush1.msra.mxu0 0.0
        %2250 = vmatprep.subr.mxu0 0.0
        %2251 = vmatpush1.msra.mxu0 0.0
        %2252 = vmatprep.subr.mxu0 0.0
        %2253 = vmatpush1.msra.mxu0 0.0
        %2254 = vmatprep.subr.mxu0 0.0
        %2255 = vmatpush1.msra.mxu0 0.0
        %2256 = vmatprep.subr.mxu0 0.0
        %2257 = vmatpush1.msra.mxu0 0.0
        %2258 = vmatprep.subr.mxu0 0.0
        %2259 = vmatpush1.msra.mxu0 0.0
        %2260 = vmatprep.subr.mxu0 0.0
        %2261 = vmatpush1.msra.mxu0 0.0
        %2262 = vmatprep.subr.mxu0 0.0
        %2263 = vmatpush1.msra.mxu0 0.0
        %2264 = vmatprep.subr.mxu0 0.0
        %2265 = vmatpush1.msra.mxu0 0.0
        %2266 = vmatprep.subr.mxu0 0.0
        %2267 = vmatpush1.msra.mxu0 0.0
        %2268 = vmatprep.subr.mxu0 0.0
        %2269 = vmatpush1.msra.mxu0 %v2236
        %2270 = vmatprep.subr.mxu0 0.0
        %2271 = vmatpush2.msra.mxu0 0.0
        %2272 = vmatprep.subr.mxu0 0.0
        %2273 = vmatpush2.msra.mxu0 0.0
        %2274 = vmatprep.subr.mxu0 0.0
        %2275 = vmatpush2.msra.mxu0 0.0
        %2276 = vmatprep.subr.mxu0 0.0
        %2277 = vmatpush2.msra.mxu0 0.0
        %2278 = vmatprep.subr.mxu0 0.0
        %2279 = vmatpush2.msra.mxu0 0.0
        %2280 = vmatprep.subr.mxu0 0.0
        %2281 = vmatpush2.msra.mxu0 0.0
        %2282 = vmatprep.subr.mxu0 0.0
        %2283 = vmatpush2.msra.mxu0 0.0
        %2284 = vmatprep.subr.mxu0 0.0
        %2285 = vmatpush2.msra.mxu0 0.0
        %2286 = vmatprep.subr.mxu0 0.0
        %2287 = vmatpush2.msra.mxu0 0.0
        %2288 = vmatprep.subr.mxu0 0.0
        %2289 = vmatpush2.msra.mxu0 0.0
        %2290 = vmatprep.subr.mxu0 0.0
        %2291 = vmatpush2.msra.mxu0 0.0
        %2292 = vmatprep.subr.mxu0 0.0
        %2293 = vmatpush2.msra.mxu0 0.0
        %2294 = vmatprep.subr.mxu0 0.0
        %2295 = vmatpush2.msra.mxu0 0.0
        %2296 = vmatprep.subr.mxu0 0.0
        %2297 = vmatpush2.msra.mxu0 0.0
        %2298 = vmatprep.subr.mxu0 0.0
        %2299 = vmatpush2.msra.mxu0 0.0
        %2300 = vmatprep.subr.mxu0 0.0
        %2301 = vmatpush2.msra.mxu0 0.0
        %2302 = vmatprep.mubr.f32.mxu0 0.0
        %2303 = vmatmul.mubr.f32.gmra.mxu0 %v2234
        %v2304 = vpop.f32.mrf.mxu0
        %v2305 = vadd.f32 0.0, %v2304
        %v2306 = vpop.f32.mrf.mxu0
        %2307 = vdwg.mxu0
        %v2308 = vadd.f32 %v2065, %v2305
        %v2309 = vld [vmem:[%s27] sm:$0x1]
        %v2311 = vlaneseq
        %v2312 = vshrl.u32 %v2311, 7
        %v2313 = vsub.s32 0, %v2312
        %v2314 = vrot.slane %v2309, %v2313
        %v2316 = vadd.f32 %v2308, %v2314
        %v2317 = vadd.f32 %v2316, %v1249
        %v2318 = vld [vmem:[%s29] sm:$0x1]
        %v2320 = vlaneseq
        %v2321 = vshrl.u32 %v2320, 7
        %v2322 = vsub.s32 0, %v2321
        %v2323 = vrot.slane %v2318, %v2322
        %v2325 = vmul.f32 %v2317, %v2323
        %v2326 = vld [vmem:[%s31] sm:$0x1]
        %v2328 = vlaneseq
        %v2329 = vshrl.u32 %v2328, 7
        %v2330 = vsub.s32 0, %v2329
        %v2331 = vrot.slane %v2326, %v2330
        %v2333 = vadd.f32 %v2325, %v2331
        %v2334 = vld [vmem:[%s33] sm:$0xff]
        %v2335 = vld [vmem:[%s33 + $0x8] sm:$0xff]
        %v2336 = vld [vmem:[%s35] sm:$0x1]
        %v2338 = vlaneseq
        %v2339 = vshrl.u32 %v2338, 7
        %v2340 = vsub.s32 0, %v2339
        %v2341 = vrot.slane %v2336, %v2340
        %v2344 = vsel %vm1262, %v2333, 0
        %2346 = vmatprep.subr.mxu0 0.0
        %2347 = vmatpush1.msra.mxu0 0.0
        %2348 = vmatprep.subr.mxu0 0.0
        %2349 = vmatpush1.msra.mxu0 0.0
        %2350 = vmatprep.subr.mxu0 0.0
        %2351 = vmatpush1.msra.mxu0 0.0
        %2352 = vmatprep.subr.mxu0 0.0
        %2353 = vmatpush1.msra.mxu0 0.0
        %2354 = vmatprep.subr.mxu0 0.0
        %2355 = vmatpush1.msra.mxu0 0.0
        %2356 = vmatprep.subr.mxu0 0.0
        %2357 = vmatpush1.msra.mxu0 0.0
        %2358 = vmatprep.subr.mxu0 0.0
        %2359 = vmatpush1.msra.mxu0 0.0
        %2360 = vmatprep.subr.mxu0 0.0
        %2361 = vmatpush1.msra.mxu0 0.0
        %2362 = vmatprep.subr.mxu0 0.0
        %2363 = vmatpush1.msra.mxu0 0.0
        %2364 = vmatprep.subr.mxu0 0.0
        %2365 = vmatpush1.msra.mxu0 0.0
        %2366 = vmatprep.subr.mxu0 0.0
        %2367 = vmatpush1.msra.mxu0 0.0
        %2368 = vmatprep.subr.mxu0 0.0
        %2369 = vmatpush1.msra.mxu0 0.0
        %2370 = vmatprep.subr.mxu0 0.0
        %2371 = vmatpush1.msra.mxu0 0.0
        %2372 = vmatprep.subr.mxu0 0.0
        %2373 = vmatpush1.msra.mxu0 0.0
        %2374 = vmatprep.subr.mxu0 0.0
        %2375 = vmatpush1.msra.mxu0 %v2335
        %2376 = vmatprep.subr.mxu0 0.0
        %2377 = vmatpush1.msra.mxu0 %v2334
        %2378 = vmatprep.subr.mxu0 0.0
        %2379 = vmatpush2.msra.mxu0 0.0
        %2380 = vmatprep.subr.mxu0 0.0
        %2381 = vmatpush2.msra.mxu0 0.0
        %2382 = vmatprep.subr.mxu0 0.0
        %2383 = vmatpush2.msra.mxu0 0.0
        %2384 = vmatprep.subr.mxu0 0.0
        %2385 = vmatpush2.msra.mxu0 0.0
        %2386 = vmatprep.subr.mxu0 0.0
        %2387 = vmatpush2.msra.mxu0 0.0
        %2388 = vmatprep.subr.mxu0 0.0
        %2389 = vmatpush2.msra.mxu0 0.0
        %2390 = vmatprep.subr.mxu0 0.0
        %2391 = vmatpush2.msra.mxu0 0.0
        %2392 = vmatprep.subr.mxu0 0.0
        %2393 = vmatpush2.msra.mxu0 0.0
        %2394 = vmatprep.subr.mxu0 0.0
        %2395 = vmatpush2.msra.mxu0 0.0
        %2396 = vmatprep.subr.mxu0 0.0
        %2397 = vmatpush2.msra.mxu0 0.0
        %2398 = vmatprep.subr.mxu0 0.0
        %2399 = vmatpush2.msra.mxu0 0.0
        %2400 = vmatprep.subr.mxu0 0.0
        %2401 = vmatpush2.msra.mxu0 0.0
        %2402 = vmatprep.subr.mxu0 0.0
        %2403 = vmatpush2.msra.mxu0 0.0
        %2404 = vmatprep.subr.mxu0 0.0
        %2405 = vmatpush2.msra.mxu0 0.0
        %2406 = vmatprep.subr.mxu0 0.0
        %2407 = vmatpush2.msra.mxu0 0.0
        %2408 = vmatprep.subr.mxu0 0.0
        %2409 = vmatpush2.msra.mxu0 0.0
        %2410 = vmatprep.mubr.f32.mxu0 0.0
        %2411 = vmatmul.mubr.f32.gmra.mxu0 %v2344
        %v2412 = vpop.f32.mrf.mxu0
        %v2413 = vadd.f32 %v2341, %v2412
        %v2414 = vpop.f32.mrf.mxu0
        %2415 = vdwg.mxu0
        %v2416 = vmax.f32 %v2413, 0.0
        %v2417 = vld [vmem:[%s37] sm:$0xff]
        %v2418 = vld [vmem:[%s37 + $0x8] sm:$0xff]
        %v2419 = vld [vmem:[%s37 + $0x10] sm:$0xff]
        %v2420 = vld [vmem:[%s37 + $0x18] sm:$0xff]
        %v2421 = vld [vmem:[%s37 + $0x20] sm:$0xff]
        %v2422 = vld [vmem:[%s37 + $0x28] sm:$0xff]
        %v2423 = vld [vmem:[%s37 + $0x30] sm:$0xff]
        %v2424 = vld [vmem:[%s37 + $0x38] sm:$0xff]
        %v2425 = vld [vmem:[%s39] sm:$0x1]
        %v2427 = vlaneseq
        %v2428 = vshrl.u32 %v2427, 7
        %v2429 = vsub.s32 0, %v2428
        %v2430 = vrot.slane %v2425, %v2429
        %vm2432 = vcmask 523264
        %v2434 = vsel %vm2432, %v2416, 0
        %2436 = vmatprep.subr.mxu0 0.0
        %2437 = vmatpush1.msra.mxu0 0.0
        %2438 = vmatprep.subr.mxu0 0.0
        %2439 = vmatpush1.msra.mxu0 0.0
        %2440 = vmatprep.subr.mxu0 0.0
        %2441 = vmatpush1.msra.mxu0 0.0
        %2442 = vmatprep.subr.mxu0 0.0
        %2443 = vmatpush1.msra.mxu0 0.0
        %2444 = vmatprep.subr.mxu0 0.0
        %2445 = vmatpush1.msra.mxu0 0.0
        %2446 = vmatprep.subr.mxu0 0.0
        %2447 = vmatpush1.msra.mxu0 0.0
        %2448 = vmatprep.subr.mxu0 0.0
        %2449 = vmatpush1.msra.mxu0 0.0
        %2450 = vmatprep.subr.mxu0 0.0
        %2451 = vmatpush1.msra.mxu0 0.0
        %2452 = vmatprep.subr.mxu0 0.0
        %2453 = vmatpush1.msra.mxu0 %v2424
        %2454 = vmatprep.subr.mxu0 0.0
        %2455 = vmatpush1.msra.mxu0 %v2423
        %2456 = vmatprep.subr.mxu0 0.0
        %2457 = vmatpush1.msra.mxu0 %v2422
        %2458 = vmatprep.subr.mxu0 0.0
        %2459 = vmatpush1.msra.mxu0 %v2421
        %2460 = vmatprep.subr.mxu0 0.0
        %2461 = vmatpush1.msra.mxu0 %v2420
        %2462 = vmatprep.subr.mxu0 0.0
        %2463 = vmatpush1.msra.mxu0 %v2419
        %2464 = vmatprep.subr.mxu0 0.0
        %2465 = vmatpush1.msra.mxu0 %v2418
        %2466 = vmatprep.subr.mxu0 0.0
        %2467 = vmatpush1.msra.mxu0 %v2417
        %2468 = vmatprep.subr.mxu0 0.0
        %2469 = vmatpush2.msra.mxu0 0.0
        %2470 = vmatprep.subr.mxu0 0.0
        %2471 = vmatpush2.msra.mxu0 0.0
        %2472 = vmatprep.subr.mxu0 0.0
        %2473 = vmatpush2.msra.mxu0 0.0
        %2474 = vmatprep.subr.mxu0 0.0
        %2475 = vmatpush2.msra.mxu0 0.0
        %2476 = vmatprep.subr.mxu0 0.0
        %2477 = vmatpush2.msra.mxu0 0.0
        %2478 = vmatprep.subr.mxu0 0.0
        %2479 = vmatpush2.msra.mxu0 0.0
        %2480 = vmatprep.subr.mxu0 0.0
        %2481 = vmatpush2.msra.mxu0 0.0
        %2482 = vmatprep.subr.mxu0 0.0
        %2483 = vmatpush2.msra.mxu0 0.0
        %2484 = vmatprep.subr.mxu0 0.0
        %2485 = vmatpush2.msra.mxu0 0.0
        %2486 = vmatprep.subr.mxu0 0.0
        %2487 = vmatpush2.msra.mxu0 0.0
        %2488 = vmatprep.subr.mxu0 0.0
        %2489 = vmatpush2.msra.mxu0 0.0
        %2490 = vmatprep.subr.mxu0 0.0
        %2491 = vmatpush2.msra.mxu0 0.0
        %2492 = vmatprep.subr.mxu0 0.0
        %2493 = vmatpush2.msra.mxu0 0.0
        %2494 = vmatprep.subr.mxu0 0.0
        %2495 = vmatpush2.msra.mxu0 0.0
        %2496 = vmatprep.subr.mxu0 0.0
        %2497 = vmatpush2.msra.mxu0 0.0
        %2498 = vmatprep.subr.mxu0 0.0
        %2499 = vmatpush2.msra.mxu0 0.0
        %2500 = vmatprep.mubr.f32.mxu0 0.0
        %2501 = vmatmul.mubr.f32.gmra.mxu0 %v2434
        %v2502 = vpop.f32.mrf.mxu0
        %v2503 = vadd.f32 %v2430, %v2502
        %v2504 = vpop.f32.mrf.mxu0
        %2505 = vdwg.mxu0
        %v2506 = vadd.f32 %v2503, %v2333
        %v2507 = vld [vmem:[%s41] sm:$0x1]
        %v2509 = vlaneseq
        %v2510 = vshrl.u32 %v2509, 7
        %v2511 = vsub.s32 0, %v2510
        %v2512 = vrot.slane %v2507, %v2511
        %v2514 = vmul.f32 %v2506, %v2512
        %v2515 = vld [vmem:[%s43] sm:$0x1]
        %v2517 = vlaneseq
        %v2518 = vshrl.u32 %v2517, 7
        %v2519 = vsub.s32 0, %v2518
        %v2520 = vrot.slane %v2515, %v2519
        %v2522 = vadd.f32 %v2514, %v2520
        %s2523 = scalar_lea.vmem %s33, 16
        %v2524 = vld [vmem:[%s2523] sm:$0xff]
        %v2525 = vld [vmem:[%s2523 + $0x8] sm:$0xff]
        %s2526 = scalar_lea.vmem %s35, 1
        %v2527 = vld [vmem:[%s2526] sm:$0x1]
        %v2529 = vlaneseq
        %v2530 = vshrl.u32 %v2529, 7
        %v2531 = vsub.s32 0, %v2530
        %v2532 = vrot.slane %v2527, %v2531
        %v2535 = vsel %vm1262, %v2522, 0
        %2537 = vmatprep.subr.mxu0 0.0
        %2538 = vmatpush1.msra.mxu0 0.0
        %2539 = vmatprep.subr.mxu0 0.0
        %2540 = vmatpush1.msra.mxu0 0.0
        %2541 = vmatprep.subr.mxu0 0.0
        %2542 = vmatpush1.msra.mxu0 0.0
        %2543 = vmatprep.subr.mxu0 0.0
        %2544 = vmatpush1.msra.mxu0 0.0
        %2545 = vmatprep.subr.mxu0 0.0
        %2546 = vmatpush1.msra.mxu0 0.0
        %2547 = vmatprep.subr.mxu0 0.0
        %2548 = vmatpush1.msra.mxu0 0.0
        %2549 = vmatprep.subr.mxu0 0.0
        %2550 = vmatpush1.msra.mxu0 0.0
        %2551 = vmatprep.subr.mxu0 0.0
        %2552 = vmatpush1.msra.mxu0 0.0
        %2553 = vmatprep.subr.mxu0 0.0
        %2554 = vmatpush1.msra.mxu0 0.0
        %2555 = vmatprep.subr.mxu0 0.0
        %2556 = vmatpush1.msra.mxu0 0.0
        %2557 = vmatprep.subr.mxu0 0.0
        %2558 = vmatpush1.msra.mxu0 0.0
        %2559 = vmatprep.subr.mxu0 0.0
        %2560 = vmatpush1.msra.mxu0 0.0
        %2561 = vmatprep.subr.mxu0 0.0
        %2562 = vmatpush1.msra.mxu0 0.0
        %2563 = vmatprep.subr.mxu0 0.0
        %2564 = vmatpush1.msra.mxu0 0.0
        %2565 = vmatprep.subr.mxu0 0.0
        %2566 = vmatpush1.msra.mxu0 %v2525
        %2567 = vmatprep.subr.mxu0 0.0
        %2568 = vmatpush1.msra.mxu0 %v2524
        %2569 = vmatprep.subr.mxu0 0.0
        %2570 = vmatpush2.msra.mxu0 0.0
        %2571 = vmatprep.subr.mxu0 0.0
        %2572 = vmatpush2.msra.mxu0 0.0
        %2573 = vmatprep.subr.mxu0 0.0
        %2574 = vmatpush2.msra.mxu0 0.0
        %2575 = vmatprep.subr.mxu0 0.0
        %2576 = vmatpush2.msra.mxu0 0.0
        %2577 = vmatprep.subr.mxu0 0.0
        %2578 = vmatpush2.msra.mxu0 0.0
        %2579 = vmatprep.subr.mxu0 0.0
        %2580 = vmatpush2.msra.mxu0 0.0
        %2581 = vmatprep.subr.mxu0 0.0
        %2582 = vmatpush2.msra.mxu0 0.0
        %2583 = vmatprep.subr.mxu0 0.0
        %2584 = vmatpush2.msra.mxu0 0.0
        %2585 = vmatprep.subr.mxu0 0.0
        %2586 = vmatpush2.msra.mxu0 0.0
        %2587 = vmatprep.subr.mxu0 0.0
        %2588 = vmatpush2.msra.mxu0 0.0
        %2589 = vmatprep.subr.mxu0 0.0
        %2590 = vmatpush2.msra.mxu0 0.0
        %2591 = vmatprep.subr.mxu0 0.0
        %2592 = vmatpush2.msra.mxu0 0.0
        %2593 = vmatprep.subr.mxu0 0.0
        %2594 = vmatpush2.msra.mxu0 0.0
        %2595 = vmatprep.subr.mxu0 0.0
        %2596 = vmatpush2.msra.mxu0 0.0
        %2597 = vmatprep.subr.mxu0 0.0
        %2598 = vmatpush2.msra.mxu0 0.0
        %2599 = vmatprep.subr.mxu0 0.0
        %2600 = vmatpush2.msra.mxu0 0.0
        %2601 = vmatprep.mubr.f32.mxu0 0.0
        %2602 = vmatmul.mubr.f32.gmra.mxu0 %v2535
        %v2603 = vpop.f32.mrf.mxu0
        %v2604 = vadd.f32 %v2532, %v2603
        %v2605 = vpop.f32.mrf.mxu0
        %2606 = vdwg.mxu0
        %v2607 = vmax.f32 %v2604, 0.0
        %s2608 = scalar_lea.vmem %s37, 64
        %v2609 = vld [vmem:[%s2608] sm:$0xff]
        %v2610 = vld [vmem:[%s2608 + $0x8] sm:$0xff]
        %v2611 = vld [vmem:[%s2608 + $0x10] sm:$0xff]
        %v2612 = vld [vmem:[%s2608 + $0x18] sm:$0xff]
        %v2613 = vld [vmem:[%s2608 + $0x20] sm:$0xff]
        %v2614 = vld [vmem:[%s2608 + $0x28] sm:$0xff]
        %v2615 = vld [vmem:[%s2608 + $0x30] sm:$0xff]
        %v2616 = vld [vmem:[%s2608 + $0x38] sm:$0xff]
        %s2617 = scalar_lea.vmem %s39, 1
        %v2618 = vld [vmem:[%s2617] sm:$0x1]
        %v2620 = vlaneseq
        %v2621 = vshrl.u32 %v2620, 7
        %v2622 = vsub.s32 0, %v2621
        %v2623 = vrot.slane %v2618, %v2622
        %v2626 = vsel %vm2432, %v2607, 0
        %2628 = vmatprep.subr.mxu0 0.0
        %2629 = vmatpush1.msra.mxu0 0.0
        %2630 = vmatprep.subr.mxu0 0.0
        %2631 = vmatpush1.msra.mxu0 0.0
        %2632 = vmatprep.subr.mxu0 0.0
        %2633 = vmatpush1.msra.mxu0 0.0
        %2634 = vmatprep.subr.mxu0 0.0
        %2635 = vmatpush1.msra.mxu0 0.0
        %2636 = vmatprep.subr.mxu0 0.0
        %2637 = vmatpush1.msra.mxu0 0.0
        %2638 = vmatprep.subr.mxu0 0.0
        %2639 = vmatpush1.msra.mxu0 0.0
        %2640 = vmatprep.subr.mxu0 0.0
        %2641 = vmatpush1.msra.mxu0 0.0
        %2642 = vmatprep.subr.mxu0 0.0
        %2643 = vmatpush1.msra.mxu0 0.0
        %2644 = vmatprep.subr.mxu0 0.0
        %2645 = vmatpush1.msra.mxu0 %v2616
        %2646 = vmatprep.subr.mxu0 0.0
        %2647 = vmatpush1.msra.mxu0 %v2615
        %2648 = vmatprep.subr.mxu0 0.0
        %2649 = vmatpush1.msra.mxu0 %v2614
        %2650 = vmatprep.subr.mxu0 0.0
        %2651 = vmatpush1.msra.mxu0 %v2613
        %2652 = vmatprep.subr.mxu0 0.0
        %2653 = vmatpush1.msra.mxu0 %v2612
        %2654 = vmatprep.subr.mxu0 0.0
        %2655 = vmatpush1.msra.mxu0 %v2611
        %2656 = vmatprep.subr.mxu0 0.0
        %2657 = vmatpush1.msra.mxu0 %v2610
        %2658 = vmatprep.subr.mxu0 0.0
        %2659 = vmatpush1.msra.mxu0 %v2609
        %2660 = vmatprep.subr.mxu0 0.0
        %2661 = vmatpush2.msra.mxu0 0.0
        %2662 = vmatprep.subr.mxu0 0.0
        %2663 = vmatpush2.msra.mxu0 0.0
        %2664 = vmatprep.subr.mxu0 0.0
        %2665 = vmatpush2.msra.mxu0 0.0
        %2666 = vmatprep.subr.mxu0 0.0
        %2667 = vmatpush2.msra.mxu0 0.0
        %2668 = vmatprep.subr.mxu0 0.0
        %2669 = vmatpush2.msra.mxu0 0.0
        %2670 = vmatprep.subr.mxu0 0.0
        %2671 = vmatpush2.msra.mxu0 0.0
        %2672 = vmatprep.subr.mxu0 0.0
        %2673 = vmatpush2.msra.mxu0 0.0
        %2674 = vmatprep.subr.mxu0 0.0
        %2675 = vmatpush2.msra.mxu0 0.0
        %2676 = vmatprep.subr.mxu0 0.0
        %2677 = vmatpush2.msra.mxu0 0.0
        %2678 = vmatprep.subr.mxu0 0.0
        %2679 = vmatpush2.msra.mxu0 0.0
        %2680 = vmatprep.subr.mxu0 0.0
        %2681 = vmatpush2.msra.mxu0 0.0
        %2682 = vmatprep.subr.mxu0 0.0
        %2683 = vmatpush2.msra.mxu0 0.0
        %2684 = vmatprep.subr.mxu0 0.0
        %2685 = vmatpush2.msra.mxu0 0.0
        %2686 = vmatprep.subr.mxu0 0.0
        %2687 = vmatpush2.msra.mxu0 0.0
        %2688 = vmatprep.subr.mxu0 0.0
        %2689 = vmatpush2.msra.mxu0 0.0
        %2690 = vmatprep.subr.mxu0 0.0
        %2691 = vmatpush2.msra.mxu0 0.0
        %2692 = vmatprep.mubr.f32.mxu0 0.0
        %2693 = vmatmul.mubr.f32.gmra.mxu0 %v2626
        %v2694 = vpop.f32.mrf.mxu0
        %v2695 = vadd.f32 %v2623, %v2694
        %v2696 = vpop.f32.mrf.mxu0
        %2697 = vdwg.mxu0
        %v2698 = vadd.f32 %v2695, %v2522
        %s2699 = scalar_lea.vmem %s41, 1
        %v2700 = vld [vmem:[%s2699] sm:$0x1]
        %v2702 = vlaneseq
        %v2703 = vshrl.u32 %v2702, 7
        %v2704 = vsub.s32 0, %v2703
        %v2705 = vrot.slane %v2700, %v2704
        %v2707 = vmul.f32 %v2698, %v2705
        %s2708 = scalar_lea.vmem %s43, 1
        %v2709 = vld [vmem:[%s2708] sm:$0x1]
        %v2711 = vlaneseq
        %v2712 = vshrl.u32 %v2711, 7
        %v2713 = vsub.s32 0, %v2712
        %v2714 = vrot.slane %v2709, %v2713
        %v2716 = vadd.f32 %v2707, %v2714
        %s2717 = scalar_lea.vmem %s33, 32
        %v2718 = vld [vmem:[%s2717] sm:$0xff]
        %v2719 = vld [vmem:[%s2717 + $0x8] sm:$0xff]
        %s2720 = scalar_lea.vmem %s35, 2
        %v2721 = vld [vmem:[%s2720] sm:$0x1]
        %v2723 = vlaneseq
        %v2724 = vshrl.u32 %v2723, 7
        %v2725 = vsub.s32 0, %v2724
        %v2726 = vrot.slane %v2721, %v2725
        %v2729 = vsel %vm1262, %v2716, 0
        %2731 = vmatprep.subr.mxu0 0.0
        %2732 = vmatpush1.msra.mxu0 0.0
        %2733 = vmatprep.subr.mxu0 0.0
        %2734 = vmatpush1.msra.mxu0 0.0
        %2735 = vmatprep.subr.mxu0 0.0
        %2736 = vmatpush1.msra.mxu0 0.0
        %2737 = vmatprep.subr.mxu0 0.0
        %2738 = vmatpush1.msra.mxu0 0.0
        %2739 = vmatprep.subr.mxu0 0.0
        %2740 = vmatpush1.msra.mxu0 0.0
        %2741 = vmatprep.subr.mxu0 0.0
        %2742 = vmatpush1.msra.mxu0 0.0
        %2743 = vmatprep.subr.mxu0 0.0
        %2744 = vmatpush1.msra.mxu0 0.0
        %2745 = vmatprep.subr.mxu0 0.0
        %2746 = vmatpush1.msra.mxu0 0.0
        %2747 = vmatprep.subr.mxu0 0.0
        %2748 = vmatpush1.msra.mxu0 0.0
        %2749 = vmatprep.subr.mxu0 0.0
        %2750 = vmatpush1.msra.mxu0 0.0
        %2751 = vmatprep.subr.mxu0 0.0
        %2752 = vmatpush1.msra.mxu0 0.0
        %2753 = vmatprep.subr.mxu0 0.0
        %2754 = vmatpush1.msra.mxu0 0.0
        %2755 = vmatprep.subr.mxu0 0.0
        %2756 = vmatpush1.msra.mxu0 0.0
        %2757 = vmatprep.subr.mxu0 0.0
        %2758 = vmatpush1.msra.mxu0 0.0
        %2759 = vmatprep.subr.mxu0 0.0
        %2760 = vmatpush1.msra.mxu0 %v2719
        %2761 = vmatprep.subr.mxu0 0.0
        %2762 = vmatpush1.msra.mxu0 %v2718
        %2763 = vmatprep.subr.mxu0 0.0
        %2764 = vmatpush2.msra.mxu0 0.0
        %2765 = vmatprep.subr.mxu0 0.0
        %2766 = vmatpush2.msra.mxu0 0.0
        %2767 = vmatprep.subr.mxu0 0.0
        %2768 = vmatpush2.msra.mxu0 0.0
        %2769 = vmatprep.subr.mxu0 0.0
        %2770 = vmatpush2.msra.mxu0 0.0
        %2771 = vmatprep.subr.mxu0 0.0
        %2772 = vmatpush2.msra.mxu0 0.0
        %2773 = vmatprep.subr.mxu0 0.0
        %2774 = vmatpush2.msra.mxu0 0.0
        %2775 = vmatprep.subr.mxu0 0.0
        %2776 = vmatpush2.msra.mxu0 0.0
        %2777 = vmatprep.subr.mxu0 0.0
        %2778 = vmatpush2.msra.mxu0 0.0
        %2779 = vmatprep.subr.mxu0 0.0
        %2780 = vmatpush2.msra.mxu0 0.0
        %2781 = vmatprep.subr.mxu0 0.0
        %2782 = vmatpush2.msra.mxu0 0.0
        %2783 = vmatprep.subr.mxu0 0.0
        %2784 = vmatpush2.msra.mxu0 0.0
        %2785 = vmatprep.subr.mxu0 0.0
        %2786 = vmatpush2.msra.mxu0 0.0
        %2787 = vmatprep.subr.mxu0 0.0
        %2788 = vmatpush2.msra.mxu0 0.0
        %2789 = vmatprep.subr.mxu0 0.0
        %2790 = vmatpush2.msra.mxu0 0.0
        %2791 = vmatprep.subr.mxu0 0.0
        %2792 = vmatpush2.msra.mxu0 0.0
        %2793 = vmatprep.subr.mxu0 0.0
        %2794 = vmatpush2.msra.mxu0 0.0
        %2795 = vmatprep.mubr.f32.mxu0 0.0
        %2796 = vmatmul.mubr.f32.gmra.mxu0 %v2729
        %v2797 = vpop.f32.mrf.mxu0
        %v2798 = vadd.f32 %v2726, %v2797
        %v2799 = vpop.f32.mrf.mxu0
        %2800 = vdwg.mxu0
        %v2801 = vmax.f32 %v2798, 0.0
        %s2802 = scalar_lea.vmem %s37, 128
        %v2803 = vld [vmem:[%s2802] sm:$0xff]
        %v2804 = vld [vmem:[%s2802 + $0x8] sm:$0xff]
        %v2805 = vld [vmem:[%s2802 + $0x10] sm:$0xff]
        %v2806 = vld [vmem:[%s2802 + $0x18] sm:$0xff]
        %v2807 = vld [vmem:[%s2802 + $0x20] sm:$0xff]
        %v2808 = vld [vmem:[%s2802 + $0x28] sm:$0xff]
        %v2809 = vld [vmem:[%s2802 + $0x30] sm:$0xff]
        %v2810 = vld [vmem:[%s2802 + $0x38] sm:$0xff]
        %s2811 = scalar_lea.vmem %s39, 2
        %v2812 = vld [vmem:[%s2811] sm:$0x1]
        %v2814 = vlaneseq
        %v2815 = vshrl.u32 %v2814, 7
        %v2816 = vsub.s32 0, %v2815
        %v2817 = vrot.slane %v2812, %v2816
        %v2820 = vsel %vm2432, %v2801, 0
        %2822 = vmatprep.subr.mxu0 0.0
        %2823 = vmatpush1.msra.mxu0 0.0
        %2824 = vmatprep.subr.mxu0 0.0
        %2825 = vmatpush1.msra.mxu0 0.0
        %2826 = vmatprep.subr.mxu0 0.0
        %2827 = vmatpush1.msra.mxu0 0.0
        %2828 = vmatprep.subr.mxu0 0.0
        %2829 = vmatpush1.msra.mxu0 0.0
        %2830 = vmatprep.subr.mxu0 0.0
        %2831 = vmatpush1.msra.mxu0 0.0
        %2832 = vmatprep.subr.mxu0 0.0
        %2833 = vmatpush1.msra.mxu0 0.0
        %2834 = vmatprep.subr.mxu0 0.0
        %2835 = vmatpush1.msra.mxu0 0.0
        %2836 = vmatprep.subr.mxu0 0.0
        %2837 = vmatpush1.msra.mxu0 0.0
        %2838 = vmatprep.subr.mxu0 0.0
        %2839 = vmatpush1.msra.mxu0 %v2810
        %2840 = vmatprep.subr.mxu0 0.0
        %2841 = vmatpush1.msra.mxu0 %v2809
        %2842 = vmatprep.subr.mxu0 0.0
        %2843 = vmatpush1.msra.mxu0 %v2808
        %2844 = vmatprep.subr.mxu0 0.0
        %2845 = vmatpush1.msra.mxu0 %v2807
        %2846 = vmatprep.subr.mxu0 0.0
        %2847 = vmatpush1.msra.mxu0 %v2806
        %2848 = vmatprep.subr.mxu0 0.0
        %2849 = vmatpush1.msra.mxu0 %v2805
        %2850 = vmatprep.subr.mxu0 0.0
        %2851 = vmatpush1.msra.mxu0 %v2804
        %2852 = vmatprep.subr.mxu0 0.0
        %2853 = vmatpush1.msra.mxu0 %v2803
        %2854 = vmatprep.subr.mxu0 0.0
        %2855 = vmatpush2.msra.mxu0 0.0
        %2856 = vmatprep.subr.mxu0 0.0
        %2857 = vmatpush2.msra.mxu0 0.0
        %2858 = vmatprep.subr.mxu0 0.0
        %2859 = vmatpush2.msra.mxu0 0.0
        %2860 = vmatprep.subr.mxu0 0.0
        %2861 = vmatpush2.msra.mxu0 0.0
        %2862 = vmatprep.subr.mxu0 0.0
        %2863 = vmatpush2.msra.mxu0 0.0
        %2864 = vmatprep.subr.mxu0 0.0
        %2865 = vmatpush2.msra.mxu0 0.0
        %2866 = vmatprep.subr.mxu0 0.0
        %2867 = vmatpush2.msra.mxu0 0.0
        %2868 = vmatprep.subr.mxu0 0.0
        %2869 = vmatpush2.msra.mxu0 0.0
        %2870 = vmatprep.subr.mxu0 0.0
        %2871 = vmatpush2.msra.mxu0 0.0
        %2872 = vmatprep.subr.mxu0 0.0
        %2873 = vmatpush2.msra.mxu0 0.0
        %2874 = vmatprep.subr.mxu0 0.0
        %2875 = vmatpush2.msra.mxu0 0.0
        %2876 = vmatprep.subr.mxu0 0.0
        %2877 = vmatpush2.msra.mxu0 0.0
        %2878 = vmatprep.subr.mxu0 0.0
        %2879 = vmatpush2.msra.mxu0 0.0
        %2880 = vmatprep.subr.mxu0 0.0
        %2881 = vmatpush2.msra.mxu0 0.0
        %2882 = vmatprep.subr.mxu0 0.0
        %2883 = vmatpush2.msra.mxu0 0.0
        %2884 = vmatprep.subr.mxu0 0.0
        %2885 = vmatpush2.msra.mxu0 0.0
        %2886 = vmatprep.mubr.f32.mxu0 0.0
        %2887 = vmatmul.mubr.f32.gmra.mxu0 %v2820
        %v2888 = vpop.f32.mrf.mxu0
        %v2889 = vadd.f32 %v2817, %v2888
        %v2890 = vpop.f32.mrf.mxu0
        %2891 = vdwg.mxu0
        %v2892 = vadd.f32 %v2889, %v2716
        %s2893 = scalar_lea.vmem %s41, 2
        %v2894 = vld [vmem:[%s2893] sm:$0x1]
        %v2896 = vlaneseq
        %v2897 = vshrl.u32 %v2896, 7
        %v2898 = vsub.s32 0, %v2897
        %v2899 = vrot.slane %v2894, %v2898
        %v2901 = vmul.f32 %v2892, %v2899
        %s2902 = scalar_lea.vmem %s43, 2
        %v2903 = vld [vmem:[%s2902] sm:$0x1]
        %v2905 = vlaneseq
        %v2906 = vshrl.u32 %v2905, 7
        %v2907 = vsub.s32 0, %v2906
        %v2908 = vrot.slane %v2903, %v2907
        %v2910 = vadd.f32 %v2901, %v2908
        %s2911 = scalar_lea.vmem %s33, 48
        %v2912 = vld [vmem:[%s2911] sm:$0xff]
        %v2913 = vld [vmem:[%s2911 + $0x8] sm:$0xff]
        %s2914 = scalar_lea.vmem %s35, 3
        %v2915 = vld [vmem:[%s2914] sm:$0x1]
        %v2917 = vlaneseq
        %v2918 = vshrl.u32 %v2917, 7
        %v2919 = vsub.s32 0, %v2918
        %v2920 = vrot.slane %v2915, %v2919
        %v2923 = vsel %vm1262, %v2910, 0
        %2925 = vmatprep.subr.mxu0 0.0
        %2926 = vmatpush1.msra.mxu0 0.0
        %2927 = vmatprep.subr.mxu0 0.0
        %2928 = vmatpush1.msra.mxu0 0.0
        %2929 = vmatprep.subr.mxu0 0.0
        %2930 = vmatpush1.msra.mxu0 0.0
        %2931 = vmatprep.subr.mxu0 0.0
        %2932 = vmatpush1.msra.mxu0 0.0
        %2933 = vmatprep.subr.mxu0 0.0
        %2934 = vmatpush1.msra.mxu0 0.0
        %2935 = vmatprep.subr.mxu0 0.0
        %2936 = vmatpush1.msra.mxu0 0.0
        %2937 = vmatprep.subr.mxu0 0.0
        %2938 = vmatpush1.msra.mxu0 0.0
        %2939 = vmatprep.subr.mxu0 0.0
        %2940 = vmatpush1.msra.mxu0 0.0
        %2941 = vmatprep.subr.mxu0 0.0
        %2942 = vmatpush1.msra.mxu0 0.0
        %2943 = vmatprep.subr.mxu0 0.0
        %2944 = vmatpush1.msra.mxu0 0.0
        %2945 = vmatprep.subr.mxu0 0.0
        %2946 = vmatpush1.msra.mxu0 0.0
        %2947 = vmatprep.subr.mxu0 0.0
        %2948 = vmatpush1.msra.mxu0 0.0
        %2949 = vmatprep.subr.mxu0 0.0
        %2950 = vmatpush1.msra.mxu0 0.0
        %2951 = vmatprep.subr.mxu0 0.0
        %2952 = vmatpush1.msra.mxu0 0.0
        %2953 = vmatprep.subr.mxu0 0.0
        %2954 = vmatpush1.msra.mxu0 %v2913
        %2955 = vmatprep.subr.mxu0 0.0
        %2956 = vmatpush1.msra.mxu0 %v2912
        %2957 = vmatprep.subr.mxu0 0.0
        %2958 = vmatpush2.msra.mxu0 0.0
        %2959 = vmatprep.subr.mxu0 0.0
        %2960 = vmatpush2.msra.mxu0 0.0
        %2961 = vmatprep.subr.mxu0 0.0
        %2962 = vmatpush2.msra.mxu0 0.0
        %2963 = vmatprep.subr.mxu0 0.0
        %2964 = vmatpush2.msra.mxu0 0.0
        %2965 = vmatprep.subr.mxu0 0.0
        %2966 = vmatpush2.msra.mxu0 0.0
        %2967 = vmatprep.subr.mxu0 0.0
        %2968 = vmatpush2.msra.mxu0 0.0
        %2969 = vmatprep.subr.mxu0 0.0
        %2970 = vmatpush2.msra.mxu0 0.0
        %2971 = vmatprep.subr.mxu0 0.0
        %2972 = vmatpush2.msra.mxu0 0.0
        %2973 = vmatprep.subr.mxu0 0.0
        %2974 = vmatpush2.msra.mxu0 0.0
        %2975 = vmatprep.subr.mxu0 0.0
        %2976 = vmatpush2.msra.mxu0 0.0
        %2977 = vmatprep.subr.mxu0 0.0
        %2978 = vmatpush2.msra.mxu0 0.0
        %2979 = vmatprep.subr.mxu0 0.0
        %2980 = vmatpush2.msra.mxu0 0.0
        %2981 = vmatprep.subr.mxu0 0.0
        %2982 = vmatpush2.msra.mxu0 0.0
        %2983 = vmatprep.subr.mxu0 0.0
        %2984 = vmatpush2.msra.mxu0 0.0
        %2985 = vmatprep.subr.mxu0 0.0
        %2986 = vmatpush2.msra.mxu0 0.0
        %2987 = vmatprep.subr.mxu0 0.0
        %2988 = vmatpush2.msra.mxu0 0.0
        %2989 = vmatprep.mubr.f32.mxu0 0.0
        %2990 = vmatmul.mubr.f32.gmra.mxu0 %v2923
        %v2991 = vpop.f32.mrf.mxu0
        %v2992 = vadd.f32 %v2920, %v2991
        %v2993 = vpop.f32.mrf.mxu0
        %2994 = vdwg.mxu0
        %v2995 = vmax.f32 %v2992, 0.0
        %s2996 = scalar_lea.vmem %s37, 192
        %v2997 = vld [vmem:[%s2996] sm:$0xff]
        %v2998 = vld [vmem:[%s2996 + $0x8] sm:$0xff]
        %v2999 = vld [vmem:[%s2996 + $0x10] sm:$0xff]
        %v3000 = vld [vmem:[%s2996 + $0x18] sm:$0xff]
        %v3001 = vld [vmem:[%s2996 + $0x20] sm:$0xff]
        %v3002 = vld [vmem:[%s2996 + $0x28] sm:$0xff]
        %v3003 = vld [vmem:[%s2996 + $0x30] sm:$0xff]
        %v3004 = vld [vmem:[%s2996 + $0x38] sm:$0xff]
        %s3005 = scalar_lea.vmem %s39, 3
        %v3006 = vld [vmem:[%s3005] sm:$0x1]
        %v3008 = vlaneseq
        %v3009 = vshrl.u32 %v3008, 7
        %v3010 = vsub.s32 0, %v3009
        %v3011 = vrot.slane %v3006, %v3010
        %v3014 = vsel %vm2432, %v2995, 0
        %3016 = vmatprep.subr.mxu0 0.0
        %3017 = vmatpush1.msra.mxu0 0.0
        %3018 = vmatprep.subr.mxu0 0.0
        %3019 = vmatpush1.msra.mxu0 0.0
        %3020 = vmatprep.subr.mxu0 0.0
        %3021 = vmatpush1.msra.mxu0 0.0
        %3022 = vmatprep.subr.mxu0 0.0
        %3023 = vmatpush1.msra.mxu0 0.0
        %3024 = vmatprep.subr.mxu0 0.0
        %3025 = vmatpush1.msra.mxu0 0.0
        %3026 = vmatprep.subr.mxu0 0.0
        %3027 = vmatpush1.msra.mxu0 0.0
        %3028 = vmatprep.subr.mxu0 0.0
        %3029 = vmatpush1.msra.mxu0 0.0
        %3030 = vmatprep.subr.mxu0 0.0
        %3031 = vmatpush1.msra.mxu0 0.0
        %3032 = vmatprep.subr.mxu0 0.0
        %3033 = vmatpush1.msra.mxu0 %v3004
        %3034 = vmatprep.subr.mxu0 0.0
        %3035 = vmatpush1.msra.mxu0 %v3003
        %3036 = vmatprep.subr.mxu0 0.0
        %3037 = vmatpush1.msra.mxu0 %v3002
        %3038 = vmatprep.subr.mxu0 0.0
        %3039 = vmatpush1.msra.mxu0 %v3001
        %3040 = vmatprep.subr.mxu0 0.0
        %3041 = vmatpush1.msra.mxu0 %v3000
        %3042 = vmatprep.subr.mxu0 0.0
        %3043 = vmatpush1.msra.mxu0 %v2999
        %3044 = vmatprep.subr.mxu0 0.0
        %3045 = vmatpush1.msra.mxu0 %v2998
        %3046 = vmatprep.subr.mxu0 0.0
        %3047 = vmatpush1.msra.mxu0 %v2997
        %3048 = vmatprep.subr.mxu0 0.0
        %3049 = vmatpush2.msra.mxu0 0.0
        %3050 = vmatprep.subr.mxu0 0.0
        %3051 = vmatpush2.msra.mxu0 0.0
        %3052 = vmatprep.subr.mxu0 0.0
        %3053 = vmatpush2.msra.mxu0 0.0
        %3054 = vmatprep.subr.mxu0 0.0
        %3055 = vmatpush2.msra.mxu0 0.0
        %3056 = vmatprep.subr.mxu0 0.0
        %3057 = vmatpush2.msra.mxu0 0.0
        %3058 = vmatprep.subr.mxu0 0.0
        %3059 = vmatpush2.msra.mxu0 0.0
        %3060 = vmatprep.subr.mxu0 0.0
        %3061 = vmatpush2.msra.mxu0 0.0
        %3062 = vmatprep.subr.mxu0 0.0
        %3063 = vmatpush2.msra.mxu0 0.0
        %3064 = vmatprep.subr.mxu0 0.0
        %3065 = vmatpush2.msra.mxu0 0.0
        %3066 = vmatprep.subr.mxu0 0.0
        %3067 = vmatpush2.msra.mxu0 0.0
        %3068 = vmatprep.subr.mxu0 0.0
        %3069 = vmatpush2.msra.mxu0 0.0
        %3070 = vmatprep.subr.mxu0 0.0
        %3071 = vmatpush2.msra.mxu0 0.0
        %3072 = vmatprep.subr.mxu0 0.0
        %3073 = vmatpush2.msra.mxu0 0.0
        %3074 = vmatprep.subr.mxu0 0.0
        %3075 = vmatpush2.msra.mxu0 0.0
        %3076 = vmatprep.subr.mxu0 0.0
        %3077 = vmatpush2.msra.mxu0 0.0
        %3078 = vmatprep.subr.mxu0 0.0
        %3079 = vmatpush2.msra.mxu0 0.0
        %3080 = vmatprep.mubr.f32.mxu0 0.0
        %3081 = vmatmul.mubr.f32.gmra.mxu0 %v3014
        %v3082 = vpop.f32.mrf.mxu0
        %v3083 = vadd.f32 %v3011, %v3082
        %v3084 = vpop.f32.mrf.mxu0
        %3085 = vdwg.mxu0
        %v3086 = vadd.f32 %v3083, %v2910
        %s3087 = scalar_lea.vmem %s41, 3
        %v3088 = vld [vmem:[%s3087] sm:$0x1]
        %v3090 = vlaneseq
        %v3091 = vshrl.u32 %v3090, 7
        %v3092 = vsub.s32 0, %v3091
        %v3093 = vrot.slane %v3088, %v3092
        %v3095 = vmul.f32 %v3086, %v3093
        %s3096 = scalar_lea.vmem %s43, 3
        %v3097 = vld [vmem:[%s3096] sm:$0x1]
        %v3099 = vlaneseq
        %v3100 = vshrl.u32 %v3099, 7
        %v3101 = vsub.s32 0, %v3100
        %v3102 = vrot.slane %v3097, %v3101
        %v3104 = vadd.f32 %v3095, %v3102
        %v3105 = vld [vmem:[%s45] sm:$0xff]
        %v3106 = vld [vmem:[%s45 + $0x8] sm:$0xff]
        %v3107 = vld [vmem:[%s47] sm:$0x1]
        %v3109 = vlaneseq
        %v3110 = vshrl.u32 %v3109, 7
        %v3111 = vsub.s32 0, %v3110
        %v3112 = vrot.slane %v3107, %v3111
        %v3115 = vsel %vm1262, %v3104, 0
        %3117 = vmatprep.subr.mxu0 0.0
        %3118 = vmatpush1.msra.mxu0 0.0
        %3119 = vmatprep.subr.mxu0 0.0
        %3120 = vmatpush1.msra.mxu0 0.0
        %3121 = vmatprep.subr.mxu0 0.0
        %3122 = vmatpush1.msra.mxu0 0.0
        %3123 = vmatprep.subr.mxu0 0.0
        %3124 = vmatpush1.msra.mxu0 0.0
        %3125 = vmatprep.subr.mxu0 0.0
        %3126 = vmatpush1.msra.mxu0 0.0
        %3127 = vmatprep.subr.mxu0 0.0
        %3128 = vmatpush1.msra.mxu0 0.0
        %3129 = vmatprep.subr.mxu0 0.0
        %3130 = vmatpush1.msra.mxu0 0.0
        %3131 = vmatprep.subr.mxu0 0.0
        %3132 = vmatpush1.msra.mxu0 0.0
        %3133 = vmatprep.subr.mxu0 0.0
        %3134 = vmatpush1.msra.mxu0 0.0
        %3135 = vmatprep.subr.mxu0 0.0
        %3136 = vmatpush1.msra.mxu0 0.0
        %3137 = vmatprep.subr.mxu0 0.0
        %3138 = vmatpush1.msra.mxu0 0.0
        %3139 = vmatprep.subr.mxu0 0.0
        %3140 = vmatpush1.msra.mxu0 0.0
        %3141 = vmatprep.subr.mxu0 0.0
        %3142 = vmatpush1.msra.mxu0 0.0
        %3143 = vmatprep.subr.mxu0 0.0
        %3144 = vmatpush1.msra.mxu0 0.0
        %3145 = vmatprep.subr.mxu0 0.0
        %3146 = vmatpush1.msra.mxu0 %v3106
        %3147 = vmatprep.subr.mxu0 0.0
        %3148 = vmatpush1.msra.mxu0 %v3105
        %3149 = vmatprep.subr.mxu0 0.0
        %3150 = vmatpush2.msra.mxu0 0.0
        %3151 = vmatprep.subr.mxu0 0.0
        %3152 = vmatpush2.msra.mxu0 0.0
        %3153 = vmatprep.subr.mxu0 0.0
        %3154 = vmatpush2.msra.mxu0 0.0
        %3155 = vmatprep.subr.mxu0 0.0
        %3156 = vmatpush2.msra.mxu0 0.0
        %3157 = vmatprep.subr.mxu0 0.0
        %3158 = vmatpush2.msra.mxu0 0.0
        %3159 = vmatprep.subr.mxu0 0.0
        %3160 = vmatpush2.msra.mxu0 0.0
        %3161 = vmatprep.subr.mxu0 0.0
        %3162 = vmatpush2.msra.mxu0 0.0
        %3163 = vmatprep.subr.mxu0 0.0
        %3164 = vmatpush2.msra.mxu0 0.0
        %3165 = vmatprep.subr.mxu0 0.0
        %3166 = vmatpush2.msra.mxu0 0.0
        %3167 = vmatprep.subr.mxu0 0.0
        %3168 = vmatpush2.msra.mxu0 0.0
        %3169 = vmatprep.subr.mxu0 0.0
        %3170 = vmatpush2.msra.mxu0 0.0
        %3171 = vmatprep.subr.mxu0 0.0
        %3172 = vmatpush2.msra.mxu0 0.0
        %3173 = vmatprep.subr.mxu0 0.0
        %3174 = vmatpush2.msra.mxu0 0.0
        %3175 = vmatprep.subr.mxu0 0.0
        %3176 = vmatpush2.msra.mxu0 0.0
        %3177 = vmatprep.subr.mxu0 0.0
        %3178 = vmatpush2.msra.mxu0 0.0
        %3179 = vmatprep.subr.mxu0 0.0
        %3180 = vmatpush2.msra.mxu0 0.0
        %3181 = vmatprep.mubr.f32.mxu0 0.0
        %3182 = vmatmul.mubr.f32.gmra.mxu0 %v3115
        %v3183 = vpop.f32.mrf.mxu0
        %v3184 = vadd.f32 %v3112, %v3183
        %v3185 = vpop.f32.mrf.mxu0
        %3186 = vdwg.mxu0
        %v3187 = vadd.f32 %v3184, %v1148
        %v3188 = vld [vmem:[%s49] sm:$0x1]
        %v3190 = vlaneseq
        %v3191 = vshrl.u32 %v3190, 7
        %v3192 = vsub.s32 0, %v3191
        %v3193 = vrot.slane %v3188, %v3192
        %v3195 = vmul.f32 %v3187, %v3193
        %v3196 = vld [vmem:[%s51] sm:$0x1]
        %v3198 = vlaneseq
        %v3199 = vshrl.u32 %v3198, 7
        %v3200 = vsub.s32 0, %v3199
        %v3201 = vrot.slane %v3196, %v3200
        %v3203 = vadd.f32 %v3195, %v3201
        %s3204 = scalar_lea.vmem %s13, 32
        %v3205 = vld [vmem:[%s3204] sm:$0xff]
        %v3206 = vld [vmem:[%s3204 + $0x8] sm:$0xff]
        %v3207 = vld [vmem:[%s3204 + $0x10] sm:$0xff]
        %v3208 = vld [vmem:[%s3204 + $0x18] sm:$0xff]
        %s3209 = scalar_lea.vmem %s15, 1
        %v3210 = vld [vmem:[%s3209] sm:$0x1]
        %v3212 = vlaneseq
        %v3213 = vshrl.u32 %v3212, 7
        %v3214 = vsub.s32 0, %v3213
        %v3215 = vrot.slane %v3210, %v3214
        %v3218 = vsel %vm1160, %v3203, 0
        %3220 = vmatprep.subr.mxu0 0.0
        %3221 = vmatpush1.msra.mxu0 0.0
        %3222 = vmatprep.subr.mxu0 0.0
        %3223 = vmatpush1.msra.mxu0 0.0
        %3224 = vmatprep.subr.mxu0 0.0
        %3225 = vmatpush1.msra.mxu0 0.0
        %3226 = vmatprep.subr.mxu0 0.0
        %3227 = vmatpush1.msra.mxu0 0.0
        %3228 = vmatprep.subr.mxu0 0.0
        %3229 = vmatpush1.msra.mxu0 0.0
        %3230 = vmatprep.subr.mxu0 0.0
        %3231 = vmatpush1.msra.mxu0 0.0
        %3232 = vmatprep.subr.mxu0 0.0
        %3233 = vmatpush1.msra.mxu0 0.0
        %3234 = vmatprep.subr.mxu0 0.0
        %3235 = vmatpush1.msra.mxu0 0.0
        %3236 = vmatprep.subr.mxu0 0.0
        %3237 = vmatpush1.msra.mxu0 0.0
        %3238 = vmatprep.subr.mxu0 0.0
        %3239 = vmatpush1.msra.mxu0 0.0
        %3240 = vmatprep.subr.mxu0 0.0
        %3241 = vmatpush1.msra.mxu0 0.0
        %3242 = vmatprep.subr.mxu0 0.0
        %3243 = vmatpush1.msra.mxu0 0.0
        %3244 = vmatprep.subr.mxu0 0.0
        %3245 = vmatpush1.msra.mxu0 %v3208
        %3246 = vmatprep.subr.mxu0 0.0
        %3247 = vmatpush1.msra.mxu0 %v3207
        %3248 = vmatprep.subr.mxu0 0.0
        %3249 = vmatpush1.msra.mxu0 %v3206
        %3250 = vmatprep.subr.mxu0 0.0
        %3251 = vmatpush1.msra.mxu0 %v3205
        %3252 = vmatprep.subr.mxu0 0.0
        %3253 = vmatpush2.msra.mxu0 0.0
        %3254 = vmatprep.subr.mxu0 0.0
        %3255 = vmatpush2.msra.mxu0 0.0
        %3256 = vmatprep.subr.mxu0 0.0
        %3257 = vmatpush2.msra.mxu0 0.0
        %3258 = vmatprep.subr.mxu0 0.0
        %3259 = vmatpush2.msra.mxu0 0.0
        %3260 = vmatprep.subr.mxu0 0.0
        %3261 = vmatpush2.msra.mxu0 0.0
        %3262 = vmatprep.subr.mxu0 0.0
        %3263 = vmatpush2.msra.mxu0 0.0
        %3264 = vmatprep.subr.mxu0 0.0
        %3265 = vmatpush2.msra.mxu0 0.0
        %3266 = vmatprep.subr.mxu0 0.0
        %3267 = vmatpush2.msra.mxu0 0.0
        %3268 = vmatprep.subr.mxu0 0.0
        %3269 = vmatpush2.msra.mxu0 0.0
        %3270 = vmatprep.subr.mxu0 0.0
        %3271 = vmatpush2.msra.mxu0 0.0
        %3272 = vmatprep.subr.mxu0 0.0
        %3273 = vmatpush2.msra.mxu0 0.0
        %3274 = vmatprep.subr.mxu0 0.0
        %3275 = vmatpush2.msra.mxu0 0.0
        %3276 = vmatprep.subr.mxu0 0.0
        %3277 = vmatpush2.msra.mxu0 0.0
        %3278 = vmatprep.subr.mxu0 0.0
        %3279 = vmatpush2.msra.mxu0 0.0
        %3280 = vmatprep.subr.mxu0 0.0
        %3281 = vmatpush2.msra.mxu0 0.0
        %3282 = vmatprep.subr.mxu0 0.0
        %3283 = vmatpush2.msra.mxu0 0.0
        %3284 = vmatprep.mubr.f32.mxu0 0.0
        %3285 = vmatmul.mubr.f32.gmra.mxu0 %v3218
        %v3286 = vpop.f32.mrf.mxu0
        %v3287 = vadd.f32 %v3215, %v3286
        %v3288 = vpop.f32.mrf.mxu0
        %3289 = vdwg.mxu0
        %s3290 = scalar_lea.vmem %s17, 1
        %v3291 = vld [vmem:[%s3290] sm:$0x1]
        %v3293 = vlaneseq
        %v3294 = vshrl.u32 %v3293, 7
        %v3295 = vsub.s32 0, %v3294
        %v3296 = vrot.slane %v3291, %v3295
        %v3298 = vmul.f32 %v3287, %v3296
        %s3299 = scalar_lea.vmem %s19, 1
        %v3300 = vld [vmem:[%s3299] sm:$0x1]
        %v3302 = vlaneseq
        %v3303 = vshrl.u32 %v3302, 7
        %v3304 = vsub.s32 0, %v3303
        %v3305 = vrot.slane %v3300, %v3304
        %v3307 = vadd.f32 %v3298, %v3305
        %s3308 = scalar_lea.vmem %s21, 16
        %v3309 = vld [vmem:[%s3308] sm:$0xff]
        %v3310 = vld [vmem:[%s3308 + $0x8] sm:$0xff]
        %s3311 = scalar_lea.vmem %s23, 1
        %v3312 = vld [vmem:[%s3311] sm:$0x1]
        %v3314 = vlaneseq
        %v3315 = vshrl.u32 %v3314, 7
        %v3316 = vsub.s32 0, %v3315
        %v3317 = vrot.slane %v3312, %v3316
        %3320 = vrot.lane.b32.xlu0 %v3307, 112
        %v3321 = vpop.permute.xlu0 %3320
        %v3322 = vsel %vm1262, %v3321, 0
        %3324 = vmatprep.subr.mxu0 0.0
        %3325 = vmatpush1.msra.mxu0 0.0
        %3326 = vmatprep.subr.mxu0 0.0
        %3327 = vmatpush1.msra.mxu0 0.0
        %3328 = vmatprep.subr.mxu0 0.0
        %3329 = vmatpush1.msra.mxu0 0.0
        %3330 = vmatprep.subr.mxu0 0.0
        %3331 = vmatpush1.msra.mxu0 0.0
        %3332 = vmatprep.subr.mxu0 0.0
        %3333 = vmatpush1.msra.mxu0 0.0
        %3334 = vmatprep.subr.mxu0 0.0
        %3335 = vmatpush1.msra.mxu0 0.0
        %3336 = vmatprep.subr.mxu0 0.0
        %3337 = vmatpush1.msra.mxu0 0.0
        %3338 = vmatprep.subr.mxu0 0.0
        %3339 = vmatpush1.msra.mxu0 0.0
        %3340 = vmatprep.subr.mxu0 0.0
        %3341 = vmatpush1.msra.mxu0 0.0
        %3342 = vmatprep.subr.mxu0 0.0
        %3343 = vmatpush1.msra.mxu0 0.0
        %3344 = vmatprep.subr.mxu0 0.0
        %3345 = vmatpush1.msra.mxu0 0.0
        %3346 = vmatprep.subr.mxu0 0.0
        %3347 = vmatpush1.msra.mxu0 0.0
        %3348 = vmatprep.subr.mxu0 0.0
        %3349 = vmatpush1.msra.mxu0 0.0
        %3350 = vmatprep.subr.mxu0 0.0
        %3351 = vmatpush1.msra.mxu0 0.0
        %3352 = vmatprep.subr.mxu0 0.0
        %3353 = vmatpush1.msra.mxu0 %v3310
        %3354 = vmatprep.subr.mxu0 0.0
        %3355 = vmatpush1.msra.mxu0 %v3309
        %3356 = vmatprep.subr.mxu0 0.0
        %3357 = vmatpush2.msra.mxu0 0.0
        %3358 = vmatprep.subr.mxu0 0.0
        %3359 = vmatpush2.msra.mxu0 0.0
        %3360 = vmatprep.subr.mxu0 0.0
        %3361 = vmatpush2.msra.mxu0 0.0
        %3362 = vmatprep.subr.mxu0 0.0
        %3363 = vmatpush2.msra.mxu0 0.0
        %3364 = vmatprep.subr.mxu0 0.0
        %3365 = vmatpush2.msra.mxu0 0.0
        %3366 = vmatprep.subr.mxu0 0.0
        %3367 = vmatpush2.msra.mxu0 0.0
        %3368 = vmatprep.subr.mxu0 0.0
        %3369 = vmatpush2.msra.mxu0 0.0
        %3370 = vmatprep.subr.mxu0 0.0
        %3371 = vmatpush2.msra.mxu0 0.0
        %3372 = vmatprep.subr.mxu0 0.0
        %3373 = vmatpush2.msra.mxu0 0.0
        %3374 = vmatprep.subr.mxu0 0.0
        %3375 = vmatpush2.msra.mxu0 0.0
        %3376 = vmatprep.subr.mxu0 0.0
        %3377 = vmatpush2.msra.mxu0 0.0
        %3378 = vmatprep.subr.mxu0 0.0
        %3379 = vmatpush2.msra.mxu0 0.0
        %3380 = vmatprep.subr.mxu0 0.0
        %3381 = vmatpush2.msra.mxu0 0.0
        %3382 = vmatprep.subr.mxu0 0.0
        %3383 = vmatpush2.msra.mxu0 0.0
        %3384 = vmatprep.subr.mxu0 0.0
        %3385 = vmatpush2.msra.mxu0 0.0
        %3386 = vmatprep.subr.mxu0 0.0
        %3387 = vmatpush2.msra.mxu0 0.0
        %3388 = vmatprep.mubr.f32.mxu0 0.0
        %3389 = vmatmul.mubr.f32.gmra.mxu0 %v3322
        %v3390 = vpop.f32.mrf.mxu0
        %v3391 = vadd.f32 %v3317, %v3390
        %v3392 = vpop.f32.mrf.mxu0
        %3393 = vdwg.mxu0
        %s3394 = scalar_lea.vmem %s25, 16
        %v3395 = vld [vmem:[%s3394] sm:$0xff]
        %v3396 = vld [vmem:[%s3394 + $0x8] sm:$0xff]
        %3398 = vrot.lane.b32.xlu0 %v3391, 112
        %v3399 = vpop.permute.xlu0 %3398
        %v3400 = vsel %vm1340, %v3391, 0
        %v3402 = vsel %vm1340, %v3399, 0
        %3404 = vmatprep.subr.mxu0 0.0
        %3405 = vmatpush1.xpose.msra.mxu0 0.0
        %3406 = vmatprep.subr.mxu0 0.0
        %3407 = vmatpush1.xpose.msra.mxu0 0.0
        %3408 = vmatprep.subr.mxu0 0.0
        %3409 = vmatpush1.xpose.msra.mxu0 0.0
        %3410 = vmatprep.subr.mxu0 0.0
        %3411 = vmatpush1.xpose.msra.mxu0 0.0
        %3412 = vmatprep.subr.mxu0 0.0
        %3413 = vmatpush1.xpose.msra.mxu0 0.0
        %3414 = vmatprep.subr.mxu0 0.0
        %3415 = vmatpush1.xpose.msra.mxu0 0.0
        %3416 = vmatprep.subr.mxu0 0.0
        %3417 = vmatpush1.xpose.msra.mxu0 0.0
        %3418 = vmatprep.subr.mxu0 0.0
        %3419 = vmatpush1.xpose.msra.mxu0 0.0
        %3420 = vmatprep.subr.mxu0 0.0
        %3421 = vmatpush1.xpose.msra.mxu0 0.0
        %3422 = vmatprep.subr.mxu0 0.0
        %3423 = vmatpush1.xpose.msra.mxu0 0.0
        %3424 = vmatprep.subr.mxu0 0.0
        %3425 = vmatpush1.xpose.msra.mxu0 0.0
        %3426 = vmatprep.subr.mxu0 0.0
        %3427 = vmatpush1.xpose.msra.mxu0 0.0
        %3428 = vmatprep.subr.mxu0 0.0
        %3429 = vmatpush1.xpose.msra.mxu0 0.0
        %3430 = vmatprep.subr.mxu0 0.0
        %3431 = vmatpush1.xpose.msra.mxu0 0.0
        %3432 = vmatprep.subr.mxu0 0.0
        %3433 = vmatpush1.xpose.msra.mxu0 0.0
        %3434 = vmatprep.subr.mxu0 0.0
        %3435 = vmatpush1.xpose.msra.mxu0 %v3402
        %3436 = vmatprep.subr.mxu0 0.0
        %3437 = vmatpush2.xpose.msra.mxu0 0.0
        %3438 = vmatprep.subr.mxu0 0.0
        %3439 = vmatpush2.xpose.msra.mxu0 0.0
        %3440 = vmatprep.subr.mxu0 0.0
        %3441 = vmatpush2.xpose.msra.mxu0 0.0
        %3442 = vmatprep.subr.mxu0 0.0
        %3443 = vmatpush2.xpose.msra.mxu0 0.0
        %3444 = vmatprep.subr.mxu0 0.0
        %3445 = vmatpush2.xpose.msra.mxu0 0.0
        %3446 = vmatprep.subr.mxu0 0.0
        %3447 = vmatpush2.xpose.msra.mxu0 0.0
        %3448 = vmatprep.subr.mxu0 0.0
        %3449 = vmatpush2.xpose.msra.mxu0 0.0
        %3450 = vmatprep.subr.mxu0 0.0
        %3451 = vmatpush2.xpose.msra.mxu0 0.0
        %3452 = vmatprep.subr.mxu0 0.0
        %3453 = vmatpush2.xpose.msra.mxu0 0.0
        %3454 = vmatprep.subr.mxu0 0.0
        %3455 = vmatpush2.xpose.msra.mxu0 0.0
        %3456 = vmatprep.subr.mxu0 0.0
        %3457 = vmatpush2.xpose.msra.mxu0 0.0
        %3458 = vmatprep.subr.mxu0 0.0
        %3459 = vmatpush2.xpose.msra.mxu0 0.0
        %3460 = vmatprep.subr.mxu0 0.0
        %3461 = vmatpush2.xpose.msra.mxu0 0.0
        %3462 = vmatprep.subr.mxu0 0.0
        %3463 = vmatpush2.xpose.msra.mxu0 0.0
        %3464 = vmatprep.subr.mxu0 0.0
        %3465 = vmatpush2.xpose.msra.mxu0 0.0
        %3466 = vmatprep.subr.mxu0 0.0
        %3467 = vmatpush2.xpose.msra.mxu0 0.0
        %3468 = vmatprep.mubr.f32.mxu0 0.0
        %3469 = vmatmul.mubr.f32.gmra.mxu0 %v3400
        %v3470 = vpop.f32.mrf.mxu0
        %v3471 = vadd.f32 0.0, %v3470
        %v3472 = vpop.f32.mrf.mxu0
        %3473 = vdwg.mxu0
        %v3474 = vmul.f32 %v3471, 0.5
        %v3475 = vsel %vm1416, %v3474, -inf
        %3476 = vmax.xlane.f32.xlu0 %v3475
        %v3477 = vpop.xlane.xlu0 %3476
        %v3478 = vsub.f32 %v3474, %v3477
        %v3479 = vmul.f32 %v3478, 1.442695
        %v3480 = vpow.pop %v3479
        %v3481 = vsel %vm1416, %v3480, 0.0
        %3482 = vadd.xlane.f32.xlu0 %v3481
        %v3483 = vpop.xlane.xlu0 %3482
        %v3484 = vrcp.pop %v3483
        %v3485 = vmul.f32 %v3480, %v3484
        %3486 = vrot.lane.b32.xlu0 %v3307, 96
        %v3487 = vpop.permute.xlu0 %3486
        %v3490 = vsel %vm1416, %v3485, 0
        %3492 = vmatprep.subr.mxu0 0.0
        %3493 = vmatpush1.msra.mxu0 0.0
        %3494 = vmatprep.subr.mxu0 0.0
        %3495 = vmatpush1.msra.mxu0 0.0
        %3496 = vmatprep.subr.mxu0 0.0
        %3497 = vmatpush1.msra.mxu0 0.0
        %3498 = vmatprep.subr.mxu0 0.0
        %3499 = vmatpush1.msra.mxu0 0.0
        %3500 = vmatprep.subr.mxu0 0.0
        %3501 = vmatpush1.msra.mxu0 0.0
        %3502 = vmatprep.subr.mxu0 0.0
        %3503 = vmatpush1.msra.mxu0 0.0
        %3504 = vmatprep.subr.mxu0 0.0
        %3505 = vmatpush1.msra.mxu0 0.0
        %3506 = vmatprep.subr.mxu0 0.0
        %3507 = vmatpush1.msra.mxu0 0.0
        %3508 = vmatprep.subr.mxu0 0.0
        %3509 = vmatpush1.msra.mxu0 0.0
        %3510 = vmatprep.subr.mxu0 0.0
        %3511 = vmatpush1.msra.mxu0 0.0
        %3512 = vmatprep.subr.mxu0 0.0
        %3513 = vmatpush1.msra.mxu0 0.0
        %3514 = vmatprep.subr.mxu0 0.0
        %3515 = vmatpush1.msra.mxu0 0.0
        %3516 = vmatprep.subr.mxu0 0.0
        %3517 = vmatpush1.msra.mxu0 0.0
        %3518 = vmatprep.subr.mxu0 0.0
        %3519 = vmatpush1.msra.mxu0 0.0
        %3520 = vmatprep.subr.mxu0 0.0
        %3521 = vmatpush1.msra.mxu0 0.0
        %3522 = vmatprep.subr.mxu0 0.0
        %3523 = vmatpush1.msra.mxu0 %v3487
        %3524 = vmatprep.subr.mxu0 0.0
        %3525 = vmatpush2.msra.mxu0 0.0
        %3526 = vmatprep.subr.mxu0 0.0
        %3527 = vmatpush2.msra.mxu0 0.0
        %3528 = vmatprep.subr.mxu0 0.0
        %3529 = vmatpush2.msra.mxu0 0.0
        %3530 = vmatprep.subr.mxu0 0.0
        %3531 = vmatpush2.msra.mxu0 0.0
        %3532 = vmatprep.subr.mxu0 0.0
        %3533 = vmatpush2.msra.mxu0 0.0
        %3534 = vmatprep.subr.mxu0 0.0
        %3535 = vmatpush2.msra.mxu0 0.0
        %3536 = vmatprep.subr.mxu0 0.0
        %3537 = vmatpush2.msra.mxu0 0.0
        %3538 = vmatprep.subr.mxu0 0.0
        %3539 = vmatpush2.msra.mxu0 0.0
        %3540 = vmatprep.subr.mxu0 0.0
        %3541 = vmatpush2.msra.mxu0 0.0
        %3542 = vmatprep.subr.mxu0 0.0
        %3543 = vmatpush2.msra.mxu0 0.0
        %3544 = vmatprep.subr.mxu0 0.0
        %3545 = vmatpush2.msra.mxu0 0.0
        %3546 = vmatprep.subr.mxu0 0.0
        %3547 = vmatpush2.msra.mxu0 0.0
        %3548 = vmatprep.subr.mxu0 0.0
        %3549 = vmatpush2.msra.mxu0 0.0
        %3550 = vmatprep.subr.mxu0 0.0
        %3551 = vmatpush2.msra.mxu0 0.0
        %3552 = vmatprep.subr.mxu0 0.0
        %3553 = vmatpush2.msra.mxu0 0.0
        %3554 = vmatprep.subr.mxu0 0.0
        %3555 = vmatpush2.msra.mxu0 0.0
        %3556 = vmatprep.mubr.f32.mxu0 0.0
        %3557 = vmatmul.mubr.f32.gmra.mxu0 %v3490
        %v3558 = vpop.f32.mrf.mxu0
        %v3559 = vadd.f32 0.0, %v3558
        %v3560 = vpop.f32.mrf.mxu0
        %3561 = vdwg.mxu0
        %3562 = vrot.lane.b32.xlu0 %v3391, 124
        %v3563 = vpop.permute.xlu0 %3562
        %3564 = vrot.lane.b32.xlu0 %v3391, 108
        %v3565 = vpop.permute.xlu0 %3564
        %v3566 = vsel %vm1340, %v3563, 0
        %v3568 = vsel %vm1340, %v3565, 0
        %3570 = vmatprep.subr.mxu0 0.0
        %3571 = vmatpush1.xpose.msra.mxu0 0.0
        %3572 = vmatprep.subr.mxu0 0.0
        %3573 = vmatpush1.xpose.msra.mxu0 0.0
        %3574 = vmatprep.subr.mxu0 0.0
        %3575 = vmatpush1.xpose.msra.mxu0 0.0
        %3576 = vmatprep.subr.mxu0 0.0
        %3577 = vmatpush1.xpose.msra.mxu0 0.0
        %3578 = vmatprep.subr.mxu0 0.0
        %3579 = vmatpush1.xpose.msra.mxu0 0.0
        %3580 = vmatprep.subr.mxu0 0.0
        %3581 = vmatpush1.xpose.msra.mxu0 0.0
        %3582 = vmatprep.subr.mxu0 0.0
        %3583 = vmatpush1.xpose.msra.mxu0 0.0
        %3584 = vmatprep.subr.mxu0 0.0
        %3585 = vmatpush1.xpose.msra.mxu0 0.0
        %3586 = vmatprep.subr.mxu0 0.0
        %3587 = vmatpush1.xpose.msra.mxu0 0.0
        %3588 = vmatprep.subr.mxu0 0.0
        %3589 = vmatpush1.xpose.msra.mxu0 0.0
        %3590 = vmatprep.subr.mxu0 0.0
        %3591 = vmatpush1.xpose.msra.mxu0 0.0
        %3592 = vmatprep.subr.mxu0 0.0
        %3593 = vmatpush1.xpose.msra.mxu0 0.0
        %3594 = vmatprep.subr.mxu0 0.0
        %3595 = vmatpush1.xpose.msra.mxu0 0.0
        %3596 = vmatprep.subr.mxu0 0.0
        %3597 = vmatpush1.xpose.msra.mxu0 0.0
        %3598 = vmatprep.subr.mxu0 0.0
        %3599 = vmatpush1.xpose.msra.mxu0 0.0
        %3600 = vmatprep.subr.mxu0 0.0
        %3601 = vmatpush1.xpose.msra.mxu0 %v3568
        %3602 = vmatprep.subr.mxu0 0.0
        %3603 = vmatpush2.xpose.msra.mxu0 0.0
        %3604 = vmatprep.subr.mxu0 0.0
        %3605 = vmatpush2.xpose.msra.mxu0 0.0
        %3606 = vmatprep.subr.mxu0 0.0
        %3607 = vmatpush2.xpose.msra.mxu0 0.0
        %3608 = vmatprep.subr.mxu0 0.0
        %3609 = vmatpush2.xpose.msra.mxu0 0.0
        %3610 = vmatprep.subr.mxu0 0.0
        %3611 = vmatpush2.xpose.msra.mxu0 0.0
        %3612 = vmatprep.subr.mxu0 0.0
        %3613 = vmatpush2.xpose.msra.mxu0 0.0
        %3614 = vmatprep.subr.mxu0 0.0
        %3615 = vmatpush2.xpose.msra.mxu0 0.0
        %3616 = vmatprep.subr.mxu0 0.0
        %3617 = vmatpush2.xpose.msra.mxu0 0.0
        %3618 = vmatprep.subr.mxu0 0.0
        %3619 = vmatpush2.xpose.msra.mxu0 0.0
        %3620 = vmatprep.subr.mxu0 0.0
        %3621 = vmatpush2.xpose.msra.mxu0 0.0
        %3622 = vmatprep.subr.mxu0 0.0
        %3623 = vmatpush2.xpose.msra.mxu0 0.0
        %3624 = vmatprep.subr.mxu0 0.0
        %3625 = vmatpush2.xpose.msra.mxu0 0.0
        %3626 = vmatprep.subr.mxu0 0.0
        %3627 = vmatpush2.xpose.msra.mxu0 0.0
        %3628 = vmatprep.subr.mxu0 0.0
        %3629 = vmatpush2.xpose.msra.mxu0 0.0
        %3630 = vmatprep.subr.mxu0 0.0
        %3631 = vmatpush2.xpose.msra.mxu0 0.0
        %3632 = vmatprep.subr.mxu0 0.0
        %3633 = vmatpush2.xpose.msra.mxu0 0.0
        %3634 = vmatprep.mubr.f32.mxu0 0.0
        %3635 = vmatmul.mubr.f32.gmra.mxu0 %v3566
        %v3636 = vpop.f32.mrf.mxu0
        %v3637 = vadd.f32 0.0, %v3636
        %v3638 = vpop.f32.mrf.mxu0
        %3639 = vdwg.mxu0
        %v3640 = vmul.f32 %v3637, 0.5
        %v3641 = vsel %vm1416, %v3640, -inf
        %3642 = vmax.xlane.f32.xlu0 %v3641
        %v3643 = vpop.xlane.xlu0 %3642
        %v3644 = vsub.f32 %v3640, %v3643
        %v3645 = vmul.f32 %v3644, 1.442695
        %v3646 = vpow.pop %v3645
        %v3647 = vsel %vm1416, %v3646, 0.0
        %3648 = vadd.xlane.f32.xlu0 %v3647
        %v3649 = vpop.xlane.xlu0 %3648
        %v3650 = vrcp.pop %v3649
        %v3651 = vmul.f32 %v3646, %v3650
        %3652 = vrot.lane.b32.xlu0 %v3307, 92
        %v3653 = vpop.permute.xlu0 %3652
        %v3656 = vsel %vm1416, %v3651, 0
        %3658 = vmatprep.subr.mxu0 0.0
        %3659 = vmatpush1.msra.mxu0 0.0
        %3660 = vmatprep.subr.mxu0 0.0
        %3661 = vmatpush1.msra.mxu0 0.0
        %3662 = vmatprep.subr.mxu0 0.0
        %3663 = vmatpush1.msra.mxu0 0.0
        %3664 = vmatprep.subr.mxu0 0.0
        %3665 = vmatpush1.msra.mxu0 0.0
        %3666 = vmatprep.subr.mxu0 0.0
        %3667 = vmatpush1.msra.mxu0 0.0
        %3668 = vmatprep.subr.mxu0 0.0
        %3669 = vmatpush1.msra.mxu0 0.0
        %3670 = vmatprep.subr.mxu0 0.0
        %3671 = vmatpush1.msra.mxu0 0.0
        %3672 = vmatprep.subr.mxu0 0.0
        %3673 = vmatpush1.msra.mxu0 0.0
        %3674 = vmatprep.subr.mxu0 0.0
        %3675 = vmatpush1.msra.mxu0 0.0
        %3676 = vmatprep.subr.mxu0 0.0
        %3677 = vmatpush1.msra.mxu0 0.0
        %3678 = vmatprep.subr.mxu0 0.0
        %3679 = vmatpush1.msra.mxu0 0.0
        %3680 = vmatprep.subr.mxu0 0.0
        %3681 = vmatpush1.msra.mxu0 0.0
        %3682 = vmatprep.subr.mxu0 0.0
        %3683 = vmatpush1.msra.mxu0 0.0
        %3684 = vmatprep.subr.mxu0 0.0
        %3685 = vmatpush1.msra.mxu0 0.0
        %3686 = vmatprep.subr.mxu0 0.0
        %3687 = vmatpush1.msra.mxu0 0.0
        %3688 = vmatprep.subr.mxu0 0.0
        %3689 = vmatpush1.msra.mxu0 %v3653
        %3690 = vmatprep.subr.mxu0 0.0
        %3691 = vmatpush2.msra.mxu0 0.0
        %3692 = vmatprep.subr.mxu0 0.0
        %3693 = vmatpush2.msra.mxu0 0.0
        %3694 = vmatprep.subr.mxu0 0.0
        %3695 = vmatpush2.msra.mxu0 0.0
        %3696 = vmatprep.subr.mxu0 0.0
        %3697 = vmatpush2.msra.mxu0 0.0
        %3698 = vmatprep.subr.mxu0 0.0
        %3699 = vmatpush2.msra.mxu0 0.0
        %3700 = vmatprep.subr.mxu0 0.0
        %3701 = vmatpush2.msra.mxu0 0.0
        %3702 = vmatprep.subr.mxu0 0.0
        %3703 = vmatpush2.msra.mxu0 0.0
        %3704 = vmatprep.subr.mxu0 0.0
        %3705 = vmatpush2.msra.mxu0 0.0
        %3706 = vmatprep.subr.mxu0 0.0
        %3707 = vmatpush2.msra.mxu0 0.0
        %3708 = vmatprep.subr.mxu0 0.0
        %3709 = vmatpush2.msra.mxu0 0.0
        %3710 = vmatprep.subr.mxu0 0.0
        %3711 = vmatpush2.msra.mxu0 0.0
        %3712 = vmatprep.subr.mxu0 0.0
        %3713 = vmatpush2.msra.mxu0 0.0
        %3714 = vmatprep.subr.mxu0 0.0
        %3715 = vmatpush2.msra.mxu0 0.0
        %3716 = vmatprep.subr.mxu0 0.0
        %3717 = vmatpush2.msra.mxu0 0.0
        %3718 = vmatprep.subr.mxu0 0.0
        %3719 = vmatpush2.msra.mxu0 0.0
        %3720 = vmatprep.subr.mxu0 0.0
        %3721 = vmatpush2.msra.mxu0 0.0
        %3722 = vmatprep.mubr.f32.mxu0 0.0
        %3723 = vmatmul.mubr.f32.gmra.mxu0 %v3656
        %v3724 = vpop.f32.mrf.mxu0
        %v3725 = vadd.f32 0.0, %v3724
        %v3726 = vpop.f32.mrf.mxu0
        %3727 = vdwg.mxu0
        %v3729 = vrot.slane %v3395, 4
        %v3731 = vsel %vm1340, %v3725, 0
        %v3733 = vsel %vm1675, %v3729, 0
        %3735 = vmatprep.subr.mxu0 0.0
        %3736 = vmatpush1.msra.mxu0 0.0
        %3737 = vmatprep.subr.mxu0 0.0
        %3738 = vmatpush1.msra.mxu0 0.0
        %3739 = vmatprep.subr.mxu0 0.0
        %3740 = vmatpush1.msra.mxu0 0.0
        %3741 = vmatprep.subr.mxu0 0.0
        %3742 = vmatpush1.msra.mxu0 0.0
        %3743 = vmatprep.subr.mxu0 0.0
        %3744 = vmatpush1.msra.mxu0 0.0
        %3745 = vmatprep.subr.mxu0 0.0
        %3746 = vmatpush1.msra.mxu0 0.0
        %3747 = vmatprep.subr.mxu0 0.0
        %3748 = vmatpush1.msra.mxu0 0.0
        %3749 = vmatprep.subr.mxu0 0.0
        %3750 = vmatpush1.msra.mxu0 0.0
        %3751 = vmatprep.subr.mxu0 0.0
        %3752 = vmatpush1.msra.mxu0 0.0
        %3753 = vmatprep.subr.mxu0 0.0
        %3754 = vmatpush1.msra.mxu0 0.0
        %3755 = vmatprep.subr.mxu0 0.0
        %3756 = vmatpush1.msra.mxu0 0.0
        %3757 = vmatprep.subr.mxu0 0.0
        %3758 = vmatpush1.msra.mxu0 0.0
        %3759 = vmatprep.subr.mxu0 0.0
        %3760 = vmatpush1.msra.mxu0 0.0
        %3761 = vmatprep.subr.mxu0 0.0
        %3762 = vmatpush1.msra.mxu0 0.0
        %3763 = vmatprep.subr.mxu0 0.0
        %3764 = vmatpush1.msra.mxu0 0.0
        %3765 = vmatprep.subr.mxu0 0.0
        %3766 = vmatpush1.msra.mxu0 %v3733
        %3767 = vmatprep.subr.mxu0 0.0
        %3768 = vmatpush2.msra.mxu0 0.0
        %3769 = vmatprep.subr.mxu0 0.0
        %3770 = vmatpush2.msra.mxu0 0.0
        %3771 = vmatprep.subr.mxu0 0.0
        %3772 = vmatpush2.msra.mxu0 0.0
        %3773 = vmatprep.subr.mxu0 0.0
        %3774 = vmatpush2.msra.mxu0 0.0
        %3775 = vmatprep.subr.mxu0 0.0
        %3776 = vmatpush2.msra.mxu0 0.0
        %3777 = vmatprep.subr.mxu0 0.0
        %3778 = vmatpush2.msra.mxu0 0.0
        %3779 = vmatprep.subr.mxu0 0.0
        %3780 = vmatpush2.msra.mxu0 0.0
        %3781 = vmatprep.subr.mxu0 0.0
        %3782 = vmatpush2.msra.mxu0 0.0
        %3783 = vmatprep.subr.mxu0 0.0
        %3784 = vmatpush2.msra.mxu0 0.0
        %3785 = vmatprep.subr.mxu0 0.0
        %3786 = vmatpush2.msra.mxu0 0.0
        %3787 = vmatprep.subr.mxu0 0.0
        %3788 = vmatpush2.msra.mxu0 0.0
        %3789 = vmatprep.subr.mxu0 0.0
        %3790 = vmatpush2.msra.mxu0 0.0
        %3791 = vmatprep.subr.mxu0 0.0
        %3792 = vmatpush2.msra.mxu0 0.0
        %3793 = vmatprep.subr.mxu0 0.0
        %3794 = vmatpush2.msra.mxu0 0.0
        %3795 = vmatprep.subr.mxu0 0.0
        %3796 = vmatpush2.msra.mxu0 0.0
        %3797 = vmatprep.subr.mxu0 0.0
        %3798 = vmatpush2.msra.mxu0 0.0
        %3799 = vmatprep.mubr.f32.mxu0 0.0
        %3800 = vmatmul.mubr.f32.gmra.mxu0 %v3731
        %v3801 = vpop.f32.mrf.mxu0
        %v3802 = vadd.f32 0.0, %v3801
        %v3803 = vpop.f32.mrf.mxu0
        %3804 = vdwg.mxu0
        %v3806 = vsel %vm1340, %v3559, 0
        %v3808 = vsel %vm1675, %v3395, 0
        %3810 = vmatprep.subr.mxu0 0.0
        %3811 = vmatpush1.msra.mxu0 0.0
        %3812 = vmatprep.subr.mxu0 0.0
        %3813 = vmatpush1.msra.mxu0 0.0
        %3814 = vmatprep.subr.mxu0 0.0
        %3815 = vmatpush1.msra.mxu0 0.0
        %3816 = vmatprep.subr.mxu0 0.0
        %3817 = vmatpush1.msra.mxu0 0.0
        %3818 = vmatprep.subr.mxu0 0.0
        %3819 = vmatpush1.msra.mxu0 0.0
        %3820 = vmatprep.subr.mxu0 0.0
        %3821 = vmatpush1.msra.mxu0 0.0
        %3822 = vmatprep.subr.mxu0 0.0
        %3823 = vmatpush1.msra.mxu0 0.0
        %3824 = vmatprep.subr.mxu0 0.0
        %3825 = vmatpush1.msra.mxu0 0.0
        %3826 = vmatprep.subr.mxu0 0.0
        %3827 = vmatpush1.msra.mxu0 0.0
        %3828 = vmatprep.subr.mxu0 0.0
        %3829 = vmatpush1.msra.mxu0 0.0
        %3830 = vmatprep.subr.mxu0 0.0
        %3831 = vmatpush1.msra.mxu0 0.0
        %3832 = vmatprep.subr.mxu0 0.0
        %3833 = vmatpush1.msra.mxu0 0.0
        %3834 = vmatprep.subr.mxu0 0.0
        %3835 = vmatpush1.msra.mxu0 0.0
        %3836 = vmatprep.subr.mxu0 0.0
        %3837 = vmatpush1.msra.mxu0 0.0
        %3838 = vmatprep.subr.mxu0 0.0
        %3839 = vmatpush1.msra.mxu0 0.0
        %3840 = vmatprep.subr.mxu0 0.0
        %3841 = vmatpush1.msra.mxu0 %v3808
        %3842 = vmatprep.subr.mxu0 0.0
        %3843 = vmatpush2.msra.mxu0 0.0
        %3844 = vmatprep.subr.mxu0 0.0
        %3845 = vmatpush2.msra.mxu0 0.0
        %3846 = vmatprep.subr.mxu0 0.0
        %3847 = vmatpush2.msra.mxu0 0.0
        %3848 = vmatprep.subr.mxu0 0.0
        %3849 = vmatpush2.msra.mxu0 0.0
        %3850 = vmatprep.subr.mxu0 0.0
        %3851 = vmatpush2.msra.mxu0 0.0
        %3852 = vmatprep.subr.mxu0 0.0
        %3853 = vmatpush2.msra.mxu0 0.0
        %3854 = vmatprep.subr.mxu0 0.0
        %3855 = vmatpush2.msra.mxu0 0.0
        %3856 = vmatprep.subr.mxu0 0.0
        %3857 = vmatpush2.msra.mxu0 0.0
        %3858 = vmatprep.subr.mxu0 0.0
        %3859 = vmatpush2.msra.mxu0 0.0
        %3860 = vmatprep.subr.mxu0 0.0
        %3861 = vmatpush2.msra.mxu0 0.0
        %3862 = vmatprep.subr.mxu0 0.0
        %3863 = vmatpush2.msra.mxu0 0.0
        %3864 = vmatprep.subr.mxu0 0.0
        %3865 = vmatpush2.msra.mxu0 0.0
        %3866 = vmatprep.subr.mxu0 0.0
        %3867 = vmatpush2.msra.mxu0 0.0
        %3868 = vmatprep.subr.mxu0 0.0
        %3869 = vmatpush2.msra.mxu0 0.0
        %3870 = vmatprep.subr.mxu0 0.0
        %3871 = vmatpush2.msra.mxu0 0.0
        %3872 = vmatprep.subr.mxu0 0.0
        %3873 = vmatpush2.msra.mxu0 0.0
        %3874 = vmatprep.mubr.f32.mxu0 0.0
        %3875 = vmatmul.mubr.f32.gmra.mxu0 %v3806
        %v3876 = vpop.f32.mrf.mxu0
        %v3877 = vadd.f32 %v3802, %v3876
        %v3878 = vpop.f32.mrf.mxu0
        %3879 = vdwg.mxu0
        %3880 = vrot.lane.b32.xlu0 %v3391, 120
        %v3881 = vpop.permute.xlu0 %3880
        %3882 = vrot.lane.b32.xlu0 %v3391, 104
        %v3883 = vpop.permute.xlu0 %3882
        %v3884 = vsel %vm1340, %v3881, 0
        %v3886 = vsel %vm1340, %v3883, 0
        %3888 = vmatprep.subr.mxu0 0.0
        %3889 = vmatpush1.xpose.msra.mxu0 0.0
        %3890 = vmatprep.subr.mxu0 0.0
        %3891 = vmatpush1.xpose.msra.mxu0 0.0
        %3892 = vmatprep.subr.mxu0 0.0
        %3893 = vmatpush1.xpose.msra.mxu0 0.0
        %3894 = vmatprep.subr.mxu0 0.0
        %3895 = vmatpush1.xpose.msra.mxu0 0.0
        %3896 = vmatprep.subr.mxu0 0.0
        %3897 = vmatpush1.xpose.msra.mxu0 0.0
        %3898 = vmatprep.subr.mxu0 0.0
        %3899 = vmatpush1.xpose.msra.mxu0 0.0
        %3900 = vmatprep.subr.mxu0 0.0
        %3901 = vmatpush1.xpose.msra.mxu0 0.0
        %3902 = vmatprep.subr.mxu0 0.0
        %3903 = vmatpush1.xpose.msra.mxu0 0.0
        %3904 = vmatprep.subr.mxu0 0.0
        %3905 = vmatpush1.xpose.msra.mxu0 0.0
        %3906 = vmatprep.subr.mxu0 0.0
        %3907 = vmatpush1.xpose.msra.mxu0 0.0
        %3908 = vmatprep.subr.mxu0 0.0
        %3909 = vmatpush1.xpose.msra.mxu0 0.0
        %3910 = vmatprep.subr.mxu0 0.0
        %3911 = vmatpush1.xpose.msra.mxu0 0.0
        %3912 = vmatprep.subr.mxu0 0.0
        %3913 = vmatpush1.xpose.msra.mxu0 0.0
        %3914 = vmatprep.subr.mxu0 0.0
        %3915 = vmatpush1.xpose.msra.mxu0 0.0
        %3916 = vmatprep.subr.mxu0 0.0
        %3917 = vmatpush1.xpose.msra.mxu0 0.0
        %3918 = vmatprep.subr.mxu0 0.0
        %3919 = vmatpush1.xpose.msra.mxu0 %v3886
        %3920 = vmatprep.subr.mxu0 0.0
        %3921 = vmatpush2.xpose.msra.mxu0 0.0
        %3922 = vmatprep.subr.mxu0 0.0
        %3923 = vmatpush2.xpose.msra.mxu0 0.0
        %3924 = vmatprep.subr.mxu0 0.0
        %3925 = vmatpush2.xpose.msra.mxu0 0.0
        %3926 = vmatprep.subr.mxu0 0.0
        %3927 = vmatpush2.xpose.msra.mxu0 0.0
        %3928 = vmatprep.subr.mxu0 0.0
        %3929 = vmatpush2.xpose.msra.mxu0 0.0
        %3930 = vmatprep.subr.mxu0 0.0
        %3931 = vmatpush2.xpose.msra.mxu0 0.0
        %3932 = vmatprep.subr.mxu0 0.0
        %3933 = vmatpush2.xpose.msra.mxu0 0.0
        %3934 = vmatprep.subr.mxu0 0.0
        %3935 = vmatpush2.xpose.msra.mxu0 0.0
        %3936 = vmatprep.subr.mxu0 0.0
        %3937 = vmatpush2.xpose.msra.mxu0 0.0
        %3938 = vmatprep.subr.mxu0 0.0
        %3939 = vmatpush2.xpose.msra.mxu0 0.0
        %3940 = vmatprep.subr.mxu0 0.0
        %3941 = vmatpush2.xpose.msra.mxu0 0.0
        %3942 = vmatprep.subr.mxu0 0.0
        %3943 = vmatpush2.xpose.msra.mxu0 0.0
        %3944 = vmatprep.subr.mxu0 0.0
        %3945 = vmatpush2.xpose.msra.mxu0 0.0
        %3946 = vmatprep.subr.mxu0 0.0
        %3947 = vmatpush2.xpose.msra.mxu0 0.0
        %3948 = vmatprep.subr.mxu0 0.0
        %3949 = vmatpush2.xpose.msra.mxu0 0.0
        %3950 = vmatprep.subr.mxu0 0.0
        %3951 = vmatpush2.xpose.msra.mxu0 0.0
        %3952 = vmatprep.mubr.f32.mxu0 0.0
        %3953 = vmatmul.mubr.f32.gmra.mxu0 %v3884
        %v3954 = vpop.f32.mrf.mxu0
        %v3955 = vadd.f32 0.0, %v3954
        %v3956 = vpop.f32.mrf.mxu0
        %3957 = vdwg.mxu0
        %v3958 = vmul.f32 %v3955, 0.5
        %v3959 = vsel %vm1416, %v3958, -inf
        %3960 = vmax.xlane.f32.xlu0 %v3959
        %v3961 = vpop.xlane.xlu0 %3960
        %v3962 = vsub.f32 %v3958, %v3961
        %v3963 = vmul.f32 %v3962, 1.442695
        %v3964 = vpow.pop %v3963
        %v3965 = vsel %vm1416, %v3964, 0.0
        %3966 = vadd.xlane.f32.xlu0 %v3965
        %v3967 = vpop.xlane.xlu0 %3966
        %v3968 = vrcp.pop %v3967
        %v3969 = vmul.f32 %v3964, %v3968
        %3970 = vrot.lane.b32.xlu0 %v3307, 88
        %v3971 = vpop.permute.xlu0 %3970
        %v3974 = vsel %vm1416, %v3969, 0
        %3976 = vmatprep.subr.mxu0 0.0
        %3977 = vmatpush1.msra.mxu0 0.0
        %3978 = vmatprep.subr.mxu0 0.0
        %3979 = vmatpush1.msra.mxu0 0.0
        %3980 = vmatprep.subr.mxu0 0.0
        %3981 = vmatpush1.msra.mxu0 0.0
        %3982 = vmatprep.subr.mxu0 0.0
        %3983 = vmatpush1.msra.mxu0 0.0
        %3984 = vmatprep.subr.mxu0 0.0
        %3985 = vmatpush1.msra.mxu0 0.0
        %3986 = vmatprep.subr.mxu0 0.0
        %3987 = vmatpush1.msra.mxu0 0.0
        %3988 = vmatprep.subr.mxu0 0.0
        %3989 = vmatpush1.msra.mxu0 0.0
        %3990 = vmatprep.subr.mxu0 0.0
        %3991 = vmatpush1.msra.mxu0 0.0
        %3992 = vmatprep.subr.mxu0 0.0
        %3993 = vmatpush1.msra.mxu0 0.0
        %3994 = vmatprep.subr.mxu0 0.0
        %3995 = vmatpush1.msra.mxu0 0.0
        %3996 = vmatprep.subr.mxu0 0.0
        %3997 = vmatpush1.msra.mxu0 0.0
        %3998 = vmatprep.subr.mxu0 0.0
        %3999 = vmatpush1.msra.mxu0 0.0
        %4000 = vmatprep.subr.mxu0 0.0
        %4001 = vmatpush1.msra.mxu0 0.0
        %4002 = vmatprep.subr.mxu0 0.0
        %4003 = vmatpush1.msra.mxu0 0.0
        %4004 = vmatprep.subr.mxu0 0.0
        %4005 = vmatpush1.msra.mxu0 0.0
        %4006 = vmatprep.subr.mxu0 0.0
        %4007 = vmatpush1.msra.mxu0 %v3971
        %4008 = vmatprep.subr.mxu0 0.0
        %4009 = vmatpush2.msra.mxu0 0.0
        %4010 = vmatprep.subr.mxu0 0.0
        %4011 = vmatpush2.msra.mxu0 0.0
        %4012 = vmatprep.subr.mxu0 0.0
        %4013 = vmatpush2.msra.mxu0 0.0
        %4014 = vmatprep.subr.mxu0 0.0
        %4015 = vmatpush2.msra.mxu0 0.0
        %4016 = vmatprep.subr.mxu0 0.0
        %4017 = vmatpush2.msra.mxu0 0.0
        %4018 = vmatprep.subr.mxu0 0.0
        %4019 = vmatpush2.msra.mxu0 0.0
        %4020 = vmatprep.subr.mxu0 0.0
        %4021 = vmatpush2.msra.mxu0 0.0
        %4022 = vmatprep.subr.mxu0 0.0
        %4023 = vmatpush2.msra.mxu0 0.0
        %4024 = vmatprep.subr.mxu0 0.0
        %4025 = vmatpush2.msra.mxu0 0.0
        %4026 = vmatprep.subr.mxu0 0.0
        %4027 = vmatpush2.msra.mxu0 0.0
        %4028 = vmatprep.subr.mxu0 0.0
        %4029 = vmatpush2.msra.mxu0 0.0
        %4030 = vmatprep.subr.mxu0 0.0
        %4031 = vmatpush2.msra.mxu0 0.0
        %4032 = vmatprep.subr.mxu0 0.0
        %4033 = vmatpush2.msra.mxu0 0.0
        %4034 = vmatprep.subr.mxu0 0.0
        %4035 = vmatpush2.msra.mxu0 0.0
        %4036 = vmatprep.subr.mxu0 0.0
        %4037 = vmatpush2.msra.mxu0 0.0
        %4038 = vmatprep.subr.mxu0 0.0
        %4039 = vmatpush2.msra.mxu0 0.0
        %4040 = vmatprep.mubr.f32.mxu0 0.0
        %4041 = vmatmul.mubr.f32.gmra.mxu0 %v3974
        %v4042 = vpop.f32.mrf.mxu0
        %v4043 = vadd.f32 0.0, %v4042
        %v4044 = vpop.f32.mrf.mxu0
        %4045 = vdwg.mxu0
        %v4047 = vsel %vm1340, %v4043, 0
        %v4050 = vsel %vm1675, %v3396, 0
        %4052 = vmatprep.subr.mxu0 0.0
        %4053 = vmatpush1.msra.mxu0 0.0
        %4054 = vmatprep.subr.mxu0 0.0
        %4055 = vmatpush1.msra.mxu0 0.0
        %4056 = vmatprep.subr.mxu0 0.0
        %4057 = vmatpush1.msra.mxu0 0.0
        %4058 = vmatprep.subr.mxu0 0.0
        %4059 = vmatpush1.msra.mxu0 0.0
        %4060 = vmatprep.subr.mxu0 0.0
        %4061 = vmatpush1.msra.mxu0 0.0
        %4062 = vmatprep.subr.mxu0 0.0
        %4063 = vmatpush1.msra.mxu0 0.0
        %4064 = vmatprep.subr.mxu0 0.0
        %4065 = vmatpush1.msra.mxu0 0.0
        %4066 = vmatprep.subr.mxu0 0.0
        %4067 = vmatpush1.msra.mxu0 0.0
        %4068 = vmatprep.subr.mxu0 0.0
        %4069 = vmatpush1.msra.mxu0 0.0
        %4070 = vmatprep.subr.mxu0 0.0
        %4071 = vmatpush1.msra.mxu0 0.0
        %4072 = vmatprep.subr.mxu0 0.0
        %4073 = vmatpush1.msra.mxu0 0.0
        %4074 = vmatprep.subr.mxu0 0.0
        %4075 = vmatpush1.msra.mxu0 0.0
        %4076 = vmatprep.subr.mxu0 0.0
        %4077 = vmatpush1.msra.mxu0 0.0
        %4078 = vmatprep.subr.mxu0 0.0
        %4079 = vmatpush1.msra.mxu0 0.0
        %4080 = vmatprep.subr.mxu0 0.0
        %4081 = vmatpush1.msra.mxu0 0.0
        %4082 = vmatprep.subr.mxu0 0.0
        %4083 = vmatpush1.msra.mxu0 %v4050
        %4084 = vmatprep.subr.mxu0 0.0
        %4085 = vmatpush2.msra.mxu0 0.0
        %4086 = vmatprep.subr.mxu0 0.0
        %4087 = vmatpush2.msra.mxu0 0.0
        %4088 = vmatprep.subr.mxu0 0.0
        %4089 = vmatpush2.msra.mxu0 0.0
        %4090 = vmatprep.subr.mxu0 0.0
        %4091 = vmatpush2.msra.mxu0 0.0
        %4092 = vmatprep.subr.mxu0 0.0
        %4093 = vmatpush2.msra.mxu0 0.0
        %4094 = vmatprep.subr.mxu0 0.0
        %4095 = vmatpush2.msra.mxu0 0.0
        %4096 = vmatprep.subr.mxu0 0.0
        %4097 = vmatpush2.msra.mxu0 0.0
        %4098 = vmatprep.subr.mxu0 0.0
        %4099 = vmatpush2.msra.mxu0 0.0
        %4100 = vmatprep.subr.mxu0 0.0
        %4101 = vmatpush2.msra.mxu0 0.0
        %4102 = vmatprep.subr.mxu0 0.0
        %4103 = vmatpush2.msra.mxu0 0.0
        %4104 = vmatprep.subr.mxu0 0.0
        %4105 = vmatpush2.msra.mxu0 0.0
        %4106 = vmatprep.subr.mxu0 0.0
        %4107 = vmatpush2.msra.mxu0 0.0
        %4108 = vmatprep.subr.mxu0 0.0
        %4109 = vmatpush2.msra.mxu0 0.0
        %4110 = vmatprep.subr.mxu0 0.0
        %4111 = vmatpush2.msra.mxu0 0.0
        %4112 = vmatprep.subr.mxu0 0.0
        %4113 = vmatpush2.msra.mxu0 0.0
        %4114 = vmatprep.subr.mxu0 0.0
        %4115 = vmatpush2.msra.mxu0 0.0
        %4116 = vmatprep.mubr.f32.mxu0 0.0
        %4117 = vmatmul.mubr.f32.gmra.mxu0 %v4047
        %v4118 = vpop.f32.mrf.mxu0
        %v4119 = vadd.f32 0.0, %v4118
        %v4120 = vpop.f32.mrf.mxu0
        %4121 = vdwg.mxu0
        %v4122 = vadd.f32 %v3877, %v4119
        %4123 = vrot.lane.b32.xlu0 %v3391, 116
        %v4124 = vpop.permute.xlu0 %4123
        %4125 = vrot.lane.b32.xlu0 %v3391, 100
        %v4126 = vpop.permute.xlu0 %4125
        %v4127 = vsel %vm1340, %v4124, 0
        %v4129 = vsel %vm1340, %v4126, 0
        %4131 = vmatprep.subr.mxu0 0.0
        %4132 = vmatpush1.xpose.msra.mxu0 0.0
        %4133 = vmatprep.subr.mxu0 0.0
        %4134 = vmatpush1.xpose.msra.mxu0 0.0
        %4135 = vmatprep.subr.mxu0 0.0
        %4136 = vmatpush1.xpose.msra.mxu0 0.0
        %4137 = vmatprep.subr.mxu0 0.0
        %4138 = vmatpush1.xpose.msra.mxu0 0.0
        %4139 = vmatprep.subr.mxu0 0.0
        %4140 = vmatpush1.xpose.msra.mxu0 0.0
        %4141 = vmatprep.subr.mxu0 0.0
        %4142 = vmatpush1.xpose.msra.mxu0 0.0
        %4143 = vmatprep.subr.mxu0 0.0
        %4144 = vmatpush1.xpose.msra.mxu0 0.0
        %4145 = vmatprep.subr.mxu0 0.0
        %4146 = vmatpush1.xpose.msra.mxu0 0.0
        %4147 = vmatprep.subr.mxu0 0.0
        %4148 = vmatpush1.xpose.msra.mxu0 0.0
        %4149 = vmatprep.subr.mxu0 0.0
        %4150 = vmatpush1.xpose.msra.mxu0 0.0
        %4151 = vmatprep.subr.mxu0 0.0
        %4152 = vmatpush1.xpose.msra.mxu0 0.0
        %4153 = vmatprep.subr.mxu0 0.0
        %4154 = vmatpush1.xpose.msra.mxu0 0.0
        %4155 = vmatprep.subr.mxu0 0.0
        %4156 = vmatpush1.xpose.msra.mxu0 0.0
        %4157 = vmatprep.subr.mxu0 0.0
        %4158 = vmatpush1.xpose.msra.mxu0 0.0
        %4159 = vmatprep.subr.mxu0 0.0
        %4160 = vmatpush1.xpose.msra.mxu0 0.0
        %4161 = vmatprep.subr.mxu0 0.0
        %4162 = vmatpush1.xpose.msra.mxu0 %v4129
        %4163 = vmatprep.subr.mxu0 0.0
        %4164 = vmatpush2.xpose.msra.mxu0 0.0
        %4165 = vmatprep.subr.mxu0 0.0
        %4166 = vmatpush2.xpose.msra.mxu0 0.0
        %4167 = vmatprep.subr.mxu0 0.0
        %4168 = vmatpush2.xpose.msra.mxu0 0.0
        %4169 = vmatprep.subr.mxu0 0.0
        %4170 = vmatpush2.xpose.msra.mxu0 0.0
        %4171 = vmatprep.subr.mxu0 0.0
        %4172 = vmatpush2.xpose.msra.mxu0 0.0
        %4173 = vmatprep.subr.mxu0 0.0
        %4174 = vmatpush2.xpose.msra.mxu0 0.0
        %4175 = vmatprep.subr.mxu0 0.0
        %4176 = vmatpush2.xpose.msra.mxu0 0.0
        %4177 = vmatprep.subr.mxu0 0.0
        %4178 = vmatpush2.xpose.msra.mxu0 0.0
        %4179 = vmatprep.subr.mxu0 0.0
        %4180 = vmatpush2.xpose.msra.mxu0 0.0
        %4181 = vmatprep.subr.mxu0 0.0
        %4182 = vmatpush2.xpose.msra.mxu0 0.0
        %4183 = vmatprep.subr.mxu0 0.0
        %4184 = vmatpush2.xpose.msra.mxu0 0.0
        %4185 = vmatprep.subr.mxu0 0.0
        %4186 = vmatpush2.xpose.msra.mxu0 0.0
        %4187 = vmatprep.subr.mxu0 0.0
        %4188 = vmatpush2.xpose.msra.mxu0 0.0
        %4189 = vmatprep.subr.mxu0 0.0
        %4190 = vmatpush2.xpose.msra.mxu0 0.0
        %4191 = vmatprep.subr.mxu0 0.0
        %4192 = vmatpush2.xpose.msra.mxu0 0.0
        %4193 = vmatprep.subr.mxu0 0.0
        %4194 = vmatpush2.xpose.msra.mxu0 0.0
        %4195 = vmatprep.mubr.f32.mxu0 0.0
        %4196 = vmatmul.mubr.f32.gmra.mxu0 %v4127
        %v4197 = vpop.f32.mrf.mxu0
        %v4198 = vadd.f32 0.0, %v4197
        %v4199 = vpop.f32.mrf.mxu0
        %4200 = vdwg.mxu0
        %v4201 = vmul.f32 %v4198, 0.5
        %v4202 = vsel %vm1416, %v4201, -inf
        %4203 = vmax.xlane.f32.xlu0 %v4202
        %v4204 = vpop.xlane.xlu0 %4203
        %v4205 = vsub.f32 %v4201, %v4204
        %v4206 = vmul.f32 %v4205, 1.442695
        %v4207 = vpow.pop %v4206
        %v4208 = vsel %vm1416, %v4207, 0.0
        %4209 = vadd.xlane.f32.xlu0 %v4208
        %v4210 = vpop.xlane.xlu0 %4209
        %v4211 = vrcp.pop %v4210
        %v4212 = vmul.f32 %v4207, %v4211
        %4213 = vrot.lane.b32.xlu0 %v3307, 84
        %v4214 = vpop.permute.xlu0 %4213
        %v4217 = vsel %vm1416, %v4212, 0
        %4219 = vmatprep.subr.mxu0 0.0
        %4220 = vmatpush1.msra.mxu0 0.0
        %4221 = vmatprep.subr.mxu0 0.0
        %4222 = vmatpush1.msra.mxu0 0.0
        %4223 = vmatprep.subr.mxu0 0.0
        %4224 = vmatpush1.msra.mxu0 0.0
        %4225 = vmatprep.subr.mxu0 0.0
        %4226 = vmatpush1.msra.mxu0 0.0
        %4227 = vmatprep.subr.mxu0 0.0
        %4228 = vmatpush1.msra.mxu0 0.0
        %4229 = vmatprep.subr.mxu0 0.0
        %4230 = vmatpush1.msra.mxu0 0.0
        %4231 = vmatprep.subr.mxu0 0.0
        %4232 = vmatpush1.msra.mxu0 0.0
        %4233 = vmatprep.subr.mxu0 0.0
        %4234 = vmatpush1.msra.mxu0 0.0
        %4235 = vmatprep.subr.mxu0 0.0
        %4236 = vmatpush1.msra.mxu0 0.0
        %4237 = vmatprep.subr.mxu0 0.0
        %4238 = vmatpush1.msra.mxu0 0.0
        %4239 = vmatprep.subr.mxu0 0.0
        %4240 = vmatpush1.msra.mxu0 0.0
        %4241 = vmatprep.subr.mxu0 0.0
        %4242 = vmatpush1.msra.mxu0 0.0
        %4243 = vmatprep.subr.mxu0 0.0
        %4244 = vmatpush1.msra.mxu0 0.0
        %4245 = vmatprep.subr.mxu0 0.0
        %4246 = vmatpush1.msra.mxu0 0.0
        %4247 = vmatprep.subr.mxu0 0.0
        %4248 = vmatpush1.msra.mxu0 0.0
        %4249 = vmatprep.subr.mxu0 0.0
        %4250 = vmatpush1.msra.mxu0 %v4214
        %4251 = vmatprep.subr.mxu0 0.0
        %4252 = vmatpush2.msra.mxu0 0.0
        %4253 = vmatprep.subr.mxu0 0.0
        %4254 = vmatpush2.msra.mxu0 0.0
        %4255 = vmatprep.subr.mxu0 0.0
        %4256 = vmatpush2.msra.mxu0 0.0
        %4257 = vmatprep.subr.mxu0 0.0
        %4258 = vmatpush2.msra.mxu0 0.0
        %4259 = vmatprep.subr.mxu0 0.0
        %4260 = vmatpush2.msra.mxu0 0.0
        %4261 = vmatprep.subr.mxu0 0.0
        %4262 = vmatpush2.msra.mxu0 0.0
        %4263 = vmatprep.subr.mxu0 0.0
        %4264 = vmatpush2.msra.mxu0 0.0
        %4265 = vmatprep.subr.mxu0 0.0
        %4266 = vmatpush2.msra.mxu0 0.0
        %4267 = vmatprep.subr.mxu0 0.0
        %4268 = vmatpush2.msra.mxu0 0.0
        %4269 = vmatprep.subr.mxu0 0.0
        %4270 = vmatpush2.msra.mxu0 0.0
        %4271 = vmatprep.subr.mxu0 0.0
        %4272 = vmatpush2.msra.mxu0 0.0
        %4273 = vmatprep.subr.mxu0 0.0
        %4274 = vmatpush2.msra.mxu0 0.0
        %4275 = vmatprep.subr.mxu0 0.0
        %4276 = vmatpush2.msra.mxu0 0.0
        %4277 = vmatprep.subr.mxu0 0.0
        %4278 = vmatpush2.msra.mxu0 0.0
        %4279 = vmatprep.subr.mxu0 0.0
        %4280 = vmatpush2.msra.mxu0 0.0
        %4281 = vmatprep.subr.mxu0 0.0
        %4282 = vmatpush2.msra.mxu0 0.0
        %4283 = vmatprep.mubr.f32.mxu0 0.0
        %4284 = vmatmul.mubr.f32.gmra.mxu0 %v4217
        %v4285 = vpop.f32.mrf.mxu0
        %v4286 = vadd.f32 0.0, %v4285
        %v4287 = vpop.f32.mrf.mxu0
        %4288 = vdwg.mxu0
        %v4289 = vrot.slane %v3396, 4
        %v4291 = vsel %vm1340, %v4286, 0
        %v4293 = vsel %vm1675, %v4289, 0
        %4295 = vmatprep.subr.mxu0 0.0
        %4296 = vmatpush1.msra.mxu0 0.0
        %4297 = vmatprep.subr.mxu0 0.0
        %4298 = vmatpush1.msra.mxu0 0.0
        %4299 = vmatprep.subr.mxu0 0.0
        %4300 = vmatpush1.msra.mxu0 0.0
        %4301 = vmatprep.subr.mxu0 0.0
        %4302 = vmatpush1.msra.mxu0 0.0
        %4303 = vmatprep.subr.mxu0 0.0
        %4304 = vmatpush1.msra.mxu0 0.0
        %4305 = vmatprep.subr.mxu0 0.0
        %4306 = vmatpush1.msra.mxu0 0.0
        %4307 = vmatprep.subr.mxu0 0.0
        %4308 = vmatpush1.msra.mxu0 0.0
        %4309 = vmatprep.subr.mxu0 0.0
        %4310 = vmatpush1.msra.mxu0 0.0
        %4311 = vmatprep.subr.mxu0 0.0
        %4312 = vmatpush1.msra.mxu0 0.0
        %4313 = vmatprep.subr.mxu0 0.0
        %4314 = vmatpush1.msra.mxu0 0.0
        %4315 = vmatprep.subr.mxu0 0.0
        %4316 = vmatpush1.msra.mxu0 0.0
        %4317 = vmatprep.subr.mxu0 0.0
        %4318 = vmatpush1.msra.mxu0 0.0
        %4319 = vmatprep.subr.mxu0 0.0
        %4320 = vmatpush1.msra.mxu0 0.0
        %4321 = vmatprep.subr.mxu0 0.0
        %4322 = vmatpush1.msra.mxu0 0.0
        %4323 = vmatprep.subr.mxu0 0.0
        %4324 = vmatpush1.msra.mxu0 0.0
        %4325 = vmatprep.subr.mxu0 0.0
        %4326 = vmatpush1.msra.mxu0 %v4293
        %4327 = vmatprep.subr.mxu0 0.0
        %4328 = vmatpush2.msra.mxu0 0.0
        %4329 = vmatprep.subr.mxu0 0.0
        %4330 = vmatpush2.msra.mxu0 0.0
        %4331 = vmatprep.subr.mxu0 0.0
        %4332 = vmatpush2.msra.mxu0 0.0
        %4333 = vmatprep.subr.mxu0 0.0
        %4334 = vmatpush2.msra.mxu0 0.0
        %4335 = vmatprep.subr.mxu0 0.0
        %4336 = vmatpush2.msra.mxu0 0.0
        %4337 = vmatprep.subr.mxu0 0.0
        %4338 = vmatpush2.msra.mxu0 0.0
        %4339 = vmatprep.subr.mxu0 0.0
        %4340 = vmatpush2.msra.mxu0 0.0
        %4341 = vmatprep.subr.mxu0 0.0
        %4342 = vmatpush2.msra.mxu0 0.0
        %4343 = vmatprep.subr.mxu0 0.0
        %4344 = vmatpush2.msra.mxu0 0.0
        %4345 = vmatprep.subr.mxu0 0.0
        %4346 = vmatpush2.msra.mxu0 0.0
        %4347 = vmatprep.subr.mxu0 0.0
        %4348 = vmatpush2.msra.mxu0 0.0
        %4349 = vmatprep.subr.mxu0 0.0
        %4350 = vmatpush2.msra.mxu0 0.0
        %4351 = vmatprep.subr.mxu0 0.0
        %4352 = vmatpush2.msra.mxu0 0.0
        %4353 = vmatprep.subr.mxu0 0.0
        %4354 = vmatpush2.msra.mxu0 0.0
        %4355 = vmatprep.subr.mxu0 0.0
        %4356 = vmatpush2.msra.mxu0 0.0
        %4357 = vmatprep.subr.mxu0 0.0
        %4358 = vmatpush2.msra.mxu0 0.0
        %4359 = vmatprep.mubr.f32.mxu0 0.0
        %4360 = vmatmul.mubr.f32.gmra.mxu0 %v4291
        %v4361 = vpop.f32.mrf.mxu0
        %v4362 = vadd.f32 0.0, %v4361
        %v4363 = vpop.f32.mrf.mxu0
        %4364 = vdwg.mxu0
        %v4365 = vadd.f32 %v4122, %v4362
        %s4366 = scalar_lea.vmem %s27, 1
        %v4367 = vld [vmem:[%s4366] sm:$0x1]
        %v4369 = vlaneseq
        %v4370 = vshrl.u32 %v4369, 7
        %v4371 = vsub.s32 0, %v4370
        %v4372 = vrot.slane %v4367, %v4371
        %v4374 = vadd.f32 %v4365, %v4372
        %v4375 = vadd.f32 %v4374, %v3307
        %s4376 = scalar_lea.vmem %s29, 1
        %v4377 = vld [vmem:[%s4376] sm:$0x1]
        %v4379 = vlaneseq
        %v4380 = vshrl.u32 %v4379, 7
        %v4381 = vsub.s32 0, %v4380
        %v4382 = vrot.slane %v4377, %v4381
        %v4384 = vmul.f32 %v4375, %v4382
        %s4385 = scalar_lea.vmem %s31, 1
        %v4386 = vld [vmem:[%s4385] sm:$0x1]
        %v4388 = vlaneseq
        %v4389 = vshrl.u32 %v4388, 7
        %v4390 = vsub.s32 0, %v4389
        %v4391 = vrot.slane %v4386, %v4390
        %v4393 = vadd.f32 %v4384, %v4391
        %s4394 = scalar_lea.vmem %s33, 64
        %v4395 = vld [vmem:[%s4394] sm:$0xff]
        %v4396 = vld [vmem:[%s4394 + $0x8] sm:$0xff]
        %s4397 = scalar_lea.vmem %s35, 4
        %v4398 = vld [vmem:[%s4397] sm:$0x1]
        %v4400 = vlaneseq
        %v4401 = vshrl.u32 %v4400, 7
        %v4402 = vsub.s32 0, %v4401
        %v4403 = vrot.slane %v4398, %v4402
        %v4406 = vsel %vm1262, %v4393, 0
        %4408 = vmatprep.subr.mxu0 0.0
        %4409 = vmatpush1.msra.mxu0 0.0
        %4410 = vmatprep.subr.mxu0 0.0
        %4411 = vmatpush1.msra.mxu0 0.0
        %4412 = vmatprep.subr.mxu0 0.0
        %4413 = vmatpush1.msra.mxu0 0.0
        %4414 = vmatprep.subr.mxu0 0.0
        %4415 = vmatpush1.msra.mxu0 0.0
        %4416 = vmatprep.subr.mxu0 0.0
        %4417 = vmatpush1.msra.mxu0 0.0
        %4418 = vmatprep.subr.mxu0 0.0
        %4419 = vmatpush1.msra.mxu0 0.0
        %4420 = vmatprep.subr.mxu0 0.0
        %4421 = vmatpush1.msra.mxu0 0.0
        %4422 = vmatprep.subr.mxu0 0.0
        %4423 = vmatpush1.msra.mxu0 0.0
        %4424 = vmatprep.subr.mxu0 0.0
        %4425 = vmatpush1.msra.mxu0 0.0
        %4426 = vmatprep.subr.mxu0 0.0
        %4427 = vmatpush1.msra.mxu0 0.0
        %4428 = vmatprep.subr.mxu0 0.0
        %4429 = vmatpush1.msra.mxu0 0.0
        %4430 = vmatprep.subr.mxu0 0.0
        %4431 = vmatpush1.msra.mxu0 0.0
        %4432 = vmatprep.subr.mxu0 0.0
        %4433 = vmatpush1.msra.mxu0 0.0
        %4434 = vmatprep.subr.mxu0 0.0
        %4435 = vmatpush1.msra.mxu0 0.0
        %4436 = vmatprep.subr.mxu0 0.0
        %4437 = vmatpush1.msra.mxu0 %v4396
        %4438 = vmatprep.subr.mxu0 0.0
        %4439 = vmatpush1.msra.mxu0 %v4395
        %4440 = vmatprep.subr.mxu0 0.0
        %4441 = vmatpush2.msra.mxu0 0.0
        %4442 = vmatprep.subr.mxu0 0.0
        %4443 = vmatpush2.msra.mxu0 0.0
        %4444 = vmatprep.subr.mxu0 0.0
        %4445 = vmatpush2.msra.mxu0 0.0
        %4446 = vmatprep.subr.mxu0 0.0
        %4447 = vmatpush2.msra.mxu0 0.0
        %4448 = vmatprep.subr.mxu0 0.0
        %4449 = vmatpush2.msra.mxu0 0.0
        %4450 = vmatprep.subr.mxu0 0.0
        %4451 = vmatpush2.msra.mxu0 0.0
        %4452 = vmatprep.subr.mxu0 0.0
        %4453 = vmatpush2.msra.mxu0 0.0
        %4454 = vmatprep.subr.mxu0 0.0
        %4455 = vmatpush2.msra.mxu0 0.0
        %4456 = vmatprep.subr.mxu0 0.0
        %4457 = vmatpush2.msra.mxu0 0.0
        %4458 = vmatprep.subr.mxu0 0.0
        %4459 = vmatpush2.msra.mxu0 0.0
        %4460 = vmatprep.subr.mxu0 0.0
        %4461 = vmatpush2.msra.mxu0 0.0
        %4462 = vmatprep.subr.mxu0 0.0
        %4463 = vmatpush2.msra.mxu0 0.0
        %4464 = vmatprep.subr.mxu0 0.0
        %4465 = vmatpush2.msra.mxu0 0.0
        %4466 = vmatprep.subr.mxu0 0.0
        %4467 = vmatpush2.msra.mxu0 0.0
        %4468 = vmatprep.subr.mxu0 0.0
        %4469 = vmatpush2.msra.mxu0 0.0
        %4470 = vmatprep.subr.mxu0 0.0
        %4471 = vmatpush2.msra.mxu0 0.0
        %4472 = vmatprep.mubr.f32.mxu0 0.0
        %4473 = vmatmul.mubr.f32.gmra.mxu0 %v4406
        %v4474 = vpop.f32.mrf.mxu0
        %v4475 = vadd.f32 %v4403, %v4474
        %v4476 = vpop.f32.mrf.mxu0
        %4477 = vdwg.mxu0
        %v4478 = vmax.f32 %v4475, 0.0
        %s4479 = scalar_lea.vmem %s37, 256
        %v4480 = vld [vmem:[%s4479] sm:$0xff]
        %v4481 = vld [vmem:[%s4479 + $0x8] sm:$0xff]
        %v4482 = vld [vmem:[%s4479 + $0x10] sm:$0xff]
        %v4483 = vld [vmem:[%s4479 + $0x18] sm:$0xff]
        %v4484 = vld [vmem:[%s4479 + $0x20] sm:$0xff]
        %v4485 = vld [vmem:[%s4479 + $0x28] sm:$0xff]
        %v4486 = vld [vmem:[%s4479 + $0x30] sm:$0xff]
        %v4487 = vld [vmem:[%s4479 + $0x38] sm:$0xff]
        %s4488 = scalar_lea.vmem %s39, 4
        %v4489 = vld [vmem:[%s4488] sm:$0x1]
        %v4491 = vlaneseq
        %v4492 = vshrl.u32 %v4491, 7
        %v4493 = vsub.s32 0, %v4492
        %v4494 = vrot.slane %v4489, %v4493
        %v4497 = vsel %vm2432, %v4478, 0
        %4499 = vmatprep.subr.mxu0 0.0
        %4500 = vmatpush1.msra.mxu0 0.0
        %4501 = vmatprep.subr.mxu0 0.0
        %4502 = vmatpush1.msra.mxu0 0.0
        %4503 = vmatprep.subr.mxu0 0.0
        %4504 = vmatpush1.msra.mxu0 0.0
        %4505 = vmatprep.subr.mxu0 0.0
        %4506 = vmatpush1.msra.mxu0 0.0
        %4507 = vmatprep.subr.mxu0 0.0
        %4508 = vmatpush1.msra.mxu0 0.0
        %4509 = vmatprep.subr.mxu0 0.0
        %4510 = vmatpush1.msra.mxu0 0.0
        %4511 = vmatprep.subr.mxu0 0.0
        %4512 = vmatpush1.msra.mxu0 0.0
        %4513 = vmatprep.subr.mxu0 0.0
        %4514 = vmatpush1.msra.mxu0 0.0
        %4515 = vmatprep.subr.mxu0 0.0
        %4516 = vmatpush1.msra.mxu0 %v4487
        %4517 = vmatprep.subr.mxu0 0.0
        %4518 = vmatpush1.msra.mxu0 %v4486
        %4519 = vmatprep.subr.mxu0 0.0
        %4520 = vmatpush1.msra.mxu0 %v4485
        %4521 = vmatprep.subr.mxu0 0.0
        %4522 = vmatpush1.msra.mxu0 %v4484
        %4523 = vmatprep.subr.mxu0 0.0
        %4524 = vmatpush1.msra.mxu0 %v4483
        %4525 = vmatprep.subr.mxu0 0.0
        %4526 = vmatpush1.msra.mxu0 %v4482
        %4527 = vmatprep.subr.mxu0 0.0
        %4528 = vmatpush1.msra.mxu0 %v4481
        %4529 = vmatprep.subr.mxu0 0.0
        %4530 = vmatpush1.msra.mxu0 %v4480
        %4531 = vmatprep.subr.mxu0 0.0
        %4532 = vmatpush2.msra.mxu0 0.0
        %4533 = vmatprep.subr.mxu0 0.0
        %4534 = vmatpush2.msra.mxu0 0.0
        %4535 = vmatprep.subr.mxu0 0.0
        %4536 = vmatpush2.msra.mxu0 0.0
        %4537 = vmatprep.subr.mxu0 0.0
        %4538 = vmatpush2.msra.mxu0 0.0
        %4539 = vmatprep.subr.mxu0 0.0
        %4540 = vmatpush2.msra.mxu0 0.0
        %4541 = vmatprep.subr.mxu0 0.0
        %4542 = vmatpush2.msra.mxu0 0.0
        %4543 = vmatprep.subr.mxu0 0.0
        %4544 = vmatpush2.msra.mxu0 0.0
        %4545 = vmatprep.subr.mxu0 0.0
        %4546 = vmatpush2.msra.mxu0 0.0
        %4547 = vmatprep.subr.mxu0 0.0
        %4548 = vmatpush2.msra.mxu0 0.0
        %4549 = vmatprep.subr.mxu0 0.0
        %4550 = vmatpush2.msra.mxu0 0.0
        %4551 = vmatprep.subr.mxu0 0.0
        %4552 = vmatpush2.msra.mxu0 0.0
        %4553 = vmatprep.subr.mxu0 0.0
        %4554 = vmatpush2.msra.mxu0 0.0
        %4555 = vmatprep.subr.mxu0 0.0
        %4556 = vmatpush2.msra.mxu0 0.0
        %4557 = vmatprep.subr.mxu0 0.0
        %4558 = vmatpush2.msra.mxu0 0.0
        %4559 = vmatprep.subr.mxu0 0.0
        %4560 = vmatpush2.msra.mxu0 0.0
        %4561 = vmatprep.subr.mxu0 0.0
        %4562 = vmatpush2.msra.mxu0 0.0
        %4563 = vmatprep.mubr.f32.mxu0 0.0
        %4564 = vmatmul.mubr.f32.gmra.mxu0 %v4497
        %v4565 = vpop.f32.mrf.mxu0
        %v4566 = vadd.f32 %v4494, %v4565
        %v4567 = vpop.f32.mrf.mxu0
        %4568 = vdwg.mxu0
        %v4569 = vadd.f32 %v4566, %v4393
        %s4570 = scalar_lea.vmem %s41, 4
        %v4571 = vld [vmem:[%s4570] sm:$0x1]
        %v4573 = vlaneseq
        %v4574 = vshrl.u32 %v4573, 7
        %v4575 = vsub.s32 0, %v4574
        %v4576 = vrot.slane %v4571, %v4575
        %v4578 = vmul.f32 %v4569, %v4576
        %s4579 = scalar_lea.vmem %s43, 4
        %v4580 = vld [vmem:[%s4579] sm:$0x1]
        %v4582 = vlaneseq
        %v4583 = vshrl.u32 %v4582, 7
        %v4584 = vsub.s32 0, %v4583
        %v4585 = vrot.slane %v4580, %v4584
        %v4587 = vadd.f32 %v4578, %v4585
        %s4588 = scalar_lea.vmem %s33, 80
        %v4589 = vld [vmem:[%s4588] sm:$0xff]
        %v4590 = vld [vmem:[%s4588 + $0x8] sm:$0xff]
        %s4591 = scalar_lea.vmem %s35, 5
        %v4592 = vld [vmem:[%s4591] sm:$0x1]
        %v4594 = vlaneseq
        %v4595 = vshrl.u32 %v4594, 7
        %v4596 = vsub.s32 0, %v4595
        %v4597 = vrot.slane %v4592, %v4596
        %v4600 = vsel %vm1262, %v4587, 0
        %4602 = vmatprep.subr.mxu0 0.0
        %4603 = vmatpush1.msra.mxu0 0.0
        %4604 = vmatprep.subr.mxu0 0.0
        %4605 = vmatpush1.msra.mxu0 0.0
        %4606 = vmatprep.subr.mxu0 0.0
        %4607 = vmatpush1.msra.mxu0 0.0
        %4608 = vmatprep.subr.mxu0 0.0
        %4609 = vmatpush1.msra.mxu0 0.0
        %4610 = vmatprep.subr.mxu0 0.0
        %4611 = vmatpush1.msra.mxu0 0.0
        %4612 = vmatprep.subr.mxu0 0.0
        %4613 = vmatpush1.msra.mxu0 0.0
        %4614 = vmatprep.subr.mxu0 0.0
        %4615 = vmatpush1.msra.mxu0 0.0
        %4616 = vmatprep.subr.mxu0 0.0
        %4617 = vmatpush1.msra.mxu0 0.0
        %4618 = vmatprep.subr.mxu0 0.0
        %4619 = vmatpush1.msra.mxu0 0.0
        %4620 = vmatprep.subr.mxu0 0.0
        %4621 = vmatpush1.msra.mxu0 0.0
        %4622 = vmatprep.subr.mxu0 0.0
        %4623 = vmatpush1.msra.mxu0 0.0
        %4624 = vmatprep.subr.mxu0 0.0
        %4625 = vmatpush1.msra.mxu0 0.0
        %4626 = vmatprep.subr.mxu0 0.0
        %4627 = vmatpush1.msra.mxu0 0.0
        %4628 = vmatprep.subr.mxu0 0.0
        %4629 = vmatpush1.msra.mxu0 0.0
        %4630 = vmatprep.subr.mxu0 0.0
        %4631 = vmatpush1.msra.mxu0 %v4590
        %4632 = vmatprep.subr.mxu0 0.0
        %4633 = vmatpush1.msra.mxu0 %v4589
        %4634 = vmatprep.subr.mxu0 0.0
        %4635 = vmatpush2.msra.mxu0 0.0
        %4636 = vmatprep.subr.mxu0 0.0
        %4637 = vmatpush2.msra.mxu0 0.0
        %4638 = vmatprep.subr.mxu0 0.0
        %4639 = vmatpush2.msra.mxu0 0.0
        %4640 = vmatprep.subr.mxu0 0.0
        %4641 = vmatpush2.msra.mxu0 0.0
        %4642 = vmatprep.subr.mxu0 0.0
        %4643 = vmatpush2.msra.mxu0 0.0
        %4644 = vmatprep.subr.mxu0 0.0
        %4645 = vmatpush2.msra.mxu0 0.0
        %4646 = vmatprep.subr.mxu0 0.0
        %4647 = vmatpush2.msra.mxu0 0.0
        %4648 = vmatprep.subr.mxu0 0.0
        %4649 = vmatpush2.msra.mxu0 0.0
        %4650 = vmatprep.subr.mxu0 0.0
        %4651 = vmatpush2.msra.mxu0 0.0
        %4652 = vmatprep.subr.mxu0 0.0
        %4653 = vmatpush2.msra.mxu0 0.0
        %4654 = vmatprep.subr.mxu0 0.0
        %4655 = vmatpush2.msra.mxu0 0.0
        %4656 = vmatprep.subr.mxu0 0.0
        %4657 = vmatpush2.msra.mxu0 0.0
        %4658 = vmatprep.subr.mxu0 0.0
        %4659 = vmatpush2.msra.mxu0 0.0
        %4660 = vmatprep.subr.mxu0 0.0
        %4661 = vmatpush2.msra.mxu0 0.0
        %4662 = vmatprep.subr.mxu0 0.0
        %4663 = vmatpush2.msra.mxu0 0.0
        %4664 = vmatprep.subr.mxu0 0.0
        %4665 = vmatpush2.msra.mxu0 0.0
        %4666 = vmatprep.mubr.f32.mxu0 0.0
        %4667 = vmatmul.mubr.f32.gmra.mxu0 %v4600
        %v4668 = vpop.f32.mrf.mxu0
        %v4669 = vadd.f32 %v4597, %v4668
        %v4670 = vpop.f32.mrf.mxu0
        %4671 = vdwg.mxu0
        %v4672 = vmax.f32 %v4669, 0.0
        %s4673 = scalar_lea.vmem %s37, 320
        %v4674 = vld [vmem:[%s4673] sm:$0xff]
        %v4675 = vld [vmem:[%s4673 + $0x8] sm:$0xff]
        %v4676 = vld [vmem:[%s4673 + $0x10] sm:$0xff]
        %v4677 = vld [vmem:[%s4673 + $0x18] sm:$0xff]
        %v4678 = vld [vmem:[%s4673 + $0x20] sm:$0xff]
        %v4679 = vld [vmem:[%s4673 + $0x28] sm:$0xff]
        %v4680 = vld [vmem:[%s4673 + $0x30] sm:$0xff]
        %v4681 = vld [vmem:[%s4673 + $0x38] sm:$0xff]
        %s4682 = scalar_lea.vmem %s39, 5
        %v4683 = vld [vmem:[%s4682] sm:$0x1]
        %v4685 = vlaneseq
        %v4686 = vshrl.u32 %v4685, 7
        %v4687 = vsub.s32 0, %v4686
        %v4688 = vrot.slane %v4683, %v4687
        %v4691 = vsel %vm2432, %v4672, 0
        %4693 = vmatprep.subr.mxu0 0.0
        %4694 = vmatpush1.msra.mxu0 0.0
        %4695 = vmatprep.subr.mxu0 0.0
        %4696 = vmatpush1.msra.mxu0 0.0
        %4697 = vmatprep.subr.mxu0 0.0
        %4698 = vmatpush1.msra.mxu0 0.0
        %4699 = vmatprep.subr.mxu0 0.0
        %4700 = vmatpush1.msra.mxu0 0.0
        %4701 = vmatprep.subr.mxu0 0.0
        %4702 = vmatpush1.msra.mxu0 0.0
        %4703 = vmatprep.subr.mxu0 0.0
        %4704 = vmatpush1.msra.mxu0 0.0
        %4705 = vmatprep.subr.mxu0 0.0
        %4706 = vmatpush1.msra.mxu0 0.0
        %4707 = vmatprep.subr.mxu0 0.0
        %4708 = vmatpush1.msra.mxu0 0.0
        %4709 = vmatprep.subr.mxu0 0.0
        %4710 = vmatpush1.msra.mxu0 %v4681
        %4711 = vmatprep.subr.mxu0 0.0
        %4712 = vmatpush1.msra.mxu0 %v4680
        %4713 = vmatprep.subr.mxu0 0.0
        %4714 = vmatpush1.msra.mxu0 %v4679
        %4715 = vmatprep.subr.mxu0 0.0
        %4716 = vmatpush1.msra.mxu0 %v4678
        %4717 = vmatprep.subr.mxu0 0.0
        %4718 = vmatpush1.msra.mxu0 %v4677
        %4719 = vmatprep.subr.mxu0 0.0
        %4720 = vmatpush1.msra.mxu0 %v4676
        %4721 = vmatprep.subr.mxu0 0.0
        %4722 = vmatpush1.msra.mxu0 %v4675
        %4723 = vmatprep.subr.mxu0 0.0
        %4724 = vmatpush1.msra.mxu0 %v4674
        %4725 = vmatprep.subr.mxu0 0.0
        %4726 = vmatpush2.msra.mxu0 0.0
        %4727 = vmatprep.subr.mxu0 0.0
        %4728 = vmatpush2.msra.mxu0 0.0
        %4729 = vmatprep.subr.mxu0 0.0
        %4730 = vmatpush2.msra.mxu0 0.0
        %4731 = vmatprep.subr.mxu0 0.0
        %4732 = vmatpush2.msra.mxu0 0.0
        %4733 = vmatprep.subr.mxu0 0.0
        %4734 = vmatpush2.msra.mxu0 0.0
        %4735 = vmatprep.subr.mxu0 0.0
        %4736 = vmatpush2.msra.mxu0 0.0
        %4737 = vmatprep.subr.mxu0 0.0
        %4738 = vmatpush2.msra.mxu0 0.0
        %4739 = vmatprep.subr.mxu0 0.0
        %4740 = vmatpush2.msra.mxu0 0.0
        %4741 = vmatprep.subr.mxu0 0.0
        %4742 = vmatpush2.msra.mxu0 0.0
        %4743 = vmatprep.subr.mxu0 0.0
        %4744 = vmatpush2.msra.mxu0 0.0
        %4745 = vmatprep.subr.mxu0 0.0
        %4746 = vmatpush2.msra.mxu0 0.0
        %4747 = vmatprep.subr.mxu0 0.0
        %4748 = vmatpush2.msra.mxu0 0.0
        %4749 = vmatprep.subr.mxu0 0.0
        %4750 = vmatpush2.msra.mxu0 0.0
        %4751 = vmatprep.subr.mxu0 0.0
        %4752 = vmatpush2.msra.mxu0 0.0
        %4753 = vmatprep.subr.mxu0 0.0
        %4754 = vmatpush2.msra.mxu0 0.0
        %4755 = vmatprep.subr.mxu0 0.0
        %4756 = vmatpush2.msra.mxu0 0.0
        %4757 = vmatprep.mubr.f32.mxu0 0.0
        %4758 = vmatmul.mubr.f32.gmra.mxu0 %v4691
        %v4759 = vpop.f32.mrf.mxu0
        %v4760 = vadd.f32 %v4688, %v4759
        %v4761 = vpop.f32.mrf.mxu0
        %4762 = vdwg.mxu0
        %v4763 = vadd.f32 %v4760, %v4587
        %s4764 = scalar_lea.vmem %s41, 5
        %v4765 = vld [vmem:[%s4764] sm:$0x1]
        %v4767 = vlaneseq
        %v4768 = vshrl.u32 %v4767, 7
        %v4769 = vsub.s32 0, %v4768
        %v4770 = vrot.slane %v4765, %v4769
        %v4772 = vmul.f32 %v4763, %v4770
        %s4773 = scalar_lea.vmem %s43, 5
        %v4774 = vld [vmem:[%s4773] sm:$0x1]
        %v4776 = vlaneseq
        %v4777 = vshrl.u32 %v4776, 7
        %v4778 = vsub.s32 0, %v4777
        %v4779 = vrot.slane %v4774, %v4778
        %v4781 = vadd.f32 %v4772, %v4779
        %s4782 = scalar_lea.vmem %s33, 96
        %v4783 = vld [vmem:[%s4782] sm:$0xff]
        %v4784 = vld [vmem:[%s4782 + $0x8] sm:$0xff]
        %s4785 = scalar_lea.vmem %s35, 6
        %v4786 = vld [vmem:[%s4785] sm:$0x1]
        %v4788 = vlaneseq
        %v4789 = vshrl.u32 %v4788, 7
        %v4790 = vsub.s32 0, %v4789
        %v4791 = vrot.slane %v4786, %v4790
        %v4794 = vsel %vm1262, %v4781, 0
        %4796 = vmatprep.subr.mxu0 0.0
        %4797 = vmatpush1.msra.mxu0 0.0
        %4798 = vmatprep.subr.mxu0 0.0
        %4799 = vmatpush1.msra.mxu0 0.0
        %4800 = vmatprep.subr.mxu0 0.0
        %4801 = vmatpush1.msra.mxu0 0.0
        %4802 = vmatprep.subr.mxu0 0.0
        %4803 = vmatpush1.msra.mxu0 0.0
        %4804 = vmatprep.subr.mxu0 0.0
        %4805 = vmatpush1.msra.mxu0 0.0
        %4806 = vmatprep.subr.mxu0 0.0
        %4807 = vmatpush1.msra.mxu0 0.0
        %4808 = vmatprep.subr.mxu0 0.0
        %4809 = vmatpush1.msra.mxu0 0.0
        %4810 = vmatprep.subr.mxu0 0.0
        %4811 = vmatpush1.msra.mxu0 0.0
        %4812 = vmatprep.subr.mxu0 0.0
        %4813 = vmatpush1.msra.mxu0 0.0
        %4814 = vmatprep.subr.mxu0 0.0
        %4815 = vmatpush1.msra.mxu0 0.0
        %4816 = vmatprep.subr.mxu0 0.0
        %4817 = vmatpush1.msra.mxu0 0.0
        %4818 = vmatprep.subr.mxu0 0.0
        %4819 = vmatpush1.msra.mxu0 0.0
        %4820 = vmatprep.subr.mxu0 0.0
        %4821 = vmatpush1.msra.mxu0 0.0
        %4822 = vmatprep.subr.mxu0 0.0
        %4823 = vmatpush1.msra.mxu0 0.0
        %4824 = vmatprep.subr.mxu0 0.0
        %4825 = vmatpush1.msra.mxu0 %v4784
        %4826 = vmatprep.subr.mxu0 0.0
        %4827 = vmatpush1.msra.mxu0 %v4783
        %4828 = vmatprep.subr.mxu0 0.0
        %4829 = vmatpush2.msra.mxu0 0.0
        %4830 = vmatprep.subr.mxu0 0.0
        %4831 = vmatpush2.msra.mxu0 0.0
        %4832 = vmatprep.subr.mxu0 0.0
        %4833 = vmatpush2.msra.mxu0 0.0
        %4834 = vmatprep.subr.mxu0 0.0
        %4835 = vmatpush2.msra.mxu0 0.0
        %4836 = vmatprep.subr.mxu0 0.0
        %4837 = vmatpush2.msra.mxu0 0.0
        %4838 = vmatprep.subr.mxu0 0.0
        %4839 = vmatpush2.msra.mxu0 0.0
        %4840 = vmatprep.subr.mxu0 0.0
        %4841 = vmatpush2.msra.mxu0 0.0
        %4842 = vmatprep.subr.mxu0 0.0
        %4843 = vmatpush2.msra.mxu0 0.0
        %4844 = vmatprep.subr.mxu0 0.0
        %4845 = vmatpush2.msra.mxu0 0.0
        %4846 = vmatprep.subr.mxu0 0.0
        %4847 = vmatpush2.msra.mxu0 0.0
        %4848 = vmatprep.subr.mxu0 0.0
        %4849 = vmatpush2.msra.mxu0 0.0
        %4850 = vmatprep.subr.mxu0 0.0
        %4851 = vmatpush2.msra.mxu0 0.0
        %4852 = vmatprep.subr.mxu0 0.0
        %4853 = vmatpush2.msra.mxu0 0.0
        %4854 = vmatprep.subr.mxu0 0.0
        %4855 = vmatpush2.msra.mxu0 0.0
        %4856 = vmatprep.subr.mxu0 0.0
        %4857 = vmatpush2.msra.mxu0 0.0
        %4858 = vmatprep.subr.mxu0 0.0
        %4859 = vmatpush2.msra.mxu0 0.0
        %4860 = vmatprep.mubr.f32.mxu0 0.0
        %4861 = vmatmul.mubr.f32.gmra.mxu0 %v4794
        %v4862 = vpop.f32.mrf.mxu0
        %v4863 = vadd.f32 %v4791, %v4862
        %v4864 = vpop.f32.mrf.mxu0
        %4865 = vdwg.mxu0
        %v4866 = vmax.f32 %v4863, 0.0
        %s4867 = scalar_lea.vmem %s37, 384
        %v4868 = vld [vmem:[%s4867] sm:$0xff]
        %v4869 = vld [vmem:[%s4867 + $0x8] sm:$0xff]
        %v4870 = vld [vmem:[%s4867 + $0x10] sm:$0xff]
        %v4871 = vld [vmem:[%s4867 + $0x18] sm:$0xff]
        %v4872 = vld [vmem:[%s4867 + $0x20] sm:$0xff]
        %v4873 = vld [vmem:[%s4867 + $0x28] sm:$0xff]
        %v4874 = vld [vmem:[%s4867 + $0x30] sm:$0xff]
        %v4875 = vld [vmem:[%s4867 + $0x38] sm:$0xff]
        %s4876 = scalar_lea.vmem %s39, 6
        %v4877 = vld [vmem:[%s4876] sm:$0x1]
        %v4879 = vlaneseq
        %v4880 = vshrl.u32 %v4879, 7
        %v4881 = vsub.s32 0, %v4880
        %v4882 = vrot.slane %v4877, %v4881
        %v4885 = vsel %vm2432, %v4866, 0
        %4887 = vmatprep.subr.mxu0 0.0
        %4888 = vmatpush1.msra.mxu0 0.0
        %4889 = vmatprep.subr.mxu0 0.0
        %4890 = vmatpush1.msra.mxu0 0.0
        %4891 = vmatprep.subr.mxu0 0.0
        %4892 = vmatpush1.msra.mxu0 0.0
        %4893 = vmatprep.subr.mxu0 0.0
        %4894 = vmatpush1.msra.mxu0 0.0
        %4895 = vmatprep.subr.mxu0 0.0
        %4896 = vmatpush1.msra.mxu0 0.0
        %4897 = vmatprep.subr.mxu0 0.0
        %4898 = vmatpush1.msra.mxu0 0.0
        %4899 = vmatprep.subr.mxu0 0.0
        %4900 = vmatpush1.msra.mxu0 0.0
        %4901 = vmatprep.subr.mxu0 0.0
        %4902 = vmatpush1.msra.mxu0 0.0
        %4903 = vmatprep.subr.mxu0 0.0
        %4904 = vmatpush1.msra.mxu0 %v4875
        %4905 = vmatprep.subr.mxu0 0.0
        %4906 = vmatpush1.msra.mxu0 %v4874
        %4907 = vmatprep.subr.mxu0 0.0
        %4908 = vmatpush1.msra.mxu0 %v4873
        %4909 = vmatprep.subr.mxu0 0.0
        %4910 = vmatpush1.msra.mxu0 %v4872
        %4911 = vmatprep.subr.mxu0 0.0
        %4912 = vmatpush1.msra.mxu0 %v4871
        %4913 = vmatprep.subr.mxu0 0.0
        %4914 = vmatpush1.msra.mxu0 %v4870
        %4915 = vmatprep.subr.mxu0 0.0
        %4916 = vmatpush1.msra.mxu0 %v4869
        %4917 = vmatprep.subr.mxu0 0.0
        %4918 = vmatpush1.msra.mxu0 %v4868
        %4919 = vmatprep.subr.mxu0 0.0
        %4920 = vmatpush2.msra.mxu0 0.0
        %4921 = vmatprep.subr.mxu0 0.0
        %4922 = vmatpush2.msra.mxu0 0.0
        %4923 = vmatprep.subr.mxu0 0.0
        %4924 = vmatpush2.msra.mxu0 0.0
        %4925 = vmatprep.subr.mxu0 0.0
        %4926 = vmatpush2.msra.mxu0 0.0
        %4927 = vmatprep.subr.mxu0 0.0
        %4928 = vmatpush2.msra.mxu0 0.0
        %4929 = vmatprep.subr.mxu0 0.0
        %4930 = vmatpush2.msra.mxu0 0.0
        %4931 = vmatprep.subr.mxu0 0.0
        %4932 = vmatpush2.msra.mxu0 0.0
        %4933 = vmatprep.subr.mxu0 0.0
        %4934 = vmatpush2.msra.mxu0 0.0
        %4935 = vmatprep.subr.mxu0 0.0
        %4936 = vmatpush2.msra.mxu0 0.0
        %4937 = vmatprep.subr.mxu0 0.0
        %4938 = vmatpush2.msra.mxu0 0.0
        %4939 = vmatprep.subr.mxu0 0.0
        %4940 = vmatpush2.msra.mxu0 0.0
        %4941 = vmatprep.subr.mxu0 0.0
        %4942 = vmatpush2.msra.mxu0 0.0
        %4943 = vmatprep.subr.mxu0 0.0
        %4944 = vmatpush2.msra.mxu0 0.0
        %4945 = vmatprep.subr.mxu0 0.0
        %4946 = vmatpush2.msra.mxu0 0.0
        %4947 = vmatprep.subr.mxu0 0.0
        %4948 = vmatpush2.msra.mxu0 0.0
        %4949 = vmatprep.subr.mxu0 0.0
        %4950 = vmatpush2.msra.mxu0 0.0
        %4951 = vmatprep.mubr.f32.mxu0 0.0
        %4952 = vmatmul.mubr.f32.gmra.mxu0 %v4885
        %v4953 = vpop.f32.mrf.mxu0
        %v4954 = vadd.f32 %v4882, %v4953
        %v4955 = vpop.f32.mrf.mxu0
        %4956 = vdwg.mxu0
        %v4957 = vadd.f32 %v4954, %v4781
        %s4958 = scalar_lea.vmem %s41, 6
        %v4959 = vld [vmem:[%s4958] sm:$0x1]
        %v4961 = vlaneseq
        %v4962 = vshrl.u32 %v4961, 7
        %v4963 = vsub.s32 0, %v4962
        %v4964 = vrot.slane %v4959, %v4963
        %v4966 = vmul.f32 %v4957, %v4964
        %s4967 = scalar_lea.vmem %s43, 6
        %v4968 = vld [vmem:[%s4967] sm:$0x1]
        %v4970 = vlaneseq
        %v4971 = vshrl.u32 %v4970, 7
        %v4972 = vsub.s32 0, %v4971
        %v4973 = vrot.slane %v4968, %v4972
        %v4975 = vadd.f32 %v4966, %v4973
        %s4976 = scalar_lea.vmem %s33, 112
        %v4977 = vld [vmem:[%s4976] sm:$0xff]
        %v4978 = vld [vmem:[%s4976 + $0x8] sm:$0xff]
        %s4979 = scalar_lea.vmem %s35, 7
        %v4980 = vld [vmem:[%s4979] sm:$0x1]
        %v4982 = vlaneseq
        %v4983 = vshrl.u32 %v4982, 7
        %v4984 = vsub.s32 0, %v4983
        %v4985 = vrot.slane %v4980, %v4984
        %v4988 = vsel %vm1262, %v4975, 0
        %4990 = vmatprep.subr.mxu0 0.0
        %4991 = vmatpush1.msra.mxu0 0.0
        %4992 = vmatprep.subr.mxu0 0.0
        %4993 = vmatpush1.msra.mxu0 0.0
        %4994 = vmatprep.subr.mxu0 0.0
        %4995 = vmatpush1.msra.mxu0 0.0
        %4996 = vmatprep.subr.mxu0 0.0
        %4997 = vmatpush1.msra.mxu0 0.0
        %4998 = vmatprep.subr.mxu0 0.0
        %4999 = vmatpush1.msra.mxu0 0.0
        %5000 = vmatprep.subr.mxu0 0.0
        %5001 = vmatpush1.msra.mxu0 0.0
        %5002 = vmatprep.subr.mxu0 0.0
        %5003 = vmatpush1.msra.mxu0 0.0
        %5004 = vmatprep.subr.mxu0 0.0
        %5005 = vmatpush1.msra.mxu0 0.0
        %5006 = vmatprep.subr.mxu0 0.0
        %5007 = vmatpush1.msra.mxu0 0.0
        %5008 = vmatprep.subr.mxu0 0.0
        %5009 = vmatpush1.msra.mxu0 0.0
        %5010 = vmatprep.subr.mxu0 0.0
        %5011 = vmatpush1.msra.mxu0 0.0
        %5012 = vmatprep.subr.mxu0 0.0
        %5013 = vmatpush1.msra.mxu0 0.0
        %5014 = vmatprep.subr.mxu0 0.0
        %5015 = vmatpush1.msra.mxu0 0.0
        %5016 = vmatprep.subr.mxu0 0.0
        %5017 = vmatpush1.msra.mxu0 0.0
        %5018 = vmatprep.subr.mxu0 0.0
        %5019 = vmatpush1.msra.mxu0 %v4978
        %5020 = vmatprep.subr.mxu0 0.0
        %5021 = vmatpush1.msra.mxu0 %v4977
        %5022 = vmatprep.subr.mxu0 0.0
        %5023 = vmatpush2.msra.mxu0 0.0
        %5024 = vmatprep.subr.mxu0 0.0
        %5025 = vmatpush2.msra.mxu0 0.0
        %5026 = vmatprep.subr.mxu0 0.0
        %5027 = vmatpush2.msra.mxu0 0.0
        %5028 = vmatprep.subr.mxu0 0.0
        %5029 = vmatpush2.msra.mxu0 0.0
        %5030 = vmatprep.subr.mxu0 0.0
        %5031 = vmatpush2.msra.mxu0 0.0
        %5032 = vmatprep.subr.mxu0 0.0
        %5033 = vmatpush2.msra.mxu0 0.0
        %5034 = vmatprep.subr.mxu0 0.0
        %5035 = vmatpush2.msra.mxu0 0.0
        %5036 = vmatprep.subr.mxu0 0.0
        %5037 = vmatpush2.msra.mxu0 0.0
        %5038 = vmatprep.subr.mxu0 0.0
        %5039 = vmatpush2.msra.mxu0 0.0
        %5040 = vmatprep.subr.mxu0 0.0
        %5041 = vmatpush2.msra.mxu0 0.0
        %5042 = vmatprep.subr.mxu0 0.0
        %5043 = vmatpush2.msra.mxu0 0.0
        %5044 = vmatprep.subr.mxu0 0.0
        %5045 = vmatpush2.msra.mxu0 0.0
        %5046 = vmatprep.subr.mxu0 0.0
        %5047 = vmatpush2.msra.mxu0 0.0
        %5048 = vmatprep.subr.mxu0 0.0
        %5049 = vmatpush2.msra.mxu0 0.0
        %5050 = vmatprep.subr.mxu0 0.0
        %5051 = vmatpush2.msra.mxu0 0.0
        %5052 = vmatprep.subr.mxu0 0.0
        %5053 = vmatpush2.msra.mxu0 0.0
        %5054 = vmatprep.mubr.f32.mxu0 0.0
        %5055 = vmatmul.mubr.f32.gmra.mxu0 %v4988
        %v5056 = vpop.f32.mrf.mxu0
        %v5057 = vadd.f32 %v4985, %v5056
        %v5058 = vpop.f32.mrf.mxu0
        %5059 = vdwg.mxu0
        %v5060 = vmax.f32 %v5057, 0.0
        %s5061 = scalar_lea.vmem %s37, 448
        %v5062 = vld [vmem:[%s5061] sm:$0xff]
        %v5063 = vld [vmem:[%s5061 + $0x8] sm:$0xff]
        %v5064 = vld [vmem:[%s5061 + $0x10] sm:$0xff]
        %v5065 = vld [vmem:[%s5061 + $0x18] sm:$0xff]
        %v5066 = vld [vmem:[%s5061 + $0x20] sm:$0xff]
        %v5067 = vld [vmem:[%s5061 + $0x28] sm:$0xff]
        %v5068 = vld [vmem:[%s5061 + $0x30] sm:$0xff]
        %v5069 = vld [vmem:[%s5061 + $0x38] sm:$0xff]
        %s5070 = scalar_lea.vmem %s39, 7
        %v5071 = vld [vmem:[%s5070] sm:$0x1]
        %v5073 = vlaneseq
        %v5074 = vshrl.u32 %v5073, 7
        %v5075 = vsub.s32 0, %v5074
        %v5076 = vrot.slane %v5071, %v5075
        %v5079 = vsel %vm2432, %v5060, 0
        %5081 = vmatprep.subr.mxu0 0.0
        %5082 = vmatpush1.msra.mxu0 0.0
        %5083 = vmatprep.subr.mxu0 0.0
        %5084 = vmatpush1.msra.mxu0 0.0
        %5085 = vmatprep.subr.mxu0 0.0
        %5086 = vmatpush1.msra.mxu0 0.0
        %5087 = vmatprep.subr.mxu0 0.0
        %5088 = vmatpush1.msra.mxu0 0.0
        %5089 = vmatprep.subr.mxu0 0.0
        %5090 = vmatpush1.msra.mxu0 0.0
        %5091 = vmatprep.subr.mxu0 0.0
        %5092 = vmatpush1.msra.mxu0 0.0
        %5093 = vmatprep.subr.mxu0 0.0
        %5094 = vmatpush1.msra.mxu0 0.0
        %5095 = vmatprep.subr.mxu0 0.0
        %5096 = vmatpush1.msra.mxu0 0.0
        %5097 = vmatprep.subr.mxu0 0.0
        %5098 = vmatpush1.msra.mxu0 %v5069
        %5099 = vmatprep.subr.mxu0 0.0
        %5100 = vmatpush1.msra.mxu0 %v5068
        %5101 = vmatprep.subr.mxu0 0.0
        %5102 = vmatpush1.msra.mxu0 %v5067
        %5103 = vmatprep.subr.mxu0 0.0
        %5104 = vmatpush1.msra.mxu0 %v5066
        %5105 = vmatprep.subr.mxu0 0.0
        %5106 = vmatpush1.msra.mxu0 %v5065
        %5107 = vmatprep.subr.mxu0 0.0
        %5108 = vmatpush1.msra.mxu0 %v5064
        %5109 = vmatprep.subr.mxu0 0.0
        %5110 = vmatpush1.msra.mxu0 %v5063
        %5111 = vmatprep.subr.mxu0 0.0
        %5112 = vmatpush1.msra.mxu0 %v5062
        %5113 = vmatprep.subr.mxu0 0.0
        %5114 = vmatpush2.msra.mxu0 0.0
        %5115 = vmatprep.subr.mxu0 0.0
        %5116 = vmatpush2.msra.mxu0 0.0
        %5117 = vmatprep.subr.mxu0 0.0
        %5118 = vmatpush2.msra.mxu0 0.0
        %5119 = vmatprep.subr.mxu0 0.0
        %5120 = vmatpush2.msra.mxu0 0.0
        %5121 = vmatprep.subr.mxu0 0.0
        %5122 = vmatpush2.msra.mxu0 0.0
        %5123 = vmatprep.subr.mxu0 0.0
        %5124 = vmatpush2.msra.mxu0 0.0
        %5125 = vmatprep.subr.mxu0 0.0
        %5126 = vmatpush2.msra.mxu0 0.0
        %5127 = vmatprep.subr.mxu0 0.0
        %5128 = vmatpush2.msra.mxu0 0.0
        %5129 = vmatprep.subr.mxu0 0.0
        %5130 = vmatpush2.msra.mxu0 0.0
        %5131 = vmatprep.subr.mxu0 0.0
        %5132 = vmatpush2.msra.mxu0 0.0
        %5133 = vmatprep.subr.mxu0 0.0
        %5134 = vmatpush2.msra.mxu0 0.0
        %5135 = vmatprep.subr.mxu0 0.0
        %5136 = vmatpush2.msra.mxu0 0.0
        %5137 = vmatprep.subr.mxu0 0.0
        %5138 = vmatpush2.msra.mxu0 0.0
        %5139 = vmatprep.subr.mxu0 0.0
        %5140 = vmatpush2.msra.mxu0 0.0
        %5141 = vmatprep.subr.mxu0 0.0
        %5142 = vmatpush2.msra.mxu0 0.0
        %5143 = vmatprep.subr.mxu0 0.0
        %5144 = vmatpush2.msra.mxu0 0.0
        %5145 = vmatprep.mubr.f32.mxu0 0.0
        %5146 = vmatmul.mubr.f32.gmra.mxu0 %v5079
        %v5147 = vpop.f32.mrf.mxu0
        %v5148 = vadd.f32 %v5076, %v5147
        %v5149 = vpop.f32.mrf.mxu0
        %5150 = vdwg.mxu0
        %v5151 = vadd.f32 %v5148, %v4975
        %s5152 = scalar_lea.vmem %s41, 7
        %v5153 = vld [vmem:[%s5152] sm:$0x1]
        %v5155 = vlaneseq
        %v5156 = vshrl.u32 %v5155, 7
        %v5157 = vsub.s32 0, %v5156
        %v5158 = vrot.slane %v5153, %v5157
        %v5160 = vmul.f32 %v5151, %v5158
        %s5161 = scalar_lea.vmem %s43, 7
        %v5162 = vld [vmem:[%s5161] sm:$0x1]
        %v5164 = vlaneseq
        %v5165 = vshrl.u32 %v5164, 7
        %v5166 = vsub.s32 0, %v5165
        %v5167 = vrot.slane %v5162, %v5166
        %v5169 = vadd.f32 %v5160, %v5167
        %s5170 = scalar_lea.vmem %s45, 16
        %v5171 = vld [vmem:[%s5170] sm:$0xff]
        %v5172 = vld [vmem:[%s5170 + $0x8] sm:$0xff]
        %s5173 = scalar_lea.vmem %s47, 1
        %v5174 = vld [vmem:[%s5173] sm:$0x1]
        %v5176 = vlaneseq
        %v5177 = vshrl.u32 %v5176, 7
        %v5178 = vsub.s32 0, %v5177
        %v5179 = vrot.slane %v5174, %v5178
        %v5182 = vsel %vm1262, %v5169, 0
        %5184 = vmatprep.subr.mxu0 0.0
        %5185 = vmatpush1.msra.mxu0 0.0
        %5186 = vmatprep.subr.mxu0 0.0
        %5187 = vmatpush1.msra.mxu0 0.0
        %5188 = vmatprep.subr.mxu0 0.0
        %5189 = vmatpush1.msra.mxu0 0.0
        %5190 = vmatprep.subr.mxu0 0.0
        %5191 = vmatpush1.msra.mxu0 0.0
        %5192 = vmatprep.subr.mxu0 0.0
        %5193 = vmatpush1.msra.mxu0 0.0
        %5194 = vmatprep.subr.mxu0 0.0
        %5195 = vmatpush1.msra.mxu0 0.0
        %5196 = vmatprep.subr.mxu0 0.0
        %5197 = vmatpush1.msra.mxu0 0.0
        %5198 = vmatprep.subr.mxu0 0.0
        %5199 = vmatpush1.msra.mxu0 0.0
        %5200 = vmatprep.subr.mxu0 0.0
        %5201 = vmatpush1.msra.mxu0 0.0
        %5202 = vmatprep.subr.mxu0 0.0
        %5203 = vmatpush1.msra.mxu0 0.0
        %5204 = vmatprep.subr.mxu0 0.0
        %5205 = vmatpush1.msra.mxu0 0.0
        %5206 = vmatprep.subr.mxu0 0.0
        %5207 = vmatpush1.msra.mxu0 0.0
        %5208 = vmatprep.subr.mxu0 0.0
        %5209 = vmatpush1.msra.mxu0 0.0
        %5210 = vmatprep.subr.mxu0 0.0
        %5211 = vmatpush1.msra.mxu0 0.0
        %5212 = vmatprep.subr.mxu0 0.0
        %5213 = vmatpush1.msra.mxu0 %v5172
        %5214 = vmatprep.subr.mxu0 0.0
        %5215 = vmatpush1.msra.mxu0 %v5171
        %5216 = vmatprep.subr.mxu0 0.0
        %5217 = vmatpush2.msra.mxu0 0.0
        %5218 = vmatprep.subr.mxu0 0.0
        %5219 = vmatpush2.msra.mxu0 0.0
        %5220 = vmatprep.subr.mxu0 0.0
        %5221 = vmatpush2.msra.mxu0 0.0
        %5222 = vmatprep.subr.mxu0 0.0
        %5223 = vmatpush2.msra.mxu0 0.0
        %5224 = vmatprep.subr.mxu0 0.0
        %5225 = vmatpush2.msra.mxu0 0.0
        %5226 = vmatprep.subr.mxu0 0.0
        %5227 = vmatpush2.msra.mxu0 0.0
        %5228 = vmatprep.subr.mxu0 0.0
        %5229 = vmatpush2.msra.mxu0 0.0
        %5230 = vmatprep.subr.mxu0 0.0
        %5231 = vmatpush2.msra.mxu0 0.0
        %5232 = vmatprep.subr.mxu0 0.0
        %5233 = vmatpush2.msra.mxu0 0.0
        %5234 = vmatprep.subr.mxu0 0.0
        %5235 = vmatpush2.msra.mxu0 0.0
        %5236 = vmatprep.subr.mxu0 0.0
        %5237 = vmatpush2.msra.mxu0 0.0
        %5238 = vmatprep.subr.mxu0 0.0
        %5239 = vmatpush2.msra.mxu0 0.0
        %5240 = vmatprep.subr.mxu0 0.0
        %5241 = vmatpush2.msra.mxu0 0.0
        %5242 = vmatprep.subr.mxu0 0.0
        %5243 = vmatpush2.msra.mxu0 0.0
        %5244 = vmatprep.subr.mxu0 0.0
        %5245 = vmatpush2.msra.mxu0 0.0
        %5246 = vmatprep.subr.mxu0 0.0
        %5247 = vmatpush2.msra.mxu0 0.0
        %5248 = vmatprep.mubr.f32.mxu0 0.0
        %5249 = vmatmul.mubr.f32.gmra.mxu0 %v5182
        %v5250 = vpop.f32.mrf.mxu0
        %v5251 = vadd.f32 %v5179, %v5250
        %v5252 = vpop.f32.mrf.mxu0
        %5253 = vdwg.mxu0
        %v5254 = vadd.f32 %v5251, %v3203
        %s5255 = scalar_lea.vmem %s49, 1
        %v5256 = vld [vmem:[%s5255] sm:$0x1]
        %v5258 = vlaneseq
        %v5259 = vshrl.u32 %v5258, 7
        %v5260 = vsub.s32 0, %v5259
        %v5261 = vrot.slane %v5256, %v5260
        %v5263 = vmul.f32 %v5254, %v5261
        %s5264 = scalar_lea.vmem %s51, 1
        %v5265 = vld [vmem:[%s5264] sm:$0x1]
        %v5267 = vlaneseq
        %v5268 = vshrl.u32 %v5267, 7
        %v5269 = vsub.s32 0, %v5268
        %v5270 = vrot.slane %v5265, %v5269
        %v5272 = vadd.f32 %v5263, %v5270
        %v5273 = vld [vmem:[%s53] sm:$0xff]
        %v5274 = vld [vmem:[%s53 + $0x8] sm:$0xff]
        %v5275 = vld [vmem:[%s53 + $0x10] sm:$0xff]
        %v5276 = vld [vmem:[%s53 + $0x18] sm:$0xff]
        %v5277 = vld [vmem:[%s55] sm:$0x1]
        %v5279 = vsel %vm1160, %v5272, 0
        %5281 = vmatprep.subr.mxu0 0.0
        %5282 = vmatpush1.msra.mxu0 0.0
        %5283 = vmatprep.subr.mxu0 0.0
        %5284 = vmatpush1.msra.mxu0 0.0
        %5285 = vmatprep.subr.mxu0 0.0
        %5286 = vmatpush1.msra.mxu0 0.0
        %5287 = vmatprep.subr.mxu0 0.0
        %5288 = vmatpush1.msra.mxu0 0.0
        %5289 = vmatprep.subr.mxu0 0.0
        %5290 = vmatpush1.msra.mxu0 0.0
        %5291 = vmatprep.subr.mxu0 0.0
        %5292 = vmatpush1.msra.mxu0 0.0
        %5293 = vmatprep.subr.mxu0 0.0
        %5294 = vmatpush1.msra.mxu0 0.0
        %5295 = vmatprep.subr.mxu0 0.0
        %5296 = vmatpush1.msra.mxu0 0.0
        %5297 = vmatprep.subr.mxu0 0.0
        %5298 = vmatpush1.msra.mxu0 0.0
        %5299 = vmatprep.subr.mxu0 0.0
        %5300 = vmatpush1.msra.mxu0 0.0
        %5301 = vmatprep.subr.mxu0 0.0
        %5302 = vmatpush1.msra.mxu0 0.0
        %5303 = vmatprep.subr.mxu0 0.0
        %5304 = vmatpush1.msra.mxu0 0.0
        %5305 = vmatprep.subr.mxu0 0.0
        %5306 = vmatpush1.msra.mxu0 %v5276
        %5307 = vmatprep.subr.mxu0 0.0
        %5308 = vmatpush1.msra.mxu0 %v5275
        %5309 = vmatprep.subr.mxu0 0.0
        %5310 = vmatpush1.msra.mxu0 %v5274
        %5311 = vmatprep.subr.mxu0 0.0
        %5312 = vmatpush1.msra.mxu0 %v5273
        %5313 = vmatprep.subr.mxu0 0.0
        %5314 = vmatpush2.msra.mxu0 0.0
        %5315 = vmatprep.subr.mxu0 0.0
        %5316 = vmatpush2.msra.mxu0 0.0
        %5317 = vmatprep.subr.mxu0 0.0
        %5318 = vmatpush2.msra.mxu0 0.0
        %5319 = vmatprep.subr.mxu0 0.0
        %5320 = vmatpush2.msra.mxu0 0.0
        %5321 = vmatprep.subr.mxu0 0.0
        %5322 = vmatpush2.msra.mxu0 0.0
        %5323 = vmatprep.subr.mxu0 0.0
        %5324 = vmatpush2.msra.mxu0 0.0
        %5325 = vmatprep.subr.mxu0 0.0
        %5326 = vmatpush2.msra.mxu0 0.0
        %5327 = vmatprep.subr.mxu0 0.0
        %5328 = vmatpush2.msra.mxu0 0.0
        %5329 = vmatprep.subr.mxu0 0.0
        %5330 = vmatpush2.msra.mxu0 0.0
        %5331 = vmatprep.subr.mxu0 0.0
        %5332 = vmatpush2.msra.mxu0 0.0
        %5333 = vmatprep.subr.mxu0 0.0
        %5334 = vmatpush2.msra.mxu0 0.0
        %5335 = vmatprep.subr.mxu0 0.0
        %5336 = vmatpush2.msra.mxu0 0.0
        %5337 = vmatprep.subr.mxu0 0.0
        %5338 = vmatpush2.msra.mxu0 0.0
        %5339 = vmatprep.subr.mxu0 0.0
        %5340 = vmatpush2.msra.mxu0 0.0
        %5341 = vmatprep.subr.mxu0 0.0
        %5342 = vmatpush2.msra.mxu0 0.0
        %5343 = vmatprep.subr.mxu0 0.0
        %5344 = vmatpush2.msra.mxu0 0.0
        %5345 = vmatprep.mubr.f32.mxu0 0.0
        %5346 = vmatmul.mubr.f32.gmra.mxu0 %v5279
        %v5347 = vpop.f32.mrf.mxu0
        %v5348 = vadd.f32 %v5277, %v5347
        %v5349 = vpop.f32.mrf.mxu0
        %5350 = vdwg.mxu0
        %v5351 = vtanh.pop %v5348
        %v5352 = vld [vmem:[%s57] sm:$0xff]
        %v5353 = vld [vmem:[%s57 + $0x8] sm:$0xff]
        %v5354 = vld [vmem:[%s57 + $0x10] sm:$0xff]
        %v5355 = vld [vmem:[%s57 + $0x18] sm:$0xff]
        %v5356 = vld [vmem:[%s59] sm:$0x1]
        %v5358 = vsel %vm1160, %v5351, 0
        %5360 = vmatprep.subr.mxu0 0.0
        %5361 = vmatpush1.msra.mxu0 0.0
        %5362 = vmatprep.subr.mxu0 0.0
        %5363 = vmatpush1.msra.mxu0 0.0
        %5364 = vmatprep.subr.mxu0 0.0
        %5365 = vmatpush1.msra.mxu0 0.0
        %5366 = vmatprep.subr.mxu0 0.0
        %5367 = vmatpush1.msra.mxu0 0.0
        %5368 = vmatprep.subr.mxu0 0.0
        %5369 = vmatpush1.msra.mxu0 0.0
        %5370 = vmatprep.subr.mxu0 0.0
        %5371 = vmatpush1.msra.mxu0 0.0
        %5372 = vmatprep.subr.mxu0 0.0
        %5373 = vmatpush1.msra.mxu0 0.0
        %5374 = vmatprep.subr.mxu0 0.0
        %5375 = vmatpush1.msra.mxu0 0.0
        %5376 = vmatprep.subr.mxu0 0.0
        %5377 = vmatpush1.msra.mxu0 0.0
        %5378 = vmatprep.subr.mxu0 0.0
        %5379 = vmatpush1.msra.mxu0 0.0
        %5380 = vmatprep.subr.mxu0 0.0
        %5381 = vmatpush1.msra.mxu0 0.0
        %5382 = vmatprep.subr.mxu0 0.0
        %5383 = vmatpush1.msra.mxu0 0.0
        %5384 = vmatprep.subr.mxu0 0.0
        %5385 = vmatpush1.msra.mxu0 %v5355
        %5386 = vmatprep.subr.mxu0 0.0
        %5387 = vmatpush1.msra.mxu0 %v5354
        %5388 = vmatprep.subr.mxu0 0.0
        %5389 = vmatpush1.msra.mxu0 %v5353
        %5390 = vmatprep.subr.mxu0 0.0
        %5391 = vmatpush1.msra.mxu0 %v5352
        %5392 = vmatprep.subr.mxu0 0.0
        %5393 = vmatpush2.msra.mxu0 0.0
        %5394 = vmatprep.subr.mxu0 0.0
        %5395 = vmatpush2.msra.mxu0 0.0
        %5396 = vmatprep.subr.mxu0 0.0
        %5397 = vmatpush2.msra.mxu0 0.0
        %5398 = vmatprep.subr.mxu0 0.0
        %5399 = vmatpush2.msra.mxu0 0.0
        %5400 = vmatprep.subr.mxu0 0.0
        %5401 = vmatpush2.msra.mxu0 0.0
        %5402 = vmatprep.subr.mxu0 0.0
        %5403 = vmatpush2.msra.mxu0 0.0
        %5404 = vmatprep.subr.mxu0 0.0
        %5405 = vmatpush2.msra.mxu0 0.0
        %5406 = vmatprep.subr.mxu0 0.0
        %5407 = vmatpush2.msra.mxu0 0.0
        %5408 = vmatprep.subr.mxu0 0.0
        %5409 = vmatpush2.msra.mxu0 0.0
        %5410 = vmatprep.subr.mxu0 0.0
        %5411 = vmatpush2.msra.mxu0 0.0
        %5412 = vmatprep.subr.mxu0 0.0
        %5413 = vmatpush2.msra.mxu0 0.0
        %5414 = vmatprep.subr.mxu0 0.0
        %5415 = vmatpush2.msra.mxu0 0.0
        %5416 = vmatprep.subr.mxu0 0.0
        %5417 = vmatpush2.msra.mxu0 0.0
        %5418 = vmatprep.subr.mxu0 0.0
        %5419 = vmatpush2.msra.mxu0 0.0
        %5420 = vmatprep.subr.mxu0 0.0
        %5421 = vmatpush2.msra.mxu0 0.0
        %5422 = vmatprep.subr.mxu0 0.0
        %5423 = vmatpush2.msra.mxu0 0.0
        %5424 = vmatprep.mubr.f32.mxu0 0.0
        %5425 = vmatmul.mubr.f32.gmra.mxu0 %v5358
        %v5426 = vpop.f32.mrf.mxu0
        %v5427 = vadd.f32 %v5356, %v5426
        %v5428 = vpop.f32.mrf.mxu0
        %5429 = vdwg.mxu0
        %v5430 = vmax.f32 %v5427, 0.0
        %v5431 = vld [vmem:[%s61] sm:$0xff]
        %v5432 = vld [vmem:[%s61 + $0x8] sm:$0xff]
        %v5433 = vld [vmem:[%s61 + $0x10] sm:$0xff]
        %v5434 = vld [vmem:[%s61 + $0x18] sm:$0xff]
        %v5435 = vld [vmem:[%s63] sm:$0x1]
        %v5437 = vsel %vm1160, %v5430, 0
        %5439 = vmatprep.subr.mxu0 0.0
        %5440 = vmatpush1.msra.mxu0 0.0
        %5441 = vmatprep.subr.mxu0 0.0
        %5442 = vmatpush1.msra.mxu0 0.0
        %5443 = vmatprep.subr.mxu0 0.0
        %5444 = vmatpush1.msra.mxu0 0.0
        %5445 = vmatprep.subr.mxu0 0.0
        %5446 = vmatpush1.msra.mxu0 0.0
        %5447 = vmatprep.subr.mxu0 0.0
        %5448 = vmatpush1.msra.mxu0 0.0
        %5449 = vmatprep.subr.mxu0 0.0
        %5450 = vmatpush1.msra.mxu0 0.0
        %5451 = vmatprep.subr.mxu0 0.0
        %5452 = vmatpush1.msra.mxu0 0.0
        %5453 = vmatprep.subr.mxu0 0.0
        %5454 = vmatpush1.msra.mxu0 0.0
        %5455 = vmatprep.subr.mxu0 0.0
        %5456 = vmatpush1.msra.mxu0 0.0
        %5457 = vmatprep.subr.mxu0 0.0
        %5458 = vmatpush1.msra.mxu0 0.0
        %5459 = vmatprep.subr.mxu0 0.0
        %5460 = vmatpush1.msra.mxu0 0.0
        %5461 = vmatprep.subr.mxu0 0.0
        %5462 = vmatpush1.msra.mxu0 0.0
        %5463 = vmatprep.subr.mxu0 0.0
        %5464 = vmatpush1.msra.mxu0 %v5434
        %5465 = vmatprep.subr.mxu0 0.0
        %5466 = vmatpush1.msra.mxu0 %v5433
        %5467 = vmatprep.subr.mxu0 0.0
        %5468 = vmatpush1.msra.mxu0 %v5432
        %5469 = vmatprep.subr.mxu0 0.0
        %5470 = vmatpush1.msra.mxu0 %v5431
        %5471 = vmatprep.subr.mxu0 0.0
        %5472 = vmatpush2.msra.mxu0 0.0
        %5473 = vmatprep.subr.mxu0 0.0
        %5474 = vmatpush2.msra.mxu0 0.0
        %5475 = vmatprep.subr.mxu0 0.0
        %5476 = vmatpush2.msra.mxu0 0.0
        %5477 = vmatprep.subr.mxu0 0.0
        %5478 = vmatpush2.msra.mxu0 0.0
        %5479 = vmatprep.subr.mxu0 0.0
        %5480 = vmatpush2.msra.mxu0 0.0
        %5481 = vmatprep.subr.mxu0 0.0
        %5482 = vmatpush2.msra.mxu0 0.0
        %5483 = vmatprep.subr.mxu0 0.0
        %5484 = vmatpush2.msra.mxu0 0.0
        %5485 = vmatprep.subr.mxu0 0.0
        %5486 = vmatpush2.msra.mxu0 0.0
        %5487 = vmatprep.subr.mxu0 0.0
        %5488 = vmatpush2.msra.mxu0 0.0
        %5489 = vmatprep.subr.mxu0 0.0
        %5490 = vmatpush2.msra.mxu0 0.0
        %5491 = vmatprep.subr.mxu0 0.0
        %5492 = vmatpush2.msra.mxu0 0.0
        %5493 = vmatprep.subr.mxu0 0.0
        %5494 = vmatpush2.msra.mxu0 0.0
        %5495 = vmatprep.subr.mxu0 0.0
        %5496 = vmatpush2.msra.mxu0 0.0
        %5497 = vmatprep.subr.mxu0 0.0
        %5498 = vmatpush2.msra.mxu0 0.0
        %5499 = vmatprep.subr.mxu0 0.0
        %5500 = vmatpush2.msra.mxu0 0.0
        %5501 = vmatprep.subr.mxu0 0.0
        %5502 = vmatpush2.msra.mxu0 0.0
        %5503 = vmatprep.mubr.f32.mxu0 0.0
        %5504 = vmatmul.mubr.f32.gmra.mxu0 %v5437
        %v5505 = vpop.f32.mrf.mxu0
        %v5506 = vadd.f32 %v5435, %v5505
        %v5507 = vpop.f32.mrf.mxu0
        %5508 = vdwg.mxu0
        %v5509 = vmax.f32 %v5506, 0.0
        %v5510 = vld [vmem:[%s65] sm:$0xff]
        %v5511 = vld [vmem:[%s65 + $0x8] sm:$0xff]
        %v5512 = vld [vmem:[%s65 + $0x10] sm:$0xff]
        %v5513 = vld [vmem:[%s65 + $0x18] sm:$0xff]
        %v5514 = vld [vmem:[%s67] sm:$0x1]
        %v5516 = vsel %vm1160, %v5509, 0
        %5518 = vmatprep.subr.mxu0 0.0
        %5519 = vmatpush1.msra.mxu0 0.0
        %5520 = vmatprep.subr.mxu0 0.0
        %5521 = vmatpush1.msra.mxu0 0.0
        %5522 = vmatprep.subr.mxu0 0.0
        %5523 = vmatpush1.msra.mxu0 0.0
        %5524 = vmatprep.subr.mxu0 0.0
        %5525 = vmatpush1.msra.mxu0 0.0
        %5526 = vmatprep.subr.mxu0 0.0
        %5527 = vmatpush1.msra.mxu0 0.0
        %5528 = vmatprep.subr.mxu0 0.0
        %5529 = vmatpush1.msra.mxu0 0.0
        %5530 = vmatprep.subr.mxu0 0.0
        %5531 = vmatpush1.msra.mxu0 0.0
        %5532 = vmatprep.subr.mxu0 0.0
        %5533 = vmatpush1.msra.mxu0 0.0
        %5534 = vmatprep.subr.mxu0 0.0
        %5535 = vmatpush1.msra.mxu0 0.0
        %5536 = vmatprep.subr.mxu0 0.0
        %5537 = vmatpush1.msra.mxu0 0.0
        %5538 = vmatprep.subr.mxu0 0.0
        %5539 = vmatpush1.msra.mxu0 0.0
        %5540 = vmatprep.subr.mxu0 0.0
        %5541 = vmatpush1.msra.mxu0 0.0
        %5542 = vmatprep.subr.mxu0 0.0
        %5543 = vmatpush1.msra.mxu0 %v5513
        %5544 = vmatprep.subr.mxu0 0.0
        %5545 = vmatpush1.msra.mxu0 %v5512
        %5546 = vmatprep.subr.mxu0 0.0
        %5547 = vmatpush1.msra.mxu0 %v5511
        %5548 = vmatprep.subr.mxu0 0.0
        %5549 = vmatpush1.msra.mxu0 %v5510
        %5550 = vmatprep.subr.mxu0 0.0
        %5551 = vmatpush2.msra.mxu0 0.0
        %5552 = vmatprep.subr.mxu0 0.0
        %5553 = vmatpush2.msra.mxu0 0.0
        %5554 = vmatprep.subr.mxu0 0.0
        %5555 = vmatpush2.msra.mxu0 0.0
        %5556 = vmatprep.subr.mxu0 0.0
        %5557 = vmatpush2.msra.mxu0 0.0
        %5558 = vmatprep.subr.mxu0 0.0
        %5559 = vmatpush2.msra.mxu0 0.0
        %5560 = vmatprep.subr.mxu0 0.0
        %5561 = vmatpush2.msra.mxu0 0.0
        %5562 = vmatprep.subr.mxu0 0.0
        %5563 = vmatpush2.msra.mxu0 0.0
        %5564 = vmatprep.subr.mxu0 0.0
        %5565 = vmatpush2.msra.mxu0 0.0
        %5566 = vmatprep.subr.mxu0 0.0
        %5567 = vmatpush2.msra.mxu0 0.0
        %5568 = vmatprep.subr.mxu0 0.0
        %5569 = vmatpush2.msra.mxu0 0.0
        %5570 = vmatprep.subr.mxu0 0.0
        %5571 = vmatpush2.msra.mxu0 0.0
        %5572 = vmatprep.subr.mxu0 0.0
        %5573 = vmatpush2.msra.mxu0 0.0
        %5574 = vmatprep.subr.mxu0 0.0
        %5575 = vmatpush2.msra.mxu0 0.0
        %5576 = vmatprep.subr.mxu0 0.0
        %5577 = vmatpush2.msra.mxu0 0.0
        %5578 = vmatprep.subr.mxu0 0.0
        %5579 = vmatpush2.msra.mxu0 0.0
        %5580 = vmatprep.subr.mxu0 0.0
        %5581 = vmatpush2.msra.mxu0 0.0
        %5582 = vmatprep.mubr.f32.mxu0 0.0
        %5583 = vmatmul.mubr.f32.gmra.mxu0 %v5516
        %v5584 = vpop.f32.mrf.mxu0
        %v5585 = vadd.f32 %v5514, %v5584
        %v5586 = vpop.f32.mrf.mxu0
        %5587 = vdwg.mxu0
        %vm5588 = vcmask 32768
        %5589 = vst.msk [vmem:[%s1032] sm:$0x1] %vm5588, %v5585
        %s5590 = sand.u32 %s810, 1
        %s5591 = scalar_lea.sflag [#allocation3], %s5590
        %s5592 = sand.u32 %s810, 1
        %s5593 = scalar_lea.vmem [#allocation2], %s5592
        // Predicated region
        $region157: #{_lambda_.1} parent=155 // pred_check
          %p5594 = pneg %p820
        $region158: #{_lambda_.1} parent=155 // pred_check_branch
          %5596 = sbr.rel (%p5594) target = $region160
        $region159: #{_lambda_.1} parent=155 // pred_region
          %s5598 = ssub.s32 16, 16
          %5599 = vsyncadd %s5591, %s5598
          %s5600 = smul.addr %s83, 16
          %s5601 = scalar_lea.hbm %s69, %s5600
          %s5603 = sshll.u32 %s5593, 4
          %s5604 = int_to_ptr.vmem [resolvable:$true] %s5603
          %5606 = dma.vmem_to_hbm [thread:$0]  %s5604, 16, %s5601, %s5591
        $region160: #{_lambda_.1} parent=155 // pred_fallthru
          _
      $region156: #{_lambda_.1} parent=5 // pred_fallthru
        _
      %p5607 = scmp.le.s32.totalorder 2, %s78
      // Predicated region
      $region161: #{_lambda_.1} parent=5 // pred_check
        %p5608 = pneg %p5607
      $region162: #{_lambda_.1} parent=5 // pred_check_branch
        %5610 = sbr.rel (%p5608) target = $region164
      $region163: #{_lambda_.1} parent=5 // pred_region
        %s5611 = ssub.s32 %s78, 2
        // Predicated region
        $region165: #{_lambda_.1} parent=163 // pred_check
          %p5612 = pneg %p826
        $region166: #{_lambda_.1} parent=163 // pred_check_branch
          %5614 = sbr.rel (%p5612) target = $region168
        $region167: #{_lambda_.1} parent=163 // pred_region
          %s5615 = sand.u32 %s811, 1
          %s5616 = scalar_lea.sflag [#allocation3], %s5615
          %s5617 = sand.u32 %s811, 1
          %s5618 = scalar_lea.vmem [#allocation2], %s5617
          %5619 = dma.done %s5616, 16
        $region168: #{_lambda_.1} parent=163 // pred_fallthru
          _
      $region164: #{_lambda_.1} parent=5 // pred_fallthru
        _
    $region6: #{_lambda_.1} parent=1 // loop_footer
      %s82 = sadd.s32 1, %s78
    $region7: #{_lambda_.1} parent=1 // loop_footer_branch
      %77 = sbr.rel target = $region3
    $region8: #{_lambda_.1} parent=1 // loop_exit
      _
    %5620 = vsyncpa [#allocation3], 1
    %s5621 = scalar_lea.sflag [#allocation3], 1
    %5622 = vsyncpa %s5621, 1

</llo_original>
